<compile_context>
chip_gen: v7x
topology: tpu7x:2x2x1
jax: 0.10.0
libtpu: 0.0.40
codegen_flags: <defaults>
</compile_context>

<pallas_src>
import math
import functools

import jax
import jax.numpy as jnp
from jax.experimental import pallas as pl
from jax.experimental.pallas import tpu as pltpu


def _gelu(x):
    # TODO(synk): PyTorch nn.GELU() uses the exact erf form; the tanh approximation
    # is used here (max abs deviation ~1e-3).
    c = math.sqrt(2.0 / math.pi)
    return 0.5 * x * (1.0 + jnp.tanh(c * (x + 0.044715 * x * x * x)))


def _layernorm(x, gamma, beta, eps=1e-5):
    mu = jnp.mean(x, axis=-1, keepdims=True)
    xc = x - mu
    var = jnp.mean(xc * xc, axis=-1, keepdims=True)
    return xc * jax.lax.rsqrt(var + eps) * gamma + beta


def afford_decoder_kernel(
    pts_ref,                       # (TB*S, 3)   zero-padded points (row 0 of each seq = CLS slot)
    add_ref,                       # (TB*S, D)   pos-enc (+cls on row 0, +emb bias elsewhere), tiled
    w_emb_ref,                     # (3, D)
    mask_ref,                      # (TB*S, TB*S) block-diagonal additive bias (0 / -1e30), host-built
    small_ref,                     # (NL, 8, D)  rows: ln1_w, ln1_b, ln2_w, ln2_b, b_o, b_f2, 0, 0
    bf1_ref,                       # (NL, 1, M)
    wqkv_ref,                      # (NL, D, 3*H*HD)   q columns pre-scaled by head_dim**-0.5
    wo_ref,                        # (NL, H*HD, D)
    wf1_ref,                       # (NL, D, M)
    wf2_ref,                       # (NL, M, D)
    sel_ref,                       # (TB, TB*S)  CLS-row selector (host-built)
    out_ref,                       # (TB, D)     CLS token per batch element
    x_ref,                         # scratch (TB*S, D)       running activations
    qkv_ref,                       # scratch (TB*S, 3*H*HD)  staged QKV
    heads_ref,                     # scratch (TB*S, H*HD)    concatenated head outputs
    *, num_layers, num_heads, head_dim,
):
    hhd = num_heads * head_dim

    # --- point embedding on the VPU (3 broadcast FMAs) + fused cls/pos/bias table ---
    pts = pts_ref[...]                                     # (TBS, 3)
    w_emb = w_emb_ref[...]                                 # (3, D)
    x_ref[...] = (pts[:, 0:1] * w_emb[0:1, :]
                  + pts[:, 1:2] * w_emb[1:2, :]
                  + pts[:, 2:3] * w_emb[2:3, :]
                  + add_ref[...])                          # (TBS, D)

    for l in range(num_layers):
        sp = small_ref[l]                                  # (8, D) packed LN / bias rows

        # ---- self-attention block (pre-norm, residual) ----
        xn = _layernorm(x_ref[...], sp[0:1, :], sp[1:2, :])
        qkv_ref[...] = jnp.dot(xn, wqkv_ref[l],
                               preferred_element_type=jnp.float32)          # (TBS, 3*hhd)

        for h in range(num_heads):
            q = qkv_ref[:, h * head_dim:(h + 1) * head_dim]
            k = qkv_ref[:, hhd + h * head_dim: hhd + (h + 1) * head_dim]
            v = qkv_ref[:, 2 * hhd + h * head_dim: 2 * hhd + (h + 1) * head_dim]
            # scores: contract last axes (no explicit transpose); scale pre-folded in w_qkv
            att = jax.lax.dot_general(q, k, (((1,), (1,)), ((), ())),
                                      preferred_element_type=jnp.float32)   # (TBS, TBS)
            # block-diagonal mask streamed from VMEM; no row-max subtraction needed
            p = jnp.exp(att + mask_ref[...])
            rsum = jnp.sum(p, axis=-1, keepdims=True)                       # (TBS, 1)
            ho = jnp.dot(p, v, preferred_element_type=jnp.float32)          # (TBS, HD)
            # deferred softmax normalization on the narrow (TBS, HD) result
            heads_ref[:, h * head_dim:(h + 1) * head_dim] = (
                ho * pl.reciprocal(rsum, approx=True))

        attn_out = jnp.dot(heads_ref[...], wo_ref[l],
                           preferred_element_type=jnp.float32)              # (TBS, D)
        x_ref[...] = x_ref[...] + attn_out + sp[4:5, :]

        # ---- feed-forward block (pre-norm, residual) ----
        xn2 = _layernorm(x_ref[...], sp[2:3, :], sp[3:4, :])
        h1 = _gelu(jnp.dot(xn2, wf1_ref[l],
                           preferred_element_type=jnp.float32) + bf1_ref[l])
        x_ref[...] = (x_ref[...]
                      + jnp.dot(h1, wf2_ref[l], preferred_element_type=jnp.float32)
                      + sp[5:6, :])

    # --- CLS extraction: rows 0, S, 2S, ... via a host-built selector matmul ---
    out_ref[...] = jnp.dot(sel_ref[...], x_ref[...],
                           preferred_element_type=jnp.float32)              # (TB, D)


def afford_transformer_decoder(points, params, *, num_layers, num_heads, head_dim,
                               batch_tile=None):
    B, L, _ = points.shape
    D = params["w_emb"].shape[1]
    M = params["w_f1"].shape[2]
    S = L + 1
    hhd = num_heads * head_dim

    if batch_tile is None:
        batch_tile = max(1, min(B, max(1, 128 // S)))       # aim for TB*S = 128 rows
        while B % batch_tile:
            batch_tile -= 1
    TB = batch_tile
    assert B % TB == 0, "batch must be divisible by batch_tile"
    TBS = TB * S
    assert TBS % 8 == 0, "batch_tile * seq_len must be a multiple of 8 (sublane tiling)"

    # --- host-side parameter prep (one-time, tiny) ---
    # zero-pad a fake point at position 0 of every sequence -> its embedding is exactly 0
    pts_pad = jnp.concatenate(
        [jnp.zeros((B, 1, 3), points.dtype), points], axis=1).reshape(B * S, 3)

    # per-token additive table: row 0 gets cls + pos[0]; rows >=1 get pos[s] + emb bias
    add = params["pos"]
    add = add.at[0].add(params["cls"][0])
    add = add.at[1:].add(params["b_emb"][0])
    add_tiled = jnp.tile(add, (TB, 1))                      # (TB*S, D)

    # fold the attention scale into the Q columns of the qkv weight
    w_qkv = params["w_qkv"].at[:, :, :hhd].multiply(head_dim ** -0.5)

    # block-diagonal additive attention bias (tokens attend only within their sequence)
    seq_id = jnp.arange(TBS, dtype=jnp.int32) // S
    mask = jnp.where(seq_id[:, None] == seq_id[None, :],
                     jnp.float32(0.0), jnp.float32(-1e30))  # (TBS, TBS)

    # pack the six per-layer (1, D) LayerNorm / bias tensors into one (NL, 8, D) array
    small = jnp.concatenate(
        [params["ln1_w"], params["ln1_b"], params["ln2_w"], params["ln2_b"],
         params["b_o"], params["b_f2"],
         jnp.zeros((num_layers, 2, D), jnp.float32)], axis=1)   # (NL, 8, D)

    # CLS-row selector: sel[b, b*S] = 1
    sel = (jnp.arange(TBS)[None, :] ==
           (jnp.arange(TB) * S)[:, None]).astype(jnp.float32)   # (TB, TBS)

    const_inputs = [
        add_tiled, params["w_emb"], mask, small, params["b_f1"],
        w_qkv, params["w_o"], params["w_f1"], params["w_f2"], sel,
    ]

    def const_spec(arr):
        zeros = (0,) * arr.ndim
        return pl.BlockSpec(arr.shape, lambda i, _z=zeros: _z)   # resident across the grid

    kernel = functools.partial(
        afford_decoder_kernel,
        num_layers=num_layers, num_heads=num_heads, head_dim=head_dim,
    )

    out = pl.pallas_call(
        kernel,
        out_shape=jax.ShapeDtypeStruct((B, D), jnp.float32),
        grid_spec=pltpu.PrefetchScalarGridSpec(
            num_scalar_prefetch=0,
            grid=(B // TB,),
            in_specs=[pl.BlockSpec((TBS, 3), lambda i: (i, 0))]
                     + [const_spec(w) for w in const_inputs],
            out_specs=pl.BlockSpec((TB, D), lambda i: (i, 0)),
            scratch_shapes=[
                pltpu.VMEM((TBS, D), jnp.float32),         # x (running activations)
                pltpu.VMEM((TBS, 3 * hhd), jnp.float32),   # staged QKV
                pltpu.VMEM((TBS, hhd), jnp.float32),       # concatenated head outputs
            ],
        ),
        compiler_params=pltpu.CompilerParams(dimension_semantics=("parallel",)),
    )(pts_pad, *const_inputs)
    return out


def init_params(key, *, D, S, num_layers, num_heads, head_dim, mlp_hidden):
    ks = jax.random.split(key, 8)
    scale = 0.02
    hhd = num_heads * head_dim

    # sinusoidal positional encoding (matches PositionalEncoding.__init__; assumes even D)
    pos = jnp.arange(S, dtype=jnp.float32)[:, None]
    div = jnp.exp(jnp.arange(0, D, 2, dtype=jnp.float32) * (-math.log(10000.0) / D))
    pe = jnp.zeros((S, D), jnp.float32)
    pe = pe.at[:, 0::2].set(jnp.sin(pos * div))
    pe = pe.at[:, 1::2].set(jnp.cos(pos * div))

    params = {
        "w_emb": jax.random.normal(ks[0], (3, D), jnp.float32) * scale,
        "b_emb": jnp.zeros((1, D), jnp.float32),
        "cls":   jax.random.normal(ks[1], (1, D), jnp.float32),
        "pos":   pe,
        "ln1_w": jnp.ones((num_layers, 1, D), jnp.float32),
        "ln1_b": jnp.zeros((num_layers, 1, D), jnp.float32),
        "ln2_w": jnp.ones((num_layers, 1, D), jnp.float32),
        "ln2_b": jnp.zeros((num_layers, 1, D), jnp.float32),
        "w_qkv": jax.random.normal(ks[2], (num_layers, D, 3 * hhd), jnp.float32) * scale,
        "w_o":   jax.random.normal(ks[3], (num_layers, hhd, D), jnp.float32) * scale,
        "b_o":   jnp.zeros((num_layers, 1, D), jnp.float32),
        "w_f1":  jax.random.normal(ks[4], (num_layers, D, mlp_hidden), jnp.float32) * scale,
        "b_f1":  jax.random.normal(ks[5], (num_layers, 1, mlp_hidden), jnp.float32) * scale,
        "w_f2":  jax.random.normal(ks[6], (num_layers, mlp_hidden, D), jnp.float32) * scale,
        "b_f2":  jnp.zeros((num_layers, 1, D), jnp.float32),
    }
    return params


def reference_forward(points, params, *, num_layers, num_heads, head_dim):
    """Pure-JAX reference matching the PyTorch forward (eval mode)."""
    B, L, _ = points.shape
    D = params["w_emb"].shape[1]
    hhd = num_heads * head_dim
    scale = head_dim ** (-0.5)

    emb = points @ params["w_emb"] + params["b_emb"]                       # (B, L, D)
    cls = jnp.broadcast_to(params["cls"][None, :, :], (B, 1, D))
    x = jnp.concatenate([cls, emb], axis=1) + params["pos"][None]          # (B, S, D)

    for l in range(num_layers):
        xn = _layernorm(x, params["ln1_w"][l], params["ln1_b"][l])
        qkv = xn @ params["w_qkv"][l]
        q, k, v = qkv[..., :hhd], qkv[..., hhd:2 * hhd], qkv[..., 2 * hhd:]
        heads = []
        for h in range(num_heads):
            sl = slice(h * head_dim, (h + 1) * head_dim)
            att = jnp.einsum("bqd,bkd->bqk", q[..., sl], k[..., sl]) * scale
            att = jax.nn.softmax(att, axis=-1)
            heads.append(jnp.einsum("bqk,bkd->bqd", att, v[..., sl]))
        attn = jnp.concatenate(heads, axis=-1) @ params["w_o"][l] + params["b_o"][l]
        x = x + attn
        xn2 = _layernorm(x, params["ln2_w"][l], params["ln2_b"][l])
        h1 = _gelu(xn2 @ params["w_f1"][l] + params["b_f1"][l])
        x = x + h1 @ params["w_f2"][l] + params["b_f2"][l]
    return x[:, 0, :]


if __name__ == "__main__":
    # small config: affordance_encoder_size=32, max_seq_len=8 (=> 7 input points),
    # num_attention_heads=2, num_attention_layers=2, head_output_size=16, mlp_hidden=64.
    # Batch 32 so each grid step packs 16 sequences (128 token rows) and the grid has
    # 2 parallel steps (both v7x TensorCores busy).
    B, L, D = 32, 7, 32
    S = L + 1
    NUM_LAYERS, NUM_HEADS, HEAD_DIM, MLP_HIDDEN = 2, 2, 16, 64

    key = jax.random.PRNGKey(0)
    kp, kx = jax.random.split(key)
    params = init_params(kp, D=D, S=S, num_layers=NUM_LAYERS,
                         num_heads=NUM_HEADS, head_dim=HEAD_DIM, mlp_hidden=MLP_HIDDEN)
    affordance = jax.random.normal(kx, (B, L, 3), jnp.float32)   # (b, l, 3) points

    out = afford_transformer_decoder(
        affordance, params,
        num_layers=NUM_LAYERS, num_heads=NUM_HEADS, head_dim=HEAD_DIM,
    )
    jax.block_until_ready(out)
    assert out.shape == (B, D) and out.dtype == jnp.float32

    ref = reference_forward(affordance, params, num_layers=NUM_LAYERS,
                            num_heads=NUM_HEADS, head_dim=HEAD_DIM)
    max_err = float(jnp.max(jnp.abs(out - ref)))
    assert max_err < 2e-2, f"kernel/reference mismatch: max abs err {max_err}"
    print("KERNEL_OK")
</pallas_src>

<mosaic_0001>
module attributes {stable_mosaic.version = 11 : i64} {
  func.func @afford_decoder_kernel(%arg0: i32, %arg1: memref<128x3xf32, #tpu.memory_space<vmem>>, %arg2: memref<128x32xf32, #tpu.memory_space<vmem>>, %arg3: memref<3x32xf32, #tpu.memory_space<vmem>>, %arg4: memref<128x128xf32, #tpu.memory_space<vmem>>, %arg5: memref<2x8x32xf32, #tpu.memory_space<vmem>>, %arg6: memref<2x1x64xf32, #tpu.memory_space<vmem>>, %arg7: memref<2x32x96xf32, #tpu.memory_space<vmem>>, %arg8: memref<2x32x32xf32, #tpu.memory_space<vmem>>, %arg9: memref<2x32x64xf32, #tpu.memory_space<vmem>>, %arg10: memref<2x64x32xf32, #tpu.memory_space<vmem>>, %arg11: memref<16x128xf32, #tpu.memory_space<vmem>>, %arg12: memref<16x32xf32, #tpu.memory_space<vmem>>, %arg13: memref<128x32xf32, #tpu.memory_space<vmem>>, %arg14: memref<128x96xf32, #tpu.memory_space<vmem>>, %arg15: memref<128x32xf32, #tpu.memory_space<vmem>>) attributes {dimension_semantics = [#tpu.dimension_semantics<parallel>], iteration_bounds = array<i64: 2>, scalar_prefetch = 0 : i64, scratch_operands = 3 : i64, tpu.core_type = #tpu.core_type<tc>, window_params = [{transform_indices = @transform_0, window_bounds = array<i64: 128, 3>}, {pipeline_mode = #tpu.pipeline_mode<synchronous>, transform_indices = @transform_1, window_bounds = array<i64: 128, 32>}, {pipeline_mode = #tpu.pipeline_mode<synchronous>, transform_indices = @transform_2, window_bounds = array<i64: 3, 32>}, {pipeline_mode = #tpu.pipeline_mode<synchronous>, transform_indices = @transform_3, window_bounds = array<i64: 128, 128>}, {pipeline_mode = #tpu.pipeline_mode<synchronous>, transform_indices = @transform_4, window_bounds = array<i64: 2, 8, 32>}, {pipeline_mode = #tpu.pipeline_mode<synchronous>, transform_indices = @transform_5, window_bounds = array<i64: 2, 1, 64>}, {pipeline_mode = #tpu.pipeline_mode<synchronous>, transform_indices = @transform_6, window_bounds = array<i64: 2, 32, 96>}, {pipeline_mode = #tpu.pipeline_mode<synchronous>, transform_indices = @transform_7, window_bounds = array<i64: 2, 32, 32>}, {pipeline_mode = #tpu.pipeline_mode<synchronous>, transform_indices = @transform_8, window_bounds = array<i64: 2, 32, 64>}, {pipeline_mode = #tpu.pipeline_mode<synchronous>, transform_indices = @transform_9, window_bounds = array<i64: 2, 64, 32>}, {pipeline_mode = #tpu.pipeline_mode<synchronous>, transform_indices = @transform_10, window_bounds = array<i64: 16, 128>}, {transform_indices = @transform_11, window_bounds = array<i64: 16, 32>}]} {
    %c0 = arith.constant 0 : index
    %c0_0 = arith.constant 0 : index
    %0 = vector.load %arg1[%c0, %c0_0] : memref<128x3xf32, #tpu.memory_space<vmem>>, vector<128x3xf32>
    %c0_1 = arith.constant 0 : index
    %c0_2 = arith.constant 0 : index
    %1 = vector.load %arg3[%c0_1, %c0_2] : memref<3x32xf32, #tpu.memory_space<vmem>>, vector<3x32xf32>
    %2 = vector.extract_strided_slice %0 {offsets = [0, 0], sizes = [128, 1], strides = [1, 1]} : vector<128x3xf32> to vector<128x1xf32>
    %3 = vector.extract_strided_slice %1 {offsets = [0, 0], sizes = [1, 32], strides = [1, 1]} : vector<3x32xf32> to vector<1x32xf32>
    %4 = vector.broadcast %2 : vector<128x1xf32> to vector<128x32xf32>
    %5 = vector.broadcast %3 : vector<1x32xf32> to vector<128x32xf32>
    %6 = arith.mulf %4, %5 : vector<128x32xf32>
    %7 = vector.extract_strided_slice %0 {offsets = [0, 1], sizes = [128, 1], strides = [1, 1]} : vector<128x3xf32> to vector<128x1xf32>
    %8 = vector.extract_strided_slice %1 {offsets = [1, 0], sizes = [1, 32], strides = [1, 1]} : vector<3x32xf32> to vector<1x32xf32>
    %9 = vector.broadcast %7 : vector<128x1xf32> to vector<128x32xf32>
    %10 = vector.broadcast %8 : vector<1x32xf32> to vector<128x32xf32>
    %11 = arith.mulf %9, %10 : vector<128x32xf32>
    %12 = arith.addf %6, %11 : vector<128x32xf32>
    %13 = vector.extract_strided_slice %0 {offsets = [0, 2], sizes = [128, 1], strides = [1, 1]} : vector<128x3xf32> to vector<128x1xf32>
    %14 = vector.extract_strided_slice %1 {offsets = [2, 0], sizes = [1, 32], strides = [1, 1]} : vector<3x32xf32> to vector<1x32xf32>
    %15 = vector.broadcast %13 : vector<128x1xf32> to vector<128x32xf32>
    %16 = vector.broadcast %14 : vector<1x32xf32> to vector<128x32xf32>
    %17 = arith.mulf %15, %16 : vector<128x32xf32>
    %18 = arith.addf %12, %17 : vector<128x32xf32>
    %c0_3 = arith.constant 0 : index
    %c0_4 = arith.constant 0 : index
    %19 = vector.load %arg2[%c0_3, %c0_4] : memref<128x32xf32, #tpu.memory_space<vmem>>, vector<128x32xf32>
    %20 = arith.addf %18, %19 : vector<128x32xf32>
    %c0_5 = arith.constant 0 : index
    %c0_6 = arith.constant 0 : index
    %21 = vector.load %arg13[%c0_5, %c0_6] : memref<128x32xf32, #tpu.memory_space<vmem>>, vector<128x32xf32>
    tpu.vector_store %arg13[%c0_5, %c0_6], %20 {strides = array<i32>} : memref<128x32xf32, #tpu.memory_space<vmem>>, vector<128x32xf32>,
    %c0_7 = arith.constant 0 : index
    %c0_8 = arith.constant 0 : index
    %c0_9 = arith.constant 0 : index
    %22 = vector.load %arg5[%c0_7, %c0_8, %c0_9] : memref<2x8x32xf32, #tpu.memory_space<vmem>>, vector<1x8x32xf32>
    %23 = vector.shape_cast %22 : vector<1x8x32xf32> to vector<8x32xf32>
    %c0_10 = arith.constant 0 : index
    %c0_11 = arith.constant 0 : index
    %24 = vector.load %arg13[%c0_10, %c0_11] : memref<128x32xf32, #tpu.memory_space<vmem>>, vector<128x32xf32>
    %25 = vector.extract_strided_slice %23 {offsets = [0, 0], sizes = [1, 32], strides = [1, 1]} : vector<8x32xf32> to vector<1x32xf32>
    %26 = vector.extract_strided_slice %23 {offsets = [1, 0], sizes = [1, 32], strides = [1, 1]} : vector<8x32xf32> to vector<1x32xf32>
    %cst = arith.constant dense<0.000000e+00> : vector<128xf32>
    %27 = vector.multi_reduction <add>, %24, %cst [1] : vector<128x32xf32> to vector<128xf32>
    %28 = vector.shape_cast %27 : vector<128xf32> to vector<128x1xf32>
    %cst_12 = arith.constant 3.200000e+01 : f32
    %29 = vector.broadcast %cst_12 : f32 to vector<128x1xf32>
    %30 = arith.divf %28, %29 : vector<128x1xf32>
    %31 = vector.broadcast %30 : vector<128x1xf32> to vector<128x32xf32>
    %32 = arith.subf %24, %31 : vector<128x32xf32>
    %33 = arith.mulf %32, %32 : vector<128x32xf32>
    %cst_13 = arith.constant dense<0.000000e+00> : vector<128xf32>
    %34 = vector.multi_reduction <add>, %33, %cst_13 [1] : vector<128x32xf32> to vector<128xf32>
    %35 = vector.shape_cast %34 : vector<128xf32> to vector<128x1xf32>
    %cst_14 = arith.constant 3.200000e+01 : f32
    %36 = vector.broadcast %cst_14 : f32 to vector<128x1xf32>
    %37 = arith.divf %35, %36 : vector<128x1xf32>
    %cst_15 = arith.constant 9.99999974E-6 : f32
    %38 = vector.broadcast %cst_15 : f32 to vector<128x1xf32>
    %39 = arith.addf %37, %38 : vector<128x1xf32>
    %40 = math.rsqrt %39 : vector<128x1xf32>
    %41 = vector.broadcast %40 : vector<128x1xf32> to vector<128x32xf32>
    %42 = arith.mulf %32, %41 : vector<128x32xf32>
    %43 = vector.broadcast %25 : vector<1x32xf32> to vector<128x32xf32>
    %44 = arith.mulf %42, %43 : vector<128x32xf32>
    %45 = vector.broadcast %26 : vector<1x32xf32> to vector<128x32xf32>
    %46 = arith.addf %44, %45 : vector<128x32xf32>
    %c0_16 = arith.constant 0 : index
    %c0_17 = arith.constant 0 : index
    %c0_18 = arith.constant 0 : index
    %47 = vector.load %arg7[%c0_16, %c0_17, %c0_18] : memref<2x32x96xf32, #tpu.memory_space<vmem>>, vector<1x32x96xf32>
    %48 = vector.shape_cast %47 : vector<1x32x96xf32> to vector<32x96xf32>
    %cst_19 = arith.constant dense<0.000000e+00> : vector<128x96xf32>
    %49 = tpu.matmul %46, %48, %cst_19 {dimension_numbers = #tpu.dot_dimension_numbers<[1], [0], [0], [1], [0, 0, 1, 1], [], []>} : vector<128x32xf32>, vector<32x96xf32>, vector<128x96xf32> -> vector<128x96xf32>
    %c0_20 = arith.constant 0 : index
    %c0_21 = arith.constant 0 : index
    %50 = vector.load %arg14[%c0_20, %c0_21] : memref<128x96xf32, #tpu.memory_space<vmem>>, vector<128x96xf32>
    tpu.vector_store %arg14[%c0_20, %c0_21], %49 {strides = array<i32>} : memref<128x96xf32, #tpu.memory_space<vmem>>, vector<128x96xf32>,
    %c0_22 = arith.constant 0 : index
    %c0_23 = arith.constant 0 : index
    %51 = vector.load %arg14[%c0_22, %c0_23] : memref<128x96xf32, #tpu.memory_space<vmem>>, vector<128x16xf32>
    %c0_24 = arith.constant 0 : index
    %c32 = arith.constant 32 : index
    %52 = vector.load %arg14[%c0_24, %c32] : memref<128x96xf32, #tpu.memory_space<vmem>>, vector<128x16xf32>
    %c0_25 = arith.constant 0 : index
    %c64 = arith.constant 64 : index
    %53 = vector.load %arg14[%c0_25, %c64] : memref<128x96xf32, #tpu.memory_space<vmem>>, vector<128x16xf32>
    %cst_26 = arith.constant dense<0.000000e+00> : vector<128x128xf32>
    %54 = tpu.matmul %51, %52, %cst_26 {dimension_numbers = #tpu.dot_dimension_numbers<[1], [1], [0], [0], [0, 0, 1, 0], [], []>} : vector<128x16xf32>, vector<128x16xf32>, vector<128x128xf32> -> vector<128x128xf32>
    %c0_27 = arith.constant 0 : index
    %c0_28 = arith.constant 0 : index
    %55 = vector.load %arg4[%c0_27, %c0_28] : memref<128x128xf32, #tpu.memory_space<vmem>>, vector<128x128xf32>
    %56 = arith.addf %54, %55 : vector<128x128xf32>
    %57 = math.exp %56 : vector<128x128xf32>
    %cst_29 = arith.constant dense<0.000000e+00> : vector<128xf32>
    %58 = vector.multi_reduction <add>, %57, %cst_29 [1] : vector<128x128xf32> to vector<128xf32>
    %59 = vector.shape_cast %58 : vector<128xf32> to vector<128x1xf32>
    %cst_30 = arith.constant dense<0.000000e+00> : vector<128x16xf32>
    %60 = tpu.matmul %57, %53, %cst_30 {dimension_numbers = #tpu.dot_dimension_numbers<[1], [0], [0], [1], [0, 0, 1, 1], [], []>} : vector<128x128xf32>, vector<128x16xf32>, vector<128x16xf32> -> vector<128x16xf32>
    %61 = tpu.reciprocal %59 {approx = true} : vector<128x1xf32> -> vector<128x1xf32>
    %62 = vector.broadcast %61 : vector<128x1xf32> to vector<128x16xf32>
    %63 = arith.mulf %60, %62 : vector<128x16xf32>
    %c0_31 = arith.constant 0 : index
    %c0_32 = arith.constant 0 : index
    %64 = vector.load %arg15[%c0_31, %c0_32] : memref<128x32xf32, #tpu.memory_space<vmem>>, vector<128x16xf32>
    tpu.vector_store %arg15[%c0_31, %c0_32], %63 {strides = array<i32>} : memref<128x32xf32, #tpu.memory_space<vmem>>, vector<128x16xf32>,
    %c0_33 = arith.constant 0 : index
    %c16 = arith.constant 16 : index
    %65 = vector.load %arg14[%c0_33, %c16] : memref<128x96xf32, #tpu.memory_space<vmem>>, vector<128x16xf32>
    %c0_34 = arith.constant 0 : index
    %c48 = arith.constant 48 : index
    %66 = vector.load %arg14[%c0_34, %c48] : memref<128x96xf32, #tpu.memory_space<vmem>>, vector<128x16xf32>
    %c0_35 = arith.constant 0 : index
    %c80 = arith.constant 80 : index
    %67 = vector.load %arg14[%c0_35, %c80] : memref<128x96xf32, #tpu.memory_space<vmem>>, vector<128x16xf32>
    %cst_36 = arith.constant dense<0.000000e+00> : vector<128x128xf32>
    %68 = tpu.matmul %65, %66, %cst_36 {dimension_numbers = #tpu.dot_dimension_numbers<[1], [1], [0], [0], [0, 0, 1, 0], [], []>} : vector<128x16xf32>, vector<128x16xf32>, vector<128x128xf32> -> vector<128x128xf32>
    %c0_37 = arith.constant 0 : index
    %c0_38 = arith.constant 0 : index
    %69 = vector.load %arg4[%c0_37, %c0_38] : memref<128x128xf32, #tpu.memory_space<vmem>>, vector<128x128xf32>
    %70 = arith.addf %68, %69 : vector<128x128xf32>
    %71 = math.exp %70 : vector<128x128xf32>
    %cst_39 = arith.constant dense<0.000000e+00> : vector<128xf32>
    %72 = vector.multi_reduction <add>, %71, %cst_39 [1] : vector<128x128xf32> to vector<128xf32>
    %73 = vector.shape_cast %72 : vector<128xf32> to vector<128x1xf32>
    %cst_40 = arith.constant dense<0.000000e+00> : vector<128x16xf32>
    %74 = tpu.matmul %71, %67, %cst_40 {dimension_numbers = #tpu.dot_dimension_numbers<[1], [0], [0], [1], [0, 0, 1, 1], [], []>} : vector<128x128xf32>, vector<128x16xf32>, vector<128x16xf32> -> vector<128x16xf32>
    %75 = tpu.reciprocal %73 {approx = true} : vector<128x1xf32> -> vector<128x1xf32>
    %76 = vector.broadcast %75 : vector<128x1xf32> to vector<128x16xf32>
    %77 = arith.mulf %74, %76 : vector<128x16xf32>
    %c0_41 = arith.constant 0 : index
    %c16_42 = arith.constant 16 : index
    %78 = vector.load %arg15[%c0_41, %c16_42] : memref<128x32xf32, #tpu.memory_space<vmem>>, vector<128x16xf32>
    tpu.vector_store %arg15[%c0_41, %c16_42], %77 {strides = array<i32>} : memref<128x32xf32, #tpu.memory_space<vmem>>, vector<128x16xf32>,
    %c0_43 = arith.constant 0 : index
    %c0_44 = arith.constant 0 : index
    %79 = vector.load %arg15[%c0_43, %c0_44] : memref<128x32xf32, #tpu.memory_space<vmem>>, vector<128x32xf32>
    %c0_45 = arith.constant 0 : index
    %c0_46 = arith.constant 0 : index
    %c0_47 = arith.constant 0 : index
    %80 = vector.load %arg8[%c0_45, %c0_46, %c0_47] : memref<2x32x32xf32, #tpu.memory_space<vmem>>, vector<1x32x32xf32>
    %81 = vector.shape_cast %80 : vector<1x32x32xf32> to vector<32x32xf32>
    %cst_48 = arith.constant dense<0.000000e+00> : vector<128x32xf32>
    %82 = tpu.matmul %79, %81, %cst_48 {dimension_numbers = #tpu.dot_dimension_numbers<[1], [0], [0], [1], [0, 0, 1, 1], [], []>} : vector<128x32xf32>, vector<32x32xf32>, vector<128x32xf32> -> vector<128x32xf32>
    %c0_49 = arith.constant 0 : index
    %c0_50 = arith.constant 0 : index
    %83 = vector.load %arg13[%c0_49, %c0_50] : memref<128x32xf32, #tpu.memory_space<vmem>>, vector<128x32xf32>
    %84 = arith.addf %83, %82 : vector<128x32xf32>
    %85 = vector.extract_strided_slice %23 {offsets = [4, 0], sizes = [1, 32], strides = [1, 1]} : vector<8x32xf32> to vector<1x32xf32>
    %86 = vector.broadcast %85 : vector<1x32xf32> to vector<128x32xf32>
    %87 = arith.addf %84, %86 : vector<128x32xf32>
    %c0_51 = arith.constant 0 : index
    %c0_52 = arith.constant 0 : index
    %88 = vector.load %arg13[%c0_51, %c0_52] : memref<128x32xf32, #tpu.memory_space<vmem>>, vector<128x32xf32>
    tpu.vector_store %arg13[%c0_51, %c0_52], %87 {strides = array<i32>} : memref<128x32xf32, #tpu.memory_space<vmem>>, vector<128x32xf32>,
    %c0_53 = arith.constant 0 : index
    %c0_54 = arith.constant 0 : index
    %89 = vector.load %arg13[%c0_53, %c0_54] : memref<128x32xf32, #tpu.memory_space<vmem>>, vector<128x32xf32>
    %90 = vector.extract_strided_slice %23 {offsets = [2, 0], sizes = [1, 32], strides = [1, 1]} : vector<8x32xf32> to vector<1x32xf32>
    %91 = vector.extract_strided_slice %23 {offsets = [3, 0], sizes = [1, 32], strides = [1, 1]} : vector<8x32xf32> to vector<1x32xf32>
    %cst_55 = arith.constant dense<0.000000e+00> : vector<128xf32>
    %92 = vector.multi_reduction <add>, %89, %cst_55 [1] : vector<128x32xf32> to vector<128xf32>
    %93 = vector.shape_cast %92 : vector<128xf32> to vector<128x1xf32>
    %cst_56 = arith.constant 3.200000e+01 : f32
    %94 = vector.broadcast %cst_56 : f32 to vector<128x1xf32>
    %95 = arith.divf %93, %94 : vector<128x1xf32>
    %96 = vector.broadcast %95 : vector<128x1xf32> to vector<128x32xf32>
    %97 = arith.subf %89, %96 : vector<128x32xf32>
    %98 = arith.mulf %97, %97 : vector<128x32xf32>
    %cst_57 = arith.constant dense<0.000000e+00> : vector<128xf32>
    %99 = vector.multi_reduction <add>, %98, %cst_57 [1] : vector<128x32xf32> to vector<128xf32>
    %100 = vector.shape_cast %99 : vector<128xf32> to vector<128x1xf32>
    %cst_58 = arith.constant 3.200000e+01 : f32
    %101 = vector.broadcast %cst_58 : f32 to vector<128x1xf32>
    %102 = arith.divf %100, %101 : vector<128x1xf32>
    %cst_59 = arith.constant 9.99999974E-6 : f32
    %103 = vector.broadcast %cst_59 : f32 to vector<128x1xf32>
    %104 = arith.addf %102, %103 : vector<128x1xf32>
    %105 = math.rsqrt %104 : vector<128x1xf32>
    %106 = vector.broadcast %105 : vector<128x1xf32> to vector<128x32xf32>
    %107 = arith.mulf %97, %106 : vector<128x32xf32>
    %108 = vector.broadcast %90 : vector<1x32xf32> to vector<128x32xf32>
    %109 = arith.mulf %107, %108 : vector<128x32xf32>
    %110 = vector.broadcast %91 : vector<1x32xf32> to vector<128x32xf32>
    %111 = arith.addf %109, %110 : vector<128x32xf32>
    %c0_60 = arith.constant 0 : index
    %c0_61 = arith.constant 0 : index
    %c0_62 = arith.constant 0 : index
    %112 = vector.load %arg9[%c0_60, %c0_61, %c0_62] : memref<2x32x64xf32, #tpu.memory_space<vmem>>, vector<1x32x64xf32>
    %113 = vector.shape_cast %112 : vector<1x32x64xf32> to vector<32x64xf32>
    %cst_63 = arith.constant dense<0.000000e+00> : vector<128x64xf32>
    %114 = tpu.matmul %111, %113, %cst_63 {dimension_numbers = #tpu.dot_dimension_numbers<[1], [0], [0], [1], [0, 0, 1, 1], [], []>} : vector<128x32xf32>, vector<32x64xf32>, vector<128x64xf32> -> vector<128x64xf32>
    %c0_64 = arith.constant 0 : index
    %c0_65 = arith.constant 0 : index
    %c0_66 = arith.constant 0 : index
    %115 = vector.load %arg6[%c0_64, %c0_65, %c0_66] : memref<2x1x64xf32, #tpu.memory_space<vmem>>, vector<1x1x64xf32>
    %116 = vector.shape_cast %115 : vector<1x1x64xf32> to vector<1x64xf32>
    %117 = vector.broadcast %116 : vector<1x64xf32> to vector<128x64xf32>
    %118 = arith.addf %114, %117 : vector<128x64xf32>
    %cst_67 = arith.constant 5.000000e-01 : f32
    %119 = vector.broadcast %cst_67 : f32 to vector<128x64xf32>
    %120 = arith.mulf %119, %118 : vector<128x64xf32>
    %cst_68 = arith.constant 4.471500e-02 : f32
    %121 = vector.broadcast %cst_68 : f32 to vector<128x64xf32>
    %122 = arith.mulf %121, %118 : vector<128x64xf32>
    %123 = arith.mulf %122, %118 : vector<128x64xf32>
    %124 = arith.mulf %123, %118 : vector<128x64xf32>
    %125 = arith.addf %118, %124 : vector<128x64xf32>
    %cst_69 = arith.constant 0.797884583 : f32
    %126 = vector.broadcast %cst_69 : f32 to vector<128x64xf32>
    %127 = arith.mulf %126, %125 : vector<128x64xf32>
    %128 = math.tanh %127 : vector<128x64xf32>
    %cst_70 = arith.constant 1.000000e+00 : f32
    %129 = vector.broadcast %cst_70 : f32 to vector<128x64xf32>
    %130 = arith.addf %129, %128 : vector<128x64xf32>
    %131 = arith.mulf %120, %130 : vector<128x64xf32>
    %c0_71 = arith.constant 0 : index
    %c0_72 = arith.constant 0 : index
    %132 = vector.load %arg13[%c0_71, %c0_72] : memref<128x32xf32, #tpu.memory_space<vmem>>, vector<128x32xf32>
    %c0_73 = arith.constant 0 : index
    %c0_74 = arith.constant 0 : index
    %c0_75 = arith.constant 0 : index
    %133 = vector.load %arg10[%c0_73, %c0_74, %c0_75] : memref<2x64x32xf32, #tpu.memory_space<vmem>>, vector<1x64x32xf32>
    %134 = vector.shape_cast %133 : vector<1x64x32xf32> to vector<64x32xf32>
    %cst_76 = arith.constant dense<0.000000e+00> : vector<128x32xf32>
    %135 = tpu.matmul %131, %134, %cst_76 {dimension_numbers = #tpu.dot_dimension_numbers<[1], [0], [0], [1], [0, 0, 1, 1], [], []>} : vector<128x64xf32>, vector<64x32xf32>, vector<128x32xf32> -> vector<128x32xf32>
    %136 = arith.addf %132, %135 : vector<128x32xf32>
    %137 = vector.extract_strided_slice %23 {offsets = [5, 0], sizes = [1, 32], strides = [1, 1]} : vector<8x32xf32> to vector<1x32xf32>
    %138 = vector.broadcast %137 : vector<1x32xf32> to vector<128x32xf32>
    %139 = arith.addf %136, %138 : vector<128x32xf32>
    %c0_77 = arith.constant 0 : index
    %c0_78 = arith.constant 0 : index
    %140 = vector.load %arg13[%c0_77, %c0_78] : memref<128x32xf32, #tpu.memory_space<vmem>>, vector<128x32xf32>
    tpu.vector_store %arg13[%c0_77, %c0_78], %139 {strides = array<i32>} : memref<128x32xf32, #tpu.memory_space<vmem>>, vector<128x32xf32>,
    %c1 = arith.constant 1 : index
    %c0_79 = arith.constant 0 : index
    %c0_80 = arith.constant 0 : index
    %141 = vector.load %arg5[%c1, %c0_79, %c0_80] : memref<2x8x32xf32, #tpu.memory_space<vmem>>, vector<1x8x32xf32>
    %142 = vector.shape_cast %141 : vector<1x8x32xf32> to vector<8x32xf32>
    %c0_81 = arith.constant 0 : index
    %c0_82 = arith.constant 0 : index
    %143 = vector.load %arg13[%c0_81, %c0_82] : memref<128x32xf32, #tpu.memory_space<vmem>>, vector<128x32xf32>
    %144 = vector.extract_strided_slice %142 {offsets = [0, 0], sizes = [1, 32], strides = [1, 1]} : vector<8x32xf32> to vector<1x32xf32>
    %145 = vector.extract_strided_slice %142 {offsets = [1, 0], sizes = [1, 32], strides = [1, 1]} : vector<8x32xf32> to vector<1x32xf32>
    %cst_83 = arith.constant dense<0.000000e+00> : vector<128xf32>
    %146 = vector.multi_reduction <add>, %143, %cst_83 [1] : vector<128x32xf32> to vector<128xf32>
    %147 = vector.shape_cast %146 : vector<128xf32> to vector<128x1xf32>
    %cst_84 = arith.constant 3.200000e+01 : f32
    %148 = vector.broadcast %cst_84 : f32 to vector<128x1xf32>
    %149 = arith.divf %147, %148 : vector<128x1xf32>
    %150 = vector.broadcast %149 : vector<128x1xf32> to vector<128x32xf32>
    %151 = arith.subf %143, %150 : vector<128x32xf32>
    %152 = arith.mulf %151, %151 : vector<128x32xf32>
    %cst_85 = arith.constant dense<0.000000e+00> : vector<128xf32>
    %153 = vector.multi_reduction <add>, %152, %cst_85 [1] : vector<128x32xf32> to vector<128xf32>
    %154 = vector.shape_cast %153 : vector<128xf32> to vector<128x1xf32>
    %cst_86 = arith.constant 3.200000e+01 : f32
    %155 = vector.broadcast %cst_86 : f32 to vector<128x1xf32>
    %156 = arith.divf %154, %155 : vector<128x1xf32>
    %cst_87 = arith.constant 9.99999974E-6 : f32
    %157 = vector.broadcast %cst_87 : f32 to vector<128x1xf32>
    %158 = arith.addf %156, %157 : vector<128x1xf32>
    %159 = math.rsqrt %158 : vector<128x1xf32>
    %160 = vector.broadcast %159 : vector<128x1xf32> to vector<128x32xf32>
    %161 = arith.mulf %151, %160 : vector<128x32xf32>
    %162 = vector.broadcast %144 : vector<1x32xf32> to vector<128x32xf32>
    %163 = arith.mulf %161, %162 : vector<128x32xf32>
    %164 = vector.broadcast %145 : vector<1x32xf32> to vector<128x32xf32>
    %165 = arith.addf %163, %164 : vector<128x32xf32>
    %c1_88 = arith.constant 1 : index
    %c0_89 = arith.constant 0 : index
    %c0_90 = arith.constant 0 : index
    %166 = vector.load %arg7[%c1_88, %c0_89, %c0_90] : memref<2x32x96xf32, #tpu.memory_space<vmem>>, vector<1x32x96xf32>
    %167 = vector.shape_cast %166 : vector<1x32x96xf32> to vector<32x96xf32>
    %cst_91 = arith.constant dense<0.000000e+00> : vector<128x96xf32>
    %168 = tpu.matmul %165, %167, %cst_91 {dimension_numbers = #tpu.dot_dimension_numbers<[1], [0], [0], [1], [0, 0, 1, 1], [], []>} : vector<128x32xf32>, vector<32x96xf32>, vector<128x96xf32> -> vector<128x96xf32>
    %c0_92 = arith.constant 0 : index
    %c0_93 = arith.constant 0 : index
    %169 = vector.load %arg14[%c0_92, %c0_93] : memref<128x96xf32, #tpu.memory_space<vmem>>, vector<128x96xf32>
    tpu.vector_store %arg14[%c0_92, %c0_93], %168 {strides = array<i32>} : memref<128x96xf32, #tpu.memory_space<vmem>>, vector<128x96xf32>,
    %c0_94 = arith.constant 0 : index
    %c0_95 = arith.constant 0 : index
    %170 = vector.load %arg14[%c0_94, %c0_95] : memref<128x96xf32, #tpu.memory_space<vmem>>, vector<128x16xf32>
    %c0_96 = arith.constant 0 : index
    %c32_97 = arith.constant 32 : index
    %171 = vector.load %arg14[%c0_96, %c32_97] : memref<128x96xf32, #tpu.memory_space<vmem>>, vector<128x16xf32>
    %c0_98 = arith.constant 0 : index
    %c64_99 = arith.constant 64 : index
    %172 = vector.load %arg14[%c0_98, %c64_99] : memref<128x96xf32, #tpu.memory_space<vmem>>, vector<128x16xf32>
    %cst_100 = arith.constant dense<0.000000e+00> : vector<128x128xf32>
    %173 = tpu.matmul %170, %171, %cst_100 {dimension_numbers = #tpu.dot_dimension_numbers<[1], [1], [0], [0], [0, 0, 1, 0], [], []>} : vector<128x16xf32>, vector<128x16xf32>, vector<128x128xf32> -> vector<128x128xf32>
    %c0_101 = arith.constant 0 : index
    %c0_102 = arith.constant 0 : index
    %174 = vector.load %arg4[%c0_101, %c0_102] : memref<128x128xf32, #tpu.memory_space<vmem>>, vector<128x128xf32>
    %175 = arith.addf %173, %174 : vector<128x128xf32>
    %176 = math.exp %175 : vector<128x128xf32>
    %cst_103 = arith.constant dense<0.000000e+00> : vector<128xf32>
    %177 = vector.multi_reduction <add>, %176, %cst_103 [1] : vector<128x128xf32> to vector<128xf32>
    %178 = vector.shape_cast %177 : vector<128xf32> to vector<128x1xf32>
    %cst_104 = arith.constant dense<0.000000e+00> : vector<128x16xf32>
    %179 = tpu.matmul %176, %172, %cst_104 {dimension_numbers = #tpu.dot_dimension_numbers<[1], [0], [0], [1], [0, 0, 1, 1], [], []>} : vector<128x128xf32>, vector<128x16xf32>, vector<128x16xf32> -> vector<128x16xf32>
    %180 = tpu.reciprocal %178 {approx = true} : vector<128x1xf32> -> vector<128x1xf32>
    %181 = vector.broadcast %180 : vector<128x1xf32> to vector<128x16xf32>
    %182 = arith.mulf %179, %181 : vector<128x16xf32>
    %c0_105 = arith.constant 0 : index
    %c0_106 = arith.constant 0 : index
    %183 = vector.load %arg15[%c0_105, %c0_106] : memref<128x32xf32, #tpu.memory_space<vmem>>, vector<128x16xf32>
    tpu.vector_store %arg15[%c0_105, %c0_106], %182 {strides = array<i32>} : memref<128x32xf32, #tpu.memory_space<vmem>>, vector<128x16xf32>,
    %c0_107 = arith.constant 0 : index
    %c16_108 = arith.constant 16 : index
    %184 = vector.load %arg14[%c0_107, %c16_108] : memref<128x96xf32, #tpu.memory_space<vmem>>, vector<128x16xf32>
    %c0_109 = arith.constant 0 : index
    %c48_110 = arith.constant 48 : index
    %185 = vector.load %arg14[%c0_109, %c48_110] : memref<128x96xf32, #tpu.memory_space<vmem>>, vector<128x16xf32>
    %c0_111 = arith.constant 0 : index
    %c80_112 = arith.constant 80 : index
    %186 = vector.load %arg14[%c0_111, %c80_112] : memref<128x96xf32, #tpu.memory_space<vmem>>, vector<128x16xf32>
    %cst_113 = arith.constant dense<0.000000e+00> : vector<128x128xf32>
    %187 = tpu.matmul %184, %185, %cst_113 {dimension_numbers = #tpu.dot_dimension_numbers<[1], [1], [0], [0], [0, 0, 1, 0], [], []>} : vector<128x16xf32>, vector<128x16xf32>, vector<128x128xf32> -> vector<128x128xf32>
    %c0_114 = arith.constant 0 : index
    %c0_115 = arith.constant 0 : index
    %188 = vector.load %arg4[%c0_114, %c0_115] : memref<128x128xf32, #tpu.memory_space<vmem>>, vector<128x128xf32>
    %189 = arith.addf %187, %188 : vector<128x128xf32>
    %190 = math.exp %189 : vector<128x128xf32>
    %cst_116 = arith.constant dense<0.000000e+00> : vector<128xf32>
    %191 = vector.multi_reduction <add>, %190, %cst_116 [1] : vector<128x128xf32> to vector<128xf32>
    %192 = vector.shape_cast %191 : vector<128xf32> to vector<128x1xf32>
    %cst_117 = arith.constant dense<0.000000e+00> : vector<128x16xf32>
    %193 = tpu.matmul %190, %186, %cst_117 {dimension_numbers = #tpu.dot_dimension_numbers<[1], [0], [0], [1], [0, 0, 1, 1], [], []>} : vector<128x128xf32>, vector<128x16xf32>, vector<128x16xf32> -> vector<128x16xf32>
    %194 = tpu.reciprocal %192 {approx = true} : vector<128x1xf32> -> vector<128x1xf32>
    %195 = vector.broadcast %194 : vector<128x1xf32> to vector<128x16xf32>
    %196 = arith.mulf %193, %195 : vector<128x16xf32>
    %c0_118 = arith.constant 0 : index
    %c16_119 = arith.constant 16 : index
    %197 = vector.load %arg15[%c0_118, %c16_119] : memref<128x32xf32, #tpu.memory_space<vmem>>, vector<128x16xf32>
    tpu.vector_store %arg15[%c0_118, %c16_119], %196 {strides = array<i32>} : memref<128x32xf32, #tpu.memory_space<vmem>>, vector<128x16xf32>,
    %c0_120 = arith.constant 0 : index
    %c0_121 = arith.constant 0 : index
    %198 = vector.load %arg15[%c0_120, %c0_121] : memref<128x32xf32, #tpu.memory_space<vmem>>, vector<128x32xf32>
    %c1_122 = arith.constant 1 : index
    %c0_123 = arith.constant 0 : index
    %c0_124 = arith.constant 0 : index
    %199 = vector.load %arg8[%c1_122, %c0_123, %c0_124] : memref<2x32x32xf32, #tpu.memory_space<vmem>>, vector<1x32x32xf32>
    %200 = vector.shape_cast %199 : vector<1x32x32xf32> to vector<32x32xf32>
    %cst_125 = arith.constant dense<0.000000e+00> : vector<128x32xf32>
    %201 = tpu.matmul %198, %200, %cst_125 {dimension_numbers = #tpu.dot_dimension_numbers<[1], [0], [0], [1], [0, 0, 1, 1], [], []>} : vector<128x32xf32>, vector<32x32xf32>, vector<128x32xf32> -> vector<128x32xf32>
    %c0_126 = arith.constant 0 : index
    %c0_127 = arith.constant 0 : index
    %202 = vector.load %arg13[%c0_126, %c0_127] : memref<128x32xf32, #tpu.memory_space<vmem>>, vector<128x32xf32>
    %203 = arith.addf %202, %201 : vector<128x32xf32>
    %204 = vector.extract_strided_slice %142 {offsets = [4, 0], sizes = [1, 32], strides = [1, 1]} : vector<8x32xf32> to vector<1x32xf32>
    %205 = vector.broadcast %204 : vector<1x32xf32> to vector<128x32xf32>
    %206 = arith.addf %203, %205 : vector<128x32xf32>
    %c0_128 = arith.constant 0 : index
    %c0_129 = arith.constant 0 : index
    %207 = vector.load %arg13[%c0_128, %c0_129] : memref<128x32xf32, #tpu.memory_space<vmem>>, vector<128x32xf32>
    tpu.vector_store %arg13[%c0_128, %c0_129], %206 {strides = array<i32>} : memref<128x32xf32, #tpu.memory_space<vmem>>, vector<128x32xf32>,
    %c0_130 = arith.constant 0 : index
    %c0_131 = arith.constant 0 : index
    %208 = vector.load %arg13[%c0_130, %c0_131] : memref<128x32xf32, #tpu.memory_space<vmem>>, vector<128x32xf32>
    %209 = vector.extract_strided_slice %142 {offsets = [2, 0], sizes = [1, 32], strides = [1, 1]} : vector<8x32xf32> to vector<1x32xf32>
    %210 = vector.extract_strided_slice %142 {offsets = [3, 0], sizes = [1, 32], strides = [1, 1]} : vector<8x32xf32> to vector<1x32xf32>
    %cst_132 = arith.constant dense<0.000000e+00> : vector<128xf32>
    %211 = vector.multi_reduction <add>, %208, %cst_132 [1] : vector<128x32xf32> to vector<128xf32>
    %212 = vector.shape_cast %211 : vector<128xf32> to vector<128x1xf32>
    %cst_133 = arith.constant 3.200000e+01 : f32
    %213 = vector.broadcast %cst_133 : f32 to vector<128x1xf32>
    %214 = arith.divf %212, %213 : vector<128x1xf32>
    %215 = vector.broadcast %214 : vector<128x1xf32> to vector<128x32xf32>
    %216 = arith.subf %208, %215 : vector<128x32xf32>
    %217 = arith.mulf %216, %216 : vector<128x32xf32>
    %cst_134 = arith.constant dense<0.000000e+00> : vector<128xf32>
    %218 = vector.multi_reduction <add>, %217, %cst_134 [1] : vector<128x32xf32> to vector<128xf32>
    %219 = vector.shape_cast %218 : vector<128xf32> to vector<128x1xf32>
    %cst_135 = arith.constant 3.200000e+01 : f32
    %220 = vector.broadcast %cst_135 : f32 to vector<128x1xf32>
    %221 = arith.divf %219, %220 : vector<128x1xf32>
    %cst_136 = arith.constant 9.99999974E-6 : f32
    %222 = vector.broadcast %cst_136 : f32 to vector<128x1xf32>
    %223 = arith.addf %221, %222 : vector<128x1xf32>
    %224 = math.rsqrt %223 : vector<128x1xf32>
    %225 = vector.broadcast %224 : vector<128x1xf32> to vector<128x32xf32>
    %226 = arith.mulf %216, %225 : vector<128x32xf32>
    %227 = vector.broadcast %209 : vector<1x32xf32> to vector<128x32xf32>
    %228 = arith.mulf %226, %227 : vector<128x32xf32>
    %229 = vector.broadcast %210 : vector<1x32xf32> to vector<128x32xf32>
    %230 = arith.addf %228, %229 : vector<128x32xf32>
    %c1_137 = arith.constant 1 : index
    %c0_138 = arith.constant 0 : index
    %c0_139 = arith.constant 0 : index
    %231 = vector.load %arg9[%c1_137, %c0_138, %c0_139] : memref<2x32x64xf32, #tpu.memory_space<vmem>>, vector<1x32x64xf32>
    %232 = vector.shape_cast %231 : vector<1x32x64xf32> to vector<32x64xf32>
    %cst_140 = arith.constant dense<0.000000e+00> : vector<128x64xf32>
    %233 = tpu.matmul %230, %232, %cst_140 {dimension_numbers = #tpu.dot_dimension_numbers<[1], [0], [0], [1], [0, 0, 1, 1], [], []>} : vector<128x32xf32>, vector<32x64xf32>, vector<128x64xf32> -> vector<128x64xf32>
    %c1_141 = arith.constant 1 : index
    %c0_142 = arith.constant 0 : index
    %c0_143 = arith.constant 0 : index
    %234 = vector.load %arg6[%c1_141, %c0_142, %c0_143] : memref<2x1x64xf32, #tpu.memory_space<vmem>>, vector<1x1x64xf32>
    %235 = vector.shape_cast %234 : vector<1x1x64xf32> to vector<1x64xf32>
    %236 = vector.broadcast %235 : vector<1x64xf32> to vector<128x64xf32>
    %237 = arith.addf %233, %236 : vector<128x64xf32>
    %cst_144 = arith.constant 5.000000e-01 : f32
    %238 = vector.broadcast %cst_144 : f32 to vector<128x64xf32>
    %239 = arith.mulf %238, %237 : vector<128x64xf32>
    %cst_145 = arith.constant 4.471500e-02 : f32
    %240 = vector.broadcast %cst_145 : f32 to vector<128x64xf32>
    %241 = arith.mulf %240, %237 : vector<128x64xf32>
    %242 = arith.mulf %241, %237 : vector<128x64xf32>
    %243 = arith.mulf %242, %237 : vector<128x64xf32>
    %244 = arith.addf %237, %243 : vector<128x64xf32>
    %cst_146 = arith.constant 0.797884583 : f32
    %245 = vector.broadcast %cst_146 : f32 to vector<128x64xf32>
    %246 = arith.mulf %245, %244 : vector<128x64xf32>
    %247 = math.tanh %246 : vector<128x64xf32>
    %cst_147 = arith.constant 1.000000e+00 : f32
    %248 = vector.broadcast %cst_147 : f32 to vector<128x64xf32>
    %249 = arith.addf %248, %247 : vector<128x64xf32>
    %250 = arith.mulf %239, %249 : vector<128x64xf32>
    %c0_148 = arith.constant 0 : index
    %c0_149 = arith.constant 0 : index
    %251 = vector.load %arg13[%c0_148, %c0_149] : memref<128x32xf32, #tpu.memory_space<vmem>>, vector<128x32xf32>
    %c1_150 = arith.constant 1 : index
    %c0_151 = arith.constant 0 : index
    %c0_152 = arith.constant 0 : index
    %252 = vector.load %arg10[%c1_150, %c0_151, %c0_152] : memref<2x64x32xf32, #tpu.memory_space<vmem>>, vector<1x64x32xf32>
    %253 = vector.shape_cast %252 : vector<1x64x32xf32> to vector<64x32xf32>
    %cst_153 = arith.constant dense<0.000000e+00> : vector<128x32xf32>
    %254 = tpu.matmul %250, %253, %cst_153 {dimension_numbers = #tpu.dot_dimension_numbers<[1], [0], [0], [1], [0, 0, 1, 1], [], []>} : vector<128x64xf32>, vector<64x32xf32>, vector<128x32xf32> -> vector<128x32xf32>
    %255 = arith.addf %251, %254 : vector<128x32xf32>
    %256 = vector.extract_strided_slice %142 {offsets = [5, 0], sizes = [1, 32], strides = [1, 1]} : vector<8x32xf32> to vector<1x32xf32>
    %257 = vector.broadcast %256 : vector<1x32xf32> to vector<128x32xf32>
    %258 = arith.addf %255, %257 : vector<128x32xf32>
    %c0_154 = arith.constant 0 : index
    %c0_155 = arith.constant 0 : index
    %259 = vector.load %arg13[%c0_154, %c0_155] : memref<128x32xf32, #tpu.memory_space<vmem>>, vector<128x32xf32>
    tpu.vector_store %arg13[%c0_154, %c0_155], %258 {strides = array<i32>} : memref<128x32xf32, #tpu.memory_space<vmem>>, vector<128x32xf32>,
    %c0_156 = arith.constant 0 : index
    %c0_157 = arith.constant 0 : index
    %260 = vector.load %arg11[%c0_156, %c0_157] : memref<16x128xf32, #tpu.memory_space<vmem>>, vector<16x128xf32>
    %c0_158 = arith.constant 0 : index
    %c0_159 = arith.constant 0 : index
    %261 = vector.load %arg13[%c0_158, %c0_159] : memref<128x32xf32, #tpu.memory_space<vmem>>, vector<128x32xf32>
    %cst_160 = arith.constant dense<0.000000e+00> : vector<16x32xf32>
    %262 = tpu.matmul %260, %261, %cst_160 {dimension_numbers = #tpu.dot_dimension_numbers<[1], [0], [0], [1], [0, 0, 1, 1], [], []>} : vector<16x128xf32>, vector<128x32xf32>, vector<16x32xf32> -> vector<16x32xf32>
    %c0_161 = arith.constant 0 : index
    %c0_162 = arith.constant 0 : index
    %263 = vector.load %arg12[%c0_161, %c0_162] : memref<16x32xf32, #tpu.memory_space<vmem>>, vector<16x32xf32>
    tpu.vector_store %arg12[%c0_161, %c0_162], %262 {strides = array<i32>} : memref<16x32xf32, #tpu.memory_space<vmem>>, vector<16x32xf32>,
    return
  }
  func.func @transform_0(%arg0: i32) -> (i32, i32) {
    %c0_i32 = arith.constant 0 : i32
    %c0_i32_0 = arith.constant 0 : i32
    return %arg0, %c0_i32 : i32, i32
  }
  func.func @transform_1(%arg0: i32) -> (i32, i32) {
    %c0_i32 = arith.constant 0 : i32
    %c0_i32_0 = arith.constant 0 : i32
    %c0_i32_1 = arith.constant 0 : i32
    return %c0_i32, %c0_i32_0 : i32, i32
  }
  func.func @transform_2(%arg0: i32) -> (i32, i32) {
    %c0_i32 = arith.constant 0 : i32
    %c0_i32_0 = arith.constant 0 : i32
    %c0_i32_1 = arith.constant 0 : i32
    return %c0_i32, %c0_i32_0 : i32, i32
  }
  func.func @transform_3(%arg0: i32) -> (i32, i32) {
    %c0_i32 = arith.constant 0 : i32
    %c0_i32_0 = arith.constant 0 : i32
    %c0_i32_1 = arith.constant 0 : i32
    return %c0_i32, %c0_i32_0 : i32, i32
  }
  func.func @transform_4(%arg0: i32) -> (i32, i32, i32) {
    %c0_i32 = arith.constant 0 : i32
    %c0_i32_0 = arith.constant 0 : i32
    %c0_i32_1 = arith.constant 0 : i32
    %c0_i32_2 = arith.constant 0 : i32
    return %c0_i32, %c0_i32_0, %c0_i32_1 : i32, i32, i32
  }
  func.func @transform_5(%arg0: i32) -> (i32, i32, i32) {
    %c0_i32 = arith.constant 0 : i32
    %c0_i32_0 = arith.constant 0 : i32
    %c0_i32_1 = arith.constant 0 : i32
    %c0_i32_2 = arith.constant 0 : i32
    return %c0_i32, %c0_i32_0, %c0_i32_1 : i32, i32, i32
  }
  func.func @transform_6(%arg0: i32) -> (i32, i32, i32) {
    %c0_i32 = arith.constant 0 : i32
    %c0_i32_0 = arith.constant 0 : i32
    %c0_i32_1 = arith.constant 0 : i32
    %c0_i32_2 = arith.constant 0 : i32
    return %c0_i32, %c0_i32_0, %c0_i32_1 : i32, i32, i32
  }
  func.func @transform_7(%arg0: i32) -> (i32, i32, i32) {
    %c0_i32 = arith.constant 0 : i32
    %c0_i32_0 = arith.constant 0 : i32
    %c0_i32_1 = arith.constant 0 : i32
    %c0_i32_2 = arith.constant 0 : i32
    return %c0_i32, %c0_i32_0, %c0_i32_1 : i32, i32, i32
  }
  func.func @transform_8(%arg0: i32) -> (i32, i32, i32) {
    %c0_i32 = arith.constant 0 : i32
    %c0_i32_0 = arith.constant 0 : i32
    %c0_i32_1 = arith.constant 0 : i32
    %c0_i32_2 = arith.constant 0 : i32
    return %c0_i32, %c0_i32_0, %c0_i32_1 : i32, i32, i32
  }
  func.func @transform_9(%arg0: i32) -> (i32, i32, i32) {
    %c0_i32 = arith.constant 0 : i32
    %c0_i32_0 = arith.constant 0 : i32
    %c0_i32_1 = arith.constant 0 : i32
    %c0_i32_2 = arith.constant 0 : i32
    return %c0_i32, %c0_i32_0, %c0_i32_1 : i32, i32, i32
  }
  func.func @transform_10(%arg0: i32) -> (i32, i32) {
    %c0_i32 = arith.constant 0 : i32
    %c0_i32_0 = arith.constant 0 : i32
    %c0_i32_1 = arith.constant 0 : i32
    return %c0_i32, %c0_i32_0 : i32, i32
  }
  func.func @transform_11(%arg0: i32) -> (i32, i32) {
    %c0_i32 = arith.constant 0 : i32
    %c0_i32_0 = arith.constant 0 : i32
    return %arg0, %c0_i32 : i32, i32
  }
}

</mosaic_0001>

<llo_original>
// kernel: tpu_custom_call.1
$region0: #{tpu_custom_call.1}
  #allocation0 [shape = 'u32[]', space=smem, size = 0x4, offset = 0x4, fixed_abs, tag = 'smem constant byte address 0x4 - core index']
  #allocation1 [shape = 'u32[144,128]{1,0:T(1,128)}', space=vmem, size = 0x12000, scoped, tag = 'internal scratch']
  #allocation2 [shape = 'f32[128,32]{1,0:T(8,128)}', space=vmem, size = 0x10000, scoped, tag = 'scratch operand']
  #allocation3 [shape = 'f32[128,96]{1,0:T(8,128)}', space=vmem, size = 0x10000, scoped, tag = 'scratch operand']
  #allocation4 [shape = 'f32[128,32]{1,0:T(8,128)}', space=vmem, size = 0x10000, scoped, tag = 'scratch operand']
  %s0 = inlined_call_operand.vmem [shape: f32[256,3], index: 0, kind: input, shape index: {}]
  %s1 = inlined_call_operand.vmem [shape: f32[128,32], index: 1, kind: input, shape index: {}]
  %s2 = inlined_call_operand.vmem [shape: f32[3,32], index: 2, kind: input, shape index: {}]
  %s3 = inlined_call_operand.vmem [shape: f32[128,128], index: 3, kind: input, shape index: {}]
  %s4 = inlined_call_operand.vmem [shape: f32[2,8,32], index: 4, kind: input, shape index: {}]
  %s5 = inlined_call_operand.vmem [shape: f32[2,1,64], index: 5, kind: input, shape index: {}]
  %s6 = inlined_call_operand.vmem [shape: f32[2,32,96], index: 6, kind: input, shape index: {}]
  %s7 = inlined_call_operand.vmem [shape: f32[2,32,32], index: 7, kind: input, shape index: {}]
  %s8 = inlined_call_operand.vmem [shape: f32[2,32,64], index: 8, kind: input, shape index: {}]
  %s9 = inlined_call_operand.vmem [shape: f32[2,64,32], index: 9, kind: input, shape index: {}]
  %s10 = inlined_call_operand.vmem [shape: f32[16,128], index: 10, kind: input, shape index: {}]
  %s11 = inlined_call_operand.hbm [shape: f32[32,32], index: 11, kind: output, shape index: {}]
  %s12 = sld [smem:[#allocation0]]
  $region77: #{tpu_custom_call.1} parent=0
    _
  %s14 = ssub.s32 1, %s12
  %s15 = scalar_select 0, %s14, %s12
  $region1: #{tpu_custom_call.1} parent=0
    #allocation5 [shape = 'u8[16384]{0}', space=vmem, size = 0x4000, scoped, tag = 'output window, operand 0']
    #allocation6 [shape = 's32[2]{0}', space=sflag, size = 0x8, scoped, tag = 'scoped memory for tpu_custom_call.1']
    %16 = vsyncpa [#allocation6], 0
    %s17 = scalar_lea.sflag [#allocation6], 1
    %18 = vsyncpa %s17, 0
    loop: start=0, step=1, limit=4
    $region2: #{tpu_custom_call.1} parent=1 // loop_pre_header
      _
    $region3: #{tpu_custom_call.1} parent=1 // loop_header
      %s20 = sphi 0, %s24
      %p21 = scmp.ge.s32.totalorder %s20, 4
      %s30 = sphi 0, %s32
      %s33 = sphi 0, %s30
      %s34 = sphi 0, %s33
      %s50 = sphi 0, %s34
      %s54 = sphi 0, %s54
      %s56 = sphi 0, %s54
      %s57 = sphi 0, %s56
      %s71 = sphi 0, %s57
      %s75 = sphi 0, %s75
      %s77 = sphi 0, %s75
      %s78 = sphi 0, %s77
      %s92 = sphi 0, %s78
      %s96 = sphi 0, %s96
      %s98 = sphi 0, %s96
      %s99 = sphi 0, %s98
      %s113 = sphi 0, %s99
      %s117 = sphi 0, %s117
      %s119 = sphi 0, %s117
      %s120 = sphi 0, %s119
      %s134 = sphi 0, %s120
      %s138 = sphi 0, %s138
      %s140 = sphi 0, %s138
      %s141 = sphi 0, %s140
      %s155 = sphi 0, %s141
      %s159 = sphi 0, %s159
      %s161 = sphi 0, %s159
      %s162 = sphi 0, %s161
      %s176 = sphi 0, %s162
      %s180 = sphi 0, %s180
      %s182 = sphi 0, %s180
      %s183 = sphi 0, %s182
      %s197 = sphi 0, %s183
      %s201 = sphi 0, %s201
      %s203 = sphi 0, %s201
      %s204 = sphi 0, %s203
      %s218 = sphi 0, %s204
      %s222 = sphi 0, %s222
      %s224 = sphi 0, %s222
      %s225 = sphi 0, %s224
      %s239 = sphi 0, %s225
      %s243 = sphi 0, %s243
      %s245 = sphi 0, %s243
      %s246 = sphi 0, %s245
      %s260 = sphi 0, %s246
      %s266 = sphi 0, %s268
      %s269 = sphi 0, %s266
      %s270 = sphi 0, %s269
      %s286 = sphi 0, %s270
    $region4: #{tpu_custom_call.1} parent=1 // loop_header_branch
      %23 = sbr.rel (%p21) target = $region8
    $region5: #{tpu_custom_call.1} parent=1 // loop_body
      %s25 = ssub.s32 %s20, 1
      %s26 = ssub.s32 %s20, 2
      %s27 = sadd.s32 %s20, 1
      %s28 = ssub.s32 %s20, %s27
      %p29 = scmp.eq.s32.totalorder %s28, 0
      %s31 = sadd.s32 %s30, 1
      %s32 = scalar_select %p29, %s30, %s31
      %p35 = pneg %p29
      %p36 = scmp.eq.s32.totalorder %s20, 1
      %p37 = por %p35, %p36
      %p38 = scmp.ne.s32.totalorder %s30, %s33
      %p39 = scmp.eq.s32.totalorder %s20, 0
      %p40 = por %p38, %p39
      %p41 = scmp.ne.s32.totalorder %s30, %s33
      %p42 = scmp.eq.s32.totalorder %s25, 1
      %p43 = por %p41, %p42
      %p44 = scmp.ne.s32.totalorder %s33, %s34
      %p45 = scmp.eq.s32.totalorder %s25, 0
      %p46 = por %p44, %p45
      %p47 = scmp.ne.s32.totalorder %s33, %s34
      %p48 = scmp.eq.s32.totalorder %s26, 1
      %p49 = por %p47, %p48
      %p51 = scmp.ne.s32.totalorder %s34, %s50
      %p52 = scmp.eq.s32.totalorder %s26, 0
      %p53 = por %p51, %p52
      %s55 = sadd.s32 %s54, 1
      %p58 = scmp.eq.s32.totalorder %s20, 1
      %p59 = scmp.ne.s32.totalorder %s54, %s56
      %p60 = scmp.eq.s32.totalorder %s20, 0
      %p61 = por %p59, %p60
      %p62 = scmp.ne.s32.totalorder %s54, %s56
      %p63 = scmp.eq.s32.totalorder %s25, 1
      %p64 = por %p62, %p63
      %p65 = scmp.ne.s32.totalorder %s56, %s57
      %p66 = scmp.eq.s32.totalorder %s25, 0
      %p67 = por %p65, %p66
      %p68 = scmp.ne.s32.totalorder %s56, %s57
      %p69 = scmp.eq.s32.totalorder %s26, 1
      %p70 = por %p68, %p69
      %p72 = scmp.ne.s32.totalorder %s57, %s71
      %p73 = scmp.eq.s32.totalorder %s26, 0
      %p74 = por %p72, %p73
      %s76 = sadd.s32 %s75, 1
      %p79 = scmp.eq.s32.totalorder %s20, 1
      %p80 = scmp.ne.s32.totalorder %s75, %s77
      %p81 = scmp.eq.s32.totalorder %s20, 0
      %p82 = por %p80, %p81
      %p83 = scmp.ne.s32.totalorder %s75, %s77
      %p84 = scmp.eq.s32.totalorder %s25, 1
      %p85 = por %p83, %p84
      %p86 = scmp.ne.s32.totalorder %s77, %s78
      %p87 = scmp.eq.s32.totalorder %s25, 0
      %p88 = por %p86, %p87
      %p89 = scmp.ne.s32.totalorder %s77, %s78
      %p90 = scmp.eq.s32.totalorder %s26, 1
      %p91 = por %p89, %p90
      %p93 = scmp.ne.s32.totalorder %s78, %s92
      %p94 = scmp.eq.s32.totalorder %s26, 0
      %p95 = por %p93, %p94
      %s97 = sadd.s32 %s96, 1
      %p100 = scmp.eq.s32.totalorder %s20, 1
      %p101 = scmp.ne.s32.totalorder %s96, %s98
      %p102 = scmp.eq.s32.totalorder %s20, 0
      %p103 = por %p101, %p102
      %p104 = scmp.ne.s32.totalorder %s96, %s98
      %p105 = scmp.eq.s32.totalorder %s25, 1
      %p106 = por %p104, %p105
      %p107 = scmp.ne.s32.totalorder %s98, %s99
      %p108 = scmp.eq.s32.totalorder %s25, 0
      %p109 = por %p107, %p108
      %p110 = scmp.ne.s32.totalorder %s98, %s99
      %p111 = scmp.eq.s32.totalorder %s26, 1
      %p112 = por %p110, %p111
      %p114 = scmp.ne.s32.totalorder %s99, %s113
      %p115 = scmp.eq.s32.totalorder %s26, 0
      %p116 = por %p114, %p115
      %s118 = sadd.s32 %s117, 1
      %p121 = scmp.eq.s32.totalorder %s20, 1
      %p122 = scmp.ne.s32.totalorder %s117, %s119
      %p123 = scmp.eq.s32.totalorder %s20, 0
      %p124 = por %p122, %p123
      %p125 = scmp.ne.s32.totalorder %s117, %s119
      %p126 = scmp.eq.s32.totalorder %s25, 1
      %p127 = por %p125, %p126
      %p128 = scmp.ne.s32.totalorder %s119, %s120
      %p129 = scmp.eq.s32.totalorder %s25, 0
      %p130 = por %p128, %p129
      %p131 = scmp.ne.s32.totalorder %s119, %s120
      %p132 = scmp.eq.s32.totalorder %s26, 1
      %p133 = por %p131, %p132
      %p135 = scmp.ne.s32.totalorder %s120, %s134
      %p136 = scmp.eq.s32.totalorder %s26, 0
      %p137 = por %p135, %p136
      %s139 = sadd.s32 %s138, 1
      %p142 = scmp.eq.s32.totalorder %s20, 1
      %p143 = scmp.ne.s32.totalorder %s138, %s140
      %p144 = scmp.eq.s32.totalorder %s20, 0
      %p145 = por %p143, %p144
      %p146 = scmp.ne.s32.totalorder %s138, %s140
      %p147 = scmp.eq.s32.totalorder %s25, 1
      %p148 = por %p146, %p147
      %p149 = scmp.ne.s32.totalorder %s140, %s141
      %p150 = scmp.eq.s32.totalorder %s25, 0
      %p151 = por %p149, %p150
      %p152 = scmp.ne.s32.totalorder %s140, %s141
      %p153 = scmp.eq.s32.totalorder %s26, 1
      %p154 = por %p152, %p153
      %p156 = scmp.ne.s32.totalorder %s141, %s155
      %p157 = scmp.eq.s32.totalorder %s26, 0
      %p158 = por %p156, %p157
      %s160 = sadd.s32 %s159, 1
      %p163 = scmp.eq.s32.totalorder %s20, 1
      %p164 = scmp.ne.s32.totalorder %s159, %s161
      %p165 = scmp.eq.s32.totalorder %s20, 0
      %p166 = por %p164, %p165
      %p167 = scmp.ne.s32.totalorder %s159, %s161
      %p168 = scmp.eq.s32.totalorder %s25, 1
      %p169 = por %p167, %p168
      %p170 = scmp.ne.s32.totalorder %s161, %s162
      %p171 = scmp.eq.s32.totalorder %s25, 0
      %p172 = por %p170, %p171
      %p173 = scmp.ne.s32.totalorder %s161, %s162
      %p174 = scmp.eq.s32.totalorder %s26, 1
      %p175 = por %p173, %p174
      %p177 = scmp.ne.s32.totalorder %s162, %s176
      %p178 = scmp.eq.s32.totalorder %s26, 0
      %p179 = por %p177, %p178
      %s181 = sadd.s32 %s180, 1
      %p184 = scmp.eq.s32.totalorder %s20, 1
      %p185 = scmp.ne.s32.totalorder %s180, %s182
      %p186 = scmp.eq.s32.totalorder %s20, 0
      %p187 = por %p185, %p186
      %p188 = scmp.ne.s32.totalorder %s180, %s182
      %p189 = scmp.eq.s32.totalorder %s25, 1
      %p190 = por %p188, %p189
      %p191 = scmp.ne.s32.totalorder %s182, %s183
      %p192 = scmp.eq.s32.totalorder %s25, 0
      %p193 = por %p191, %p192
      %p194 = scmp.ne.s32.totalorder %s182, %s183
      %p195 = scmp.eq.s32.totalorder %s26, 1
      %p196 = por %p194, %p195
      %p198 = scmp.ne.s32.totalorder %s183, %s197
      %p199 = scmp.eq.s32.totalorder %s26, 0
      %p200 = por %p198, %p199
      %s202 = sadd.s32 %s201, 1
      %p205 = scmp.eq.s32.totalorder %s20, 1
      %p206 = scmp.ne.s32.totalorder %s201, %s203
      %p207 = scmp.eq.s32.totalorder %s20, 0
      %p208 = por %p206, %p207
      %p209 = scmp.ne.s32.totalorder %s201, %s203
      %p210 = scmp.eq.s32.totalorder %s25, 1
      %p211 = por %p209, %p210
      %p212 = scmp.ne.s32.totalorder %s203, %s204
      %p213 = scmp.eq.s32.totalorder %s25, 0
      %p214 = por %p212, %p213
      %p215 = scmp.ne.s32.totalorder %s203, %s204
      %p216 = scmp.eq.s32.totalorder %s26, 1
      %p217 = por %p215, %p216
      %p219 = scmp.ne.s32.totalorder %s204, %s218
      %p220 = scmp.eq.s32.totalorder %s26, 0
      %p221 = por %p219, %p220
      %s223 = sadd.s32 %s222, 1
      %p226 = scmp.eq.s32.totalorder %s20, 1
      %p227 = scmp.ne.s32.totalorder %s222, %s224
      %p228 = scmp.eq.s32.totalorder %s20, 0
      %p229 = por %p227, %p228
      %p230 = scmp.ne.s32.totalorder %s222, %s224
      %p231 = scmp.eq.s32.totalorder %s25, 1
      %p232 = por %p230, %p231
      %p233 = scmp.ne.s32.totalorder %s224, %s225
      %p234 = scmp.eq.s32.totalorder %s25, 0
      %p235 = por %p233, %p234
      %p236 = scmp.ne.s32.totalorder %s224, %s225
      %p237 = scmp.eq.s32.totalorder %s26, 1
      %p238 = por %p236, %p237
      %p240 = scmp.ne.s32.totalorder %s225, %s239
      %p241 = scmp.eq.s32.totalorder %s26, 0
      %p242 = por %p240, %p241
      %s244 = sadd.s32 %s243, 1
      %p247 = scmp.eq.s32.totalorder %s20, 1
      %p248 = scmp.ne.s32.totalorder %s243, %s245
      %p249 = scmp.eq.s32.totalorder %s20, 0
      %p250 = por %p248, %p249
      %p251 = scmp.ne.s32.totalorder %s243, %s245
      %p252 = scmp.eq.s32.totalorder %s25, 1
      %p253 = por %p251, %p252
      %p254 = scmp.ne.s32.totalorder %s245, %s246
      %p255 = scmp.eq.s32.totalorder %s25, 0
      %p256 = por %p254, %p255
      %p257 = scmp.ne.s32.totalorder %s245, %s246
      %p258 = scmp.eq.s32.totalorder %s26, 1
      %p259 = por %p257, %p258
      %p261 = scmp.ne.s32.totalorder %s246, %s260
      %p262 = scmp.eq.s32.totalorder %s26, 0
      %p263 = por %p261, %p262
      %s264 = ssub.s32 %s20, %s27
      %p265 = scmp.eq.s32.totalorder %s264, 0
      %s267 = sadd.s32 %s266, 1
      %s268 = scalar_select %p265, %s266, %s267
      %p271 = pneg %p265
      %p272 = scmp.eq.s32.totalorder %s20, 1
      %p273 = por %p271, %p272
      %p274 = scmp.ne.s32.totalorder %s266, %s269
      %p275 = scmp.eq.s32.totalorder %s20, 0
      %p276 = por %p274, %p275
      %p277 = scmp.ne.s32.totalorder %s266, %s269
      %p278 = scmp.eq.s32.totalorder %s25, 1
      %p279 = por %p277, %p278
      %p280 = scmp.ne.s32.totalorder %s269, %s270
      %p281 = scmp.eq.s32.totalorder %s25, 0
      %p282 = por %p280, %p281
      %p283 = scmp.ne.s32.totalorder %s269, %s270
      %p284 = scmp.eq.s32.totalorder %s26, 1
      %p285 = por %p283, %p284
      %p287 = scmp.ne.s32.totalorder %s270, %s286
      %p288 = scmp.eq.s32.totalorder %s26, 0
      %p289 = por %p287, %p288
      %p290 = scmp.le.s32.totalorder 1, %s20
      %p291 = scmp.lt.s32.totalorder %s20, 3
      %p292 = pnand %p290, %p291
      %p293 = pneg %p292
      // Predicated region
      $region9: #{tpu_custom_call.1} parent=5 // pred_check
        _
      $region10: #{tpu_custom_call.1} parent=5 // pred_check_branch
        %295 = sbr.rel (%p292) target = $region12
      $region11: #{tpu_custom_call.1} parent=5 // pred_region
        %s296 = ssub.s32 %s20, 1
        // Predicated region
        $region13: #{tpu_custom_call.1} parent=11 // pred_check
          %p297 = pneg %p67
        $region14: #{tpu_custom_call.1} parent=11 // pred_check_branch
          %299 = sbr.rel (%p297) target = $region16
        $region15: #{tpu_custom_call.1} parent=11 // pred_region
          _
        $region16: #{tpu_custom_call.1} parent=11 // pred_fallthru
          _
        // Predicated region
        $region17: #{tpu_custom_call.1} parent=11 // pred_check
          %p300 = pneg %p88
        $region18: #{tpu_custom_call.1} parent=11 // pred_check_branch
          %302 = sbr.rel (%p300) target = $region20
        $region19: #{tpu_custom_call.1} parent=11 // pred_region
          _
        $region20: #{tpu_custom_call.1} parent=11 // pred_fallthru
          _
        // Predicated region
        $region21: #{tpu_custom_call.1} parent=11 // pred_check
          %p303 = pneg %p109
        $region22: #{tpu_custom_call.1} parent=11 // pred_check_branch
          %305 = sbr.rel (%p303) target = $region24
        $region23: #{tpu_custom_call.1} parent=11 // pred_region
          _
        $region24: #{tpu_custom_call.1} parent=11 // pred_fallthru
          _
        // Predicated region
        $region25: #{tpu_custom_call.1} parent=11 // pred_check
          %p306 = pneg %p130
        $region26: #{tpu_custom_call.1} parent=11 // pred_check_branch
          %308 = sbr.rel (%p306) target = $region28
        $region27: #{tpu_custom_call.1} parent=11 // pred_region
          _
        $region28: #{tpu_custom_call.1} parent=11 // pred_fallthru
          _
        // Predicated region
        $region29: #{tpu_custom_call.1} parent=11 // pred_check
          %p309 = pneg %p151
        $region30: #{tpu_custom_call.1} parent=11 // pred_check_branch
          %311 = sbr.rel (%p309) target = $region32
        $region31: #{tpu_custom_call.1} parent=11 // pred_region
          _
        $region32: #{tpu_custom_call.1} parent=11 // pred_fallthru
          _
        // Predicated region
        $region33: #{tpu_custom_call.1} parent=11 // pred_check
          %p312 = pneg %p172
        $region34: #{tpu_custom_call.1} parent=11 // pred_check_branch
          %314 = sbr.rel (%p312) target = $region36
        $region35: #{tpu_custom_call.1} parent=11 // pred_region
          _
        $region36: #{tpu_custom_call.1} parent=11 // pred_fallthru
          _
        // Predicated region
        $region37: #{tpu_custom_call.1} parent=11 // pred_check
          %p315 = pneg %p193
        $region38: #{tpu_custom_call.1} parent=11 // pred_check_branch
          %317 = sbr.rel (%p315) target = $region40
        $region39: #{tpu_custom_call.1} parent=11 // pred_region
          _
        $region40: #{tpu_custom_call.1} parent=11 // pred_fallthru
          _
        // Predicated region
        $region41: #{tpu_custom_call.1} parent=11 // pred_check
          %p318 = pneg %p214
        $region42: #{tpu_custom_call.1} parent=11 // pred_check_branch
          %320 = sbr.rel (%p318) target = $region44
        $region43: #{tpu_custom_call.1} parent=11 // pred_region
          _
        $region44: #{tpu_custom_call.1} parent=11 // pred_fallthru
          _
        // Predicated region
        $region45: #{tpu_custom_call.1} parent=11 // pred_check
          %p321 = pneg %p235
        $region46: #{tpu_custom_call.1} parent=11 // pred_check_branch
          %323 = sbr.rel (%p321) target = $region48
        $region47: #{tpu_custom_call.1} parent=11 // pred_region
          _
        $region48: #{tpu_custom_call.1} parent=11 // pred_fallthru
          _
        // Predicated region
        $region49: #{tpu_custom_call.1} parent=11 // pred_check
          %p324 = pneg %p256
        $region50: #{tpu_custom_call.1} parent=11 // pred_check_branch
          %326 = sbr.rel (%p324) target = $region52
        $region51: #{tpu_custom_call.1} parent=11 // pred_region
          _
        $region52: #{tpu_custom_call.1} parent=11 // pred_fallthru
          _
      $region12: #{tpu_custom_call.1} parent=5 // pred_fallthru
        _
      %p327 = scmp.lt.s32.totalorder %s20, 2
      // Predicated region
      $region53: #{tpu_custom_call.1} parent=5 // pred_check
        %p328 = pneg %p327
      $region54: #{tpu_custom_call.1} parent=5 // pred_check_branch
        %330 = sbr.rel (%p328) target = $region56
      $region55: #{tpu_custom_call.1} parent=5 // pred_region
        // Predicated region
        $region57: #{tpu_custom_call.1} parent=55 // pred_check
          %p331 = pneg %p40
        $region58: #{tpu_custom_call.1} parent=55 // pred_check_branch
          %333 = sbr.rel (%p331) target = $region60
        $region59: #{tpu_custom_call.1} parent=55 // pred_region
          %s334 = smul.u32 16, %s20
          %p335 = scmp.lt.s32.totalorder %s334, 31
          %s336 = scalar_select %p335, %s334, 31
          %s337 = smul.addr %s336, 8
          %s338 = scalar_lea.vmem %s0, %s337
          %s339 = smul.u32 16, %s20
        $region60: #{tpu_custom_call.1} parent=55 // pred_fallthru
          _
      $region56: #{tpu_custom_call.1} parent=5 // pred_fallthru
        _
      %p340 = scmp.le.s32.totalorder 1, %s20
      %p341 = scmp.lt.s32.totalorder %s20, 3
      %p342 = pnand %p340, %p341
      %p343 = pneg %p342
      // Predicated region
      $region61: #{tpu_custom_call.1} parent=5 // pred_check
        _
      $region62: #{tpu_custom_call.1} parent=5 // pred_check_branch
        %345 = sbr.rel (%p342) target = $region64
      $region63: #{tpu_custom_call.1} parent=5 // pred_region
        %s346 = ssub.s32 %s20, 1
        %s347 = smul.u32 16, %s25
        %p348 = scmp.lt.s32.totalorder %s347, 31
        %s349 = scalar_select %p348, %s347, 31
        %s350 = smul.addr %s349, 8
        %s351 = scalar_lea.vmem %s0, %s350
        %p352 = pneg %p46
        %p353 = pneg %p43
        %p354 = pneg %p67
        %p355 = pneg %p64
        %p356 = pneg %p88
        %p357 = pneg %p85
        %p358 = pneg %p109
        %p359 = pneg %p106
        %p360 = pneg %p130
        %p361 = pneg %p127
        %p362 = pneg %p151
        %p363 = pneg %p148
        %p364 = pneg %p172
        %p365 = pneg %p169
        %p366 = pneg %p193
        %p367 = pneg %p190
        %p368 = pneg %p214
        %p369 = pneg %p211
        %p370 = pneg %p235
        %p371 = pneg %p232
        %p372 = pneg %p256
        %p373 = pneg %p253
        %p374 = pneg %p282
        %p375 = pneg %p279
        %s376 = sand.u32 %s269, 1
        %s377 = scalar_lea.sflag [#allocation6], %s376
        %s378 = sand.u32 %s269, 1
        %s379 = smul.addr %s378, 16
        %s380 = scalar_lea.vmem [#allocation5], %s379
        %s381 = smul.u32 16, %s25
        %p382 = scmp.lt.s32.totalorder %s381, 31
        %s383 = scalar_select %p382, %s381, 31
        %s384 = smul.addr %s383, 8
        %s385 = scalar_lea.vmem %s0, %s384
        %s386 = smul.u32 16, %s25
        %s387 = smul.u32 2, %s25
        %v388 = vld [vmem:[%s385] sm:$0xff]
        %v389 = vld [vmem:[%s385 + $0x8] sm:$0xff]
        %v390 = vld [vmem:[%s385 + $0x10] sm:$0xff]
        %v391 = vld [vmem:[%s385 + $0x18] sm:$0xff]
        %v392 = vld [vmem:[%s385 + $0x20] sm:$0xff]
        %v393 = vld [vmem:[%s385 + $0x28] sm:$0xff]
        %v394 = vld [vmem:[%s385 + $0x30] sm:$0xff]
        %v395 = vld [vmem:[%s385 + $0x38] sm:$0xff]
        %v396 = vld [vmem:[%s385 + $0x40] sm:$0xff]
        %v397 = vld [vmem:[%s385 + $0x48] sm:$0xff]
        %v398 = vld [vmem:[%s385 + $0x50] sm:$0xff]
        %v399 = vld [vmem:[%s385 + $0x58] sm:$0xff]
        %v400 = vld [vmem:[%s385 + $0x60] sm:$0xff]
        %v401 = vld [vmem:[%s385 + $0x68] sm:$0xff]
        %v402 = vld [vmem:[%s385 + $0x70] sm:$0xff]
        %v403 = vld [vmem:[%s385 + $0x78] sm:$0xff]
        %v404 = vld [vmem:[%s2] sm:$0x7]
        %406 = vset.pattern.permute.xlu0 0
        %407 = vperm.xlu0 %406, %v388
        %v408 = vpop.permute.xlu0 %407
        %411 = vset.pattern.permute.xlu0 0
        %412 = vperm.xlu0 %411, %v389
        %v413 = vpop.permute.xlu0 %412
        %416 = vset.pattern.permute.xlu0 0
        %417 = vperm.xlu0 %416, %v390
        %v418 = vpop.permute.xlu0 %417
        %421 = vset.pattern.permute.xlu0 0
        %422 = vperm.xlu0 %421, %v391
        %v423 = vpop.permute.xlu0 %422
        %426 = vset.pattern.permute.xlu0 0
        %427 = vperm.xlu0 %426, %v392
        %v428 = vpop.permute.xlu0 %427
        %431 = vset.pattern.permute.xlu0 0
        %432 = vperm.xlu0 %431, %v393
        %v433 = vpop.permute.xlu0 %432
        %436 = vset.pattern.permute.xlu0 0
        %437 = vperm.xlu0 %436, %v394
        %v438 = vpop.permute.xlu0 %437
        %441 = vset.pattern.permute.xlu0 0
        %442 = vperm.xlu0 %441, %v395
        %v443 = vpop.permute.xlu0 %442
        %446 = vset.pattern.permute.xlu0 0
        %447 = vperm.xlu0 %446, %v396
        %v448 = vpop.permute.xlu0 %447
        %451 = vset.pattern.permute.xlu0 0
        %452 = vperm.xlu0 %451, %v397
        %v453 = vpop.permute.xlu0 %452
        %456 = vset.pattern.permute.xlu0 0
        %457 = vperm.xlu0 %456, %v398
        %v458 = vpop.permute.xlu0 %457
        %461 = vset.pattern.permute.xlu0 0
        %462 = vperm.xlu0 %461, %v399
        %v463 = vpop.permute.xlu0 %462
        %466 = vset.pattern.permute.xlu0 0
        %467 = vperm.xlu0 %466, %v400
        %v468 = vpop.permute.xlu0 %467
        %471 = vset.pattern.permute.xlu0 0
        %472 = vperm.xlu0 %471, %v401
        %v473 = vpop.permute.xlu0 %472
        %476 = vset.pattern.permute.xlu0 0
        %477 = vperm.xlu0 %476, %v402
        %v478 = vpop.permute.xlu0 %477
        %481 = vset.pattern.permute.xlu0 0
        %482 = vperm.xlu0 %481, %v403
        %v483 = vpop.permute.xlu0 %482
        %v485 = vlaneseq
        %v486 = vshrl.u32 %v485, 7
        %v487 = vsub.s32 0, %v486
        %v488 = vrot.slane %v404, %v487
        %v489 = vmul.f32 %v408, %v488
        %v490 = vmul.f32 %v413, %v488
        %v491 = vmul.f32 %v418, %v488
        %v492 = vmul.f32 %v423, %v488
        %v493 = vmul.f32 %v428, %v488
        %v494 = vmul.f32 %v433, %v488
        %v495 = vmul.f32 %v438, %v488
        %v496 = vmul.f32 %v443, %v488
        %v497 = vmul.f32 %v448, %v488
        %v498 = vmul.f32 %v453, %v488
        %v499 = vmul.f32 %v458, %v488
        %v500 = vmul.f32 %v463, %v488
        %v501 = vmul.f32 %v468, %v488
        %v502 = vmul.f32 %v473, %v488
        %v503 = vmul.f32 %v478, %v488
        %v504 = vmul.f32 %v483, %v488
        %505 = vset.pattern.permute.xlu0 1
        %506 = vperm.xlu0 %505, %v388
        %v507 = vpop.permute.xlu0 %506
        %509 = vset.pattern.permute.xlu0 1
        %510 = vperm.xlu0 %509, %v389
        %v511 = vpop.permute.xlu0 %510
        %513 = vset.pattern.permute.xlu0 1
        %514 = vperm.xlu0 %513, %v390
        %v515 = vpop.permute.xlu0 %514
        %517 = vset.pattern.permute.xlu0 1
        %518 = vperm.xlu0 %517, %v391
        %v519 = vpop.permute.xlu0 %518
        %521 = vset.pattern.permute.xlu0 1
        %522 = vperm.xlu0 %521, %v392
        %v523 = vpop.permute.xlu0 %522
        %525 = vset.pattern.permute.xlu0 1
        %526 = vperm.xlu0 %525, %v393
        %v527 = vpop.permute.xlu0 %526
        %529 = vset.pattern.permute.xlu0 1
        %530 = vperm.xlu0 %529, %v394
        %v531 = vpop.permute.xlu0 %530
        %533 = vset.pattern.permute.xlu0 1
        %534 = vperm.xlu0 %533, %v395
        %v535 = vpop.permute.xlu0 %534
        %537 = vset.pattern.permute.xlu0 1
        %538 = vperm.xlu0 %537, %v396
        %v539 = vpop.permute.xlu0 %538
        %541 = vset.pattern.permute.xlu0 1
        %542 = vperm.xlu0 %541, %v397
        %v543 = vpop.permute.xlu0 %542
        %545 = vset.pattern.permute.xlu0 1
        %546 = vperm.xlu0 %545, %v398
        %v547 = vpop.permute.xlu0 %546
        %549 = vset.pattern.permute.xlu0 1
        %550 = vperm.xlu0 %549, %v399
        %v551 = vpop.permute.xlu0 %550
        %553 = vset.pattern.permute.xlu0 1
        %554 = vperm.xlu0 %553, %v400
        %v555 = vpop.permute.xlu0 %554
        %557 = vset.pattern.permute.xlu0 1
        %558 = vperm.xlu0 %557, %v401
        %v559 = vpop.permute.xlu0 %558
        %561 = vset.pattern.permute.xlu0 1
        %562 = vperm.xlu0 %561, %v402
        %v563 = vpop.permute.xlu0 %562
        %565 = vset.pattern.permute.xlu0 1
        %566 = vperm.xlu0 %565, %v403
        %v567 = vpop.permute.xlu0 %566
        %v569 = vlaneseq
        %v570 = vshrl.u32 %v569, 7
        %v571 = vsub.s32 1, %v570
        %v572 = vrot.slane %v404, %v571
        %v573 = vmul.f32 %v507, %v572
        %v574 = vmul.f32 %v511, %v572
        %v575 = vmul.f32 %v515, %v572
        %v576 = vmul.f32 %v519, %v572
        %v577 = vmul.f32 %v523, %v572
        %v578 = vmul.f32 %v527, %v572
        %v579 = vmul.f32 %v531, %v572
        %v580 = vmul.f32 %v535, %v572
        %v581 = vmul.f32 %v539, %v572
        %v582 = vmul.f32 %v543, %v572
        %v583 = vmul.f32 %v547, %v572
        %v584 = vmul.f32 %v551, %v572
        %v585 = vmul.f32 %v555, %v572
        %v586 = vmul.f32 %v559, %v572
        %v587 = vmul.f32 %v563, %v572
        %v588 = vmul.f32 %v567, %v572
        %v589 = vadd.f32 %v489, %v573
        %v590 = vadd.f32 %v490, %v574
        %v591 = vadd.f32 %v491, %v575
        %v592 = vadd.f32 %v492, %v576
        %v593 = vadd.f32 %v493, %v577
        %v594 = vadd.f32 %v494, %v578
        %v595 = vadd.f32 %v495, %v579
        %v596 = vadd.f32 %v496, %v580
        %v597 = vadd.f32 %v497, %v581
        %v598 = vadd.f32 %v498, %v582
        %v599 = vadd.f32 %v499, %v583
        %v600 = vadd.f32 %v500, %v584
        %v601 = vadd.f32 %v501, %v585
        %v602 = vadd.f32 %v502, %v586
        %v603 = vadd.f32 %v503, %v587
        %v604 = vadd.f32 %v504, %v588
        %605 = vset.pattern.permute.xlu0 2
        %606 = vperm.xlu0 %605, %v388
        %v607 = vpop.permute.xlu0 %606
        %609 = vset.pattern.permute.xlu0 2
        %610 = vperm.xlu0 %609, %v389
        %v611 = vpop.permute.xlu0 %610
        %613 = vset.pattern.permute.xlu0 2
        %614 = vperm.xlu0 %613, %v390
        %v615 = vpop.permute.xlu0 %614
        %617 = vset.pattern.permute.xlu0 2
        %618 = vperm.xlu0 %617, %v391
        %v619 = vpop.permute.xlu0 %618
        %621 = vset.pattern.permute.xlu0 2
        %622 = vperm.xlu0 %621, %v392
        %v623 = vpop.permute.xlu0 %622
        %625 = vset.pattern.permute.xlu0 2
        %626 = vperm.xlu0 %625, %v393
        %v627 = vpop.permute.xlu0 %626
        %629 = vset.pattern.permute.xlu0 2
        %630 = vperm.xlu0 %629, %v394
        %v631 = vpop.permute.xlu0 %630
        %633 = vset.pattern.permute.xlu0 2
        %634 = vperm.xlu0 %633, %v395
        %v635 = vpop.permute.xlu0 %634
        %637 = vset.pattern.permute.xlu0 2
        %638 = vperm.xlu0 %637, %v396
        %v639 = vpop.permute.xlu0 %638
        %641 = vset.pattern.permute.xlu0 2
        %642 = vperm.xlu0 %641, %v397
        %v643 = vpop.permute.xlu0 %642
        %645 = vset.pattern.permute.xlu0 2
        %646 = vperm.xlu0 %645, %v398
        %v647 = vpop.permute.xlu0 %646
        %649 = vset.pattern.permute.xlu0 2
        %650 = vperm.xlu0 %649, %v399
        %v651 = vpop.permute.xlu0 %650
        %653 = vset.pattern.permute.xlu0 2
        %654 = vperm.xlu0 %653, %v400
        %v655 = vpop.permute.xlu0 %654
        %657 = vset.pattern.permute.xlu0 2
        %658 = vperm.xlu0 %657, %v401
        %v659 = vpop.permute.xlu0 %658
        %661 = vset.pattern.permute.xlu0 2
        %662 = vperm.xlu0 %661, %v402
        %v663 = vpop.permute.xlu0 %662
        %665 = vset.pattern.permute.xlu0 2
        %666 = vperm.xlu0 %665, %v403
        %v667 = vpop.permute.xlu0 %666
        %v669 = vlaneseq
        %v670 = vshrl.u32 %v669, 7
        %v671 = vsub.s32 2, %v670
        %v672 = vrot.slane %v404, %v671
        %v673 = vmul.f32 %v607, %v672
        %v674 = vmul.f32 %v611, %v672
        %v675 = vmul.f32 %v615, %v672
        %v676 = vmul.f32 %v619, %v672
        %v677 = vmul.f32 %v623, %v672
        %v678 = vmul.f32 %v627, %v672
        %v679 = vmul.f32 %v631, %v672
        %v680 = vmul.f32 %v635, %v672
        %v681 = vmul.f32 %v639, %v672
        %v682 = vmul.f32 %v643, %v672
        %v683 = vmul.f32 %v647, %v672
        %v684 = vmul.f32 %v651, %v672
        %v685 = vmul.f32 %v655, %v672
        %v686 = vmul.f32 %v659, %v672
        %v687 = vmul.f32 %v663, %v672
        %v688 = vmul.f32 %v667, %v672
        %v689 = vadd.f32 %v589, %v673
        %v690 = vadd.f32 %v590, %v674
        %v691 = vadd.f32 %v591, %v675
        %v692 = vadd.f32 %v592, %v676
        %v693 = vadd.f32 %v593, %v677
        %v694 = vadd.f32 %v594, %v678
        %v695 = vadd.f32 %v595, %v679
        %v696 = vadd.f32 %v596, %v680
        %v697 = vadd.f32 %v597, %v681
        %v698 = vadd.f32 %v598, %v682
        %v699 = vadd.f32 %v599, %v683
        %v700 = vadd.f32 %v600, %v684
        %v701 = vadd.f32 %v601, %v685
        %v702 = vadd.f32 %v602, %v686
        %v703 = vadd.f32 %v603, %v687
        %v704 = vadd.f32 %v604, %v688
        %v705 = vld [vmem:[%s1] sm:$0xff]
        %v706 = vld [vmem:[%s1 + $0x8] sm:$0xff]
        %v707 = vld [vmem:[%s1 + $0x10] sm:$0xff]
        %v708 = vld [vmem:[%s1 + $0x18] sm:$0xff]
        %v709 = vld [vmem:[%s1 + $0x20] sm:$0xff]
        %v710 = vld [vmem:[%s1 + $0x28] sm:$0xff]
        %v711 = vld [vmem:[%s1 + $0x30] sm:$0xff]
        %v712 = vld [vmem:[%s1 + $0x38] sm:$0xff]
        %v713 = vld [vmem:[%s1 + $0x40] sm:$0xff]
        %v714 = vld [vmem:[%s1 + $0x48] sm:$0xff]
        %v715 = vld [vmem:[%s1 + $0x50] sm:$0xff]
        %v716 = vld [vmem:[%s1 + $0x58] sm:$0xff]
        %v717 = vld [vmem:[%s1 + $0x60] sm:$0xff]
        %v718 = vld [vmem:[%s1 + $0x68] sm:$0xff]
        %v719 = vld [vmem:[%s1 + $0x70] sm:$0xff]
        %v720 = vld [vmem:[%s1 + $0x78] sm:$0xff]
        %v721 = vadd.f32 %v689, %v705
        %v722 = vadd.f32 %v690, %v706
        %v723 = vadd.f32 %v691, %v707
        %v724 = vadd.f32 %v692, %v708
        %v725 = vadd.f32 %v693, %v709
        %v726 = vadd.f32 %v694, %v710
        %v727 = vadd.f32 %v695, %v711
        %v728 = vadd.f32 %v696, %v712
        %v729 = vadd.f32 %v697, %v713
        %v730 = vadd.f32 %v698, %v714
        %v731 = vadd.f32 %v699, %v715
        %v732 = vadd.f32 %v700, %v716
        %v733 = vadd.f32 %v701, %v717
        %v734 = vadd.f32 %v702, %v718
        %v735 = vadd.f32 %v703, %v719
        %v736 = vadd.f32 %v704, %v720
        %vm737 = vcmask 261120
        %738 = vst.msk [vmem:[#allocation2] sm:$0xff] %vm737, %v721
        %739 = vst.msk [vmem:[#allocation2 + $0x8] sm:$0xff] %vm737, %v722
        %740 = vst.msk [vmem:[#allocation2 + $0x10] sm:$0xff] %vm737, %v723
        %741 = vst.msk [vmem:[#allocation2 + $0x18] sm:$0xff] %vm737, %v724
        %742 = vst.msk [vmem:[#allocation2 + $0x20] sm:$0xff] %vm737, %v725
        %743 = vst.msk [vmem:[#allocation2 + $0x28] sm:$0xff] %vm737, %v726
        %744 = vst.msk [vmem:[#allocation2 + $0x30] sm:$0xff] %vm737, %v727
        %745 = vst.msk [vmem:[#allocation2 + $0x38] sm:$0xff] %vm737, %v728
        %746 = vst.msk [vmem:[#allocation2 + $0x40] sm:$0xff] %vm737, %v729
        %747 = vst.msk [vmem:[#allocation2 + $0x48] sm:$0xff] %vm737, %v730
        %748 = vst.msk [vmem:[#allocation2 + $0x50] sm:$0xff] %vm737, %v731
        %749 = vst.msk [vmem:[#allocation2 + $0x58] sm:$0xff] %vm737, %v732
        %750 = vst.msk [vmem:[#allocation2 + $0x60] sm:$0xff] %vm737, %v733
        %751 = vst.msk [vmem:[#allocation2 + $0x68] sm:$0xff] %vm737, %v734
        %752 = vst.msk [vmem:[#allocation2 + $0x70] sm:$0xff] %vm737, %v735
        %753 = vst.msk [vmem:[#allocation2 + $0x78] sm:$0xff] %vm737, %v736
        %v754 = vld [vmem:[%s4] sm:$0xff]
        %v755 = vld [vmem:[#allocation2] sm:$0xff]
        %v756 = vld [vmem:[#allocation2 + $0x8] sm:$0xff]
        %v757 = vld [vmem:[#allocation2 + $0x10] sm:$0xff]
        %v758 = vld [vmem:[#allocation2 + $0x18] sm:$0xff]
        %v759 = vld [vmem:[#allocation2 + $0x20] sm:$0xff]
        %v760 = vld [vmem:[#allocation2 + $0x28] sm:$0xff]
        %v761 = vld [vmem:[#allocation2 + $0x30] sm:$0xff]
        %v762 = vld [vmem:[#allocation2 + $0x38] sm:$0xff]
        %v763 = vld [vmem:[#allocation2 + $0x40] sm:$0xff]
        %v764 = vld [vmem:[#allocation2 + $0x48] sm:$0xff]
        %v765 = vld [vmem:[#allocation2 + $0x50] sm:$0xff]
        %v766 = vld [vmem:[#allocation2 + $0x58] sm:$0xff]
        %v767 = vld [vmem:[#allocation2 + $0x60] sm:$0xff]
        %v768 = vld [vmem:[#allocation2 + $0x68] sm:$0xff]
        %v769 = vld [vmem:[#allocation2 + $0x70] sm:$0xff]
        %v770 = vld [vmem:[#allocation2 + $0x78] sm:$0xff]
        %v771 = vsel %vm737, %v755, 0.0
        %772 = vadd.xlane.f32.xlu0 %v771
        %v773 = vpop.xlane.xlu0 %772
        %v774 = vsel %vm737, %v756, 0.0
        %775 = vadd.xlane.f32.xlu0 %v774
        %v776 = vpop.xlane.xlu0 %775
        %v777 = vsel %vm737, %v757, 0.0
        %778 = vadd.xlane.f32.xlu0 %v777
        %v779 = vpop.xlane.xlu0 %778
        %v780 = vsel %vm737, %v758, 0.0
        %781 = vadd.xlane.f32.xlu0 %v780
        %v782 = vpop.xlane.xlu0 %781
        %v783 = vsel %vm737, %v759, 0.0
        %784 = vadd.xlane.f32.xlu0 %v783
        %v785 = vpop.xlane.xlu0 %784
        %v786 = vsel %vm737, %v760, 0.0
        %787 = vadd.xlane.f32.xlu0 %v786
        %v788 = vpop.xlane.xlu0 %787
        %v789 = vsel %vm737, %v761, 0.0
        %790 = vadd.xlane.f32.xlu0 %v789
        %v791 = vpop.xlane.xlu0 %790
        %v792 = vsel %vm737, %v762, 0.0
        %793 = vadd.xlane.f32.xlu0 %v792
        %v794 = vpop.xlane.xlu0 %793
        %v795 = vsel %vm737, %v763, 0.0
        %796 = vadd.xlane.f32.xlu0 %v795
        %v797 = vpop.xlane.xlu0 %796
        %v798 = vsel %vm737, %v764, 0.0
        %799 = vadd.xlane.f32.xlu0 %v798
        %v800 = vpop.xlane.xlu0 %799
        %v801 = vsel %vm737, %v765, 0.0
        %802 = vadd.xlane.f32.xlu0 %v801
        %v803 = vpop.xlane.xlu0 %802
        %v804 = vsel %vm737, %v766, 0.0
        %805 = vadd.xlane.f32.xlu0 %v804
        %v806 = vpop.xlane.xlu0 %805
        %v807 = vsel %vm737, %v767, 0.0
        %808 = vadd.xlane.f32.xlu0 %v807
        %v809 = vpop.xlane.xlu0 %808
        %v810 = vsel %vm737, %v768, 0.0
        %811 = vadd.xlane.f32.xlu0 %v810
        %v812 = vpop.xlane.xlu0 %811
        %v813 = vsel %vm737, %v769, 0.0
        %814 = vadd.xlane.f32.xlu0 %v813
        %v815 = vpop.xlane.xlu0 %814
        %v816 = vsel %vm737, %v770, 0.0
        %817 = vadd.xlane.f32.xlu0 %v816
        %v818 = vpop.xlane.xlu0 %817
        %v819 = vrcp.pop 32.0
        %v820 = vmul.f32 %v773, %v819
        %v821 = vmul.f32 %v776, %v819
        %v822 = vmul.f32 %v779, %v819
        %v823 = vmul.f32 %v782, %v819
        %v824 = vmul.f32 %v785, %v819
        %v825 = vmul.f32 %v788, %v819
        %v826 = vmul.f32 %v791, %v819
        %v827 = vmul.f32 %v794, %v819
        %v828 = vmul.f32 %v797, %v819
        %v829 = vmul.f32 %v800, %v819
        %v830 = vmul.f32 %v803, %v819
        %v831 = vmul.f32 %v806, %v819
        %v832 = vmul.f32 %v809, %v819
        %v833 = vmul.f32 %v812, %v819
        %v834 = vmul.f32 %v815, %v819
        %v835 = vmul.f32 %v818, %v819
        %v836 = vsub.f32 %v755, %v820
        %v837 = vsub.f32 %v756, %v821
        %v838 = vsub.f32 %v757, %v822
        %v839 = vsub.f32 %v758, %v823
        %v840 = vsub.f32 %v759, %v824
        %v841 = vsub.f32 %v760, %v825
        %v842 = vsub.f32 %v761, %v826
        %v843 = vsub.f32 %v762, %v827
        %v844 = vsub.f32 %v763, %v828
        %v845 = vsub.f32 %v764, %v829
        %v846 = vsub.f32 %v765, %v830
        %v847 = vsub.f32 %v766, %v831
        %v848 = vsub.f32 %v767, %v832
        %v849 = vsub.f32 %v768, %v833
        %v850 = vsub.f32 %v769, %v834
        %v851 = vsub.f32 %v770, %v835
        %v852 = vmul.f32 %v836, %v836
        %v853 = vmul.f32 %v837, %v837
        %v854 = vmul.f32 %v838, %v838
        %v855 = vmul.f32 %v839, %v839
        %v856 = vmul.f32 %v840, %v840
        %v857 = vmul.f32 %v841, %v841
        %v858 = vmul.f32 %v842, %v842
        %v859 = vmul.f32 %v843, %v843
        %v860 = vmul.f32 %v844, %v844
        %v861 = vmul.f32 %v845, %v845
        %v862 = vmul.f32 %v846, %v846
        %v863 = vmul.f32 %v847, %v847
        %v864 = vmul.f32 %v848, %v848
        %v865 = vmul.f32 %v849, %v849
        %v866 = vmul.f32 %v850, %v850
        %v867 = vmul.f32 %v851, %v851
        %v868 = vsel %vm737, %v852, 0.0
        %869 = vadd.xlane.f32.xlu0 %v868
        %v870 = vpop.xlane.xlu0 %869
        %v871 = vsel %vm737, %v853, 0.0
        %872 = vadd.xlane.f32.xlu0 %v871
        %v873 = vpop.xlane.xlu0 %872
        %v874 = vsel %vm737, %v854, 0.0
        %875 = vadd.xlane.f32.xlu0 %v874
        %v876 = vpop.xlane.xlu0 %875
        %v877 = vsel %vm737, %v855, 0.0
        %878 = vadd.xlane.f32.xlu0 %v877
        %v879 = vpop.xlane.xlu0 %878
        %v880 = vsel %vm737, %v856, 0.0
        %881 = vadd.xlane.f32.xlu0 %v880
        %v882 = vpop.xlane.xlu0 %881
        %v883 = vsel %vm737, %v857, 0.0
        %884 = vadd.xlane.f32.xlu0 %v883
        %v885 = vpop.xlane.xlu0 %884
        %v886 = vsel %vm737, %v858, 0.0
        %887 = vadd.xlane.f32.xlu0 %v886
        %v888 = vpop.xlane.xlu0 %887
        %v889 = vsel %vm737, %v859, 0.0
        %890 = vadd.xlane.f32.xlu0 %v889
        %v891 = vpop.xlane.xlu0 %890
        %v892 = vsel %vm737, %v860, 0.0
        %893 = vadd.xlane.f32.xlu0 %v892
        %v894 = vpop.xlane.xlu0 %893
        %v895 = vsel %vm737, %v861, 0.0
        %896 = vadd.xlane.f32.xlu0 %v895
        %v897 = vpop.xlane.xlu0 %896
        %v898 = vsel %vm737, %v862, 0.0
        %899 = vadd.xlane.f32.xlu0 %v898
        %v900 = vpop.xlane.xlu0 %899
        %v901 = vsel %vm737, %v863, 0.0
        %902 = vadd.xlane.f32.xlu0 %v901
        %v903 = vpop.xlane.xlu0 %902
        %v904 = vsel %vm737, %v864, 0.0
        %905 = vadd.xlane.f32.xlu0 %v904
        %v906 = vpop.xlane.xlu0 %905
        %v907 = vsel %vm737, %v865, 0.0
        %908 = vadd.xlane.f32.xlu0 %v907
        %v909 = vpop.xlane.xlu0 %908
        %v910 = vsel %vm737, %v866, 0.0
        %911 = vadd.xlane.f32.xlu0 %v910
        %v912 = vpop.xlane.xlu0 %911
        %v913 = vsel %vm737, %v867, 0.0
        %914 = vadd.xlane.f32.xlu0 %v913
        %v915 = vpop.xlane.xlu0 %914
        %v916 = vmul.f32 %v870, %v819
        %v917 = vmul.f32 %v873, %v819
        %v918 = vmul.f32 %v876, %v819
        %v919 = vmul.f32 %v879, %v819
        %v920 = vmul.f32 %v882, %v819
        %v921 = vmul.f32 %v885, %v819
        %v922 = vmul.f32 %v888, %v819
        %v923 = vmul.f32 %v891, %v819
        %v924 = vmul.f32 %v894, %v819
        %v925 = vmul.f32 %v897, %v819
        %v926 = vmul.f32 %v900, %v819
        %v927 = vmul.f32 %v903, %v819
        %v928 = vmul.f32 %v906, %v819
        %v929 = vmul.f32 %v909, %v819
        %v930 = vmul.f32 %v912, %v819
        %v931 = vmul.f32 %v915, %v819
        %v932 = vadd.f32 %v916, 1e-05
        %v933 = vadd.f32 %v917, 1e-05
        %v934 = vadd.f32 %v918, 1e-05
        %v935 = vadd.f32 %v919, 1e-05
        %v936 = vadd.f32 %v920, 1e-05
        %v937 = vadd.f32 %v921, 1e-05
        %v938 = vadd.f32 %v922, 1e-05
        %v939 = vadd.f32 %v923, 1e-05
        %v940 = vadd.f32 %v924, 1e-05
        %v941 = vadd.f32 %v925, 1e-05
        %v942 = vadd.f32 %v926, 1e-05
        %v943 = vadd.f32 %v927, 1e-05
        %v944 = vadd.f32 %v928, 1e-05
        %v945 = vadd.f32 %v929, 1e-05
        %v946 = vadd.f32 %v930, 1e-05
        %v947 = vadd.f32 %v931, 1e-05
        %v948 = vrsqrt.pop %v932
        %v949 = vrsqrt.pop %v933
        %v950 = vrsqrt.pop %v934
        %v951 = vrsqrt.pop %v935
        %v952 = vrsqrt.pop %v936
        %v953 = vrsqrt.pop %v937
        %v954 = vrsqrt.pop %v938
        %v955 = vrsqrt.pop %v939
        %v956 = vrsqrt.pop %v940
        %v957 = vrsqrt.pop %v941
        %v958 = vrsqrt.pop %v942
        %v959 = vrsqrt.pop %v943
        %v960 = vrsqrt.pop %v944
        %v961 = vrsqrt.pop %v945
        %v962 = vrsqrt.pop %v946
        %v963 = vrsqrt.pop %v947
        %v964 = vmul.f32 %v836, %v948
        %v965 = vmul.f32 %v837, %v949
        %v966 = vmul.f32 %v838, %v950
        %v967 = vmul.f32 %v839, %v951
        %v968 = vmul.f32 %v840, %v952
        %v969 = vmul.f32 %v841, %v953
        %v970 = vmul.f32 %v842, %v954
        %v971 = vmul.f32 %v843, %v955
        %v972 = vmul.f32 %v844, %v956
        %v973 = vmul.f32 %v845, %v957
        %v974 = vmul.f32 %v846, %v958
        %v975 = vmul.f32 %v847, %v959
        %v976 = vmul.f32 %v848, %v960
        %v977 = vmul.f32 %v849, %v961
        %v978 = vmul.f32 %v850, %v962
        %v979 = vmul.f32 %v851, %v963
        %v980 = vlaneseq
        %v981 = vshrl.u32 %v980, 7
        %v982 = vsub.s32 0, %v981
        %v983 = vrot.slane %v754, %v982
        %v984 = vmul.f32 %v964, %v983
        %v985 = vmul.f32 %v965, %v983
        %v986 = vmul.f32 %v966, %v983
        %v987 = vmul.f32 %v967, %v983
        %v988 = vmul.f32 %v968, %v983
        %v989 = vmul.f32 %v969, %v983
        %v990 = vmul.f32 %v970, %v983
        %v991 = vmul.f32 %v971, %v983
        %v992 = vmul.f32 %v972, %v983
        %v993 = vmul.f32 %v973, %v983
        %v994 = vmul.f32 %v974, %v983
        %v995 = vmul.f32 %v975, %v983
        %v996 = vmul.f32 %v976, %v983
        %v997 = vmul.f32 %v977, %v983
        %v998 = vmul.f32 %v978, %v983
        %v999 = vmul.f32 %v979, %v983
        %v1000 = vlaneseq
        %v1001 = vshrl.u32 %v1000, 7
        %v1002 = vsub.s32 1, %v1001
        %v1003 = vrot.slane %v754, %v1002
        %v1004 = vadd.f32 %v984, %v1003
        %v1005 = vadd.f32 %v985, %v1003
        %v1006 = vadd.f32 %v986, %v1003
        %v1007 = vadd.f32 %v987, %v1003
        %v1008 = vadd.f32 %v988, %v1003
        %v1009 = vadd.f32 %v989, %v1003
        %v1010 = vadd.f32 %v990, %v1003
        %v1011 = vadd.f32 %v991, %v1003
        %v1012 = vadd.f32 %v992, %v1003
        %v1013 = vadd.f32 %v993, %v1003
        %v1014 = vadd.f32 %v994, %v1003
        %v1015 = vadd.f32 %v995, %v1003
        %v1016 = vadd.f32 %v996, %v1003
        %v1017 = vadd.f32 %v997, %v1003
        %v1018 = vadd.f32 %v998, %v1003
        %v1019 = vadd.f32 %v999, %v1003
        %v1020 = vld [vmem:[%s6] sm:$0xff]
        %v1021 = vld [vmem:[%s6 + $0x8] sm:$0xff]
        %v1022 = vld [vmem:[%s6 + $0x10] sm:$0xff]
        %v1023 = vld [vmem:[%s6 + $0x18] sm:$0xff]
        %v1025 = vsel %vm737, %v1004, 0
        %v1028 = vsel %vm737, %v1005, 0
        %v1031 = vsel %vm737, %v1006, 0
        %v1034 = vsel %vm737, %v1007, 0
        %v1037 = vsel %vm737, %v1008, 0
        %v1040 = vsel %vm737, %v1009, 0
        %v1043 = vsel %vm737, %v1010, 0
        %v1046 = vsel %vm737, %v1011, 0
        %v1049 = vsel %vm737, %v1012, 0
        %v1052 = vsel %vm737, %v1013, 0
        %v1055 = vsel %vm737, %v1014, 0
        %v1058 = vsel %vm737, %v1015, 0
        %v1061 = vsel %vm737, %v1016, 0
        %v1064 = vsel %vm737, %v1017, 0
        %v1067 = vsel %vm737, %v1018, 0
        %v1070 = vsel %vm737, %v1019, 0
        %1072 = vmatprep.subr.mxu0 0.0
        %1073 = vmatpush1.msra.mxu0 %v1020
        %1074 = vmatprep.subr.mxu0 0.0
        %1075 = vmatpush1.msra.mxu0 %v1021
        %1076 = vmatprep.subr.mxu0 0.0
        %1077 = vmatpush1.msra.mxu0 %v1022
        %1078 = vmatprep.subr.mxu0 0.0
        %1079 = vmatpush1.msra.mxu0 %v1023
        %1080 = vmatprep.subr.mxu0 0.0
        %1081 = vmatpush1.msra.mxu0 0.0
        %1082 = vmatprep.subr.mxu0 0.0
        %1083 = vmatpush1.msra.mxu0 0.0
        %1084 = vmatprep.subr.mxu0 0.0
        %1085 = vmatpush1.msra.mxu0 0.0
        %1086 = vmatprep.subr.mxu0 0.0
        %1087 = vmatpush1.msra.mxu0 0.0
        %1088 = vmatprep.subr.mxu0 0.0
        %1089 = vmatpush1.msra.mxu0 0.0
        %1090 = vmatprep.subr.mxu0 0.0
        %1091 = vmatpush1.msra.mxu0 0.0
        %1092 = vmatprep.subr.mxu0 0.0
        %1093 = vmatpush1.msra.mxu0 0.0
        %1094 = vmatprep.subr.mxu0 0.0
        %1095 = vmatpush1.msra.mxu0 0.0
        %1096 = vmatprep.subr.mxu0 0.0
        %1097 = vmatpush1.msra.mxu0 0.0
        %1098 = vmatprep.subr.mxu0 0.0
        %1099 = vmatpush1.msra.mxu0 0.0
        %1100 = vmatprep.subr.mxu0 0.0
        %1101 = vmatpush1.msra.mxu0 0.0
        %1102 = vmatprep.subr.mxu0 0.0
        %1103 = vmatpush1.msra.mxu0 0.0
        %1104 = vmatprep.subr.mxu0 0.0
        %1105 = vmatpush1.msra.mxu0 0.0
        %1106 = vmatprep.subr.mxu0 0.0
        %1107 = vmatpush1.msra.mxu0 0.0
        %1108 = vmatprep.subr.mxu0 0.0
        %1109 = vmatpush1.msra.mxu0 0.0
        %1110 = vmatprep.subr.mxu0 0.0
        %1111 = vmatpush1.msra.mxu0 0.0
        %1112 = vmatprep.subr.mxu0 0.0
        %1113 = vmatpush1.msra.mxu0 0.0
        %1114 = vmatprep.subr.mxu0 0.0
        %1115 = vmatpush1.msra.mxu0 0.0
        %1116 = vmatprep.subr.mxu0 0.0
        %1117 = vmatpush1.msra.mxu0 0.0
        %1118 = vmatprep.subr.mxu0 0.0
        %1119 = vmatpush1.msra.mxu0 0.0
        %1120 = vmatprep.subr.mxu0 0.0
        %1121 = vmatpush1.msra.mxu0 0.0
        %1122 = vmatprep.subr.mxu0 0.0
        %1123 = vmatpush1.msra.mxu0 0.0
        %1124 = vmatprep.subr.mxu0 0.0
        %1125 = vmatpush1.msra.mxu0 0.0
        %1126 = vmatprep.subr.mxu0 0.0
        %1127 = vmatpush1.msra.mxu0 0.0
        %1128 = vmatprep.subr.mxu0 0.0
        %1129 = vmatpush1.msra.mxu0 0.0
        %1130 = vmatprep.subr.mxu0 0.0
        %1131 = vmatpush1.msra.mxu0 0.0
        %1132 = vmatprep.subr.mxu0 0.0
        %1133 = vmatpush1.msra.mxu0 0.0
        %1134 = vmatprep.subr.mxu0 0.0
        %1135 = vmatpush1.msra.mxu0 0.0
        %1136 = vmatprep.mubr.f32.mxu0 0.0
        %1137 = vmatmul.mubr.f32.gmra.mrb[0].mxu0 %v1025
        %v1138 = vpop.f32.mrb[0].mxu0
        %v1139 = vadd.f32 0.0, %v1138
        %v1140 = vpop.f32.mrb[0].mxu0
        %1141 = vmatprep.mubr.f32.mxu0 0.0
        %1142 = vmatmul.mubr.f32.gmra.mrb[0].mxu0 %v1028
        %v1143 = vpop.f32.mrb[0].mxu0
        %v1144 = vadd.f32 0.0, %v1143
        %v1145 = vpop.f32.mrb[0].mxu0
        %1146 = vmatprep.mubr.f32.mxu0 0.0
        %1147 = vmatmul.mubr.f32.gmra.mrb[0].mxu0 %v1031
        %v1148 = vpop.f32.mrb[0].mxu0
        %v1149 = vadd.f32 0.0, %v1148
        %v1150 = vpop.f32.mrb[0].mxu0
        %1151 = vmatprep.mubr.f32.mxu0 0.0
        %1152 = vmatmul.mubr.f32.gmra.mrb[0].mxu0 %v1034
        %v1153 = vpop.f32.mrb[0].mxu0
        %v1154 = vadd.f32 0.0, %v1153
        %v1155 = vpop.f32.mrb[0].mxu0
        %1156 = vmatprep.mubr.f32.mxu0 0.0
        %1157 = vmatmul.mubr.f32.gmra.mrb[0].mxu0 %v1037
        %v1158 = vpop.f32.mrb[0].mxu0
        %v1159 = vadd.f32 0.0, %v1158
        %v1160 = vpop.f32.mrb[0].mxu0
        %1161 = vmatprep.mubr.f32.mxu0 0.0
        %1162 = vmatmul.mubr.f32.gmra.mrb[0].mxu0 %v1040
        %v1163 = vpop.f32.mrb[0].mxu0
        %v1164 = vadd.f32 0.0, %v1163
        %v1165 = vpop.f32.mrb[0].mxu0
        %1166 = vmatprep.mubr.f32.mxu0 0.0
        %1167 = vmatmul.mubr.f32.gmra.mrb[0].mxu0 %v1043
        %v1168 = vpop.f32.mrb[0].mxu0
        %v1169 = vadd.f32 0.0, %v1168
        %v1170 = vpop.f32.mrb[0].mxu0
        %1171 = vmatprep.mubr.f32.mxu0 0.0
        %1172 = vmatmul.mubr.f32.gmra.mrb[0].mxu0 %v1046
        %v1173 = vpop.f32.mrb[0].mxu0
        %v1174 = vadd.f32 0.0, %v1173
        %v1175 = vpop.f32.mrb[0].mxu0
        %1176 = vmatprep.mubr.f32.mxu0 0.0
        %1177 = vmatmul.mubr.f32.gmra.mrb[0].mxu0 %v1049
        %v1178 = vpop.f32.mrb[0].mxu0
        %v1179 = vadd.f32 0.0, %v1178
        %v1180 = vpop.f32.mrb[0].mxu0
        %1181 = vmatprep.mubr.f32.mxu0 0.0
        %1182 = vmatmul.mubr.f32.gmra.mrb[0].mxu0 %v1052
        %v1183 = vpop.f32.mrb[0].mxu0
        %v1184 = vadd.f32 0.0, %v1183
        %v1185 = vpop.f32.mrb[0].mxu0
        %1186 = vmatprep.mubr.f32.mxu0 0.0
        %1187 = vmatmul.mubr.f32.gmra.mrb[0].mxu0 %v1055
        %v1188 = vpop.f32.mrb[0].mxu0
        %v1189 = vadd.f32 0.0, %v1188
        %v1190 = vpop.f32.mrb[0].mxu0
        %1191 = vmatprep.mubr.f32.mxu0 0.0
        %1192 = vmatmul.mubr.f32.gmra.mrb[0].mxu0 %v1058
        %v1193 = vpop.f32.mrb[0].mxu0
        %v1194 = vadd.f32 0.0, %v1193
        %v1195 = vpop.f32.mrb[0].mxu0
        %1196 = vmatprep.mubr.f32.mxu0 0.0
        %1197 = vmatmul.mubr.f32.gmra.mrb[0].mxu0 %v1061
        %v1198 = vpop.f32.mrb[0].mxu0
        %v1199 = vadd.f32 0.0, %v1198
        %v1200 = vpop.f32.mrb[0].mxu0
        %1201 = vmatprep.mubr.f32.mxu0 0.0
        %1202 = vmatmul.mubr.f32.gmra.mrb[0].mxu0 %v1064
        %v1203 = vpop.f32.mrb[0].mxu0
        %v1204 = vadd.f32 0.0, %v1203
        %v1205 = vpop.f32.mrb[0].mxu0
        %1206 = vmatprep.mubr.f32.mxu0 0.0
        %1207 = vmatmul.mubr.f32.gmra.mrb[0].mxu0 %v1067
        %v1208 = vpop.f32.mrb[0].mxu0
        %v1209 = vadd.f32 0.0, %v1208
        %v1210 = vpop.f32.mrb[0].mxu0
        %1211 = vmatprep.mubr.f32.mxu0 0.0
        %1212 = vmatmul.mubr.f32.gmra.mrb[0].mxu0 %v1070
        %v1213 = vpop.f32.mrb[0].mxu0
        %v1214 = vadd.f32 0.0, %v1213
        %v1215 = vpop.f32.mrb[0].mxu0
        %1216 = vdwg.mxu0
        %vm1217 = vcmask 785408
        %1218 = vst.msk [vmem:[#allocation3] sm:$0xff] %vm1217, %v1139
        %1219 = vst.msk [vmem:[#allocation3 + $0x8] sm:$0xff] %vm1217, %v1144
        %1220 = vst.msk [vmem:[#allocation3 + $0x10] sm:$0xff] %vm1217, %v1149
        %1221 = vst.msk [vmem:[#allocation3 + $0x18] sm:$0xff] %vm1217, %v1154
        %1222 = vst.msk [vmem:[#allocation3 + $0x20] sm:$0xff] %vm1217, %v1159
        %1223 = vst.msk [vmem:[#allocation3 + $0x28] sm:$0xff] %vm1217, %v1164
        %1224 = vst.msk [vmem:[#allocation3 + $0x30] sm:$0xff] %vm1217, %v1169
        %1225 = vst.msk [vmem:[#allocation3 + $0x38] sm:$0xff] %vm1217, %v1174
        %1226 = vst.msk [vmem:[#allocation3 + $0x40] sm:$0xff] %vm1217, %v1179
        %1227 = vst.msk [vmem:[#allocation3 + $0x48] sm:$0xff] %vm1217, %v1184
        %1228 = vst.msk [vmem:[#allocation3 + $0x50] sm:$0xff] %vm1217, %v1189
        %1229 = vst.msk [vmem:[#allocation3 + $0x58] sm:$0xff] %vm1217, %v1194
        %1230 = vst.msk [vmem:[#allocation3 + $0x60] sm:$0xff] %vm1217, %v1199
        %1231 = vst.msk [vmem:[#allocation3 + $0x68] sm:$0xff] %vm1217, %v1204
        %1232 = vst.msk [vmem:[#allocation3 + $0x70] sm:$0xff] %vm1217, %v1209
        %1233 = vst.msk [vmem:[#allocation3 + $0x78] sm:$0xff] %vm1217, %v1214
        %v1234 = vld [vmem:[#allocation3] sm:$0xff]
        %v1235 = vld [vmem:[#allocation3 + $0x8] sm:$0xff]
        %v1236 = vld [vmem:[#allocation3 + $0x10] sm:$0xff]
        %v1237 = vld [vmem:[#allocation3 + $0x18] sm:$0xff]
        %v1238 = vld [vmem:[#allocation3 + $0x20] sm:$0xff]
        %v1239 = vld [vmem:[#allocation3 + $0x28] sm:$0xff]
        %v1240 = vld [vmem:[#allocation3 + $0x30] sm:$0xff]
        %v1241 = vld [vmem:[#allocation3 + $0x38] sm:$0xff]
        %v1242 = vld [vmem:[#allocation3 + $0x40] sm:$0xff]
        %v1243 = vld [vmem:[#allocation3 + $0x48] sm:$0xff]
        %v1244 = vld [vmem:[#allocation3 + $0x50] sm:$0xff]
        %v1245 = vld [vmem:[#allocation3 + $0x58] sm:$0xff]
        %v1246 = vld [vmem:[#allocation3 + $0x60] sm:$0xff]
        %v1247 = vld [vmem:[#allocation3 + $0x68] sm:$0xff]
        %v1248 = vld [vmem:[#allocation3 + $0x70] sm:$0xff]
        %v1249 = vld [vmem:[#allocation3 + $0x78] sm:$0xff]
        %v1250 = vld [vmem:[%s3] sm:$0xff]
        %v1251 = vld [vmem:[%s3 + $0x8] sm:$0xff]
        %v1252 = vld [vmem:[%s3 + $0x10] sm:$0xff]
        %v1253 = vld [vmem:[%s3 + $0x18] sm:$0xff]
        %v1254 = vld [vmem:[%s3 + $0x20] sm:$0xff]
        %v1255 = vld [vmem:[%s3 + $0x28] sm:$0xff]
        %v1256 = vld [vmem:[%s3 + $0x30] sm:$0xff]
        %v1257 = vld [vmem:[%s3 + $0x38] sm:$0xff]
        %v1258 = vld [vmem:[%s3 + $0x40] sm:$0xff]
        %v1259 = vld [vmem:[%s3 + $0x48] sm:$0xff]
        %v1260 = vld [vmem:[%s3 + $0x50] sm:$0xff]
        %v1261 = vld [vmem:[%s3 + $0x58] sm:$0xff]
        %v1262 = vld [vmem:[%s3 + $0x60] sm:$0xff]
        %v1263 = vld [vmem:[%s3 + $0x68] sm:$0xff]
        %v1264 = vld [vmem:[%s3 + $0x70] sm:$0xff]
        %v1265 = vld [vmem:[%s3 + $0x78] sm:$0xff]
        %1282 = vrot.lane.b32.xlu0 %v1234, 96
        %v1283 = vpop.permute.xlu0 %1282
        %1284 = vrot.lane.b32.xlu0 %v1235, 96
        %v1285 = vpop.permute.xlu0 %1284
        %1286 = vrot.lane.b32.xlu0 %v1236, 96
        %v1287 = vpop.permute.xlu0 %1286
        %1288 = vrot.lane.b32.xlu0 %v1237, 96
        %v1289 = vpop.permute.xlu0 %1288
        %1290 = vrot.lane.b32.xlu0 %v1238, 96
        %v1291 = vpop.permute.xlu0 %1290
        %1292 = vrot.lane.b32.xlu0 %v1239, 96
        %v1293 = vpop.permute.xlu0 %1292
        %1294 = vrot.lane.b32.xlu0 %v1240, 96
        %v1295 = vpop.permute.xlu0 %1294
        %1296 = vrot.lane.b32.xlu0 %v1241, 96
        %v1297 = vpop.permute.xlu0 %1296
        %1298 = vrot.lane.b32.xlu0 %v1242, 96
        %v1299 = vpop.permute.xlu0 %1298
        %1300 = vrot.lane.b32.xlu0 %v1243, 96
        %v1301 = vpop.permute.xlu0 %1300
        %1302 = vrot.lane.b32.xlu0 %v1244, 96
        %v1303 = vpop.permute.xlu0 %1302
        %1304 = vrot.lane.b32.xlu0 %v1245, 96
        %v1305 = vpop.permute.xlu0 %1304
        %1306 = vrot.lane.b32.xlu0 %v1246, 96
        %v1307 = vpop.permute.xlu0 %1306
        %1308 = vrot.lane.b32.xlu0 %v1247, 96
        %v1309 = vpop.permute.xlu0 %1308
        %1310 = vrot.lane.b32.xlu0 %v1248, 96
        %v1311 = vpop.permute.xlu0 %1310
        %1312 = vrot.lane.b32.xlu0 %v1249, 96
        %v1313 = vpop.permute.xlu0 %1312
        %vm1314 = vcmask 130048
        %v1315 = vsel %vm1314, %v1234, 0
        %v1317 = vsel %vm1314, %v1235, 0
        %v1319 = vsel %vm1314, %v1236, 0
        %v1321 = vsel %vm1314, %v1237, 0
        %v1323 = vsel %vm1314, %v1238, 0
        %v1325 = vsel %vm1314, %v1239, 0
        %v1327 = vsel %vm1314, %v1240, 0
        %v1329 = vsel %vm1314, %v1241, 0
        %v1331 = vsel %vm1314, %v1242, 0
        %v1333 = vsel %vm1314, %v1243, 0
        %v1335 = vsel %vm1314, %v1244, 0
        %v1337 = vsel %vm1314, %v1245, 0
        %v1339 = vsel %vm1314, %v1246, 0
        %v1341 = vsel %vm1314, %v1247, 0
        %v1343 = vsel %vm1314, %v1248, 0
        %v1345 = vsel %vm1314, %v1249, 0
        %v1347 = vsel %vm1314, %v1283, 0
        %v1349 = vsel %vm1314, %v1285, 0
        %v1351 = vsel %vm1314, %v1287, 0
        %v1353 = vsel %vm1314, %v1289, 0
        %v1355 = vsel %vm1314, %v1291, 0
        %v1357 = vsel %vm1314, %v1293, 0
        %v1359 = vsel %vm1314, %v1295, 0
        %v1361 = vsel %vm1314, %v1297, 0
        %v1363 = vsel %vm1314, %v1299, 0
        %v1365 = vsel %vm1314, %v1301, 0
        %v1367 = vsel %vm1314, %v1303, 0
        %v1369 = vsel %vm1314, %v1305, 0
        %v1371 = vsel %vm1314, %v1307, 0
        %v1373 = vsel %vm1314, %v1309, 0
        %v1375 = vsel %vm1314, %v1311, 0
        %v1377 = vsel %vm1314, %v1313, 0
        %1379 = vmatprep.subr.mxu0 0.0
        %1380 = vmatpush1.xpose.msra.mxu0 %v1347
        %1381 = vmatprep.subr.mxu0 0.0
        %1382 = vmatpush1.xpose.msra.mxu0 %v1349
        %1383 = vmatprep.subr.mxu0 0.0
        %1384 = vmatpush1.xpose.msra.mxu0 %v1351
        %1385 = vmatprep.subr.mxu0 0.0
        %1386 = vmatpush1.xpose.msra.mxu0 %v1353
        %1387 = vmatprep.subr.mxu0 0.0
        %1388 = vmatpush1.xpose.msra.mxu0 %v1355
        %1389 = vmatprep.subr.mxu0 0.0
        %1390 = vmatpush1.xpose.msra.mxu0 %v1357
        %1391 = vmatprep.subr.mxu0 0.0
        %1392 = vmatpush1.xpose.msra.mxu0 %v1359
        %1393 = vmatprep.subr.mxu0 0.0
        %1394 = vmatpush1.xpose.msra.mxu0 %v1361
        %1395 = vmatprep.subr.mxu0 0.0
        %1396 = vmatpush1.xpose.msra.mxu0 %v1363
        %1397 = vmatprep.subr.mxu0 0.0
        %1398 = vmatpush1.xpose.msra.mxu0 %v1365
        %1399 = vmatprep.subr.mxu0 0.0
        %1400 = vmatpush1.xpose.msra.mxu0 %v1367
        %1401 = vmatprep.subr.mxu0 0.0
        %1402 = vmatpush1.xpose.msra.mxu0 %v1369
        %1403 = vmatprep.subr.mxu0 0.0
        %1404 = vmatpush1.xpose.msra.mxu0 %v1371
        %1405 = vmatprep.subr.mxu0 0.0
        %1406 = vmatpush1.xpose.msra.mxu0 %v1373
        %1407 = vmatprep.subr.mxu0 0.0
        %1408 = vmatpush1.xpose.msra.mxu0 %v1375
        %1409 = vmatprep.subr.mxu0 0.0
        %1410 = vmatpush1.xpose.msra.mxu0 %v1377
        %1411 = vmatprep.subr.mxu0 0.0
        %1412 = vmatpush1.xpose.msra.mxu0 0.0
        %1413 = vmatprep.subr.mxu0 0.0
        %1414 = vmatpush1.xpose.msra.mxu0 0.0
        %1415 = vmatprep.subr.mxu0 0.0
        %1416 = vmatpush1.xpose.msra.mxu0 0.0
        %1417 = vmatprep.subr.mxu0 0.0
        %1418 = vmatpush1.xpose.msra.mxu0 0.0
        %1419 = vmatprep.subr.mxu0 0.0
        %1420 = vmatpush1.xpose.msra.mxu0 0.0
        %1421 = vmatprep.subr.mxu0 0.0
        %1422 = vmatpush1.xpose.msra.mxu0 0.0
        %1423 = vmatprep.subr.mxu0 0.0
        %1424 = vmatpush1.xpose.msra.mxu0 0.0
        %1425 = vmatprep.subr.mxu0 0.0
        %1426 = vmatpush1.xpose.msra.mxu0 0.0
        %1427 = vmatprep.subr.mxu0 0.0
        %1428 = vmatpush1.xpose.msra.mxu0 0.0
        %1429 = vmatprep.subr.mxu0 0.0
        %1430 = vmatpush1.xpose.msra.mxu0 0.0
        %1431 = vmatprep.subr.mxu0 0.0
        %1432 = vmatpush1.xpose.msra.mxu0 0.0
        %1433 = vmatprep.subr.mxu0 0.0
        %1434 = vmatpush1.xpose.msra.mxu0 0.0
        %1435 = vmatprep.subr.mxu0 0.0
        %1436 = vmatpush1.xpose.msra.mxu0 0.0
        %1437 = vmatprep.subr.mxu0 0.0
        %1438 = vmatpush1.xpose.msra.mxu0 0.0
        %1439 = vmatprep.subr.mxu0 0.0
        %1440 = vmatpush1.xpose.msra.mxu0 0.0
        %1441 = vmatprep.subr.mxu0 0.0
        %1442 = vmatpush1.xpose.msra.mxu0 0.0
        %1443 = vmatprep.mubr.f32.mxu0 0.0
        %1444 = vmatmul.mubr.f32.gmra.mrb[0].mxu0 %v1315
        %v1445 = vpop.f32.mrb[0].mxu0
        %v1446 = vadd.f32 %v1250, %v1445
        %v1447 = vpop.f32.mrb[0].mxu0
        %1448 = vmatprep.mubr.f32.mxu0 0.0
        %1449 = vmatmul.mubr.f32.gmra.mrb[0].mxu0 %v1317
        %v1450 = vpop.f32.mrb[0].mxu0
        %v1451 = vadd.f32 %v1251, %v1450
        %v1452 = vpop.f32.mrb[0].mxu0
        %1453 = vmatprep.mubr.f32.mxu0 0.0
        %1454 = vmatmul.mubr.f32.gmra.mrb[0].mxu0 %v1319
        %v1455 = vpop.f32.mrb[0].mxu0
        %v1456 = vadd.f32 %v1252, %v1455
        %v1457 = vpop.f32.mrb[0].mxu0
        %1458 = vmatprep.mubr.f32.mxu0 0.0
        %1459 = vmatmul.mubr.f32.gmra.mrb[0].mxu0 %v1321
        %v1460 = vpop.f32.mrb[0].mxu0
        %v1461 = vadd.f32 %v1253, %v1460
        %v1462 = vpop.f32.mrb[0].mxu0
        %1463 = vmatprep.mubr.f32.mxu0 0.0
        %1464 = vmatmul.mubr.f32.gmra.mrb[0].mxu0 %v1323
        %v1465 = vpop.f32.mrb[0].mxu0
        %v1466 = vadd.f32 %v1254, %v1465
        %v1467 = vpop.f32.mrb[0].mxu0
        %1468 = vmatprep.mubr.f32.mxu0 0.0
        %1469 = vmatmul.mubr.f32.gmra.mrb[0].mxu0 %v1325
        %v1470 = vpop.f32.mrb[0].mxu0
        %v1471 = vadd.f32 %v1255, %v1470
        %v1472 = vpop.f32.mrb[0].mxu0
        %1473 = vmatprep.mubr.f32.mxu0 0.0
        %1474 = vmatmul.mubr.f32.gmra.mrb[0].mxu0 %v1327
        %v1475 = vpop.f32.mrb[0].mxu0
        %v1476 = vadd.f32 %v1256, %v1475
        %v1477 = vpop.f32.mrb[0].mxu0
        %1478 = vmatprep.mubr.f32.mxu0 0.0
        %1479 = vmatmul.mubr.f32.gmra.mrb[0].mxu0 %v1329
        %v1480 = vpop.f32.mrb[0].mxu0
        %v1481 = vadd.f32 %v1257, %v1480
        %v1482 = vpop.f32.mrb[0].mxu0
        %1483 = vmatprep.mubr.f32.mxu0 0.0
        %1484 = vmatmul.mubr.f32.gmra.mrb[0].mxu0 %v1331
        %v1485 = vpop.f32.mrb[0].mxu0
        %v1486 = vadd.f32 %v1258, %v1485
        %v1487 = vpop.f32.mrb[0].mxu0
        %1488 = vmatprep.mubr.f32.mxu0 0.0
        %1489 = vmatmul.mubr.f32.gmra.mrb[0].mxu0 %v1333
        %v1490 = vpop.f32.mrb[0].mxu0
        %v1491 = vadd.f32 %v1259, %v1490
        %v1492 = vpop.f32.mrb[0].mxu0
        %1493 = vmatprep.mubr.f32.mxu0 0.0
        %1494 = vmatmul.mubr.f32.gmra.mrb[0].mxu0 %v1335
        %v1495 = vpop.f32.mrb[0].mxu0
        %v1496 = vadd.f32 %v1260, %v1495
        %v1497 = vpop.f32.mrb[0].mxu0
        %1498 = vmatprep.mubr.f32.mxu0 0.0
        %1499 = vmatmul.mubr.f32.gmra.mrb[0].mxu0 %v1337
        %v1500 = vpop.f32.mrb[0].mxu0
        %v1501 = vadd.f32 %v1261, %v1500
        %v1502 = vpop.f32.mrb[0].mxu0
        %1503 = vmatprep.mubr.f32.mxu0 0.0
        %1504 = vmatmul.mubr.f32.gmra.mrb[0].mxu0 %v1339
        %v1505 = vpop.f32.mrb[0].mxu0
        %v1506 = vadd.f32 %v1262, %v1505
        %v1507 = vpop.f32.mrb[0].mxu0
        %1508 = vmatprep.mubr.f32.mxu0 0.0
        %1509 = vmatmul.mubr.f32.gmra.mrb[0].mxu0 %v1341
        %v1510 = vpop.f32.mrb[0].mxu0
        %v1511 = vadd.f32 %v1263, %v1510
        %v1512 = vpop.f32.mrb[0].mxu0
        %1513 = vmatprep.mubr.f32.mxu0 0.0
        %1514 = vmatmul.mubr.f32.gmra.mrb[0].mxu0 %v1343
        %v1515 = vpop.f32.mrb[0].mxu0
        %v1516 = vadd.f32 %v1264, %v1515
        %v1517 = vpop.f32.mrb[0].mxu0
        %1518 = vmatprep.mubr.f32.mxu0 0.0
        %1519 = vmatmul.mubr.f32.gmra.mrb[0].mxu0 %v1345
        %v1520 = vpop.f32.mrb[0].mxu0
        %v1521 = vadd.f32 %v1265, %v1520
        %v1522 = vpop.f32.mrb[0].mxu0
        %1523 = vdwg.mxu0
        %v1524 = vmul.f32 %v1446, 1.442695
        %v1525 = vpow.pop %v1524
        %v1526 = vmul.f32 %v1451, 1.442695
        %v1527 = vpow.pop %v1526
        %v1528 = vmul.f32 %v1456, 1.442695
        %v1529 = vpow.pop %v1528
        %v1530 = vmul.f32 %v1461, 1.442695
        %v1531 = vpow.pop %v1530
        %v1532 = vmul.f32 %v1466, 1.442695
        %v1533 = vpow.pop %v1532
        %v1534 = vmul.f32 %v1471, 1.442695
        %v1535 = vpow.pop %v1534
        %v1536 = vmul.f32 %v1476, 1.442695
        %v1537 = vpow.pop %v1536
        %v1538 = vmul.f32 %v1481, 1.442695
        %v1539 = vpow.pop %v1538
        %v1540 = vmul.f32 %v1486, 1.442695
        %v1541 = vpow.pop %v1540
        %v1542 = vmul.f32 %v1491, 1.442695
        %v1543 = vpow.pop %v1542
        %v1544 = vmul.f32 %v1496, 1.442695
        %v1545 = vpow.pop %v1544
        %v1546 = vmul.f32 %v1501, 1.442695
        %v1547 = vpow.pop %v1546
        %v1548 = vmul.f32 %v1506, 1.442695
        %v1549 = vpow.pop %v1548
        %v1550 = vmul.f32 %v1511, 1.442695
        %v1551 = vpow.pop %v1550
        %v1552 = vmul.f32 %v1516, 1.442695
        %v1553 = vpow.pop %v1552
        %v1554 = vmul.f32 %v1521, 1.442695
        %v1555 = vpow.pop %v1554
        %1556 = vadd.xlane.f32.xlu0 %v1525
        %v1557 = vpop.xlane.xlu0 %1556
        %1558 = vadd.xlane.f32.xlu0 %v1527
        %v1559 = vpop.xlane.xlu0 %1558
        %1560 = vadd.xlane.f32.xlu0 %v1529
        %v1561 = vpop.xlane.xlu0 %1560
        %1562 = vadd.xlane.f32.xlu0 %v1531
        %v1563 = vpop.xlane.xlu0 %1562
        %1564 = vadd.xlane.f32.xlu0 %v1533
        %v1565 = vpop.xlane.xlu0 %1564
        %1566 = vadd.xlane.f32.xlu0 %v1535
        %v1567 = vpop.xlane.xlu0 %1566
        %1568 = vadd.xlane.f32.xlu0 %v1537
        %v1569 = vpop.xlane.xlu0 %1568
        %1570 = vadd.xlane.f32.xlu0 %v1539
        %v1571 = vpop.xlane.xlu0 %1570
        %1572 = vadd.xlane.f32.xlu0 %v1541
        %v1573 = vpop.xlane.xlu0 %1572
        %1574 = vadd.xlane.f32.xlu0 %v1543
        %v1575 = vpop.xlane.xlu0 %1574
        %1576 = vadd.xlane.f32.xlu0 %v1545
        %v1577 = vpop.xlane.xlu0 %1576
        %1578 = vadd.xlane.f32.xlu0 %v1547
        %v1579 = vpop.xlane.xlu0 %1578
        %1580 = vadd.xlane.f32.xlu0 %v1549
        %v1581 = vpop.xlane.xlu0 %1580
        %1582 = vadd.xlane.f32.xlu0 %v1551
        %v1583 = vpop.xlane.xlu0 %1582
        %1584 = vadd.xlane.f32.xlu0 %v1553
        %v1585 = vpop.xlane.xlu0 %1584
        %1586 = vadd.xlane.f32.xlu0 %v1555
        %v1587 = vpop.xlane.xlu0 %1586
        %1588 = vrot.lane.b32.xlu0 %v1234, 64
        %v1589 = vpop.permute.xlu0 %1588
        %1590 = vrot.lane.b32.xlu0 %v1235, 64
        %v1591 = vpop.permute.xlu0 %1590
        %1592 = vrot.lane.b32.xlu0 %v1236, 64
        %v1593 = vpop.permute.xlu0 %1592
        %1594 = vrot.lane.b32.xlu0 %v1237, 64
        %v1595 = vpop.permute.xlu0 %1594
        %1596 = vrot.lane.b32.xlu0 %v1238, 64
        %v1597 = vpop.permute.xlu0 %1596
        %1598 = vrot.lane.b32.xlu0 %v1239, 64
        %v1599 = vpop.permute.xlu0 %1598
        %1600 = vrot.lane.b32.xlu0 %v1240, 64
        %v1601 = vpop.permute.xlu0 %1600
        %1602 = vrot.lane.b32.xlu0 %v1241, 64
        %v1603 = vpop.permute.xlu0 %1602
        %1604 = vrot.lane.b32.xlu0 %v1242, 64
        %v1605 = vpop.permute.xlu0 %1604
        %1606 = vrot.lane.b32.xlu0 %v1243, 64
        %v1607 = vpop.permute.xlu0 %1606
        %1608 = vrot.lane.b32.xlu0 %v1244, 64
        %v1609 = vpop.permute.xlu0 %1608
        %1610 = vrot.lane.b32.xlu0 %v1245, 64
        %v1611 = vpop.permute.xlu0 %1610
        %1612 = vrot.lane.b32.xlu0 %v1246, 64
        %v1613 = vpop.permute.xlu0 %1612
        %1614 = vrot.lane.b32.xlu0 %v1247, 64
        %v1615 = vpop.permute.xlu0 %1614
        %1616 = vrot.lane.b32.xlu0 %v1248, 64
        %v1617 = vpop.permute.xlu0 %1616
        %1618 = vrot.lane.b32.xlu0 %v1249, 64
        %v1619 = vpop.permute.xlu0 %1618
        %1636 = vmatprep.subr.mxu0 0.0
        %1637 = vmatpush1.msra.mxu0 %v1589
        %1638 = vmatprep.subr.mxu0 0.0
        %1639 = vmatpush1.msra.mxu0 %v1591
        %1640 = vmatprep.subr.mxu0 0.0
        %1641 = vmatpush1.msra.mxu0 %v1593
        %1642 = vmatprep.subr.mxu0 0.0
        %1643 = vmatpush1.msra.mxu0 %v1595
        %1644 = vmatprep.subr.mxu0 0.0
        %1645 = vmatpush1.msra.mxu0 %v1597
        %1646 = vmatprep.subr.mxu0 0.0
        %1647 = vmatpush1.msra.mxu0 %v1599
        %1648 = vmatprep.subr.mxu0 0.0
        %1649 = vmatpush1.msra.mxu0 %v1601
        %1650 = vmatprep.subr.mxu0 0.0
        %1651 = vmatpush1.msra.mxu0 %v1603
        %1652 = vmatprep.subr.mxu0 0.0
        %1653 = vmatpush1.msra.mxu0 %v1605
        %1654 = vmatprep.subr.mxu0 0.0
        %1655 = vmatpush1.msra.mxu0 %v1607
        %1656 = vmatprep.subr.mxu0 0.0
        %1657 = vmatpush1.msra.mxu0 %v1609
        %1658 = vmatprep.subr.mxu0 0.0
        %1659 = vmatpush1.msra.mxu0 %v1611
        %1660 = vmatprep.subr.mxu0 0.0
        %1661 = vmatpush1.msra.mxu0 %v1613
        %1662 = vmatprep.subr.mxu0 0.0
        %1663 = vmatpush1.msra.mxu0 %v1615
        %1664 = vmatprep.subr.mxu0 0.0
        %1665 = vmatpush1.msra.mxu0 %v1617
        %1666 = vmatprep.subr.mxu0 0.0
        %1667 = vmatpush1.msra.mxu0 %v1619
        %1668 = vmatprep.subr.mxu0 0.0
        %1669 = vmatpush1.msra.mxu0 0.0
        %1670 = vmatprep.subr.mxu0 0.0
        %1671 = vmatpush1.msra.mxu0 0.0
        %1672 = vmatprep.subr.mxu0 0.0
        %1673 = vmatpush1.msra.mxu0 0.0
        %1674 = vmatprep.subr.mxu0 0.0
        %1675 = vmatpush1.msra.mxu0 0.0
        %1676 = vmatprep.subr.mxu0 0.0
        %1677 = vmatpush1.msra.mxu0 0.0
        %1678 = vmatprep.subr.mxu0 0.0
        %1679 = vmatpush1.msra.mxu0 0.0
        %1680 = vmatprep.subr.mxu0 0.0
        %1681 = vmatpush1.msra.mxu0 0.0
        %1682 = vmatprep.subr.mxu0 0.0
        %1683 = vmatpush1.msra.mxu0 0.0
        %1684 = vmatprep.subr.mxu0 0.0
        %1685 = vmatpush1.msra.mxu0 0.0
        %1686 = vmatprep.subr.mxu0 0.0
        %1687 = vmatpush1.msra.mxu0 0.0
        %1688 = vmatprep.subr.mxu0 0.0
        %1689 = vmatpush1.msra.mxu0 0.0
        %1690 = vmatprep.subr.mxu0 0.0
        %1691 = vmatpush1.msra.mxu0 0.0
        %1692 = vmatprep.subr.mxu0 0.0
        %1693 = vmatpush1.msra.mxu0 0.0
        %1694 = vmatprep.subr.mxu0 0.0
        %1695 = vmatpush1.msra.mxu0 0.0
        %1696 = vmatprep.subr.mxu0 0.0
        %1697 = vmatpush1.msra.mxu0 0.0
        %1698 = vmatprep.subr.mxu0 0.0
        %1699 = vmatpush1.msra.mxu0 0.0
        %1700 = vmatprep.mubr.f32.mxu0 0.0
        %1701 = vmatmul.mubr.f32.gmra.mrb[0].mxu0 %v1525
        %v1702 = vpop.f32.mrb[0].mxu0
        %v1703 = vadd.f32 0.0, %v1702
        %v1704 = vpop.f32.mrb[0].mxu0
        %1705 = vmatprep.mubr.f32.mxu0 0.0
        %1706 = vmatmul.mubr.f32.gmra.mrb[0].mxu0 %v1527
        %v1707 = vpop.f32.mrb[0].mxu0
        %v1708 = vadd.f32 0.0, %v1707
        %v1709 = vpop.f32.mrb[0].mxu0
        %1710 = vmatprep.mubr.f32.mxu0 0.0
        %1711 = vmatmul.mubr.f32.gmra.mrb[0].mxu0 %v1529
        %v1712 = vpop.f32.mrb[0].mxu0
        %v1713 = vadd.f32 0.0, %v1712
        %v1714 = vpop.f32.mrb[0].mxu0
        %1715 = vmatprep.mubr.f32.mxu0 0.0
        %1716 = vmatmul.mubr.f32.gmra.mrb[0].mxu0 %v1531
        %v1717 = vpop.f32.mrb[0].mxu0
        %v1718 = vadd.f32 0.0, %v1717
        %v1719 = vpop.f32.mrb[0].mxu0
        %1720 = vmatprep.mubr.f32.mxu0 0.0
        %1721 = vmatmul.mubr.f32.gmra.mrb[0].mxu0 %v1533
        %v1722 = vpop.f32.mrb[0].mxu0
        %v1723 = vadd.f32 0.0, %v1722
        %v1724 = vpop.f32.mrb[0].mxu0
        %1725 = vmatprep.mubr.f32.mxu0 0.0
        %1726 = vmatmul.mubr.f32.gmra.mrb[0].mxu0 %v1535
        %v1727 = vpop.f32.mrb[0].mxu0
        %v1728 = vadd.f32 0.0, %v1727
        %v1729 = vpop.f32.mrb[0].mxu0
        %1730 = vmatprep.mubr.f32.mxu0 0.0
        %1731 = vmatmul.mubr.f32.gmra.mrb[0].mxu0 %v1537
        %v1732 = vpop.f32.mrb[0].mxu0
        %v1733 = vadd.f32 0.0, %v1732
        %v1734 = vpop.f32.mrb[0].mxu0
        %1735 = vmatprep.mubr.f32.mxu0 0.0
        %1736 = vmatmul.mubr.f32.gmra.mrb[0].mxu0 %v1539
        %v1737 = vpop.f32.mrb[0].mxu0
        %v1738 = vadd.f32 0.0, %v1737
        %v1739 = vpop.f32.mrb[0].mxu0
        %1740 = vmatprep.mubr.f32.mxu0 0.0
        %1741 = vmatmul.mubr.f32.gmra.mrb[0].mxu0 %v1541
        %v1742 = vpop.f32.mrb[0].mxu0
        %v1743 = vadd.f32 0.0, %v1742
        %v1744 = vpop.f32.mrb[0].mxu0
        %1745 = vmatprep.mubr.f32.mxu0 0.0
        %1746 = vmatmul.mubr.f32.gmra.mrb[0].mxu0 %v1543
        %v1747 = vpop.f32.mrb[0].mxu0
        %v1748 = vadd.f32 0.0, %v1747
        %v1749 = vpop.f32.mrb[0].mxu0
        %1750 = vmatprep.mubr.f32.mxu0 0.0
        %1751 = vmatmul.mubr.f32.gmra.mrb[0].mxu0 %v1545
        %v1752 = vpop.f32.mrb[0].mxu0
        %v1753 = vadd.f32 0.0, %v1752
        %v1754 = vpop.f32.mrb[0].mxu0
        %1755 = vmatprep.mubr.f32.mxu0 0.0
        %1756 = vmatmul.mubr.f32.gmra.mrb[0].mxu0 %v1547
        %v1757 = vpop.f32.mrb[0].mxu0
        %v1758 = vadd.f32 0.0, %v1757
        %v1759 = vpop.f32.mrb[0].mxu0
        %1760 = vmatprep.mubr.f32.mxu0 0.0
        %1761 = vmatmul.mubr.f32.gmra.mrb[0].mxu0 %v1549
        %v1762 = vpop.f32.mrb[0].mxu0
        %v1763 = vadd.f32 0.0, %v1762
        %v1764 = vpop.f32.mrb[0].mxu0
        %1765 = vmatprep.mubr.f32.mxu0 0.0
        %1766 = vmatmul.mubr.f32.gmra.mrb[0].mxu0 %v1551
        %v1767 = vpop.f32.mrb[0].mxu0
        %v1768 = vadd.f32 0.0, %v1767
        %v1769 = vpop.f32.mrb[0].mxu0
        %1770 = vmatprep.mubr.f32.mxu0 0.0
        %1771 = vmatmul.mubr.f32.gmra.mrb[0].mxu0 %v1553
        %v1772 = vpop.f32.mrb[0].mxu0
        %v1773 = vadd.f32 0.0, %v1772
        %v1774 = vpop.f32.mrb[0].mxu0
        %1775 = vmatprep.mubr.f32.mxu0 0.0
        %1776 = vmatmul.mubr.f32.gmra.mrb[0].mxu0 %v1555
        %v1777 = vpop.f32.mrb[0].mxu0
        %v1778 = vadd.f32 0.0, %v1777
        %v1779 = vpop.f32.mrb[0].mxu0
        %1780 = vdwg.mxu0
        %v1781 = vrcp.pop %v1557
        %v1782 = vrcp.pop %v1559
        %v1783 = vrcp.pop %v1561
        %v1784 = vrcp.pop %v1563
        %v1785 = vrcp.pop %v1565
        %v1786 = vrcp.pop %v1567
        %v1787 = vrcp.pop %v1569
        %v1788 = vrcp.pop %v1571
        %v1789 = vrcp.pop %v1573
        %v1790 = vrcp.pop %v1575
        %v1791 = vrcp.pop %v1577
        %v1792 = vrcp.pop %v1579
        %v1793 = vrcp.pop %v1581
        %v1794 = vrcp.pop %v1583
        %v1795 = vrcp.pop %v1585
        %v1796 = vrcp.pop %v1587
        %v1797 = vmul.f32 %v1703, %v1781
        %v1798 = vmul.f32 %v1708, %v1782
        %v1799 = vmul.f32 %v1713, %v1783
        %v1800 = vmul.f32 %v1718, %v1784
        %v1801 = vmul.f32 %v1723, %v1785
        %v1802 = vmul.f32 %v1728, %v1786
        %v1803 = vmul.f32 %v1733, %v1787
        %v1804 = vmul.f32 %v1738, %v1788
        %v1805 = vmul.f32 %v1743, %v1789
        %v1806 = vmul.f32 %v1748, %v1790
        %v1807 = vmul.f32 %v1753, %v1791
        %v1808 = vmul.f32 %v1758, %v1792
        %v1809 = vmul.f32 %v1763, %v1793
        %v1810 = vmul.f32 %v1768, %v1794
        %v1811 = vmul.f32 %v1773, %v1795
        %v1812 = vmul.f32 %v1778, %v1796
        %1813 = vst.msk [vmem:[#allocation4] sm:$0xff] %vm1314, %v1797
        %1814 = vst.msk [vmem:[#allocation4 + $0x8] sm:$0xff] %vm1314, %v1798
        %1815 = vst.msk [vmem:[#allocation4 + $0x10] sm:$0xff] %vm1314, %v1799
        %1816 = vst.msk [vmem:[#allocation4 + $0x18] sm:$0xff] %vm1314, %v1800
        %1817 = vst.msk [vmem:[#allocation4 + $0x20] sm:$0xff] %vm1314, %v1801
        %1818 = vst.msk [vmem:[#allocation4 + $0x28] sm:$0xff] %vm1314, %v1802
        %1819 = vst.msk [vmem:[#allocation4 + $0x30] sm:$0xff] %vm1314, %v1803
        %1820 = vst.msk [vmem:[#allocation4 + $0x38] sm:$0xff] %vm1314, %v1804
        %1821 = vst.msk [vmem:[#allocation4 + $0x40] sm:$0xff] %vm1314, %v1805
        %1822 = vst.msk [vmem:[#allocation4 + $0x48] sm:$0xff] %vm1314, %v1806
        %1823 = vst.msk [vmem:[#allocation4 + $0x50] sm:$0xff] %vm1314, %v1807
        %1824 = vst.msk [vmem:[#allocation4 + $0x58] sm:$0xff] %vm1314, %v1808
        %1825 = vst.msk [vmem:[#allocation4 + $0x60] sm:$0xff] %vm1314, %v1809
        %1826 = vst.msk [vmem:[#allocation4 + $0x68] sm:$0xff] %vm1314, %v1810
        %1827 = vst.msk [vmem:[#allocation4 + $0x70] sm:$0xff] %vm1314, %v1811
        %1828 = vst.msk [vmem:[#allocation4 + $0x78] sm:$0xff] %vm1314, %v1812
        %v1829 = vld [vmem:[#allocation3] sm:$0xff]
        %v1830 = vld [vmem:[#allocation3 + $0x8] sm:$0xff]
        %v1831 = vld [vmem:[#allocation3 + $0x10] sm:$0xff]
        %v1832 = vld [vmem:[#allocation3 + $0x18] sm:$0xff]
        %v1833 = vld [vmem:[#allocation3 + $0x20] sm:$0xff]
        %v1834 = vld [vmem:[#allocation3 + $0x28] sm:$0xff]
        %v1835 = vld [vmem:[#allocation3 + $0x30] sm:$0xff]
        %v1836 = vld [vmem:[#allocation3 + $0x38] sm:$0xff]
        %v1837 = vld [vmem:[#allocation3 + $0x40] sm:$0xff]
        %v1838 = vld [vmem:[#allocation3 + $0x48] sm:$0xff]
        %v1839 = vld [vmem:[#allocation3 + $0x50] sm:$0xff]
        %v1840 = vld [vmem:[#allocation3 + $0x58] sm:$0xff]
        %v1841 = vld [vmem:[#allocation3 + $0x60] sm:$0xff]
        %v1842 = vld [vmem:[#allocation3 + $0x68] sm:$0xff]
        %v1843 = vld [vmem:[#allocation3 + $0x70] sm:$0xff]
        %v1844 = vld [vmem:[#allocation3 + $0x78] sm:$0xff]
        %v1845 = vld [vmem:[%s3] sm:$0xff]
        %v1846 = vld [vmem:[%s3 + $0x8] sm:$0xff]
        %v1847 = vld [vmem:[%s3 + $0x10] sm:$0xff]
        %v1848 = vld [vmem:[%s3 + $0x18] sm:$0xff]
        %v1849 = vld [vmem:[%s3 + $0x20] sm:$0xff]
        %v1850 = vld [vmem:[%s3 + $0x28] sm:$0xff]
        %v1851 = vld [vmem:[%s3 + $0x30] sm:$0xff]
        %v1852 = vld [vmem:[%s3 + $0x38] sm:$0xff]
        %v1853 = vld [vmem:[%s3 + $0x40] sm:$0xff]
        %v1854 = vld [vmem:[%s3 + $0x48] sm:$0xff]
        %v1855 = vld [vmem:[%s3 + $0x50] sm:$0xff]
        %v1856 = vld [vmem:[%s3 + $0x58] sm:$0xff]
        %v1857 = vld [vmem:[%s3 + $0x60] sm:$0xff]
        %v1858 = vld [vmem:[%s3 + $0x68] sm:$0xff]
        %v1859 = vld [vmem:[%s3 + $0x70] sm:$0xff]
        %v1860 = vld [vmem:[%s3 + $0x78] sm:$0xff]
        %1877 = vrot.lane.b32.xlu0 %v1829, 112
        %v1878 = vpop.permute.xlu0 %1877
        %1879 = vrot.lane.b32.xlu0 %v1830, 112
        %v1880 = vpop.permute.xlu0 %1879
        %1881 = vrot.lane.b32.xlu0 %v1831, 112
        %v1882 = vpop.permute.xlu0 %1881
        %1883 = vrot.lane.b32.xlu0 %v1832, 112
        %v1884 = vpop.permute.xlu0 %1883
        %1885 = vrot.lane.b32.xlu0 %v1833, 112
        %v1886 = vpop.permute.xlu0 %1885
        %1887 = vrot.lane.b32.xlu0 %v1834, 112
        %v1888 = vpop.permute.xlu0 %1887
        %1889 = vrot.lane.b32.xlu0 %v1835, 112
        %v1890 = vpop.permute.xlu0 %1889
        %1891 = vrot.lane.b32.xlu0 %v1836, 112
        %v1892 = vpop.permute.xlu0 %1891
        %1893 = vrot.lane.b32.xlu0 %v1837, 112
        %v1894 = vpop.permute.xlu0 %1893
        %1895 = vrot.lane.b32.xlu0 %v1838, 112
        %v1896 = vpop.permute.xlu0 %1895
        %1897 = vrot.lane.b32.xlu0 %v1839, 112
        %v1898 = vpop.permute.xlu0 %1897
        %1899 = vrot.lane.b32.xlu0 %v1840, 112
        %v1900 = vpop.permute.xlu0 %1899
        %1901 = vrot.lane.b32.xlu0 %v1841, 112
        %v1902 = vpop.permute.xlu0 %1901
        %1903 = vrot.lane.b32.xlu0 %v1842, 112
        %v1904 = vpop.permute.xlu0 %1903
        %1905 = vrot.lane.b32.xlu0 %v1843, 112
        %v1906 = vpop.permute.xlu0 %1905
        %1907 = vrot.lane.b32.xlu0 %v1844, 112
        %v1908 = vpop.permute.xlu0 %1907
        %1909 = vrot.lane.b32.xlu0 %v1829, 80
        %v1910 = vpop.permute.xlu0 %1909
        %1911 = vrot.lane.b32.xlu0 %v1830, 80
        %v1912 = vpop.permute.xlu0 %1911
        %1913 = vrot.lane.b32.xlu0 %v1831, 80
        %v1914 = vpop.permute.xlu0 %1913
        %1915 = vrot.lane.b32.xlu0 %v1832, 80
        %v1916 = vpop.permute.xlu0 %1915
        %1917 = vrot.lane.b32.xlu0 %v1833, 80
        %v1918 = vpop.permute.xlu0 %1917
        %1919 = vrot.lane.b32.xlu0 %v1834, 80
        %v1920 = vpop.permute.xlu0 %1919
        %1921 = vrot.lane.b32.xlu0 %v1835, 80
        %v1922 = vpop.permute.xlu0 %1921
        %1923 = vrot.lane.b32.xlu0 %v1836, 80
        %v1924 = vpop.permute.xlu0 %1923
        %1925 = vrot.lane.b32.xlu0 %v1837, 80
        %v1926 = vpop.permute.xlu0 %1925
        %1927 = vrot.lane.b32.xlu0 %v1838, 80
        %v1928 = vpop.permute.xlu0 %1927
        %1929 = vrot.lane.b32.xlu0 %v1839, 80
        %v1930 = vpop.permute.xlu0 %1929
        %1931 = vrot.lane.b32.xlu0 %v1840, 80
        %v1932 = vpop.permute.xlu0 %1931
        %1933 = vrot.lane.b32.xlu0 %v1841, 80
        %v1934 = vpop.permute.xlu0 %1933
        %1935 = vrot.lane.b32.xlu0 %v1842, 80
        %v1936 = vpop.permute.xlu0 %1935
        %1937 = vrot.lane.b32.xlu0 %v1843, 80
        %v1938 = vpop.permute.xlu0 %1937
        %1939 = vrot.lane.b32.xlu0 %v1844, 80
        %v1940 = vpop.permute.xlu0 %1939
        %v1941 = vsel %vm1314, %v1878, 0
        %v1943 = vsel %vm1314, %v1880, 0
        %v1945 = vsel %vm1314, %v1882, 0
        %v1947 = vsel %vm1314, %v1884, 0
        %v1949 = vsel %vm1314, %v1886, 0
        %v1951 = vsel %vm1314, %v1888, 0
        %v1953 = vsel %vm1314, %v1890, 0
        %v1955 = vsel %vm1314, %v1892, 0
        %v1957 = vsel %vm1314, %v1894, 0
        %v1959 = vsel %vm1314, %v1896, 0
        %v1961 = vsel %vm1314, %v1898, 0
        %v1963 = vsel %vm1314, %v1900, 0
        %v1965 = vsel %vm1314, %v1902, 0
        %v1967 = vsel %vm1314, %v1904, 0
        %v1969 = vsel %vm1314, %v1906, 0
        %v1971 = vsel %vm1314, %v1908, 0
        %v1973 = vsel %vm1314, %v1910, 0
        %v1975 = vsel %vm1314, %v1912, 0
        %v1977 = vsel %vm1314, %v1914, 0
        %v1979 = vsel %vm1314, %v1916, 0
        %v1981 = vsel %vm1314, %v1918, 0
        %v1983 = vsel %vm1314, %v1920, 0
        %v1985 = vsel %vm1314, %v1922, 0
        %v1987 = vsel %vm1314, %v1924, 0
        %v1989 = vsel %vm1314, %v1926, 0
        %v1991 = vsel %vm1314, %v1928, 0
        %v1993 = vsel %vm1314, %v1930, 0
        %v1995 = vsel %vm1314, %v1932, 0
        %v1997 = vsel %vm1314, %v1934, 0
        %v1999 = vsel %vm1314, %v1936, 0
        %v2001 = vsel %vm1314, %v1938, 0
        %v2003 = vsel %vm1314, %v1940, 0
        %2005 = vmatprep.subr.mxu0 0.0
        %2006 = vmatpush1.xpose.msra.mxu0 %v1973
        %2007 = vmatprep.subr.mxu0 0.0
        %2008 = vmatpush1.xpose.msra.mxu0 %v1975
        %2009 = vmatprep.subr.mxu0 0.0
        %2010 = vmatpush1.xpose.msra.mxu0 %v1977
        %2011 = vmatprep.subr.mxu0 0.0
        %2012 = vmatpush1.xpose.msra.mxu0 %v1979
        %2013 = vmatprep.subr.mxu0 0.0
        %2014 = vmatpush1.xpose.msra.mxu0 %v1981
        %2015 = vmatprep.subr.mxu0 0.0
        %2016 = vmatpush1.xpose.msra.mxu0 %v1983
        %2017 = vmatprep.subr.mxu0 0.0
        %2018 = vmatpush1.xpose.msra.mxu0 %v1985
        %2019 = vmatprep.subr.mxu0 0.0
        %2020 = vmatpush1.xpose.msra.mxu0 %v1987
        %2021 = vmatprep.subr.mxu0 0.0
        %2022 = vmatpush1.xpose.msra.mxu0 %v1989
        %2023 = vmatprep.subr.mxu0 0.0
        %2024 = vmatpush1.xpose.msra.mxu0 %v1991
        %2025 = vmatprep.subr.mxu0 0.0
        %2026 = vmatpush1.xpose.msra.mxu0 %v1993
        %2027 = vmatprep.subr.mxu0 0.0
        %2028 = vmatpush1.xpose.msra.mxu0 %v1995
        %2029 = vmatprep.subr.mxu0 0.0
        %2030 = vmatpush1.xpose.msra.mxu0 %v1997
        %2031 = vmatprep.subr.mxu0 0.0
        %2032 = vmatpush1.xpose.msra.mxu0 %v1999
        %2033 = vmatprep.subr.mxu0 0.0
        %2034 = vmatpush1.xpose.msra.mxu0 %v2001
        %2035 = vmatprep.subr.mxu0 0.0
        %2036 = vmatpush1.xpose.msra.mxu0 %v2003
        %2037 = vmatprep.subr.mxu0 0.0
        %2038 = vmatpush1.xpose.msra.mxu0 0.0
        %2039 = vmatprep.subr.mxu0 0.0
        %2040 = vmatpush1.xpose.msra.mxu0 0.0
        %2041 = vmatprep.subr.mxu0 0.0
        %2042 = vmatpush1.xpose.msra.mxu0 0.0
        %2043 = vmatprep.subr.mxu0 0.0
        %2044 = vmatpush1.xpose.msra.mxu0 0.0
        %2045 = vmatprep.subr.mxu0 0.0
        %2046 = vmatpush1.xpose.msra.mxu0 0.0
        %2047 = vmatprep.subr.mxu0 0.0
        %2048 = vmatpush1.xpose.msra.mxu0 0.0
        %2049 = vmatprep.subr.mxu0 0.0
        %2050 = vmatpush1.xpose.msra.mxu0 0.0
        %2051 = vmatprep.subr.mxu0 0.0
        %2052 = vmatpush1.xpose.msra.mxu0 0.0
        %2053 = vmatprep.subr.mxu0 0.0
        %2054 = vmatpush1.xpose.msra.mxu0 0.0
        %2055 = vmatprep.subr.mxu0 0.0
        %2056 = vmatpush1.xpose.msra.mxu0 0.0
        %2057 = vmatprep.subr.mxu0 0.0
        %2058 = vmatpush1.xpose.msra.mxu0 0.0
        %2059 = vmatprep.subr.mxu0 0.0
        %2060 = vmatpush1.xpose.msra.mxu0 0.0
        %2061 = vmatprep.subr.mxu0 0.0
        %2062 = vmatpush1.xpose.msra.mxu0 0.0
        %2063 = vmatprep.subr.mxu0 0.0
        %2064 = vmatpush1.xpose.msra.mxu0 0.0
        %2065 = vmatprep.subr.mxu0 0.0
        %2066 = vmatpush1.xpose.msra.mxu0 0.0
        %2067 = vmatprep.subr.mxu0 0.0
        %2068 = vmatpush1.xpose.msra.mxu0 0.0
        %2069 = vmatprep.mubr.f32.mxu0 0.0
        %2070 = vmatmul.mubr.f32.gmra.mrb[0].mxu0 %v1941
        %v2071 = vpop.f32.mrb[0].mxu0
        %v2072 = vadd.f32 %v1845, %v2071
        %v2073 = vpop.f32.mrb[0].mxu0
        %2074 = vmatprep.mubr.f32.mxu0 0.0
        %2075 = vmatmul.mubr.f32.gmra.mrb[0].mxu0 %v1943
        %v2076 = vpop.f32.mrb[0].mxu0
        %v2077 = vadd.f32 %v1846, %v2076
        %v2078 = vpop.f32.mrb[0].mxu0
        %2079 = vmatprep.mubr.f32.mxu0 0.0
        %2080 = vmatmul.mubr.f32.gmra.mrb[0].mxu0 %v1945
        %v2081 = vpop.f32.mrb[0].mxu0
        %v2082 = vadd.f32 %v1847, %v2081
        %v2083 = vpop.f32.mrb[0].mxu0
        %2084 = vmatprep.mubr.f32.mxu0 0.0
        %2085 = vmatmul.mubr.f32.gmra.mrb[0].mxu0 %v1947
        %v2086 = vpop.f32.mrb[0].mxu0
        %v2087 = vadd.f32 %v1848, %v2086
        %v2088 = vpop.f32.mrb[0].mxu0
        %2089 = vmatprep.mubr.f32.mxu0 0.0
        %2090 = vmatmul.mubr.f32.gmra.mrb[0].mxu0 %v1949
        %v2091 = vpop.f32.mrb[0].mxu0
        %v2092 = vadd.f32 %v1849, %v2091
        %v2093 = vpop.f32.mrb[0].mxu0
        %2094 = vmatprep.mubr.f32.mxu0 0.0
        %2095 = vmatmul.mubr.f32.gmra.mrb[0].mxu0 %v1951
        %v2096 = vpop.f32.mrb[0].mxu0
        %v2097 = vadd.f32 %v1850, %v2096
        %v2098 = vpop.f32.mrb[0].mxu0
        %2099 = vmatprep.mubr.f32.mxu0 0.0
        %2100 = vmatmul.mubr.f32.gmra.mrb[0].mxu0 %v1953
        %v2101 = vpop.f32.mrb[0].mxu0
        %v2102 = vadd.f32 %v1851, %v2101
        %v2103 = vpop.f32.mrb[0].mxu0
        %2104 = vmatprep.mubr.f32.mxu0 0.0
        %2105 = vmatmul.mubr.f32.gmra.mrb[0].mxu0 %v1955
        %v2106 = vpop.f32.mrb[0].mxu0
        %v2107 = vadd.f32 %v1852, %v2106
        %v2108 = vpop.f32.mrb[0].mxu0
        %2109 = vmatprep.mubr.f32.mxu0 0.0
        %2110 = vmatmul.mubr.f32.gmra.mrb[0].mxu0 %v1957
        %v2111 = vpop.f32.mrb[0].mxu0
        %v2112 = vadd.f32 %v1853, %v2111
        %v2113 = vpop.f32.mrb[0].mxu0
        %2114 = vmatprep.mubr.f32.mxu0 0.0
        %2115 = vmatmul.mubr.f32.gmra.mrb[0].mxu0 %v1959
        %v2116 = vpop.f32.mrb[0].mxu0
        %v2117 = vadd.f32 %v1854, %v2116
        %v2118 = vpop.f32.mrb[0].mxu0
        %2119 = vmatprep.mubr.f32.mxu0 0.0
        %2120 = vmatmul.mubr.f32.gmra.mrb[0].mxu0 %v1961
        %v2121 = vpop.f32.mrb[0].mxu0
        %v2122 = vadd.f32 %v1855, %v2121
        %v2123 = vpop.f32.mrb[0].mxu0
        %2124 = vmatprep.mubr.f32.mxu0 0.0
        %2125 = vmatmul.mubr.f32.gmra.mrb[0].mxu0 %v1963
        %v2126 = vpop.f32.mrb[0].mxu0
        %v2127 = vadd.f32 %v1856, %v2126
        %v2128 = vpop.f32.mrb[0].mxu0
        %2129 = vmatprep.mubr.f32.mxu0 0.0
        %2130 = vmatmul.mubr.f32.gmra.mrb[0].mxu0 %v1965
        %v2131 = vpop.f32.mrb[0].mxu0
        %v2132 = vadd.f32 %v1857, %v2131
        %v2133 = vpop.f32.mrb[0].mxu0
        %2134 = vmatprep.mubr.f32.mxu0 0.0
        %2135 = vmatmul.mubr.f32.gmra.mrb[0].mxu0 %v1967
        %v2136 = vpop.f32.mrb[0].mxu0
        %v2137 = vadd.f32 %v1858, %v2136
        %v2138 = vpop.f32.mrb[0].mxu0
        %2139 = vmatprep.mubr.f32.mxu0 0.0
        %2140 = vmatmul.mubr.f32.gmra.mrb[0].mxu0 %v1969
        %v2141 = vpop.f32.mrb[0].mxu0
        %v2142 = vadd.f32 %v1859, %v2141
        %v2143 = vpop.f32.mrb[0].mxu0
        %2144 = vmatprep.mubr.f32.mxu0 0.0
        %2145 = vmatmul.mubr.f32.gmra.mrb[0].mxu0 %v1971
        %v2146 = vpop.f32.mrb[0].mxu0
        %v2147 = vadd.f32 %v1860, %v2146
        %v2148 = vpop.f32.mrb[0].mxu0
        %2149 = vdwg.mxu0
        %v2150 = vmul.f32 %v2072, 1.442695
        %v2151 = vpow.pop %v2150
        %v2152 = vmul.f32 %v2077, 1.442695
        %v2153 = vpow.pop %v2152
        %v2154 = vmul.f32 %v2082, 1.442695
        %v2155 = vpow.pop %v2154
        %v2156 = vmul.f32 %v2087, 1.442695
        %v2157 = vpow.pop %v2156
        %v2158 = vmul.f32 %v2092, 1.442695
        %v2159 = vpow.pop %v2158
        %v2160 = vmul.f32 %v2097, 1.442695
        %v2161 = vpow.pop %v2160
        %v2162 = vmul.f32 %v2102, 1.442695
        %v2163 = vpow.pop %v2162
        %v2164 = vmul.f32 %v2107, 1.442695
        %v2165 = vpow.pop %v2164
        %v2166 = vmul.f32 %v2112, 1.442695
        %v2167 = vpow.pop %v2166
        %v2168 = vmul.f32 %v2117, 1.442695
        %v2169 = vpow.pop %v2168
        %v2170 = vmul.f32 %v2122, 1.442695
        %v2171 = vpow.pop %v2170
        %v2172 = vmul.f32 %v2127, 1.442695
        %v2173 = vpow.pop %v2172
        %v2174 = vmul.f32 %v2132, 1.442695
        %v2175 = vpow.pop %v2174
        %v2176 = vmul.f32 %v2137, 1.442695
        %v2177 = vpow.pop %v2176
        %v2178 = vmul.f32 %v2142, 1.442695
        %v2179 = vpow.pop %v2178
        %v2180 = vmul.f32 %v2147, 1.442695
        %v2181 = vpow.pop %v2180
        %2182 = vadd.xlane.f32.xlu0 %v2151
        %v2183 = vpop.xlane.xlu0 %2182
        %2184 = vadd.xlane.f32.xlu0 %v2153
        %v2185 = vpop.xlane.xlu0 %2184
        %2186 = vadd.xlane.f32.xlu0 %v2155
        %v2187 = vpop.xlane.xlu0 %2186
        %2188 = vadd.xlane.f32.xlu0 %v2157
        %v2189 = vpop.xlane.xlu0 %2188
        %2190 = vadd.xlane.f32.xlu0 %v2159
        %v2191 = vpop.xlane.xlu0 %2190
        %2192 = vadd.xlane.f32.xlu0 %v2161
        %v2193 = vpop.xlane.xlu0 %2192
        %2194 = vadd.xlane.f32.xlu0 %v2163
        %v2195 = vpop.xlane.xlu0 %2194
        %2196 = vadd.xlane.f32.xlu0 %v2165
        %v2197 = vpop.xlane.xlu0 %2196
        %2198 = vadd.xlane.f32.xlu0 %v2167
        %v2199 = vpop.xlane.xlu0 %2198
        %2200 = vadd.xlane.f32.xlu0 %v2169
        %v2201 = vpop.xlane.xlu0 %2200
        %2202 = vadd.xlane.f32.xlu0 %v2171
        %v2203 = vpop.xlane.xlu0 %2202
        %2204 = vadd.xlane.f32.xlu0 %v2173
        %v2205 = vpop.xlane.xlu0 %2204
        %2206 = vadd.xlane.f32.xlu0 %v2175
        %v2207 = vpop.xlane.xlu0 %2206
        %2208 = vadd.xlane.f32.xlu0 %v2177
        %v2209 = vpop.xlane.xlu0 %2208
        %2210 = vadd.xlane.f32.xlu0 %v2179
        %v2211 = vpop.xlane.xlu0 %2210
        %2212 = vadd.xlane.f32.xlu0 %v2181
        %v2213 = vpop.xlane.xlu0 %2212
        %2214 = vrot.lane.b32.xlu0 %v1829, 48
        %v2215 = vpop.permute.xlu0 %2214
        %2216 = vrot.lane.b32.xlu0 %v1830, 48
        %v2217 = vpop.permute.xlu0 %2216
        %2218 = vrot.lane.b32.xlu0 %v1831, 48
        %v2219 = vpop.permute.xlu0 %2218
        %2220 = vrot.lane.b32.xlu0 %v1832, 48
        %v2221 = vpop.permute.xlu0 %2220
        %2222 = vrot.lane.b32.xlu0 %v1833, 48
        %v2223 = vpop.permute.xlu0 %2222
        %2224 = vrot.lane.b32.xlu0 %v1834, 48
        %v2225 = vpop.permute.xlu0 %2224
        %2226 = vrot.lane.b32.xlu0 %v1835, 48
        %v2227 = vpop.permute.xlu0 %2226
        %2228 = vrot.lane.b32.xlu0 %v1836, 48
        %v2229 = vpop.permute.xlu0 %2228
        %2230 = vrot.lane.b32.xlu0 %v1837, 48
        %v2231 = vpop.permute.xlu0 %2230
        %2232 = vrot.lane.b32.xlu0 %v1838, 48
        %v2233 = vpop.permute.xlu0 %2232
        %2234 = vrot.lane.b32.xlu0 %v1839, 48
        %v2235 = vpop.permute.xlu0 %2234
        %2236 = vrot.lane.b32.xlu0 %v1840, 48
        %v2237 = vpop.permute.xlu0 %2236
        %2238 = vrot.lane.b32.xlu0 %v1841, 48
        %v2239 = vpop.permute.xlu0 %2238
        %2240 = vrot.lane.b32.xlu0 %v1842, 48
        %v2241 = vpop.permute.xlu0 %2240
        %2242 = vrot.lane.b32.xlu0 %v1843, 48
        %v2243 = vpop.permute.xlu0 %2242
        %2244 = vrot.lane.b32.xlu0 %v1844, 48
        %v2245 = vpop.permute.xlu0 %2244
        %2262 = vmatprep.subr.mxu0 0.0
        %2263 = vmatpush1.msra.mxu0 %v2215
        %2264 = vmatprep.subr.mxu0 0.0
        %2265 = vmatpush1.msra.mxu0 %v2217
        %2266 = vmatprep.subr.mxu0 0.0
        %2267 = vmatpush1.msra.mxu0 %v2219
        %2268 = vmatprep.subr.mxu0 0.0
        %2269 = vmatpush1.msra.mxu0 %v2221
        %2270 = vmatprep.subr.mxu0 0.0
        %2271 = vmatpush1.msra.mxu0 %v2223
        %2272 = vmatprep.subr.mxu0 0.0
        %2273 = vmatpush1.msra.mxu0 %v2225
        %2274 = vmatprep.subr.mxu0 0.0
        %2275 = vmatpush1.msra.mxu0 %v2227
        %2276 = vmatprep.subr.mxu0 0.0
        %2277 = vmatpush1.msra.mxu0 %v2229
        %2278 = vmatprep.subr.mxu0 0.0
        %2279 = vmatpush1.msra.mxu0 %v2231
        %2280 = vmatprep.subr.mxu0 0.0
        %2281 = vmatpush1.msra.mxu0 %v2233
        %2282 = vmatprep.subr.mxu0 0.0
        %2283 = vmatpush1.msra.mxu0 %v2235
        %2284 = vmatprep.subr.mxu0 0.0
        %2285 = vmatpush1.msra.mxu0 %v2237
        %2286 = vmatprep.subr.mxu0 0.0
        %2287 = vmatpush1.msra.mxu0 %v2239
        %2288 = vmatprep.subr.mxu0 0.0
        %2289 = vmatpush1.msra.mxu0 %v2241
        %2290 = vmatprep.subr.mxu0 0.0
        %2291 = vmatpush1.msra.mxu0 %v2243
        %2292 = vmatprep.subr.mxu0 0.0
        %2293 = vmatpush1.msra.mxu0 %v2245
        %2294 = vmatprep.subr.mxu0 0.0
        %2295 = vmatpush1.msra.mxu0 0.0
        %2296 = vmatprep.subr.mxu0 0.0
        %2297 = vmatpush1.msra.mxu0 0.0
        %2298 = vmatprep.subr.mxu0 0.0
        %2299 = vmatpush1.msra.mxu0 0.0
        %2300 = vmatprep.subr.mxu0 0.0
        %2301 = vmatpush1.msra.mxu0 0.0
        %2302 = vmatprep.subr.mxu0 0.0
        %2303 = vmatpush1.msra.mxu0 0.0
        %2304 = vmatprep.subr.mxu0 0.0
        %2305 = vmatpush1.msra.mxu0 0.0
        %2306 = vmatprep.subr.mxu0 0.0
        %2307 = vmatpush1.msra.mxu0 0.0
        %2308 = vmatprep.subr.mxu0 0.0
        %2309 = vmatpush1.msra.mxu0 0.0
        %2310 = vmatprep.subr.mxu0 0.0
        %2311 = vmatpush1.msra.mxu0 0.0
        %2312 = vmatprep.subr.mxu0 0.0
        %2313 = vmatpush1.msra.mxu0 0.0
        %2314 = vmatprep.subr.mxu0 0.0
        %2315 = vmatpush1.msra.mxu0 0.0
        %2316 = vmatprep.subr.mxu0 0.0
        %2317 = vmatpush1.msra.mxu0 0.0
        %2318 = vmatprep.subr.mxu0 0.0
        %2319 = vmatpush1.msra.mxu0 0.0
        %2320 = vmatprep.subr.mxu0 0.0
        %2321 = vmatpush1.msra.mxu0 0.0
        %2322 = vmatprep.subr.mxu0 0.0
        %2323 = vmatpush1.msra.mxu0 0.0
        %2324 = vmatprep.subr.mxu0 0.0
        %2325 = vmatpush1.msra.mxu0 0.0
        %2326 = vmatprep.mubr.f32.mxu0 0.0
        %2327 = vmatmul.mubr.f32.gmra.mrb[0].mxu0 %v2151
        %v2328 = vpop.f32.mrb[0].mxu0
        %v2329 = vadd.f32 0.0, %v2328
        %v2330 = vpop.f32.mrb[0].mxu0
        %2331 = vmatprep.mubr.f32.mxu0 0.0
        %2332 = vmatmul.mubr.f32.gmra.mrb[0].mxu0 %v2153
        %v2333 = vpop.f32.mrb[0].mxu0
        %v2334 = vadd.f32 0.0, %v2333
        %v2335 = vpop.f32.mrb[0].mxu0
        %2336 = vmatprep.mubr.f32.mxu0 0.0
        %2337 = vmatmul.mubr.f32.gmra.mrb[0].mxu0 %v2155
        %v2338 = vpop.f32.mrb[0].mxu0
        %v2339 = vadd.f32 0.0, %v2338
        %v2340 = vpop.f32.mrb[0].mxu0
        %2341 = vmatprep.mubr.f32.mxu0 0.0
        %2342 = vmatmul.mubr.f32.gmra.mrb[0].mxu0 %v2157
        %v2343 = vpop.f32.mrb[0].mxu0
        %v2344 = vadd.f32 0.0, %v2343
        %v2345 = vpop.f32.mrb[0].mxu0
        %2346 = vmatprep.mubr.f32.mxu0 0.0
        %2347 = vmatmul.mubr.f32.gmra.mrb[0].mxu0 %v2159
        %v2348 = vpop.f32.mrb[0].mxu0
        %v2349 = vadd.f32 0.0, %v2348
        %v2350 = vpop.f32.mrb[0].mxu0
        %2351 = vmatprep.mubr.f32.mxu0 0.0
        %2352 = vmatmul.mubr.f32.gmra.mrb[0].mxu0 %v2161
        %v2353 = vpop.f32.mrb[0].mxu0
        %v2354 = vadd.f32 0.0, %v2353
        %v2355 = vpop.f32.mrb[0].mxu0
        %2356 = vmatprep.mubr.f32.mxu0 0.0
        %2357 = vmatmul.mubr.f32.gmra.mrb[0].mxu0 %v2163
        %v2358 = vpop.f32.mrb[0].mxu0
        %v2359 = vadd.f32 0.0, %v2358
        %v2360 = vpop.f32.mrb[0].mxu0
        %2361 = vmatprep.mubr.f32.mxu0 0.0
        %2362 = vmatmul.mubr.f32.gmra.mrb[0].mxu0 %v2165
        %v2363 = vpop.f32.mrb[0].mxu0
        %v2364 = vadd.f32 0.0, %v2363
        %v2365 = vpop.f32.mrb[0].mxu0
        %2366 = vmatprep.mubr.f32.mxu0 0.0
        %2367 = vmatmul.mubr.f32.gmra.mrb[0].mxu0 %v2167
        %v2368 = vpop.f32.mrb[0].mxu0
        %v2369 = vadd.f32 0.0, %v2368
        %v2370 = vpop.f32.mrb[0].mxu0
        %2371 = vmatprep.mubr.f32.mxu0 0.0
        %2372 = vmatmul.mubr.f32.gmra.mrb[0].mxu0 %v2169
        %v2373 = vpop.f32.mrb[0].mxu0
        %v2374 = vadd.f32 0.0, %v2373
        %v2375 = vpop.f32.mrb[0].mxu0
        %2376 = vmatprep.mubr.f32.mxu0 0.0
        %2377 = vmatmul.mubr.f32.gmra.mrb[0].mxu0 %v2171
        %v2378 = vpop.f32.mrb[0].mxu0
        %v2379 = vadd.f32 0.0, %v2378
        %v2380 = vpop.f32.mrb[0].mxu0
        %2381 = vmatprep.mubr.f32.mxu0 0.0
        %2382 = vmatmul.mubr.f32.gmra.mrb[0].mxu0 %v2173
        %v2383 = vpop.f32.mrb[0].mxu0
        %v2384 = vadd.f32 0.0, %v2383
        %v2385 = vpop.f32.mrb[0].mxu0
        %2386 = vmatprep.mubr.f32.mxu0 0.0
        %2387 = vmatmul.mubr.f32.gmra.mrb[0].mxu0 %v2175
        %v2388 = vpop.f32.mrb[0].mxu0
        %v2389 = vadd.f32 0.0, %v2388
        %v2390 = vpop.f32.mrb[0].mxu0
        %2391 = vmatprep.mubr.f32.mxu0 0.0
        %2392 = vmatmul.mubr.f32.gmra.mrb[0].mxu0 %v2177
        %v2393 = vpop.f32.mrb[0].mxu0
        %v2394 = vadd.f32 0.0, %v2393
        %v2395 = vpop.f32.mrb[0].mxu0
        %2396 = vmatprep.mubr.f32.mxu0 0.0
        %2397 = vmatmul.mubr.f32.gmra.mrb[0].mxu0 %v2179
        %v2398 = vpop.f32.mrb[0].mxu0
        %v2399 = vadd.f32 0.0, %v2398
        %v2400 = vpop.f32.mrb[0].mxu0
        %2401 = vmatprep.mubr.f32.mxu0 0.0
        %2402 = vmatmul.mubr.f32.gmra.mrb[0].mxu0 %v2181
        %v2403 = vpop.f32.mrb[0].mxu0
        %v2404 = vadd.f32 0.0, %v2403
        %v2405 = vpop.f32.mrb[0].mxu0
        %2406 = vdwg.mxu0
        %v2407 = vrcp.pop %v2183
        %v2408 = vrcp.pop %v2185
        %v2409 = vrcp.pop %v2187
        %v2410 = vrcp.pop %v2189
        %v2411 = vrcp.pop %v2191
        %v2412 = vrcp.pop %v2193
        %v2413 = vrcp.pop %v2195
        %v2414 = vrcp.pop %v2197
        %v2415 = vrcp.pop %v2199
        %v2416 = vrcp.pop %v2201
        %v2417 = vrcp.pop %v2203
        %v2418 = vrcp.pop %v2205
        %v2419 = vrcp.pop %v2207
        %v2420 = vrcp.pop %v2209
        %v2421 = vrcp.pop %v2211
        %v2422 = vrcp.pop %v2213
        %v2423 = vmul.f32 %v2329, %v2407
        %v2424 = vmul.f32 %v2334, %v2408
        %v2425 = vmul.f32 %v2339, %v2409
        %v2426 = vmul.f32 %v2344, %v2410
        %v2427 = vmul.f32 %v2349, %v2411
        %v2428 = vmul.f32 %v2354, %v2412
        %v2429 = vmul.f32 %v2359, %v2413
        %v2430 = vmul.f32 %v2364, %v2414
        %v2431 = vmul.f32 %v2369, %v2415
        %v2432 = vmul.f32 %v2374, %v2416
        %v2433 = vmul.f32 %v2379, %v2417
        %v2434 = vmul.f32 %v2384, %v2418
        %v2435 = vmul.f32 %v2389, %v2419
        %v2436 = vmul.f32 %v2394, %v2420
        %v2437 = vmul.f32 %v2399, %v2421
        %v2438 = vmul.f32 %v2404, %v2422
        %2455 = vrot.lane.b32.xlu0 %v2423, 16
        %v2456 = vpop.permute.xlu0 %2455
        %2457 = vrot.lane.b32.xlu0 %v2424, 16
        %v2458 = vpop.permute.xlu0 %2457
        %2459 = vrot.lane.b32.xlu0 %v2425, 16
        %v2460 = vpop.permute.xlu0 %2459
        %2461 = vrot.lane.b32.xlu0 %v2426, 16
        %v2462 = vpop.permute.xlu0 %2461
        %2463 = vrot.lane.b32.xlu0 %v2427, 16
        %v2464 = vpop.permute.xlu0 %2463
        %2465 = vrot.lane.b32.xlu0 %v2428, 16
        %v2466 = vpop.permute.xlu0 %2465
        %2467 = vrot.lane.b32.xlu0 %v2429, 16
        %v2468 = vpop.permute.xlu0 %2467
        %2469 = vrot.lane.b32.xlu0 %v2430, 16
        %v2470 = vpop.permute.xlu0 %2469
        %2471 = vrot.lane.b32.xlu0 %v2431, 16
        %v2472 = vpop.permute.xlu0 %2471
        %2473 = vrot.lane.b32.xlu0 %v2432, 16
        %v2474 = vpop.permute.xlu0 %2473
        %2475 = vrot.lane.b32.xlu0 %v2433, 16
        %v2476 = vpop.permute.xlu0 %2475
        %2477 = vrot.lane.b32.xlu0 %v2434, 16
        %v2478 = vpop.permute.xlu0 %2477
        %2479 = vrot.lane.b32.xlu0 %v2435, 16
        %v2480 = vpop.permute.xlu0 %2479
        %2481 = vrot.lane.b32.xlu0 %v2436, 16
        %v2482 = vpop.permute.xlu0 %2481
        %2483 = vrot.lane.b32.xlu0 %v2437, 16
        %v2484 = vpop.permute.xlu0 %2483
        %2485 = vrot.lane.b32.xlu0 %v2438, 16
        %v2486 = vpop.permute.xlu0 %2485
        %vm2503 = vcmask 261248
        %2504 = vst.msk [vmem:[#allocation4] sm:$0xff] %vm2503, %v2456
        %2505 = vst.msk [vmem:[#allocation4 + $0x8] sm:$0xff] %vm2503, %v2458
        %2506 = vst.msk [vmem:[#allocation4 + $0x10] sm:$0xff] %vm2503, %v2460
        %2507 = vst.msk [vmem:[#allocation4 + $0x18] sm:$0xff] %vm2503, %v2462
        %2508 = vst.msk [vmem:[#allocation4 + $0x20] sm:$0xff] %vm2503, %v2464
        %2509 = vst.msk [vmem:[#allocation4 + $0x28] sm:$0xff] %vm2503, %v2466
        %2510 = vst.msk [vmem:[#allocation4 + $0x30] sm:$0xff] %vm2503, %v2468
        %2511 = vst.msk [vmem:[#allocation4 + $0x38] sm:$0xff] %vm2503, %v2470
        %2512 = vst.msk [vmem:[#allocation4 + $0x40] sm:$0xff] %vm2503, %v2472
        %2513 = vst.msk [vmem:[#allocation4 + $0x48] sm:$0xff] %vm2503, %v2474
        %2514 = vst.msk [vmem:[#allocation4 + $0x50] sm:$0xff] %vm2503, %v2476
        %2515 = vst.msk [vmem:[#allocation4 + $0x58] sm:$0xff] %vm2503, %v2478
        %2516 = vst.msk [vmem:[#allocation4 + $0x60] sm:$0xff] %vm2503, %v2480
        %2517 = vst.msk [vmem:[#allocation4 + $0x68] sm:$0xff] %vm2503, %v2482
        %2518 = vst.msk [vmem:[#allocation4 + $0x70] sm:$0xff] %vm2503, %v2484
        %2519 = vst.msk [vmem:[#allocation4 + $0x78] sm:$0xff] %vm2503, %v2486
        %v2520 = vld [vmem:[#allocation4] sm:$0xff]
        %v2521 = vld [vmem:[#allocation4 + $0x8] sm:$0xff]
        %v2522 = vld [vmem:[#allocation4 + $0x10] sm:$0xff]
        %v2523 = vld [vmem:[#allocation4 + $0x18] sm:$0xff]
        %v2524 = vld [vmem:[#allocation4 + $0x20] sm:$0xff]
        %v2525 = vld [vmem:[#allocation4 + $0x28] sm:$0xff]
        %v2526 = vld [vmem:[#allocation4 + $0x30] sm:$0xff]
        %v2527 = vld [vmem:[#allocation4 + $0x38] sm:$0xff]
        %v2528 = vld [vmem:[#allocation4 + $0x40] sm:$0xff]
        %v2529 = vld [vmem:[#allocation4 + $0x48] sm:$0xff]
        %v2530 = vld [vmem:[#allocation4 + $0x50] sm:$0xff]
        %v2531 = vld [vmem:[#allocation4 + $0x58] sm:$0xff]
        %v2532 = vld [vmem:[#allocation4 + $0x60] sm:$0xff]
        %v2533 = vld [vmem:[#allocation4 + $0x68] sm:$0xff]
        %v2534 = vld [vmem:[#allocation4 + $0x70] sm:$0xff]
        %v2535 = vld [vmem:[#allocation4 + $0x78] sm:$0xff]
        %v2536 = vld [vmem:[%s7] sm:$0xff]
        %v2537 = vld [vmem:[%s7 + $0x8] sm:$0xff]
        %v2538 = vld [vmem:[%s7 + $0x10] sm:$0xff]
        %v2539 = vld [vmem:[%s7 + $0x18] sm:$0xff]
        %v2541 = vsel %vm737, %v2520, 0
        %v2544 = vsel %vm737, %v2521, 0
        %v2547 = vsel %vm737, %v2522, 0
        %v2550 = vsel %vm737, %v2523, 0
        %v2553 = vsel %vm737, %v2524, 0
        %v2556 = vsel %vm737, %v2525, 0
        %v2559 = vsel %vm737, %v2526, 0
        %v2562 = vsel %vm737, %v2527, 0
        %v2565 = vsel %vm737, %v2528, 0
        %v2568 = vsel %vm737, %v2529, 0
        %v2571 = vsel %vm737, %v2530, 0
        %v2574 = vsel %vm737, %v2531, 0
        %v2577 = vsel %vm737, %v2532, 0
        %v2580 = vsel %vm737, %v2533, 0
        %v2583 = vsel %vm737, %v2534, 0
        %v2586 = vsel %vm737, %v2535, 0
        %2588 = vmatprep.subr.mxu0 0.0
        %2589 = vmatpush1.msra.mxu0 %v2536
        %2590 = vmatprep.subr.mxu0 0.0
        %2591 = vmatpush1.msra.mxu0 %v2537
        %2592 = vmatprep.subr.mxu0 0.0
        %2593 = vmatpush1.msra.mxu0 %v2538
        %2594 = vmatprep.subr.mxu0 0.0
        %2595 = vmatpush1.msra.mxu0 %v2539
        %2596 = vmatprep.subr.mxu0 0.0
        %2597 = vmatpush1.msra.mxu0 0.0
        %2598 = vmatprep.subr.mxu0 0.0
        %2599 = vmatpush1.msra.mxu0 0.0
        %2600 = vmatprep.subr.mxu0 0.0
        %2601 = vmatpush1.msra.mxu0 0.0
        %2602 = vmatprep.subr.mxu0 0.0
        %2603 = vmatpush1.msra.mxu0 0.0
        %2604 = vmatprep.subr.mxu0 0.0
        %2605 = vmatpush1.msra.mxu0 0.0
        %2606 = vmatprep.subr.mxu0 0.0
        %2607 = vmatpush1.msra.mxu0 0.0
        %2608 = vmatprep.subr.mxu0 0.0
        %2609 = vmatpush1.msra.mxu0 0.0
        %2610 = vmatprep.subr.mxu0 0.0
        %2611 = vmatpush1.msra.mxu0 0.0
        %2612 = vmatprep.subr.mxu0 0.0
        %2613 = vmatpush1.msra.mxu0 0.0
        %2614 = vmatprep.subr.mxu0 0.0
        %2615 = vmatpush1.msra.mxu0 0.0
        %2616 = vmatprep.subr.mxu0 0.0
        %2617 = vmatpush1.msra.mxu0 0.0
        %2618 = vmatprep.subr.mxu0 0.0
        %2619 = vmatpush1.msra.mxu0 0.0
        %2620 = vmatprep.subr.mxu0 0.0
        %2621 = vmatpush1.msra.mxu0 0.0
        %2622 = vmatprep.subr.mxu0 0.0
        %2623 = vmatpush1.msra.mxu0 0.0
        %2624 = vmatprep.subr.mxu0 0.0
        %2625 = vmatpush1.msra.mxu0 0.0
        %2626 = vmatprep.subr.mxu0 0.0
        %2627 = vmatpush1.msra.mxu0 0.0
        %2628 = vmatprep.subr.mxu0 0.0
        %2629 = vmatpush1.msra.mxu0 0.0
        %2630 = vmatprep.subr.mxu0 0.0
        %2631 = vmatpush1.msra.mxu0 0.0
        %2632 = vmatprep.subr.mxu0 0.0
        %2633 = vmatpush1.msra.mxu0 0.0
        %2634 = vmatprep.subr.mxu0 0.0
        %2635 = vmatpush1.msra.mxu0 0.0
        %2636 = vmatprep.subr.mxu0 0.0
        %2637 = vmatpush1.msra.mxu0 0.0
        %2638 = vmatprep.subr.mxu0 0.0
        %2639 = vmatpush1.msra.mxu0 0.0
        %2640 = vmatprep.subr.mxu0 0.0
        %2641 = vmatpush1.msra.mxu0 0.0
        %2642 = vmatprep.subr.mxu0 0.0
        %2643 = vmatpush1.msra.mxu0 0.0
        %2644 = vmatprep.subr.mxu0 0.0
        %2645 = vmatpush1.msra.mxu0 0.0
        %2646 = vmatprep.subr.mxu0 0.0
        %2647 = vmatpush1.msra.mxu0 0.0
        %2648 = vmatprep.subr.mxu0 0.0
        %2649 = vmatpush1.msra.mxu0 0.0
        %2650 = vmatprep.subr.mxu0 0.0
        %2651 = vmatpush1.msra.mxu0 0.0
        %2652 = vmatprep.mubr.f32.mxu0 0.0
        %2653 = vmatmul.mubr.f32.gmra.mrb[0].mxu0 %v2541
        %v2654 = vpop.f32.mrb[0].mxu0
        %v2655 = vadd.f32 0.0, %v2654
        %v2656 = vpop.f32.mrb[0].mxu0
        %2657 = vmatprep.mubr.f32.mxu0 0.0
        %2658 = vmatmul.mubr.f32.gmra.mrb[0].mxu0 %v2544
        %v2659 = vpop.f32.mrb[0].mxu0
        %v2660 = vadd.f32 0.0, %v2659
        %v2661 = vpop.f32.mrb[0].mxu0
        %2662 = vmatprep.mubr.f32.mxu0 0.0
        %2663 = vmatmul.mubr.f32.gmra.mrb[0].mxu0 %v2547
        %v2664 = vpop.f32.mrb[0].mxu0
        %v2665 = vadd.f32 0.0, %v2664
        %v2666 = vpop.f32.mrb[0].mxu0
        %2667 = vmatprep.mubr.f32.mxu0 0.0
        %2668 = vmatmul.mubr.f32.gmra.mrb[0].mxu0 %v2550
        %v2669 = vpop.f32.mrb[0].mxu0
        %v2670 = vadd.f32 0.0, %v2669
        %v2671 = vpop.f32.mrb[0].mxu0
        %2672 = vmatprep.mubr.f32.mxu0 0.0
        %2673 = vmatmul.mubr.f32.gmra.mrb[0].mxu0 %v2553
        %v2674 = vpop.f32.mrb[0].mxu0
        %v2675 = vadd.f32 0.0, %v2674
        %v2676 = vpop.f32.mrb[0].mxu0
        %2677 = vmatprep.mubr.f32.mxu0 0.0
        %2678 = vmatmul.mubr.f32.gmra.mrb[0].mxu0 %v2556
        %v2679 = vpop.f32.mrb[0].mxu0
        %v2680 = vadd.f32 0.0, %v2679
        %v2681 = vpop.f32.mrb[0].mxu0
        %2682 = vmatprep.mubr.f32.mxu0 0.0
        %2683 = vmatmul.mubr.f32.gmra.mrb[0].mxu0 %v2559
        %v2684 = vpop.f32.mrb[0].mxu0
        %v2685 = vadd.f32 0.0, %v2684
        %v2686 = vpop.f32.mrb[0].mxu0
        %2687 = vmatprep.mubr.f32.mxu0 0.0
        %2688 = vmatmul.mubr.f32.gmra.mrb[0].mxu0 %v2562
        %v2689 = vpop.f32.mrb[0].mxu0
        %v2690 = vadd.f32 0.0, %v2689
        %v2691 = vpop.f32.mrb[0].mxu0
        %2692 = vmatprep.mubr.f32.mxu0 0.0
        %2693 = vmatmul.mubr.f32.gmra.mrb[0].mxu0 %v2565
        %v2694 = vpop.f32.mrb[0].mxu0
        %v2695 = vadd.f32 0.0, %v2694
        %v2696 = vpop.f32.mrb[0].mxu0
        %2697 = vmatprep.mubr.f32.mxu0 0.0
        %2698 = vmatmul.mubr.f32.gmra.mrb[0].mxu0 %v2568
        %v2699 = vpop.f32.mrb[0].mxu0
        %v2700 = vadd.f32 0.0, %v2699
        %v2701 = vpop.f32.mrb[0].mxu0
        %2702 = vmatprep.mubr.f32.mxu0 0.0
        %2703 = vmatmul.mubr.f32.gmra.mrb[0].mxu0 %v2571
        %v2704 = vpop.f32.mrb[0].mxu0
        %v2705 = vadd.f32 0.0, %v2704
        %v2706 = vpop.f32.mrb[0].mxu0
        %2707 = vmatprep.mubr.f32.mxu0 0.0
        %2708 = vmatmul.mubr.f32.gmra.mrb[0].mxu0 %v2574
        %v2709 = vpop.f32.mrb[0].mxu0
        %v2710 = vadd.f32 0.0, %v2709
        %v2711 = vpop.f32.mrb[0].mxu0
        %2712 = vmatprep.mubr.f32.mxu0 0.0
        %2713 = vmatmul.mubr.f32.gmra.mrb[0].mxu0 %v2577
        %v2714 = vpop.f32.mrb[0].mxu0
        %v2715 = vadd.f32 0.0, %v2714
        %v2716 = vpop.f32.mrb[0].mxu0
        %2717 = vmatprep.mubr.f32.mxu0 0.0
        %2718 = vmatmul.mubr.f32.gmra.mrb[0].mxu0 %v2580
        %v2719 = vpop.f32.mrb[0].mxu0
        %v2720 = vadd.f32 0.0, %v2719
        %v2721 = vpop.f32.mrb[0].mxu0
        %2722 = vmatprep.mubr.f32.mxu0 0.0
        %2723 = vmatmul.mubr.f32.gmra.mrb[0].mxu0 %v2583
        %v2724 = vpop.f32.mrb[0].mxu0
        %v2725 = vadd.f32 0.0, %v2724
        %v2726 = vpop.f32.mrb[0].mxu0
        %2727 = vmatprep.mubr.f32.mxu0 0.0
        %2728 = vmatmul.mubr.f32.gmra.mrb[0].mxu0 %v2586
        %v2729 = vpop.f32.mrb[0].mxu0
        %v2730 = vadd.f32 0.0, %v2729
        %v2731 = vpop.f32.mrb[0].mxu0
        %2732 = vdwg.mxu0
        %v2733 = vld [vmem:[#allocation2] sm:$0xff]
        %v2734 = vld [vmem:[#allocation2 + $0x8] sm:$0xff]
        %v2735 = vld [vmem:[#allocation2 + $0x10] sm:$0xff]
        %v2736 = vld [vmem:[#allocation2 + $0x18] sm:$0xff]
        %v2737 = vld [vmem:[#allocation2 + $0x20] sm:$0xff]
        %v2738 = vld [vmem:[#allocation2 + $0x28] sm:$0xff]
        %v2739 = vld [vmem:[#allocation2 + $0x30] sm:$0xff]
        %v2740 = vld [vmem:[#allocation2 + $0x38] sm:$0xff]
        %v2741 = vld [vmem:[#allocation2 + $0x40] sm:$0xff]
        %v2742 = vld [vmem:[#allocation2 + $0x48] sm:$0xff]
        %v2743 = vld [vmem:[#allocation2 + $0x50] sm:$0xff]
        %v2744 = vld [vmem:[#allocation2 + $0x58] sm:$0xff]
        %v2745 = vld [vmem:[#allocation2 + $0x60] sm:$0xff]
        %v2746 = vld [vmem:[#allocation2 + $0x68] sm:$0xff]
        %v2747 = vld [vmem:[#allocation2 + $0x70] sm:$0xff]
        %v2748 = vld [vmem:[#allocation2 + $0x78] sm:$0xff]
        %v2749 = vadd.f32 %v2733, %v2655
        %v2750 = vadd.f32 %v2734, %v2660
        %v2751 = vadd.f32 %v2735, %v2665
        %v2752 = vadd.f32 %v2736, %v2670
        %v2753 = vadd.f32 %v2737, %v2675
        %v2754 = vadd.f32 %v2738, %v2680
        %v2755 = vadd.f32 %v2739, %v2685
        %v2756 = vadd.f32 %v2740, %v2690
        %v2757 = vadd.f32 %v2741, %v2695
        %v2758 = vadd.f32 %v2742, %v2700
        %v2759 = vadd.f32 %v2743, %v2705
        %v2760 = vadd.f32 %v2744, %v2710
        %v2761 = vadd.f32 %v2745, %v2715
        %v2762 = vadd.f32 %v2746, %v2720
        %v2763 = vadd.f32 %v2747, %v2725
        %v2764 = vadd.f32 %v2748, %v2730
        %v2765 = vlaneseq
        %v2766 = vshrl.u32 %v2765, 7
        %v2767 = vsub.s32 4, %v2766
        %v2768 = vrot.slane %v754, %v2767
        %v2769 = vadd.f32 %v2749, %v2768
        %v2770 = vadd.f32 %v2750, %v2768
        %v2771 = vadd.f32 %v2751, %v2768
        %v2772 = vadd.f32 %v2752, %v2768
        %v2773 = vadd.f32 %v2753, %v2768
        %v2774 = vadd.f32 %v2754, %v2768
        %v2775 = vadd.f32 %v2755, %v2768
        %v2776 = vadd.f32 %v2756, %v2768
        %v2777 = vadd.f32 %v2757, %v2768
        %v2778 = vadd.f32 %v2758, %v2768
        %v2779 = vadd.f32 %v2759, %v2768
        %v2780 = vadd.f32 %v2760, %v2768
        %v2781 = vadd.f32 %v2761, %v2768
        %v2782 = vadd.f32 %v2762, %v2768
        %v2783 = vadd.f32 %v2763, %v2768
        %v2784 = vadd.f32 %v2764, %v2768
        %2785 = vst.msk [vmem:[#allocation2] sm:$0xff] %vm737, %v2769
        %2786 = vst.msk [vmem:[#allocation2 + $0x8] sm:$0xff] %vm737, %v2770
        %2787 = vst.msk [vmem:[#allocation2 + $0x10] sm:$0xff] %vm737, %v2771
        %2788 = vst.msk [vmem:[#allocation2 + $0x18] sm:$0xff] %vm737, %v2772
        %2789 = vst.msk [vmem:[#allocation2 + $0x20] sm:$0xff] %vm737, %v2773
        %2790 = vst.msk [vmem:[#allocation2 + $0x28] sm:$0xff] %vm737, %v2774
        %2791 = vst.msk [vmem:[#allocation2 + $0x30] sm:$0xff] %vm737, %v2775
        %2792 = vst.msk [vmem:[#allocation2 + $0x38] sm:$0xff] %vm737, %v2776
        %2793 = vst.msk [vmem:[#allocation2 + $0x40] sm:$0xff] %vm737, %v2777
        %2794 = vst.msk [vmem:[#allocation2 + $0x48] sm:$0xff] %vm737, %v2778
        %2795 = vst.msk [vmem:[#allocation2 + $0x50] sm:$0xff] %vm737, %v2779
        %2796 = vst.msk [vmem:[#allocation2 + $0x58] sm:$0xff] %vm737, %v2780
        %2797 = vst.msk [vmem:[#allocation2 + $0x60] sm:$0xff] %vm737, %v2781
        %2798 = vst.msk [vmem:[#allocation2 + $0x68] sm:$0xff] %vm737, %v2782
        %2799 = vst.msk [vmem:[#allocation2 + $0x70] sm:$0xff] %vm737, %v2783
        %2800 = vst.msk [vmem:[#allocation2 + $0x78] sm:$0xff] %vm737, %v2784
        %v2801 = vld [vmem:[#allocation2] sm:$0xff]
        %v2802 = vld [vmem:[#allocation2 + $0x8] sm:$0xff]
        %v2803 = vld [vmem:[#allocation2 + $0x10] sm:$0xff]
        %v2804 = vld [vmem:[#allocation2 + $0x18] sm:$0xff]
        %v2805 = vld [vmem:[#allocation2 + $0x20] sm:$0xff]
        %v2806 = vld [vmem:[#allocation2 + $0x28] sm:$0xff]
        %v2807 = vld [vmem:[#allocation2 + $0x30] sm:$0xff]
        %v2808 = vld [vmem:[#allocation2 + $0x38] sm:$0xff]
        %v2809 = vld [vmem:[#allocation2 + $0x40] sm:$0xff]
        %v2810 = vld [vmem:[#allocation2 + $0x48] sm:$0xff]
        %v2811 = vld [vmem:[#allocation2 + $0x50] sm:$0xff]
        %v2812 = vld [vmem:[#allocation2 + $0x58] sm:$0xff]
        %v2813 = vld [vmem:[#allocation2 + $0x60] sm:$0xff]
        %v2814 = vld [vmem:[#allocation2 + $0x68] sm:$0xff]
        %v2815 = vld [vmem:[#allocation2 + $0x70] sm:$0xff]
        %v2816 = vld [vmem:[#allocation2 + $0x78] sm:$0xff]
        %v2817 = vsel %vm737, %v2801, 0.0
        %2818 = vadd.xlane.f32.xlu0 %v2817
        %v2819 = vpop.xlane.xlu0 %2818
        %v2820 = vsel %vm737, %v2802, 0.0
        %2821 = vadd.xlane.f32.xlu0 %v2820
        %v2822 = vpop.xlane.xlu0 %2821
        %v2823 = vsel %vm737, %v2803, 0.0
        %2824 = vadd.xlane.f32.xlu0 %v2823
        %v2825 = vpop.xlane.xlu0 %2824
        %v2826 = vsel %vm737, %v2804, 0.0
        %2827 = vadd.xlane.f32.xlu0 %v2826
        %v2828 = vpop.xlane.xlu0 %2827
        %v2829 = vsel %vm737, %v2805, 0.0
        %2830 = vadd.xlane.f32.xlu0 %v2829
        %v2831 = vpop.xlane.xlu0 %2830
        %v2832 = vsel %vm737, %v2806, 0.0
        %2833 = vadd.xlane.f32.xlu0 %v2832
        %v2834 = vpop.xlane.xlu0 %2833
        %v2835 = vsel %vm737, %v2807, 0.0
        %2836 = vadd.xlane.f32.xlu0 %v2835
        %v2837 = vpop.xlane.xlu0 %2836
        %v2838 = vsel %vm737, %v2808, 0.0
        %2839 = vadd.xlane.f32.xlu0 %v2838
        %v2840 = vpop.xlane.xlu0 %2839
        %v2841 = vsel %vm737, %v2809, 0.0
        %2842 = vadd.xlane.f32.xlu0 %v2841
        %v2843 = vpop.xlane.xlu0 %2842
        %v2844 = vsel %vm737, %v2810, 0.0
        %2845 = vadd.xlane.f32.xlu0 %v2844
        %v2846 = vpop.xlane.xlu0 %2845
        %v2847 = vsel %vm737, %v2811, 0.0
        %2848 = vadd.xlane.f32.xlu0 %v2847
        %v2849 = vpop.xlane.xlu0 %2848
        %v2850 = vsel %vm737, %v2812, 0.0
        %2851 = vadd.xlane.f32.xlu0 %v2850
        %v2852 = vpop.xlane.xlu0 %2851
        %v2853 = vsel %vm737, %v2813, 0.0
        %2854 = vadd.xlane.f32.xlu0 %v2853
        %v2855 = vpop.xlane.xlu0 %2854
        %v2856 = vsel %vm737, %v2814, 0.0
        %2857 = vadd.xlane.f32.xlu0 %v2856
        %v2858 = vpop.xlane.xlu0 %2857
        %v2859 = vsel %vm737, %v2815, 0.0
        %2860 = vadd.xlane.f32.xlu0 %v2859
        %v2861 = vpop.xlane.xlu0 %2860
        %v2862 = vsel %vm737, %v2816, 0.0
        %2863 = vadd.xlane.f32.xlu0 %v2862
        %v2864 = vpop.xlane.xlu0 %2863
        %v2865 = vmul.f32 %v2819, %v819
        %v2866 = vmul.f32 %v2822, %v819
        %v2867 = vmul.f32 %v2825, %v819
        %v2868 = vmul.f32 %v2828, %v819
        %v2869 = vmul.f32 %v2831, %v819
        %v2870 = vmul.f32 %v2834, %v819
        %v2871 = vmul.f32 %v2837, %v819
        %v2872 = vmul.f32 %v2840, %v819
        %v2873 = vmul.f32 %v2843, %v819
        %v2874 = vmul.f32 %v2846, %v819
        %v2875 = vmul.f32 %v2849, %v819
        %v2876 = vmul.f32 %v2852, %v819
        %v2877 = vmul.f32 %v2855, %v819
        %v2878 = vmul.f32 %v2858, %v819
        %v2879 = vmul.f32 %v2861, %v819
        %v2880 = vmul.f32 %v2864, %v819
        %v2881 = vsub.f32 %v2801, %v2865
        %v2882 = vsub.f32 %v2802, %v2866
        %v2883 = vsub.f32 %v2803, %v2867
        %v2884 = vsub.f32 %v2804, %v2868
        %v2885 = vsub.f32 %v2805, %v2869
        %v2886 = vsub.f32 %v2806, %v2870
        %v2887 = vsub.f32 %v2807, %v2871
        %v2888 = vsub.f32 %v2808, %v2872
        %v2889 = vsub.f32 %v2809, %v2873
        %v2890 = vsub.f32 %v2810, %v2874
        %v2891 = vsub.f32 %v2811, %v2875
        %v2892 = vsub.f32 %v2812, %v2876
        %v2893 = vsub.f32 %v2813, %v2877
        %v2894 = vsub.f32 %v2814, %v2878
        %v2895 = vsub.f32 %v2815, %v2879
        %v2896 = vsub.f32 %v2816, %v2880
        %v2897 = vmul.f32 %v2881, %v2881
        %v2898 = vmul.f32 %v2882, %v2882
        %v2899 = vmul.f32 %v2883, %v2883
        %v2900 = vmul.f32 %v2884, %v2884
        %v2901 = vmul.f32 %v2885, %v2885
        %v2902 = vmul.f32 %v2886, %v2886
        %v2903 = vmul.f32 %v2887, %v2887
        %v2904 = vmul.f32 %v2888, %v2888
        %v2905 = vmul.f32 %v2889, %v2889
        %v2906 = vmul.f32 %v2890, %v2890
        %v2907 = vmul.f32 %v2891, %v2891
        %v2908 = vmul.f32 %v2892, %v2892
        %v2909 = vmul.f32 %v2893, %v2893
        %v2910 = vmul.f32 %v2894, %v2894
        %v2911 = vmul.f32 %v2895, %v2895
        %v2912 = vmul.f32 %v2896, %v2896
        %v2913 = vsel %vm737, %v2897, 0.0
        %2914 = vadd.xlane.f32.xlu0 %v2913
        %v2915 = vpop.xlane.xlu0 %2914
        %v2916 = vsel %vm737, %v2898, 0.0
        %2917 = vadd.xlane.f32.xlu0 %v2916
        %v2918 = vpop.xlane.xlu0 %2917
        %v2919 = vsel %vm737, %v2899, 0.0
        %2920 = vadd.xlane.f32.xlu0 %v2919
        %v2921 = vpop.xlane.xlu0 %2920
        %v2922 = vsel %vm737, %v2900, 0.0
        %2923 = vadd.xlane.f32.xlu0 %v2922
        %v2924 = vpop.xlane.xlu0 %2923
        %v2925 = vsel %vm737, %v2901, 0.0
        %2926 = vadd.xlane.f32.xlu0 %v2925
        %v2927 = vpop.xlane.xlu0 %2926
        %v2928 = vsel %vm737, %v2902, 0.0
        %2929 = vadd.xlane.f32.xlu0 %v2928
        %v2930 = vpop.xlane.xlu0 %2929
        %v2931 = vsel %vm737, %v2903, 0.0
        %2932 = vadd.xlane.f32.xlu0 %v2931
        %v2933 = vpop.xlane.xlu0 %2932
        %v2934 = vsel %vm737, %v2904, 0.0
        %2935 = vadd.xlane.f32.xlu0 %v2934
        %v2936 = vpop.xlane.xlu0 %2935
        %v2937 = vsel %vm737, %v2905, 0.0
        %2938 = vadd.xlane.f32.xlu0 %v2937
        %v2939 = vpop.xlane.xlu0 %2938
        %v2940 = vsel %vm737, %v2906, 0.0
        %2941 = vadd.xlane.f32.xlu0 %v2940
        %v2942 = vpop.xlane.xlu0 %2941
        %v2943 = vsel %vm737, %v2907, 0.0
        %2944 = vadd.xlane.f32.xlu0 %v2943
        %v2945 = vpop.xlane.xlu0 %2944
        %v2946 = vsel %vm737, %v2908, 0.0
        %2947 = vadd.xlane.f32.xlu0 %v2946
        %v2948 = vpop.xlane.xlu0 %2947
        %v2949 = vsel %vm737, %v2909, 0.0
        %2950 = vadd.xlane.f32.xlu0 %v2949
        %v2951 = vpop.xlane.xlu0 %2950
        %v2952 = vsel %vm737, %v2910, 0.0
        %2953 = vadd.xlane.f32.xlu0 %v2952
        %v2954 = vpop.xlane.xlu0 %2953
        %v2955 = vsel %vm737, %v2911, 0.0
        %2956 = vadd.xlane.f32.xlu0 %v2955
        %v2957 = vpop.xlane.xlu0 %2956
        %v2958 = vsel %vm737, %v2912, 0.0
        %2959 = vadd.xlane.f32.xlu0 %v2958
        %v2960 = vpop.xlane.xlu0 %2959
        %v2961 = vmul.f32 %v2915, %v819
        %v2962 = vmul.f32 %v2918, %v819
        %v2963 = vmul.f32 %v2921, %v819
        %v2964 = vmul.f32 %v2924, %v819
        %v2965 = vmul.f32 %v2927, %v819
        %v2966 = vmul.f32 %v2930, %v819
        %v2967 = vmul.f32 %v2933, %v819
        %v2968 = vmul.f32 %v2936, %v819
        %v2969 = vmul.f32 %v2939, %v819
        %v2970 = vmul.f32 %v2942, %v819
        %v2971 = vmul.f32 %v2945, %v819
        %v2972 = vmul.f32 %v2948, %v819
        %v2973 = vmul.f32 %v2951, %v819
        %v2974 = vmul.f32 %v2954, %v819
        %v2975 = vmul.f32 %v2957, %v819
        %v2976 = vmul.f32 %v2960, %v819
        %v2977 = vadd.f32 %v2961, 1e-05
        %v2978 = vadd.f32 %v2962, 1e-05
        %v2979 = vadd.f32 %v2963, 1e-05
        %v2980 = vadd.f32 %v2964, 1e-05
        %v2981 = vadd.f32 %v2965, 1e-05
        %v2982 = vadd.f32 %v2966, 1e-05
        %v2983 = vadd.f32 %v2967, 1e-05
        %v2984 = vadd.f32 %v2968, 1e-05
        %v2985 = vadd.f32 %v2969, 1e-05
        %v2986 = vadd.f32 %v2970, 1e-05
        %v2987 = vadd.f32 %v2971, 1e-05
        %v2988 = vadd.f32 %v2972, 1e-05
        %v2989 = vadd.f32 %v2973, 1e-05
        %v2990 = vadd.f32 %v2974, 1e-05
        %v2991 = vadd.f32 %v2975, 1e-05
        %v2992 = vadd.f32 %v2976, 1e-05
        %v2993 = vrsqrt.pop %v2977
        %v2994 = vrsqrt.pop %v2978
        %v2995 = vrsqrt.pop %v2979
        %v2996 = vrsqrt.pop %v2980
        %v2997 = vrsqrt.pop %v2981
        %v2998 = vrsqrt.pop %v2982
        %v2999 = vrsqrt.pop %v2983
        %v3000 = vrsqrt.pop %v2984
        %v3001 = vrsqrt.pop %v2985
        %v3002 = vrsqrt.pop %v2986
        %v3003 = vrsqrt.pop %v2987
        %v3004 = vrsqrt.pop %v2988
        %v3005 = vrsqrt.pop %v2989
        %v3006 = vrsqrt.pop %v2990
        %v3007 = vrsqrt.pop %v2991
        %v3008 = vrsqrt.pop %v2992
        %v3009 = vmul.f32 %v2881, %v2993
        %v3010 = vmul.f32 %v2882, %v2994
        %v3011 = vmul.f32 %v2883, %v2995
        %v3012 = vmul.f32 %v2884, %v2996
        %v3013 = vmul.f32 %v2885, %v2997
        %v3014 = vmul.f32 %v2886, %v2998
        %v3015 = vmul.f32 %v2887, %v2999
        %v3016 = vmul.f32 %v2888, %v3000
        %v3017 = vmul.f32 %v2889, %v3001
        %v3018 = vmul.f32 %v2890, %v3002
        %v3019 = vmul.f32 %v2891, %v3003
        %v3020 = vmul.f32 %v2892, %v3004
        %v3021 = vmul.f32 %v2893, %v3005
        %v3022 = vmul.f32 %v2894, %v3006
        %v3023 = vmul.f32 %v2895, %v3007
        %v3024 = vmul.f32 %v2896, %v3008
        %v3025 = vlaneseq
        %v3026 = vshrl.u32 %v3025, 7
        %v3027 = vsub.s32 2, %v3026
        %v3028 = vrot.slane %v754, %v3027
        %v3029 = vmul.f32 %v3009, %v3028
        %v3030 = vmul.f32 %v3010, %v3028
        %v3031 = vmul.f32 %v3011, %v3028
        %v3032 = vmul.f32 %v3012, %v3028
        %v3033 = vmul.f32 %v3013, %v3028
        %v3034 = vmul.f32 %v3014, %v3028
        %v3035 = vmul.f32 %v3015, %v3028
        %v3036 = vmul.f32 %v3016, %v3028
        %v3037 = vmul.f32 %v3017, %v3028
        %v3038 = vmul.f32 %v3018, %v3028
        %v3039 = vmul.f32 %v3019, %v3028
        %v3040 = vmul.f32 %v3020, %v3028
        %v3041 = vmul.f32 %v3021, %v3028
        %v3042 = vmul.f32 %v3022, %v3028
        %v3043 = vmul.f32 %v3023, %v3028
        %v3044 = vmul.f32 %v3024, %v3028
        %v3045 = vlaneseq
        %v3046 = vshrl.u32 %v3045, 7
        %v3047 = vsub.s32 3, %v3046
        %v3048 = vrot.slane %v754, %v3047
        %v3049 = vadd.f32 %v3029, %v3048
        %v3050 = vadd.f32 %v3030, %v3048
        %v3051 = vadd.f32 %v3031, %v3048
        %v3052 = vadd.f32 %v3032, %v3048
        %v3053 = vadd.f32 %v3033, %v3048
        %v3054 = vadd.f32 %v3034, %v3048
        %v3055 = vadd.f32 %v3035, %v3048
        %v3056 = vadd.f32 %v3036, %v3048
        %v3057 = vadd.f32 %v3037, %v3048
        %v3058 = vadd.f32 %v3038, %v3048
        %v3059 = vadd.f32 %v3039, %v3048
        %v3060 = vadd.f32 %v3040, %v3048
        %v3061 = vadd.f32 %v3041, %v3048
        %v3062 = vadd.f32 %v3042, %v3048
        %v3063 = vadd.f32 %v3043, %v3048
        %v3064 = vadd.f32 %v3044, %v3048
        %v3065 = vld [vmem:[%s8] sm:$0xff]
        %v3066 = vld [vmem:[%s8 + $0x8] sm:$0xff]
        %v3067 = vld [vmem:[%s8 + $0x10] sm:$0xff]
        %v3068 = vld [vmem:[%s8 + $0x18] sm:$0xff]
        %v3069 = vld [vmem:[%s5] sm:$0x1]
        %v3071 = vlaneseq
        %v3072 = vshrl.u32 %v3071, 7
        %v3073 = vsub.s32 0, %v3072
        %v3074 = vrot.slane %v3069, %v3073
        %v3077 = vsel %vm737, %v3049, 0
        %v3080 = vsel %vm737, %v3050, 0
        %v3083 = vsel %vm737, %v3051, 0
        %v3086 = vsel %vm737, %v3052, 0
        %v3089 = vsel %vm737, %v3053, 0
        %v3092 = vsel %vm737, %v3054, 0
        %v3095 = vsel %vm737, %v3055, 0
        %v3098 = vsel %vm737, %v3056, 0
        %v3101 = vsel %vm737, %v3057, 0
        %v3104 = vsel %vm737, %v3058, 0
        %v3107 = vsel %vm737, %v3059, 0
        %v3110 = vsel %vm737, %v3060, 0
        %v3113 = vsel %vm737, %v3061, 0
        %v3116 = vsel %vm737, %v3062, 0
        %v3119 = vsel %vm737, %v3063, 0
        %v3122 = vsel %vm737, %v3064, 0
        %3124 = vmatprep.subr.mxu0 0.0
        %3125 = vmatpush1.msra.mxu0 %v3065
        %3126 = vmatprep.subr.mxu0 0.0
        %3127 = vmatpush1.msra.mxu0 %v3066
        %3128 = vmatprep.subr.mxu0 0.0
        %3129 = vmatpush1.msra.mxu0 %v3067
        %3130 = vmatprep.subr.mxu0 0.0
        %3131 = vmatpush1.msra.mxu0 %v3068
        %3132 = vmatprep.subr.mxu0 0.0
        %3133 = vmatpush1.msra.mxu0 0.0
        %3134 = vmatprep.subr.mxu0 0.0
        %3135 = vmatpush1.msra.mxu0 0.0
        %3136 = vmatprep.subr.mxu0 0.0
        %3137 = vmatpush1.msra.mxu0 0.0
        %3138 = vmatprep.subr.mxu0 0.0
        %3139 = vmatpush1.msra.mxu0 0.0
        %3140 = vmatprep.subr.mxu0 0.0
        %3141 = vmatpush1.msra.mxu0 0.0
        %3142 = vmatprep.subr.mxu0 0.0
        %3143 = vmatpush1.msra.mxu0 0.0
        %3144 = vmatprep.subr.mxu0 0.0
        %3145 = vmatpush1.msra.mxu0 0.0
        %3146 = vmatprep.subr.mxu0 0.0
        %3147 = vmatpush1.msra.mxu0 0.0
        %3148 = vmatprep.subr.mxu0 0.0
        %3149 = vmatpush1.msra.mxu0 0.0
        %3150 = vmatprep.subr.mxu0 0.0
        %3151 = vmatpush1.msra.mxu0 0.0
        %3152 = vmatprep.subr.mxu0 0.0
        %3153 = vmatpush1.msra.mxu0 0.0
        %3154 = vmatprep.subr.mxu0 0.0
        %3155 = vmatpush1.msra.mxu0 0.0
        %3156 = vmatprep.subr.mxu0 0.0
        %3157 = vmatpush1.msra.mxu0 0.0
        %3158 = vmatprep.subr.mxu0 0.0
        %3159 = vmatpush1.msra.mxu0 0.0
        %3160 = vmatprep.subr.mxu0 0.0
        %3161 = vmatpush1.msra.mxu0 0.0
        %3162 = vmatprep.subr.mxu0 0.0
        %3163 = vmatpush1.msra.mxu0 0.0
        %3164 = vmatprep.subr.mxu0 0.0
        %3165 = vmatpush1.msra.mxu0 0.0
        %3166 = vmatprep.subr.mxu0 0.0
        %3167 = vmatpush1.msra.mxu0 0.0
        %3168 = vmatprep.subr.mxu0 0.0
        %3169 = vmatpush1.msra.mxu0 0.0
        %3170 = vmatprep.subr.mxu0 0.0
        %3171 = vmatpush1.msra.mxu0 0.0
        %3172 = vmatprep.subr.mxu0 0.0
        %3173 = vmatpush1.msra.mxu0 0.0
        %3174 = vmatprep.subr.mxu0 0.0
        %3175 = vmatpush1.msra.mxu0 0.0
        %3176 = vmatprep.subr.mxu0 0.0
        %3177 = vmatpush1.msra.mxu0 0.0
        %3178 = vmatprep.subr.mxu0 0.0
        %3179 = vmatpush1.msra.mxu0 0.0
        %3180 = vmatprep.subr.mxu0 0.0
        %3181 = vmatpush1.msra.mxu0 0.0
        %3182 = vmatprep.subr.mxu0 0.0
        %3183 = vmatpush1.msra.mxu0 0.0
        %3184 = vmatprep.subr.mxu0 0.0
        %3185 = vmatpush1.msra.mxu0 0.0
        %3186 = vmatprep.subr.mxu0 0.0
        %3187 = vmatpush1.msra.mxu0 0.0
        %3188 = vmatprep.mubr.f32.mxu0 0.0
        %3189 = vmatmul.mubr.f32.gmra.mrb[0].mxu0 %v3077
        %v3190 = vpop.f32.mrb[0].mxu0
        %v3191 = vadd.f32 %v3074, %v3190
        %v3192 = vpop.f32.mrb[0].mxu0
        %3193 = vmatprep.mubr.f32.mxu0 0.0
        %3194 = vmatmul.mubr.f32.gmra.mrb[0].mxu0 %v3080
        %v3195 = vpop.f32.mrb[0].mxu0
        %v3196 = vadd.f32 %v3074, %v3195
        %v3197 = vpop.f32.mrb[0].mxu0
        %3198 = vmatprep.mubr.f32.mxu0 0.0
        %3199 = vmatmul.mubr.f32.gmra.mrb[0].mxu0 %v3083
        %v3200 = vpop.f32.mrb[0].mxu0
        %v3201 = vadd.f32 %v3074, %v3200
        %v3202 = vpop.f32.mrb[0].mxu0
        %3203 = vmatprep.mubr.f32.mxu0 0.0
        %3204 = vmatmul.mubr.f32.gmra.mrb[0].mxu0 %v3086
        %v3205 = vpop.f32.mrb[0].mxu0
        %v3206 = vadd.f32 %v3074, %v3205
        %v3207 = vpop.f32.mrb[0].mxu0
        %3208 = vmatprep.mubr.f32.mxu0 0.0
        %3209 = vmatmul.mubr.f32.gmra.mrb[0].mxu0 %v3089
        %v3210 = vpop.f32.mrb[0].mxu0
        %v3211 = vadd.f32 %v3074, %v3210
        %v3212 = vpop.f32.mrb[0].mxu0
        %3213 = vmatprep.mubr.f32.mxu0 0.0
        %3214 = vmatmul.mubr.f32.gmra.mrb[0].mxu0 %v3092
        %v3215 = vpop.f32.mrb[0].mxu0
        %v3216 = vadd.f32 %v3074, %v3215
        %v3217 = vpop.f32.mrb[0].mxu0
        %3218 = vmatprep.mubr.f32.mxu0 0.0
        %3219 = vmatmul.mubr.f32.gmra.mrb[0].mxu0 %v3095
        %v3220 = vpop.f32.mrb[0].mxu0
        %v3221 = vadd.f32 %v3074, %v3220
        %v3222 = vpop.f32.mrb[0].mxu0
        %3223 = vmatprep.mubr.f32.mxu0 0.0
        %3224 = vmatmul.mubr.f32.gmra.mrb[0].mxu0 %v3098
        %v3225 = vpop.f32.mrb[0].mxu0
        %v3226 = vadd.f32 %v3074, %v3225
        %v3227 = vpop.f32.mrb[0].mxu0
        %3228 = vmatprep.mubr.f32.mxu0 0.0
        %3229 = vmatmul.mubr.f32.gmra.mrb[0].mxu0 %v3101
        %v3230 = vpop.f32.mrb[0].mxu0
        %v3231 = vadd.f32 %v3074, %v3230
        %v3232 = vpop.f32.mrb[0].mxu0
        %3233 = vmatprep.mubr.f32.mxu0 0.0
        %3234 = vmatmul.mubr.f32.gmra.mrb[0].mxu0 %v3104
        %v3235 = vpop.f32.mrb[0].mxu0
        %v3236 = vadd.f32 %v3074, %v3235
        %v3237 = vpop.f32.mrb[0].mxu0
        %3238 = vmatprep.mubr.f32.mxu0 0.0
        %3239 = vmatmul.mubr.f32.gmra.mrb[0].mxu0 %v3107
        %v3240 = vpop.f32.mrb[0].mxu0
        %v3241 = vadd.f32 %v3074, %v3240
        %v3242 = vpop.f32.mrb[0].mxu0
        %3243 = vmatprep.mubr.f32.mxu0 0.0
        %3244 = vmatmul.mubr.f32.gmra.mrb[0].mxu0 %v3110
        %v3245 = vpop.f32.mrb[0].mxu0
        %v3246 = vadd.f32 %v3074, %v3245
        %v3247 = vpop.f32.mrb[0].mxu0
        %3248 = vmatprep.mubr.f32.mxu0 0.0
        %3249 = vmatmul.mubr.f32.gmra.mrb[0].mxu0 %v3113
        %v3250 = vpop.f32.mrb[0].mxu0
        %v3251 = vadd.f32 %v3074, %v3250
        %v3252 = vpop.f32.mrb[0].mxu0
        %3253 = vmatprep.mubr.f32.mxu0 0.0
        %3254 = vmatmul.mubr.f32.gmra.mrb[0].mxu0 %v3116
        %v3255 = vpop.f32.mrb[0].mxu0
        %v3256 = vadd.f32 %v3074, %v3255
        %v3257 = vpop.f32.mrb[0].mxu0
        %3258 = vmatprep.mubr.f32.mxu0 0.0
        %3259 = vmatmul.mubr.f32.gmra.mrb[0].mxu0 %v3119
        %v3260 = vpop.f32.mrb[0].mxu0
        %v3261 = vadd.f32 %v3074, %v3260
        %v3262 = vpop.f32.mrb[0].mxu0
        %3263 = vmatprep.mubr.f32.mxu0 0.0
        %3264 = vmatmul.mubr.f32.gmra.mrb[0].mxu0 %v3122
        %v3265 = vpop.f32.mrb[0].mxu0
        %v3266 = vadd.f32 %v3074, %v3265
        %v3267 = vpop.f32.mrb[0].mxu0
        %3268 = vdwg.mxu0
        %v3269 = vmul.f32 %v3191, 0.5
        %v3270 = vmul.f32 %v3196, 0.5
        %v3271 = vmul.f32 %v3201, 0.5
        %v3272 = vmul.f32 %v3206, 0.5
        %v3273 = vmul.f32 %v3211, 0.5
        %v3274 = vmul.f32 %v3216, 0.5
        %v3275 = vmul.f32 %v3221, 0.5
        %v3276 = vmul.f32 %v3226, 0.5
        %v3277 = vmul.f32 %v3231, 0.5
        %v3278 = vmul.f32 %v3236, 0.5
        %v3279 = vmul.f32 %v3241, 0.5
        %v3280 = vmul.f32 %v3246, 0.5
        %v3281 = vmul.f32 %v3251, 0.5
        %v3282 = vmul.f32 %v3256, 0.5
        %v3283 = vmul.f32 %v3261, 0.5
        %v3284 = vmul.f32 %v3266, 0.5
        %v3285 = vmul.f32 %v3191, 0.044715
        %v3286 = vmul.f32 %v3196, 0.044715
        %v3287 = vmul.f32 %v3201, 0.044715
        %v3288 = vmul.f32 %v3206, 0.044715
        %v3289 = vmul.f32 %v3211, 0.044715
        %v3290 = vmul.f32 %v3216, 0.044715
        %v3291 = vmul.f32 %v3221, 0.044715
        %v3292 = vmul.f32 %v3226, 0.044715
        %v3293 = vmul.f32 %v3231, 0.044715
        %v3294 = vmul.f32 %v3236, 0.044715
        %v3295 = vmul.f32 %v3241, 0.044715
        %v3296 = vmul.f32 %v3246, 0.044715
        %v3297 = vmul.f32 %v3251, 0.044715
        %v3298 = vmul.f32 %v3256, 0.044715
        %v3299 = vmul.f32 %v3261, 0.044715
        %v3300 = vmul.f32 %v3266, 0.044715
        %v3301 = vmul.f32 %v3285, %v3191
        %v3302 = vmul.f32 %v3286, %v3196
        %v3303 = vmul.f32 %v3287, %v3201
        %v3304 = vmul.f32 %v3288, %v3206
        %v3305 = vmul.f32 %v3289, %v3211
        %v3306 = vmul.f32 %v3290, %v3216
        %v3307 = vmul.f32 %v3291, %v3221
        %v3308 = vmul.f32 %v3292, %v3226
        %v3309 = vmul.f32 %v3293, %v3231
        %v3310 = vmul.f32 %v3294, %v3236
        %v3311 = vmul.f32 %v3295, %v3241
        %v3312 = vmul.f32 %v3296, %v3246
        %v3313 = vmul.f32 %v3297, %v3251
        %v3314 = vmul.f32 %v3298, %v3256
        %v3315 = vmul.f32 %v3299, %v3261
        %v3316 = vmul.f32 %v3300, %v3266
        %v3317 = vmul.f32 %v3301, %v3191
        %v3318 = vmul.f32 %v3302, %v3196
        %v3319 = vmul.f32 %v3303, %v3201
        %v3320 = vmul.f32 %v3304, %v3206
        %v3321 = vmul.f32 %v3305, %v3211
        %v3322 = vmul.f32 %v3306, %v3216
        %v3323 = vmul.f32 %v3307, %v3221
        %v3324 = vmul.f32 %v3308, %v3226
        %v3325 = vmul.f32 %v3309, %v3231
        %v3326 = vmul.f32 %v3310, %v3236
        %v3327 = vmul.f32 %v3311, %v3241
        %v3328 = vmul.f32 %v3312, %v3246
        %v3329 = vmul.f32 %v3313, %v3251
        %v3330 = vmul.f32 %v3314, %v3256
        %v3331 = vmul.f32 %v3315, %v3261
        %v3332 = vmul.f32 %v3316, %v3266
        %v3333 = vadd.f32 %v3191, %v3317
        %v3334 = vadd.f32 %v3196, %v3318
        %v3335 = vadd.f32 %v3201, %v3319
        %v3336 = vadd.f32 %v3206, %v3320
        %v3337 = vadd.f32 %v3211, %v3321
        %v3338 = vadd.f32 %v3216, %v3322
        %v3339 = vadd.f32 %v3221, %v3323
        %v3340 = vadd.f32 %v3226, %v3324
        %v3341 = vadd.f32 %v3231, %v3325
        %v3342 = vadd.f32 %v3236, %v3326
        %v3343 = vadd.f32 %v3241, %v3327
        %v3344 = vadd.f32 %v3246, %v3328
        %v3345 = vadd.f32 %v3251, %v3329
        %v3346 = vadd.f32 %v3256, %v3330
        %v3347 = vadd.f32 %v3261, %v3331
        %v3348 = vadd.f32 %v3266, %v3332
        %v3349 = vmul.f32 %v3333, 0.7978846
        %v3350 = vmul.f32 %v3334, 0.7978846
        %v3351 = vmul.f32 %v3335, 0.7978846
        %v3352 = vmul.f32 %v3336, 0.7978846
        %v3353 = vmul.f32 %v3337, 0.7978846
        %v3354 = vmul.f32 %v3338, 0.7978846
        %v3355 = vmul.f32 %v3339, 0.7978846
        %v3356 = vmul.f32 %v3340, 0.7978846
        %v3357 = vmul.f32 %v3341, 0.7978846
        %v3358 = vmul.f32 %v3342, 0.7978846
        %v3359 = vmul.f32 %v3343, 0.7978846
        %v3360 = vmul.f32 %v3344, 0.7978846
        %v3361 = vmul.f32 %v3345, 0.7978846
        %v3362 = vmul.f32 %v3346, 0.7978846
        %v3363 = vmul.f32 %v3347, 0.7978846
        %v3364 = vmul.f32 %v3348, 0.7978846
        %v3365 = vtanh.pop %v3349
        %v3366 = vtanh.pop %v3350
        %v3367 = vtanh.pop %v3351
        %v3368 = vtanh.pop %v3352
        %v3369 = vtanh.pop %v3353
        %v3370 = vtanh.pop %v3354
        %v3371 = vtanh.pop %v3355
        %v3372 = vtanh.pop %v3356
        %v3373 = vtanh.pop %v3357
        %v3374 = vtanh.pop %v3358
        %v3375 = vtanh.pop %v3359
        %v3376 = vtanh.pop %v3360
        %v3377 = vtanh.pop %v3361
        %v3378 = vtanh.pop %v3362
        %v3379 = vtanh.pop %v3363
        %v3380 = vtanh.pop %v3364
        %v3381 = vadd.f32 %v3365, 1.0
        %v3382 = vadd.f32 %v3366, 1.0
        %v3383 = vadd.f32 %v3367, 1.0
        %v3384 = vadd.f32 %v3368, 1.0
        %v3385 = vadd.f32 %v3369, 1.0
        %v3386 = vadd.f32 %v3370, 1.0
        %v3387 = vadd.f32 %v3371, 1.0
        %v3388 = vadd.f32 %v3372, 1.0
        %v3389 = vadd.f32 %v3373, 1.0
        %v3390 = vadd.f32 %v3374, 1.0
        %v3391 = vadd.f32 %v3375, 1.0
        %v3392 = vadd.f32 %v3376, 1.0
        %v3393 = vadd.f32 %v3377, 1.0
        %v3394 = vadd.f32 %v3378, 1.0
        %v3395 = vadd.f32 %v3379, 1.0
        %v3396 = vadd.f32 %v3380, 1.0
        %v3397 = vmul.f32 %v3269, %v3381
        %v3398 = vmul.f32 %v3270, %v3382
        %v3399 = vmul.f32 %v3271, %v3383
        %v3400 = vmul.f32 %v3272, %v3384
        %v3401 = vmul.f32 %v3273, %v3385
        %v3402 = vmul.f32 %v3274, %v3386
        %v3403 = vmul.f32 %v3275, %v3387
        %v3404 = vmul.f32 %v3276, %v3388
        %v3405 = vmul.f32 %v3277, %v3389
        %v3406 = vmul.f32 %v3278, %v3390
        %v3407 = vmul.f32 %v3279, %v3391
        %v3408 = vmul.f32 %v3280, %v3392
        %v3409 = vmul.f32 %v3281, %v3393
        %v3410 = vmul.f32 %v3282, %v3394
        %v3411 = vmul.f32 %v3283, %v3395
        %v3412 = vmul.f32 %v3284, %v3396
        %v3413 = vld [vmem:[%s9] sm:$0xff]
        %v3414 = vld [vmem:[%s9 + $0x8] sm:$0xff]
        %v3415 = vld [vmem:[%s9 + $0x10] sm:$0xff]
        %v3416 = vld [vmem:[%s9 + $0x18] sm:$0xff]
        %v3417 = vld [vmem:[%s9 + $0x20] sm:$0xff]
        %v3418 = vld [vmem:[%s9 + $0x28] sm:$0xff]
        %v3419 = vld [vmem:[%s9 + $0x30] sm:$0xff]
        %v3420 = vld [vmem:[%s9 + $0x38] sm:$0xff]
        %vm3421 = vcmask 523264
        %v3423 = vsel %vm3421, %v3397, 0
        %v3426 = vsel %vm3421, %v3398, 0
        %v3429 = vsel %vm3421, %v3399, 0
        %v3432 = vsel %vm3421, %v3400, 0
        %v3435 = vsel %vm3421, %v3401, 0
        %v3438 = vsel %vm3421, %v3402, 0
        %v3441 = vsel %vm3421, %v3403, 0
        %v3444 = vsel %vm3421, %v3404, 0
        %v3447 = vsel %vm3421, %v3405, 0
        %v3450 = vsel %vm3421, %v3406, 0
        %v3453 = vsel %vm3421, %v3407, 0
        %v3456 = vsel %vm3421, %v3408, 0
        %v3459 = vsel %vm3421, %v3409, 0
        %v3462 = vsel %vm3421, %v3410, 0
        %v3465 = vsel %vm3421, %v3411, 0
        %v3468 = vsel %vm3421, %v3412, 0
        %3470 = vmatprep.subr.mxu0 0.0
        %3471 = vmatpush1.msra.mxu0 %v3413
        %3472 = vmatprep.subr.mxu0 0.0
        %3473 = vmatpush1.msra.mxu0 %v3414
        %3474 = vmatprep.subr.mxu0 0.0
        %3475 = vmatpush1.msra.mxu0 %v3415
        %3476 = vmatprep.subr.mxu0 0.0
        %3477 = vmatpush1.msra.mxu0 %v3416
        %3478 = vmatprep.subr.mxu0 0.0
        %3479 = vmatpush1.msra.mxu0 %v3417
        %3480 = vmatprep.subr.mxu0 0.0
        %3481 = vmatpush1.msra.mxu0 %v3418
        %3482 = vmatprep.subr.mxu0 0.0
        %3483 = vmatpush1.msra.mxu0 %v3419
        %3484 = vmatprep.subr.mxu0 0.0
        %3485 = vmatpush1.msra.mxu0 %v3420
        %3486 = vmatprep.subr.mxu0 0.0
        %3487 = vmatpush1.msra.mxu0 0.0
        %3488 = vmatprep.subr.mxu0 0.0
        %3489 = vmatpush1.msra.mxu0 0.0
        %3490 = vmatprep.subr.mxu0 0.0
        %3491 = vmatpush1.msra.mxu0 0.0
        %3492 = vmatprep.subr.mxu0 0.0
        %3493 = vmatpush1.msra.mxu0 0.0
        %3494 = vmatprep.subr.mxu0 0.0
        %3495 = vmatpush1.msra.mxu0 0.0
        %3496 = vmatprep.subr.mxu0 0.0
        %3497 = vmatpush1.msra.mxu0 0.0
        %3498 = vmatprep.subr.mxu0 0.0
        %3499 = vmatpush1.msra.mxu0 0.0
        %3500 = vmatprep.subr.mxu0 0.0
        %3501 = vmatpush1.msra.mxu0 0.0
        %3502 = vmatprep.subr.mxu0 0.0
        %3503 = vmatpush1.msra.mxu0 0.0
        %3504 = vmatprep.subr.mxu0 0.0
        %3505 = vmatpush1.msra.mxu0 0.0
        %3506 = vmatprep.subr.mxu0 0.0
        %3507 = vmatpush1.msra.mxu0 0.0
        %3508 = vmatprep.subr.mxu0 0.0
        %3509 = vmatpush1.msra.mxu0 0.0
        %3510 = vmatprep.subr.mxu0 0.0
        %3511 = vmatpush1.msra.mxu0 0.0
        %3512 = vmatprep.subr.mxu0 0.0
        %3513 = vmatpush1.msra.mxu0 0.0
        %3514 = vmatprep.subr.mxu0 0.0
        %3515 = vmatpush1.msra.mxu0 0.0
        %3516 = vmatprep.subr.mxu0 0.0
        %3517 = vmatpush1.msra.mxu0 0.0
        %3518 = vmatprep.subr.mxu0 0.0
        %3519 = vmatpush1.msra.mxu0 0.0
        %3520 = vmatprep.subr.mxu0 0.0
        %3521 = vmatpush1.msra.mxu0 0.0
        %3522 = vmatprep.subr.mxu0 0.0
        %3523 = vmatpush1.msra.mxu0 0.0
        %3524 = vmatprep.subr.mxu0 0.0
        %3525 = vmatpush1.msra.mxu0 0.0
        %3526 = vmatprep.subr.mxu0 0.0
        %3527 = vmatpush1.msra.mxu0 0.0
        %3528 = vmatprep.subr.mxu0 0.0
        %3529 = vmatpush1.msra.mxu0 0.0
        %3530 = vmatprep.subr.mxu0 0.0
        %3531 = vmatpush1.msra.mxu0 0.0
        %3532 = vmatprep.subr.mxu0 0.0
        %3533 = vmatpush1.msra.mxu0 0.0
        %3534 = vmatprep.mubr.f32.mxu0 0.0
        %3535 = vmatmul.mubr.f32.gmra.mrb[0].mxu0 %v3423
        %v3536 = vpop.f32.mrb[0].mxu0
        %v3537 = vadd.f32 0.0, %v3536
        %v3538 = vpop.f32.mrb[0].mxu0
        %3539 = vmatprep.mubr.f32.mxu0 0.0
        %3540 = vmatmul.mubr.f32.gmra.mrb[0].mxu0 %v3426
        %v3541 = vpop.f32.mrb[0].mxu0
        %v3542 = vadd.f32 0.0, %v3541
        %v3543 = vpop.f32.mrb[0].mxu0
        %3544 = vmatprep.mubr.f32.mxu0 0.0
        %3545 = vmatmul.mubr.f32.gmra.mrb[0].mxu0 %v3429
        %v3546 = vpop.f32.mrb[0].mxu0
        %v3547 = vadd.f32 0.0, %v3546
        %v3548 = vpop.f32.mrb[0].mxu0
        %3549 = vmatprep.mubr.f32.mxu0 0.0
        %3550 = vmatmul.mubr.f32.gmra.mrb[0].mxu0 %v3432
        %v3551 = vpop.f32.mrb[0].mxu0
        %v3552 = vadd.f32 0.0, %v3551
        %v3553 = vpop.f32.mrb[0].mxu0
        %3554 = vmatprep.mubr.f32.mxu0 0.0
        %3555 = vmatmul.mubr.f32.gmra.mrb[0].mxu0 %v3435
        %v3556 = vpop.f32.mrb[0].mxu0
        %v3557 = vadd.f32 0.0, %v3556
        %v3558 = vpop.f32.mrb[0].mxu0
        %3559 = vmatprep.mubr.f32.mxu0 0.0
        %3560 = vmatmul.mubr.f32.gmra.mrb[0].mxu0 %v3438
        %v3561 = vpop.f32.mrb[0].mxu0
        %v3562 = vadd.f32 0.0, %v3561
        %v3563 = vpop.f32.mrb[0].mxu0
        %3564 = vmatprep.mubr.f32.mxu0 0.0
        %3565 = vmatmul.mubr.f32.gmra.mrb[0].mxu0 %v3441
        %v3566 = vpop.f32.mrb[0].mxu0
        %v3567 = vadd.f32 0.0, %v3566
        %v3568 = vpop.f32.mrb[0].mxu0
        %3569 = vmatprep.mubr.f32.mxu0 0.0
        %3570 = vmatmul.mubr.f32.gmra.mrb[0].mxu0 %v3444
        %v3571 = vpop.f32.mrb[0].mxu0
        %v3572 = vadd.f32 0.0, %v3571
        %v3573 = vpop.f32.mrb[0].mxu0
        %3574 = vmatprep.mubr.f32.mxu0 0.0
        %3575 = vmatmul.mubr.f32.gmra.mrb[0].mxu0 %v3447
        %v3576 = vpop.f32.mrb[0].mxu0
        %v3577 = vadd.f32 0.0, %v3576
        %v3578 = vpop.f32.mrb[0].mxu0
        %3579 = vmatprep.mubr.f32.mxu0 0.0
        %3580 = vmatmul.mubr.f32.gmra.mrb[0].mxu0 %v3450
        %v3581 = vpop.f32.mrb[0].mxu0
        %v3582 = vadd.f32 0.0, %v3581
        %v3583 = vpop.f32.mrb[0].mxu0
        %3584 = vmatprep.mubr.f32.mxu0 0.0
        %3585 = vmatmul.mubr.f32.gmra.mrb[0].mxu0 %v3453
        %v3586 = vpop.f32.mrb[0].mxu0
        %v3587 = vadd.f32 0.0, %v3586
        %v3588 = vpop.f32.mrb[0].mxu0
        %3589 = vmatprep.mubr.f32.mxu0 0.0
        %3590 = vmatmul.mubr.f32.gmra.mrb[0].mxu0 %v3456
        %v3591 = vpop.f32.mrb[0].mxu0
        %v3592 = vadd.f32 0.0, %v3591
        %v3593 = vpop.f32.mrb[0].mxu0
        %3594 = vmatprep.mubr.f32.mxu0 0.0
        %3595 = vmatmul.mubr.f32.gmra.mrb[0].mxu0 %v3459
        %v3596 = vpop.f32.mrb[0].mxu0
        %v3597 = vadd.f32 0.0, %v3596
        %v3598 = vpop.f32.mrb[0].mxu0
        %3599 = vmatprep.mubr.f32.mxu0 0.0
        %3600 = vmatmul.mubr.f32.gmra.mrb[0].mxu0 %v3462
        %v3601 = vpop.f32.mrb[0].mxu0
        %v3602 = vadd.f32 0.0, %v3601
        %v3603 = vpop.f32.mrb[0].mxu0
        %3604 = vmatprep.mubr.f32.mxu0 0.0
        %3605 = vmatmul.mubr.f32.gmra.mrb[0].mxu0 %v3465
        %v3606 = vpop.f32.mrb[0].mxu0
        %v3607 = vadd.f32 0.0, %v3606
        %v3608 = vpop.f32.mrb[0].mxu0
        %3609 = vmatprep.mubr.f32.mxu0 0.0
        %3610 = vmatmul.mubr.f32.gmra.mrb[0].mxu0 %v3468
        %v3611 = vpop.f32.mrb[0].mxu0
        %v3612 = vadd.f32 0.0, %v3611
        %v3613 = vpop.f32.mrb[0].mxu0
        %3614 = vdwg.mxu0
        %v3615 = vadd.f32 %v2801, %v3537
        %v3616 = vadd.f32 %v2802, %v3542
        %v3617 = vadd.f32 %v2803, %v3547
        %v3618 = vadd.f32 %v2804, %v3552
        %v3619 = vadd.f32 %v2805, %v3557
        %v3620 = vadd.f32 %v2806, %v3562
        %v3621 = vadd.f32 %v2807, %v3567
        %v3622 = vadd.f32 %v2808, %v3572
        %v3623 = vadd.f32 %v2809, %v3577
        %v3624 = vadd.f32 %v2810, %v3582
        %v3625 = vadd.f32 %v2811, %v3587
        %v3626 = vadd.f32 %v2812, %v3592
        %v3627 = vadd.f32 %v2813, %v3597
        %v3628 = vadd.f32 %v2814, %v3602
        %v3629 = vadd.f32 %v2815, %v3607
        %v3630 = vadd.f32 %v2816, %v3612
        %v3631 = vlaneseq
        %v3632 = vshrl.u32 %v3631, 7
        %v3633 = vsub.s32 5, %v3632
        %v3634 = vrot.slane %v754, %v3633
        %v3635 = vadd.f32 %v3615, %v3634
        %v3636 = vadd.f32 %v3616, %v3634
        %v3637 = vadd.f32 %v3617, %v3634
        %v3638 = vadd.f32 %v3618, %v3634
        %v3639 = vadd.f32 %v3619, %v3634
        %v3640 = vadd.f32 %v3620, %v3634
        %v3641 = vadd.f32 %v3621, %v3634
        %v3642 = vadd.f32 %v3622, %v3634
        %v3643 = vadd.f32 %v3623, %v3634
        %v3644 = vadd.f32 %v3624, %v3634
        %v3645 = vadd.f32 %v3625, %v3634
        %v3646 = vadd.f32 %v3626, %v3634
        %v3647 = vadd.f32 %v3627, %v3634
        %v3648 = vadd.f32 %v3628, %v3634
        %v3649 = vadd.f32 %v3629, %v3634
        %v3650 = vadd.f32 %v3630, %v3634
        %3651 = vst.msk [vmem:[#allocation2] sm:$0xff] %vm737, %v3635
        %3652 = vst.msk [vmem:[#allocation2 + $0x8] sm:$0xff] %vm737, %v3636
        %3653 = vst.msk [vmem:[#allocation2 + $0x10] sm:$0xff] %vm737, %v3637
        %3654 = vst.msk [vmem:[#allocation2 + $0x18] sm:$0xff] %vm737, %v3638
        %3655 = vst.msk [vmem:[#allocation2 + $0x20] sm:$0xff] %vm737, %v3639
        %3656 = vst.msk [vmem:[#allocation2 + $0x28] sm:$0xff] %vm737, %v3640
        %3657 = vst.msk [vmem:[#allocation2 + $0x30] sm:$0xff] %vm737, %v3641
        %3658 = vst.msk [vmem:[#allocation2 + $0x38] sm:$0xff] %vm737, %v3642
        %3659 = vst.msk [vmem:[#allocation2 + $0x40] sm:$0xff] %vm737, %v3643
        %3660 = vst.msk [vmem:[#allocation2 + $0x48] sm:$0xff] %vm737, %v3644
        %3661 = vst.msk [vmem:[#allocation2 + $0x50] sm:$0xff] %vm737, %v3645
        %3662 = vst.msk [vmem:[#allocation2 + $0x58] sm:$0xff] %vm737, %v3646
        %3663 = vst.msk [vmem:[#allocation2 + $0x60] sm:$0xff] %vm737, %v3647
        %3664 = vst.msk [vmem:[#allocation2 + $0x68] sm:$0xff] %vm737, %v3648
        %3665 = vst.msk [vmem:[#allocation2 + $0x70] sm:$0xff] %vm737, %v3649
        %3666 = vst.msk [vmem:[#allocation2 + $0x78] sm:$0xff] %vm737, %v3650
        %s3667 = scalar_lea.vmem %s4, 8
        %v3668 = vld [vmem:[%s3667] sm:$0xff]
        %v3669 = vld [vmem:[#allocation2] sm:$0xff]
        %v3670 = vld [vmem:[#allocation2 + $0x8] sm:$0xff]
        %v3671 = vld [vmem:[#allocation2 + $0x10] sm:$0xff]
        %v3672 = vld [vmem:[#allocation2 + $0x18] sm:$0xff]
        %v3673 = vld [vmem:[#allocation2 + $0x20] sm:$0xff]
        %v3674 = vld [vmem:[#allocation2 + $0x28] sm:$0xff]
        %v3675 = vld [vmem:[#allocation2 + $0x30] sm:$0xff]
        %v3676 = vld [vmem:[#allocation2 + $0x38] sm:$0xff]
        %v3677 = vld [vmem:[#allocation2 + $0x40] sm:$0xff]
        %v3678 = vld [vmem:[#allocation2 + $0x48] sm:$0xff]
        %v3679 = vld [vmem:[#allocation2 + $0x50] sm:$0xff]
        %v3680 = vld [vmem:[#allocation2 + $0x58] sm:$0xff]
        %v3681 = vld [vmem:[#allocation2 + $0x60] sm:$0xff]
        %v3682 = vld [vmem:[#allocation2 + $0x68] sm:$0xff]
        %v3683 = vld [vmem:[#allocation2 + $0x70] sm:$0xff]
        %v3684 = vld [vmem:[#allocation2 + $0x78] sm:$0xff]
        %v3685 = vsel %vm737, %v3669, 0.0
        %3686 = vadd.xlane.f32.xlu0 %v3685
        %v3687 = vpop.xlane.xlu0 %3686
        %v3688 = vsel %vm737, %v3670, 0.0
        %3689 = vadd.xlane.f32.xlu0 %v3688
        %v3690 = vpop.xlane.xlu0 %3689
        %v3691 = vsel %vm737, %v3671, 0.0
        %3692 = vadd.xlane.f32.xlu0 %v3691
        %v3693 = vpop.xlane.xlu0 %3692
        %v3694 = vsel %vm737, %v3672, 0.0
        %3695 = vadd.xlane.f32.xlu0 %v3694
        %v3696 = vpop.xlane.xlu0 %3695
        %v3697 = vsel %vm737, %v3673, 0.0
        %3698 = vadd.xlane.f32.xlu0 %v3697
        %v3699 = vpop.xlane.xlu0 %3698
        %v3700 = vsel %vm737, %v3674, 0.0
        %3701 = vadd.xlane.f32.xlu0 %v3700
        %v3702 = vpop.xlane.xlu0 %3701
        %v3703 = vsel %vm737, %v3675, 0.0
        %3704 = vadd.xlane.f32.xlu0 %v3703
        %v3705 = vpop.xlane.xlu0 %3704
        %v3706 = vsel %vm737, %v3676, 0.0
        %3707 = vadd.xlane.f32.xlu0 %v3706
        %v3708 = vpop.xlane.xlu0 %3707
        %v3709 = vsel %vm737, %v3677, 0.0
        %3710 = vadd.xlane.f32.xlu0 %v3709
        %v3711 = vpop.xlane.xlu0 %3710
        %v3712 = vsel %vm737, %v3678, 0.0
        %3713 = vadd.xlane.f32.xlu0 %v3712
        %v3714 = vpop.xlane.xlu0 %3713
        %v3715 = vsel %vm737, %v3679, 0.0
        %3716 = vadd.xlane.f32.xlu0 %v3715
        %v3717 = vpop.xlane.xlu0 %3716
        %v3718 = vsel %vm737, %v3680, 0.0
        %3719 = vadd.xlane.f32.xlu0 %v3718
        %v3720 = vpop.xlane.xlu0 %3719
        %v3721 = vsel %vm737, %v3681, 0.0
        %3722 = vadd.xlane.f32.xlu0 %v3721
        %v3723 = vpop.xlane.xlu0 %3722
        %v3724 = vsel %vm737, %v3682, 0.0
        %3725 = vadd.xlane.f32.xlu0 %v3724
        %v3726 = vpop.xlane.xlu0 %3725
        %v3727 = vsel %vm737, %v3683, 0.0
        %3728 = vadd.xlane.f32.xlu0 %v3727
        %v3729 = vpop.xlane.xlu0 %3728
        %v3730 = vsel %vm737, %v3684, 0.0
        %3731 = vadd.xlane.f32.xlu0 %v3730
        %v3732 = vpop.xlane.xlu0 %3731
        %v3733 = vmul.f32 %v3687, %v819
        %v3734 = vmul.f32 %v3690, %v819
        %v3735 = vmul.f32 %v3693, %v819
        %v3736 = vmul.f32 %v3696, %v819
        %v3737 = vmul.f32 %v3699, %v819
        %v3738 = vmul.f32 %v3702, %v819
        %v3739 = vmul.f32 %v3705, %v819
        %v3740 = vmul.f32 %v3708, %v819
        %v3741 = vmul.f32 %v3711, %v819
        %v3742 = vmul.f32 %v3714, %v819
        %v3743 = vmul.f32 %v3717, %v819
        %v3744 = vmul.f32 %v3720, %v819
        %v3745 = vmul.f32 %v3723, %v819
        %v3746 = vmul.f32 %v3726, %v819
        %v3747 = vmul.f32 %v3729, %v819
        %v3748 = vmul.f32 %v3732, %v819
        %v3749 = vsub.f32 %v3669, %v3733
        %v3750 = vsub.f32 %v3670, %v3734
        %v3751 = vsub.f32 %v3671, %v3735
        %v3752 = vsub.f32 %v3672, %v3736
        %v3753 = vsub.f32 %v3673, %v3737
        %v3754 = vsub.f32 %v3674, %v3738
        %v3755 = vsub.f32 %v3675, %v3739
        %v3756 = vsub.f32 %v3676, %v3740
        %v3757 = vsub.f32 %v3677, %v3741
        %v3758 = vsub.f32 %v3678, %v3742
        %v3759 = vsub.f32 %v3679, %v3743
        %v3760 = vsub.f32 %v3680, %v3744
        %v3761 = vsub.f32 %v3681, %v3745
        %v3762 = vsub.f32 %v3682, %v3746
        %v3763 = vsub.f32 %v3683, %v3747
        %v3764 = vsub.f32 %v3684, %v3748
        %v3765 = vmul.f32 %v3749, %v3749
        %v3766 = vmul.f32 %v3750, %v3750
        %v3767 = vmul.f32 %v3751, %v3751
        %v3768 = vmul.f32 %v3752, %v3752
        %v3769 = vmul.f32 %v3753, %v3753
        %v3770 = vmul.f32 %v3754, %v3754
        %v3771 = vmul.f32 %v3755, %v3755
        %v3772 = vmul.f32 %v3756, %v3756
        %v3773 = vmul.f32 %v3757, %v3757
        %v3774 = vmul.f32 %v3758, %v3758
        %v3775 = vmul.f32 %v3759, %v3759
        %v3776 = vmul.f32 %v3760, %v3760
        %v3777 = vmul.f32 %v3761, %v3761
        %v3778 = vmul.f32 %v3762, %v3762
        %v3779 = vmul.f32 %v3763, %v3763
        %v3780 = vmul.f32 %v3764, %v3764
        %v3781 = vsel %vm737, %v3765, 0.0
        %3782 = vadd.xlane.f32.xlu0 %v3781
        %v3783 = vpop.xlane.xlu0 %3782
        %v3784 = vsel %vm737, %v3766, 0.0
        %3785 = vadd.xlane.f32.xlu0 %v3784
        %v3786 = vpop.xlane.xlu0 %3785
        %v3787 = vsel %vm737, %v3767, 0.0
        %3788 = vadd.xlane.f32.xlu0 %v3787
        %v3789 = vpop.xlane.xlu0 %3788
        %v3790 = vsel %vm737, %v3768, 0.0
        %3791 = vadd.xlane.f32.xlu0 %v3790
        %v3792 = vpop.xlane.xlu0 %3791
        %v3793 = vsel %vm737, %v3769, 0.0
        %3794 = vadd.xlane.f32.xlu0 %v3793
        %v3795 = vpop.xlane.xlu0 %3794
        %v3796 = vsel %vm737, %v3770, 0.0
        %3797 = vadd.xlane.f32.xlu0 %v3796
        %v3798 = vpop.xlane.xlu0 %3797
        %v3799 = vsel %vm737, %v3771, 0.0
        %3800 = vadd.xlane.f32.xlu0 %v3799
        %v3801 = vpop.xlane.xlu0 %3800
        %v3802 = vsel %vm737, %v3772, 0.0
        %3803 = vadd.xlane.f32.xlu0 %v3802
        %v3804 = vpop.xlane.xlu0 %3803
        %v3805 = vsel %vm737, %v3773, 0.0
        %3806 = vadd.xlane.f32.xlu0 %v3805
        %v3807 = vpop.xlane.xlu0 %3806
        %v3808 = vsel %vm737, %v3774, 0.0
        %3809 = vadd.xlane.f32.xlu0 %v3808
        %v3810 = vpop.xlane.xlu0 %3809
        %v3811 = vsel %vm737, %v3775, 0.0
        %3812 = vadd.xlane.f32.xlu0 %v3811
        %v3813 = vpop.xlane.xlu0 %3812
        %v3814 = vsel %vm737, %v3776, 0.0
        %3815 = vadd.xlane.f32.xlu0 %v3814
        %v3816 = vpop.xlane.xlu0 %3815
        %v3817 = vsel %vm737, %v3777, 0.0
        %3818 = vadd.xlane.f32.xlu0 %v3817
        %v3819 = vpop.xlane.xlu0 %3818
        %v3820 = vsel %vm737, %v3778, 0.0
        %3821 = vadd.xlane.f32.xlu0 %v3820
        %v3822 = vpop.xlane.xlu0 %3821
        %v3823 = vsel %vm737, %v3779, 0.0
        %3824 = vadd.xlane.f32.xlu0 %v3823
        %v3825 = vpop.xlane.xlu0 %3824
        %v3826 = vsel %vm737, %v3780, 0.0
        %3827 = vadd.xlane.f32.xlu0 %v3826
        %v3828 = vpop.xlane.xlu0 %3827
        %v3829 = vmul.f32 %v3783, %v819
        %v3830 = vmul.f32 %v3786, %v819
        %v3831 = vmul.f32 %v3789, %v819
        %v3832 = vmul.f32 %v3792, %v819
        %v3833 = vmul.f32 %v3795, %v819
        %v3834 = vmul.f32 %v3798, %v819
        %v3835 = vmul.f32 %v3801, %v819
        %v3836 = vmul.f32 %v3804, %v819
        %v3837 = vmul.f32 %v3807, %v819
        %v3838 = vmul.f32 %v3810, %v819
        %v3839 = vmul.f32 %v3813, %v819
        %v3840 = vmul.f32 %v3816, %v819
        %v3841 = vmul.f32 %v3819, %v819
        %v3842 = vmul.f32 %v3822, %v819
        %v3843 = vmul.f32 %v3825, %v819
        %v3844 = vmul.f32 %v3828, %v819
        %v3845 = vadd.f32 %v3829, 1e-05
        %v3846 = vadd.f32 %v3830, 1e-05
        %v3847 = vadd.f32 %v3831, 1e-05
        %v3848 = vadd.f32 %v3832, 1e-05
        %v3849 = vadd.f32 %v3833, 1e-05
        %v3850 = vadd.f32 %v3834, 1e-05
        %v3851 = vadd.f32 %v3835, 1e-05
        %v3852 = vadd.f32 %v3836, 1e-05
        %v3853 = vadd.f32 %v3837, 1e-05
        %v3854 = vadd.f32 %v3838, 1e-05
        %v3855 = vadd.f32 %v3839, 1e-05
        %v3856 = vadd.f32 %v3840, 1e-05
        %v3857 = vadd.f32 %v3841, 1e-05
        %v3858 = vadd.f32 %v3842, 1e-05
        %v3859 = vadd.f32 %v3843, 1e-05
        %v3860 = vadd.f32 %v3844, 1e-05
        %v3861 = vrsqrt.pop %v3845
        %v3862 = vrsqrt.pop %v3846
        %v3863 = vrsqrt.pop %v3847
        %v3864 = vrsqrt.pop %v3848
        %v3865 = vrsqrt.pop %v3849
        %v3866 = vrsqrt.pop %v3850
        %v3867 = vrsqrt.pop %v3851
        %v3868 = vrsqrt.pop %v3852
        %v3869 = vrsqrt.pop %v3853
        %v3870 = vrsqrt.pop %v3854
        %v3871 = vrsqrt.pop %v3855
        %v3872 = vrsqrt.pop %v3856
        %v3873 = vrsqrt.pop %v3857
        %v3874 = vrsqrt.pop %v3858
        %v3875 = vrsqrt.pop %v3859
        %v3876 = vrsqrt.pop %v3860
        %v3877 = vmul.f32 %v3749, %v3861
        %v3878 = vmul.f32 %v3750, %v3862
        %v3879 = vmul.f32 %v3751, %v3863
        %v3880 = vmul.f32 %v3752, %v3864
        %v3881 = vmul.f32 %v3753, %v3865
        %v3882 = vmul.f32 %v3754, %v3866
        %v3883 = vmul.f32 %v3755, %v3867
        %v3884 = vmul.f32 %v3756, %v3868
        %v3885 = vmul.f32 %v3757, %v3869
        %v3886 = vmul.f32 %v3758, %v3870
        %v3887 = vmul.f32 %v3759, %v3871
        %v3888 = vmul.f32 %v3760, %v3872
        %v3889 = vmul.f32 %v3761, %v3873
        %v3890 = vmul.f32 %v3762, %v3874
        %v3891 = vmul.f32 %v3763, %v3875
        %v3892 = vmul.f32 %v3764, %v3876
        %v3893 = vlaneseq
        %v3894 = vshrl.u32 %v3893, 7
        %v3895 = vsub.s32 0, %v3894
        %v3896 = vrot.slane %v3668, %v3895
        %v3897 = vmul.f32 %v3877, %v3896
        %v3898 = vmul.f32 %v3878, %v3896
        %v3899 = vmul.f32 %v3879, %v3896
        %v3900 = vmul.f32 %v3880, %v3896
        %v3901 = vmul.f32 %v3881, %v3896
        %v3902 = vmul.f32 %v3882, %v3896
        %v3903 = vmul.f32 %v3883, %v3896
        %v3904 = vmul.f32 %v3884, %v3896
        %v3905 = vmul.f32 %v3885, %v3896
        %v3906 = vmul.f32 %v3886, %v3896
        %v3907 = vmul.f32 %v3887, %v3896
        %v3908 = vmul.f32 %v3888, %v3896
        %v3909 = vmul.f32 %v3889, %v3896
        %v3910 = vmul.f32 %v3890, %v3896
        %v3911 = vmul.f32 %v3891, %v3896
        %v3912 = vmul.f32 %v3892, %v3896
        %v3913 = vlaneseq
        %v3914 = vshrl.u32 %v3913, 7
        %v3915 = vsub.s32 1, %v3914
        %v3916 = vrot.slane %v3668, %v3915
        %v3917 = vadd.f32 %v3897, %v3916
        %v3918 = vadd.f32 %v3898, %v3916
        %v3919 = vadd.f32 %v3899, %v3916
        %v3920 = vadd.f32 %v3900, %v3916
        %v3921 = vadd.f32 %v3901, %v3916
        %v3922 = vadd.f32 %v3902, %v3916
        %v3923 = vadd.f32 %v3903, %v3916
        %v3924 = vadd.f32 %v3904, %v3916
        %v3925 = vadd.f32 %v3905, %v3916
        %v3926 = vadd.f32 %v3906, %v3916
        %v3927 = vadd.f32 %v3907, %v3916
        %v3928 = vadd.f32 %v3908, %v3916
        %v3929 = vadd.f32 %v3909, %v3916
        %v3930 = vadd.f32 %v3910, %v3916
        %v3931 = vadd.f32 %v3911, %v3916
        %v3932 = vadd.f32 %v3912, %v3916
        %s3933 = scalar_lea.vmem %s6, 32
        %v3934 = vld [vmem:[%s3933] sm:$0xff]
        %v3935 = vld [vmem:[%s3933 + $0x8] sm:$0xff]
        %v3936 = vld [vmem:[%s3933 + $0x10] sm:$0xff]
        %v3937 = vld [vmem:[%s3933 + $0x18] sm:$0xff]
        %v3939 = vsel %vm737, %v3917, 0
        %v3942 = vsel %vm737, %v3918, 0
        %v3945 = vsel %vm737, %v3919, 0
        %v3948 = vsel %vm737, %v3920, 0
        %v3951 = vsel %vm737, %v3921, 0
        %v3954 = vsel %vm737, %v3922, 0
        %v3957 = vsel %vm737, %v3923, 0
        %v3960 = vsel %vm737, %v3924, 0
        %v3963 = vsel %vm737, %v3925, 0
        %v3966 = vsel %vm737, %v3926, 0
        %v3969 = vsel %vm737, %v3927, 0
        %v3972 = vsel %vm737, %v3928, 0
        %v3975 = vsel %vm737, %v3929, 0
        %v3978 = vsel %vm737, %v3930, 0
        %v3981 = vsel %vm737, %v3931, 0
        %v3984 = vsel %vm737, %v3932, 0
        %3986 = vmatprep.subr.mxu0 0.0
        %3987 = vmatpush1.msra.mxu0 %v3934
        %3988 = vmatprep.subr.mxu0 0.0
        %3989 = vmatpush1.msra.mxu0 %v3935
        %3990 = vmatprep.subr.mxu0 0.0
        %3991 = vmatpush1.msra.mxu0 %v3936
        %3992 = vmatprep.subr.mxu0 0.0
        %3993 = vmatpush1.msra.mxu0 %v3937
        %3994 = vmatprep.subr.mxu0 0.0
        %3995 = vmatpush1.msra.mxu0 0.0
        %3996 = vmatprep.subr.mxu0 0.0
        %3997 = vmatpush1.msra.mxu0 0.0
        %3998 = vmatprep.subr.mxu0 0.0
        %3999 = vmatpush1.msra.mxu0 0.0
        %4000 = vmatprep.subr.mxu0 0.0
        %4001 = vmatpush1.msra.mxu0 0.0
        %4002 = vmatprep.subr.mxu0 0.0
        %4003 = vmatpush1.msra.mxu0 0.0
        %4004 = vmatprep.subr.mxu0 0.0
        %4005 = vmatpush1.msra.mxu0 0.0
        %4006 = vmatprep.subr.mxu0 0.0
        %4007 = vmatpush1.msra.mxu0 0.0
        %4008 = vmatprep.subr.mxu0 0.0
        %4009 = vmatpush1.msra.mxu0 0.0
        %4010 = vmatprep.subr.mxu0 0.0
        %4011 = vmatpush1.msra.mxu0 0.0
        %4012 = vmatprep.subr.mxu0 0.0
        %4013 = vmatpush1.msra.mxu0 0.0
        %4014 = vmatprep.subr.mxu0 0.0
        %4015 = vmatpush1.msra.mxu0 0.0
        %4016 = vmatprep.subr.mxu0 0.0
        %4017 = vmatpush1.msra.mxu0 0.0
        %4018 = vmatprep.subr.mxu0 0.0
        %4019 = vmatpush1.msra.mxu0 0.0
        %4020 = vmatprep.subr.mxu0 0.0
        %4021 = vmatpush1.msra.mxu0 0.0
        %4022 = vmatprep.subr.mxu0 0.0
        %4023 = vmatpush1.msra.mxu0 0.0
        %4024 = vmatprep.subr.mxu0 0.0
        %4025 = vmatpush1.msra.mxu0 0.0
        %4026 = vmatprep.subr.mxu0 0.0
        %4027 = vmatpush1.msra.mxu0 0.0
        %4028 = vmatprep.subr.mxu0 0.0
        %4029 = vmatpush1.msra.mxu0 0.0
        %4030 = vmatprep.subr.mxu0 0.0
        %4031 = vmatpush1.msra.mxu0 0.0
        %4032 = vmatprep.subr.mxu0 0.0
        %4033 = vmatpush1.msra.mxu0 0.0
        %4034 = vmatprep.subr.mxu0 0.0
        %4035 = vmatpush1.msra.mxu0 0.0
        %4036 = vmatprep.subr.mxu0 0.0
        %4037 = vmatpush1.msra.mxu0 0.0
        %4038 = vmatprep.subr.mxu0 0.0
        %4039 = vmatpush1.msra.mxu0 0.0
        %4040 = vmatprep.subr.mxu0 0.0
        %4041 = vmatpush1.msra.mxu0 0.0
        %4042 = vmatprep.subr.mxu0 0.0
        %4043 = vmatpush1.msra.mxu0 0.0
        %4044 = vmatprep.subr.mxu0 0.0
        %4045 = vmatpush1.msra.mxu0 0.0
        %4046 = vmatprep.subr.mxu0 0.0
        %4047 = vmatpush1.msra.mxu0 0.0
        %4048 = vmatprep.subr.mxu0 0.0
        %4049 = vmatpush1.msra.mxu0 0.0
        %4050 = vmatprep.mubr.f32.mxu0 0.0
        %4051 = vmatmul.mubr.f32.gmra.mrb[0].mxu0 %v3939
        %v4052 = vpop.f32.mrb[0].mxu0
        %v4053 = vadd.f32 0.0, %v4052
        %v4054 = vpop.f32.mrb[0].mxu0
        %4055 = vmatprep.mubr.f32.mxu0 0.0
        %4056 = vmatmul.mubr.f32.gmra.mrb[0].mxu0 %v3942
        %v4057 = vpop.f32.mrb[0].mxu0
        %v4058 = vadd.f32 0.0, %v4057
        %v4059 = vpop.f32.mrb[0].mxu0
        %4060 = vmatprep.mubr.f32.mxu0 0.0
        %4061 = vmatmul.mubr.f32.gmra.mrb[0].mxu0 %v3945
        %v4062 = vpop.f32.mrb[0].mxu0
        %v4063 = vadd.f32 0.0, %v4062
        %v4064 = vpop.f32.mrb[0].mxu0
        %4065 = vmatprep.mubr.f32.mxu0 0.0
        %4066 = vmatmul.mubr.f32.gmra.mrb[0].mxu0 %v3948
        %v4067 = vpop.f32.mrb[0].mxu0
        %v4068 = vadd.f32 0.0, %v4067
        %v4069 = vpop.f32.mrb[0].mxu0
        %4070 = vmatprep.mubr.f32.mxu0 0.0
        %4071 = vmatmul.mubr.f32.gmra.mrb[0].mxu0 %v3951
        %v4072 = vpop.f32.mrb[0].mxu0
        %v4073 = vadd.f32 0.0, %v4072
        %v4074 = vpop.f32.mrb[0].mxu0
        %4075 = vmatprep.mubr.f32.mxu0 0.0
        %4076 = vmatmul.mubr.f32.gmra.mrb[0].mxu0 %v3954
        %v4077 = vpop.f32.mrb[0].mxu0
        %v4078 = vadd.f32 0.0, %v4077
        %v4079 = vpop.f32.mrb[0].mxu0
        %4080 = vmatprep.mubr.f32.mxu0 0.0
        %4081 = vmatmul.mubr.f32.gmra.mrb[0].mxu0 %v3957
        %v4082 = vpop.f32.mrb[0].mxu0
        %v4083 = vadd.f32 0.0, %v4082
        %v4084 = vpop.f32.mrb[0].mxu0
        %4085 = vmatprep.mubr.f32.mxu0 0.0
        %4086 = vmatmul.mubr.f32.gmra.mrb[0].mxu0 %v3960
        %v4087 = vpop.f32.mrb[0].mxu0
        %v4088 = vadd.f32 0.0, %v4087
        %v4089 = vpop.f32.mrb[0].mxu0
        %4090 = vmatprep.mubr.f32.mxu0 0.0
        %4091 = vmatmul.mubr.f32.gmra.mrb[0].mxu0 %v3963
        %v4092 = vpop.f32.mrb[0].mxu0
        %v4093 = vadd.f32 0.0, %v4092
        %v4094 = vpop.f32.mrb[0].mxu0
        %4095 = vmatprep.mubr.f32.mxu0 0.0
        %4096 = vmatmul.mubr.f32.gmra.mrb[0].mxu0 %v3966
        %v4097 = vpop.f32.mrb[0].mxu0
        %v4098 = vadd.f32 0.0, %v4097
        %v4099 = vpop.f32.mrb[0].mxu0
        %4100 = vmatprep.mubr.f32.mxu0 0.0
        %4101 = vmatmul.mubr.f32.gmra.mrb[0].mxu0 %v3969
        %v4102 = vpop.f32.mrb[0].mxu0
        %v4103 = vadd.f32 0.0, %v4102
        %v4104 = vpop.f32.mrb[0].mxu0
        %4105 = vmatprep.mubr.f32.mxu0 0.0
        %4106 = vmatmul.mubr.f32.gmra.mrb[0].mxu0 %v3972
        %v4107 = vpop.f32.mrb[0].mxu0
        %v4108 = vadd.f32 0.0, %v4107
        %v4109 = vpop.f32.mrb[0].mxu0
        %4110 = vmatprep.mubr.f32.mxu0 0.0
        %4111 = vmatmul.mubr.f32.gmra.mrb[0].mxu0 %v3975
        %v4112 = vpop.f32.mrb[0].mxu0
        %v4113 = vadd.f32 0.0, %v4112
        %v4114 = vpop.f32.mrb[0].mxu0
        %4115 = vmatprep.mubr.f32.mxu0 0.0
        %4116 = vmatmul.mubr.f32.gmra.mrb[0].mxu0 %v3978
        %v4117 = vpop.f32.mrb[0].mxu0
        %v4118 = vadd.f32 0.0, %v4117
        %v4119 = vpop.f32.mrb[0].mxu0
        %4120 = vmatprep.mubr.f32.mxu0 0.0
        %4121 = vmatmul.mubr.f32.gmra.mrb[0].mxu0 %v3981
        %v4122 = vpop.f32.mrb[0].mxu0
        %v4123 = vadd.f32 0.0, %v4122
        %v4124 = vpop.f32.mrb[0].mxu0
        %4125 = vmatprep.mubr.f32.mxu0 0.0
        %4126 = vmatmul.mubr.f32.gmra.mrb[0].mxu0 %v3984
        %v4127 = vpop.f32.mrb[0].mxu0
        %v4128 = vadd.f32 0.0, %v4127
        %v4129 = vpop.f32.mrb[0].mxu0
        %4130 = vdwg.mxu0
        %4131 = vst.msk [vmem:[#allocation3] sm:$0xff] %vm1217, %v4053
        %4132 = vst.msk [vmem:[#allocation3 + $0x8] sm:$0xff] %vm1217, %v4058
        %4133 = vst.msk [vmem:[#allocation3 + $0x10] sm:$0xff] %vm1217, %v4063
        %4134 = vst.msk [vmem:[#allocation3 + $0x18] sm:$0xff] %vm1217, %v4068
        %4135 = vst.msk [vmem:[#allocation3 + $0x20] sm:$0xff] %vm1217, %v4073
        %4136 = vst.msk [vmem:[#allocation3 + $0x28] sm:$0xff] %vm1217, %v4078
        %4137 = vst.msk [vmem:[#allocation3 + $0x30] sm:$0xff] %vm1217, %v4083
        %4138 = vst.msk [vmem:[#allocation3 + $0x38] sm:$0xff] %vm1217, %v4088
        %4139 = vst.msk [vmem:[#allocation3 + $0x40] sm:$0xff] %vm1217, %v4093
        %4140 = vst.msk [vmem:[#allocation3 + $0x48] sm:$0xff] %vm1217, %v4098
        %4141 = vst.msk [vmem:[#allocation3 + $0x50] sm:$0xff] %vm1217, %v4103
        %4142 = vst.msk [vmem:[#allocation3 + $0x58] sm:$0xff] %vm1217, %v4108
        %4143 = vst.msk [vmem:[#allocation3 + $0x60] sm:$0xff] %vm1217, %v4113
        %4144 = vst.msk [vmem:[#allocation3 + $0x68] sm:$0xff] %vm1217, %v4118
        %4145 = vst.msk [vmem:[#allocation3 + $0x70] sm:$0xff] %vm1217, %v4123
        %4146 = vst.msk [vmem:[#allocation3 + $0x78] sm:$0xff] %vm1217, %v4128
        %v4147 = vld [vmem:[#allocation3] sm:$0xff]
        %v4148 = vld [vmem:[#allocation3 + $0x8] sm:$0xff]
        %v4149 = vld [vmem:[#allocation3 + $0x10] sm:$0xff]
        %v4150 = vld [vmem:[#allocation3 + $0x18] sm:$0xff]
        %v4151 = vld [vmem:[#allocation3 + $0x20] sm:$0xff]
        %v4152 = vld [vmem:[#allocation3 + $0x28] sm:$0xff]
        %v4153 = vld [vmem:[#allocation3 + $0x30] sm:$0xff]
        %v4154 = vld [vmem:[#allocation3 + $0x38] sm:$0xff]
        %v4155 = vld [vmem:[#allocation3 + $0x40] sm:$0xff]
        %v4156 = vld [vmem:[#allocation3 + $0x48] sm:$0xff]
        %v4157 = vld [vmem:[#allocation3 + $0x50] sm:$0xff]
        %v4158 = vld [vmem:[#allocation3 + $0x58] sm:$0xff]
        %v4159 = vld [vmem:[#allocation3 + $0x60] sm:$0xff]
        %v4160 = vld [vmem:[#allocation3 + $0x68] sm:$0xff]
        %v4161 = vld [vmem:[#allocation3 + $0x70] sm:$0xff]
        %v4162 = vld [vmem:[#allocation3 + $0x78] sm:$0xff]
        %v4163 = vld [vmem:[%s3] sm:$0xff]
        %v4164 = vld [vmem:[%s3 + $0x8] sm:$0xff]
        %v4165 = vld [vmem:[%s3 + $0x10] sm:$0xff]
        %v4166 = vld [vmem:[%s3 + $0x18] sm:$0xff]
        %v4167 = vld [vmem:[%s3 + $0x20] sm:$0xff]
        %v4168 = vld [vmem:[%s3 + $0x28] sm:$0xff]
        %v4169 = vld [vmem:[%s3 + $0x30] sm:$0xff]
        %v4170 = vld [vmem:[%s3 + $0x38] sm:$0xff]
        %v4171 = vld [vmem:[%s3 + $0x40] sm:$0xff]
        %v4172 = vld [vmem:[%s3 + $0x48] sm:$0xff]
        %v4173 = vld [vmem:[%s3 + $0x50] sm:$0xff]
        %v4174 = vld [vmem:[%s3 + $0x58] sm:$0xff]
        %v4175 = vld [vmem:[%s3 + $0x60] sm:$0xff]
        %v4176 = vld [vmem:[%s3 + $0x68] sm:$0xff]
        %v4177 = vld [vmem:[%s3 + $0x70] sm:$0xff]
        %v4178 = vld [vmem:[%s3 + $0x78] sm:$0xff]
        %4195 = vrot.lane.b32.xlu0 %v4147, 96
        %v4196 = vpop.permute.xlu0 %4195
        %4197 = vrot.lane.b32.xlu0 %v4148, 96
        %v4198 = vpop.permute.xlu0 %4197
        %4199 = vrot.lane.b32.xlu0 %v4149, 96
        %v4200 = vpop.permute.xlu0 %4199
        %4201 = vrot.lane.b32.xlu0 %v4150, 96
        %v4202 = vpop.permute.xlu0 %4201
        %4203 = vrot.lane.b32.xlu0 %v4151, 96
        %v4204 = vpop.permute.xlu0 %4203
        %4205 = vrot.lane.b32.xlu0 %v4152, 96
        %v4206 = vpop.permute.xlu0 %4205
        %4207 = vrot.lane.b32.xlu0 %v4153, 96
        %v4208 = vpop.permute.xlu0 %4207
        %4209 = vrot.lane.b32.xlu0 %v4154, 96
        %v4210 = vpop.permute.xlu0 %4209
        %4211 = vrot.lane.b32.xlu0 %v4155, 96
        %v4212 = vpop.permute.xlu0 %4211
        %4213 = vrot.lane.b32.xlu0 %v4156, 96
        %v4214 = vpop.permute.xlu0 %4213
        %4215 = vrot.lane.b32.xlu0 %v4157, 96
        %v4216 = vpop.permute.xlu0 %4215
        %4217 = vrot.lane.b32.xlu0 %v4158, 96
        %v4218 = vpop.permute.xlu0 %4217
        %4219 = vrot.lane.b32.xlu0 %v4159, 96
        %v4220 = vpop.permute.xlu0 %4219
        %4221 = vrot.lane.b32.xlu0 %v4160, 96
        %v4222 = vpop.permute.xlu0 %4221
        %4223 = vrot.lane.b32.xlu0 %v4161, 96
        %v4224 = vpop.permute.xlu0 %4223
        %4225 = vrot.lane.b32.xlu0 %v4162, 96
        %v4226 = vpop.permute.xlu0 %4225
        %v4227 = vsel %vm1314, %v4147, 0
        %v4229 = vsel %vm1314, %v4148, 0
        %v4231 = vsel %vm1314, %v4149, 0
        %v4233 = vsel %vm1314, %v4150, 0
        %v4235 = vsel %vm1314, %v4151, 0
        %v4237 = vsel %vm1314, %v4152, 0
        %v4239 = vsel %vm1314, %v4153, 0
        %v4241 = vsel %vm1314, %v4154, 0
        %v4243 = vsel %vm1314, %v4155, 0
        %v4245 = vsel %vm1314, %v4156, 0
        %v4247 = vsel %vm1314, %v4157, 0
        %v4249 = vsel %vm1314, %v4158, 0
        %v4251 = vsel %vm1314, %v4159, 0
        %v4253 = vsel %vm1314, %v4160, 0
        %v4255 = vsel %vm1314, %v4161, 0
        %v4257 = vsel %vm1314, %v4162, 0
        %v4259 = vsel %vm1314, %v4196, 0
        %v4261 = vsel %vm1314, %v4198, 0
        %v4263 = vsel %vm1314, %v4200, 0
        %v4265 = vsel %vm1314, %v4202, 0
        %v4267 = vsel %vm1314, %v4204, 0
        %v4269 = vsel %vm1314, %v4206, 0
        %v4271 = vsel %vm1314, %v4208, 0
        %v4273 = vsel %vm1314, %v4210, 0
        %v4275 = vsel %vm1314, %v4212, 0
        %v4277 = vsel %vm1314, %v4214, 0
        %v4279 = vsel %vm1314, %v4216, 0
        %v4281 = vsel %vm1314, %v4218, 0
        %v4283 = vsel %vm1314, %v4220, 0
        %v4285 = vsel %vm1314, %v4222, 0
        %v4287 = vsel %vm1314, %v4224, 0
        %v4289 = vsel %vm1314, %v4226, 0
        %4291 = vmatprep.subr.mxu0 0.0
        %4292 = vmatpush1.xpose.msra.mxu0 %v4259
        %4293 = vmatprep.subr.mxu0 0.0
        %4294 = vmatpush1.xpose.msra.mxu0 %v4261
        %4295 = vmatprep.subr.mxu0 0.0
        %4296 = vmatpush1.xpose.msra.mxu0 %v4263
        %4297 = vmatprep.subr.mxu0 0.0
        %4298 = vmatpush1.xpose.msra.mxu0 %v4265
        %4299 = vmatprep.subr.mxu0 0.0
        %4300 = vmatpush1.xpose.msra.mxu0 %v4267
        %4301 = vmatprep.subr.mxu0 0.0
        %4302 = vmatpush1.xpose.msra.mxu0 %v4269
        %4303 = vmatprep.subr.mxu0 0.0
        %4304 = vmatpush1.xpose.msra.mxu0 %v4271
        %4305 = vmatprep.subr.mxu0 0.0
        %4306 = vmatpush1.xpose.msra.mxu0 %v4273
        %4307 = vmatprep.subr.mxu0 0.0
        %4308 = vmatpush1.xpose.msra.mxu0 %v4275
        %4309 = vmatprep.subr.mxu0 0.0
        %4310 = vmatpush1.xpose.msra.mxu0 %v4277
        %4311 = vmatprep.subr.mxu0 0.0
        %4312 = vmatpush1.xpose.msra.mxu0 %v4279
        %4313 = vmatprep.subr.mxu0 0.0
        %4314 = vmatpush1.xpose.msra.mxu0 %v4281
        %4315 = vmatprep.subr.mxu0 0.0
        %4316 = vmatpush1.xpose.msra.mxu0 %v4283
        %4317 = vmatprep.subr.mxu0 0.0
        %4318 = vmatpush1.xpose.msra.mxu0 %v4285
        %4319 = vmatprep.subr.mxu0 0.0
        %4320 = vmatpush1.xpose.msra.mxu0 %v4287
        %4321 = vmatprep.subr.mxu0 0.0
        %4322 = vmatpush1.xpose.msra.mxu0 %v4289
        %4323 = vmatprep.subr.mxu0 0.0
        %4324 = vmatpush1.xpose.msra.mxu0 0.0
        %4325 = vmatprep.subr.mxu0 0.0
        %4326 = vmatpush1.xpose.msra.mxu0 0.0
        %4327 = vmatprep.subr.mxu0 0.0
        %4328 = vmatpush1.xpose.msra.mxu0 0.0
        %4329 = vmatprep.subr.mxu0 0.0
        %4330 = vmatpush1.xpose.msra.mxu0 0.0
        %4331 = vmatprep.subr.mxu0 0.0
        %4332 = vmatpush1.xpose.msra.mxu0 0.0
        %4333 = vmatprep.subr.mxu0 0.0
        %4334 = vmatpush1.xpose.msra.mxu0 0.0
        %4335 = vmatprep.subr.mxu0 0.0
        %4336 = vmatpush1.xpose.msra.mxu0 0.0
        %4337 = vmatprep.subr.mxu0 0.0
        %4338 = vmatpush1.xpose.msra.mxu0 0.0
        %4339 = vmatprep.subr.mxu0 0.0
        %4340 = vmatpush1.xpose.msra.mxu0 0.0
        %4341 = vmatprep.subr.mxu0 0.0
        %4342 = vmatpush1.xpose.msra.mxu0 0.0
        %4343 = vmatprep.subr.mxu0 0.0
        %4344 = vmatpush1.xpose.msra.mxu0 0.0
        %4345 = vmatprep.subr.mxu0 0.0
        %4346 = vmatpush1.xpose.msra.mxu0 0.0
        %4347 = vmatprep.subr.mxu0 0.0
        %4348 = vmatpush1.xpose.msra.mxu0 0.0
        %4349 = vmatprep.subr.mxu0 0.0
        %4350 = vmatpush1.xpose.msra.mxu0 0.0
        %4351 = vmatprep.subr.mxu0 0.0
        %4352 = vmatpush1.xpose.msra.mxu0 0.0
        %4353 = vmatprep.subr.mxu0 0.0
        %4354 = vmatpush1.xpose.msra.mxu0 0.0
        %4355 = vmatprep.mubr.f32.mxu0 0.0
        %4356 = vmatmul.mubr.f32.gmra.mrb[0].mxu0 %v4227
        %v4357 = vpop.f32.mrb[0].mxu0
        %v4358 = vadd.f32 %v4163, %v4357
        %v4359 = vpop.f32.mrb[0].mxu0
        %4360 = vmatprep.mubr.f32.mxu0 0.0
        %4361 = vmatmul.mubr.f32.gmra.mrb[0].mxu0 %v4229
        %v4362 = vpop.f32.mrb[0].mxu0
        %v4363 = vadd.f32 %v4164, %v4362
        %v4364 = vpop.f32.mrb[0].mxu0
        %4365 = vmatprep.mubr.f32.mxu0 0.0
        %4366 = vmatmul.mubr.f32.gmra.mrb[0].mxu0 %v4231
        %v4367 = vpop.f32.mrb[0].mxu0
        %v4368 = vadd.f32 %v4165, %v4367
        %v4369 = vpop.f32.mrb[0].mxu0
        %4370 = vmatprep.mubr.f32.mxu0 0.0
        %4371 = vmatmul.mubr.f32.gmra.mrb[0].mxu0 %v4233
        %v4372 = vpop.f32.mrb[0].mxu0
        %v4373 = vadd.f32 %v4166, %v4372
        %v4374 = vpop.f32.mrb[0].mxu0
        %4375 = vmatprep.mubr.f32.mxu0 0.0
        %4376 = vmatmul.mubr.f32.gmra.mrb[0].mxu0 %v4235
        %v4377 = vpop.f32.mrb[0].mxu0
        %v4378 = vadd.f32 %v4167, %v4377
        %v4379 = vpop.f32.mrb[0].mxu0
        %4380 = vmatprep.mubr.f32.mxu0 0.0
        %4381 = vmatmul.mubr.f32.gmra.mrb[0].mxu0 %v4237
        %v4382 = vpop.f32.mrb[0].mxu0
        %v4383 = vadd.f32 %v4168, %v4382
        %v4384 = vpop.f32.mrb[0].mxu0
        %4385 = vmatprep.mubr.f32.mxu0 0.0
        %4386 = vmatmul.mubr.f32.gmra.mrb[0].mxu0 %v4239
        %v4387 = vpop.f32.mrb[0].mxu0
        %v4388 = vadd.f32 %v4169, %v4387
        %v4389 = vpop.f32.mrb[0].mxu0
        %4390 = vmatprep.mubr.f32.mxu0 0.0
        %4391 = vmatmul.mubr.f32.gmra.mrb[0].mxu0 %v4241
        %v4392 = vpop.f32.mrb[0].mxu0
        %v4393 = vadd.f32 %v4170, %v4392
        %v4394 = vpop.f32.mrb[0].mxu0
        %4395 = vmatprep.mubr.f32.mxu0 0.0
        %4396 = vmatmul.mubr.f32.gmra.mrb[0].mxu0 %v4243
        %v4397 = vpop.f32.mrb[0].mxu0
        %v4398 = vadd.f32 %v4171, %v4397
        %v4399 = vpop.f32.mrb[0].mxu0
        %4400 = vmatprep.mubr.f32.mxu0 0.0
        %4401 = vmatmul.mubr.f32.gmra.mrb[0].mxu0 %v4245
        %v4402 = vpop.f32.mrb[0].mxu0
        %v4403 = vadd.f32 %v4172, %v4402
        %v4404 = vpop.f32.mrb[0].mxu0
        %4405 = vmatprep.mubr.f32.mxu0 0.0
        %4406 = vmatmul.mubr.f32.gmra.mrb[0].mxu0 %v4247
        %v4407 = vpop.f32.mrb[0].mxu0
        %v4408 = vadd.f32 %v4173, %v4407
        %v4409 = vpop.f32.mrb[0].mxu0
        %4410 = vmatprep.mubr.f32.mxu0 0.0
        %4411 = vmatmul.mubr.f32.gmra.mrb[0].mxu0 %v4249
        %v4412 = vpop.f32.mrb[0].mxu0
        %v4413 = vadd.f32 %v4174, %v4412
        %v4414 = vpop.f32.mrb[0].mxu0
        %4415 = vmatprep.mubr.f32.mxu0 0.0
        %4416 = vmatmul.mubr.f32.gmra.mrb[0].mxu0 %v4251
        %v4417 = vpop.f32.mrb[0].mxu0
        %v4418 = vadd.f32 %v4175, %v4417
        %v4419 = vpop.f32.mrb[0].mxu0
        %4420 = vmatprep.mubr.f32.mxu0 0.0
        %4421 = vmatmul.mubr.f32.gmra.mrb[0].mxu0 %v4253
        %v4422 = vpop.f32.mrb[0].mxu0
        %v4423 = vadd.f32 %v4176, %v4422
        %v4424 = vpop.f32.mrb[0].mxu0
        %4425 = vmatprep.mubr.f32.mxu0 0.0
        %4426 = vmatmul.mubr.f32.gmra.mrb[0].mxu0 %v4255
        %v4427 = vpop.f32.mrb[0].mxu0
        %v4428 = vadd.f32 %v4177, %v4427
        %v4429 = vpop.f32.mrb[0].mxu0
        %4430 = vmatprep.mubr.f32.mxu0 0.0
        %4431 = vmatmul.mubr.f32.gmra.mrb[0].mxu0 %v4257
        %v4432 = vpop.f32.mrb[0].mxu0
        %v4433 = vadd.f32 %v4178, %v4432
        %v4434 = vpop.f32.mrb[0].mxu0
        %4435 = vdwg.mxu0
        %v4436 = vmul.f32 %v4358, 1.442695
        %v4437 = vpow.pop %v4436
        %v4438 = vmul.f32 %v4363, 1.442695
        %v4439 = vpow.pop %v4438
        %v4440 = vmul.f32 %v4368, 1.442695
        %v4441 = vpow.pop %v4440
        %v4442 = vmul.f32 %v4373, 1.442695
        %v4443 = vpow.pop %v4442
        %v4444 = vmul.f32 %v4378, 1.442695
        %v4445 = vpow.pop %v4444
        %v4446 = vmul.f32 %v4383, 1.442695
        %v4447 = vpow.pop %v4446
        %v4448 = vmul.f32 %v4388, 1.442695
        %v4449 = vpow.pop %v4448
        %v4450 = vmul.f32 %v4393, 1.442695
        %v4451 = vpow.pop %v4450
        %v4452 = vmul.f32 %v4398, 1.442695
        %v4453 = vpow.pop %v4452
        %v4454 = vmul.f32 %v4403, 1.442695
        %v4455 = vpow.pop %v4454
        %v4456 = vmul.f32 %v4408, 1.442695
        %v4457 = vpow.pop %v4456
        %v4458 = vmul.f32 %v4413, 1.442695
        %v4459 = vpow.pop %v4458
        %v4460 = vmul.f32 %v4418, 1.442695
        %v4461 = vpow.pop %v4460
        %v4462 = vmul.f32 %v4423, 1.442695
        %v4463 = vpow.pop %v4462
        %v4464 = vmul.f32 %v4428, 1.442695
        %v4465 = vpow.pop %v4464
        %v4466 = vmul.f32 %v4433, 1.442695
        %v4467 = vpow.pop %v4466
        %4468 = vadd.xlane.f32.xlu0 %v4437
        %v4469 = vpop.xlane.xlu0 %4468
        %4470 = vadd.xlane.f32.xlu0 %v4439
        %v4471 = vpop.xlane.xlu0 %4470
        %4472 = vadd.xlane.f32.xlu0 %v4441
        %v4473 = vpop.xlane.xlu0 %4472
        %4474 = vadd.xlane.f32.xlu0 %v4443
        %v4475 = vpop.xlane.xlu0 %4474
        %4476 = vadd.xlane.f32.xlu0 %v4445
        %v4477 = vpop.xlane.xlu0 %4476
        %4478 = vadd.xlane.f32.xlu0 %v4447
        %v4479 = vpop.xlane.xlu0 %4478
        %4480 = vadd.xlane.f32.xlu0 %v4449
        %v4481 = vpop.xlane.xlu0 %4480
        %4482 = vadd.xlane.f32.xlu0 %v4451
        %v4483 = vpop.xlane.xlu0 %4482
        %4484 = vadd.xlane.f32.xlu0 %v4453
        %v4485 = vpop.xlane.xlu0 %4484
        %4486 = vadd.xlane.f32.xlu0 %v4455
        %v4487 = vpop.xlane.xlu0 %4486
        %4488 = vadd.xlane.f32.xlu0 %v4457
        %v4489 = vpop.xlane.xlu0 %4488
        %4490 = vadd.xlane.f32.xlu0 %v4459
        %v4491 = vpop.xlane.xlu0 %4490
        %4492 = vadd.xlane.f32.xlu0 %v4461
        %v4493 = vpop.xlane.xlu0 %4492
        %4494 = vadd.xlane.f32.xlu0 %v4463
        %v4495 = vpop.xlane.xlu0 %4494
        %4496 = vadd.xlane.f32.xlu0 %v4465
        %v4497 = vpop.xlane.xlu0 %4496
        %4498 = vadd.xlane.f32.xlu0 %v4467
        %v4499 = vpop.xlane.xlu0 %4498
        %4500 = vrot.lane.b32.xlu0 %v4147, 64
        %v4501 = vpop.permute.xlu0 %4500
        %4502 = vrot.lane.b32.xlu0 %v4148, 64
        %v4503 = vpop.permute.xlu0 %4502
        %4504 = vrot.lane.b32.xlu0 %v4149, 64
        %v4505 = vpop.permute.xlu0 %4504
        %4506 = vrot.lane.b32.xlu0 %v4150, 64
        %v4507 = vpop.permute.xlu0 %4506
        %4508 = vrot.lane.b32.xlu0 %v4151, 64
        %v4509 = vpop.permute.xlu0 %4508
        %4510 = vrot.lane.b32.xlu0 %v4152, 64
        %v4511 = vpop.permute.xlu0 %4510
        %4512 = vrot.lane.b32.xlu0 %v4153, 64
        %v4513 = vpop.permute.xlu0 %4512
        %4514 = vrot.lane.b32.xlu0 %v4154, 64
        %v4515 = vpop.permute.xlu0 %4514
        %4516 = vrot.lane.b32.xlu0 %v4155, 64
        %v4517 = vpop.permute.xlu0 %4516
        %4518 = vrot.lane.b32.xlu0 %v4156, 64
        %v4519 = vpop.permute.xlu0 %4518
        %4520 = vrot.lane.b32.xlu0 %v4157, 64
        %v4521 = vpop.permute.xlu0 %4520
        %4522 = vrot.lane.b32.xlu0 %v4158, 64
        %v4523 = vpop.permute.xlu0 %4522
        %4524 = vrot.lane.b32.xlu0 %v4159, 64
        %v4525 = vpop.permute.xlu0 %4524
        %4526 = vrot.lane.b32.xlu0 %v4160, 64
        %v4527 = vpop.permute.xlu0 %4526
        %4528 = vrot.lane.b32.xlu0 %v4161, 64
        %v4529 = vpop.permute.xlu0 %4528
        %4530 = vrot.lane.b32.xlu0 %v4162, 64
        %v4531 = vpop.permute.xlu0 %4530
        %4548 = vmatprep.subr.mxu0 0.0
        %4549 = vmatpush1.msra.mxu0 %v4501
        %4550 = vmatprep.subr.mxu0 0.0
        %4551 = vmatpush1.msra.mxu0 %v4503
        %4552 = vmatprep.subr.mxu0 0.0
        %4553 = vmatpush1.msra.mxu0 %v4505
        %4554 = vmatprep.subr.mxu0 0.0
        %4555 = vmatpush1.msra.mxu0 %v4507
        %4556 = vmatprep.subr.mxu0 0.0
        %4557 = vmatpush1.msra.mxu0 %v4509
        %4558 = vmatprep.subr.mxu0 0.0
        %4559 = vmatpush1.msra.mxu0 %v4511
        %4560 = vmatprep.subr.mxu0 0.0
        %4561 = vmatpush1.msra.mxu0 %v4513
        %4562 = vmatprep.subr.mxu0 0.0
        %4563 = vmatpush1.msra.mxu0 %v4515
        %4564 = vmatprep.subr.mxu0 0.0
        %4565 = vmatpush1.msra.mxu0 %v4517
        %4566 = vmatprep.subr.mxu0 0.0
        %4567 = vmatpush1.msra.mxu0 %v4519
        %4568 = vmatprep.subr.mxu0 0.0
        %4569 = vmatpush1.msra.mxu0 %v4521
        %4570 = vmatprep.subr.mxu0 0.0
        %4571 = vmatpush1.msra.mxu0 %v4523
        %4572 = vmatprep.subr.mxu0 0.0
        %4573 = vmatpush1.msra.mxu0 %v4525
        %4574 = vmatprep.subr.mxu0 0.0
        %4575 = vmatpush1.msra.mxu0 %v4527
        %4576 = vmatprep.subr.mxu0 0.0
        %4577 = vmatpush1.msra.mxu0 %v4529
        %4578 = vmatprep.subr.mxu0 0.0
        %4579 = vmatpush1.msra.mxu0 %v4531
        %4580 = vmatprep.subr.mxu0 0.0
        %4581 = vmatpush1.msra.mxu0 0.0
        %4582 = vmatprep.subr.mxu0 0.0
        %4583 = vmatpush1.msra.mxu0 0.0
        %4584 = vmatprep.subr.mxu0 0.0
        %4585 = vmatpush1.msra.mxu0 0.0
        %4586 = vmatprep.subr.mxu0 0.0
        %4587 = vmatpush1.msra.mxu0 0.0
        %4588 = vmatprep.subr.mxu0 0.0
        %4589 = vmatpush1.msra.mxu0 0.0
        %4590 = vmatprep.subr.mxu0 0.0
        %4591 = vmatpush1.msra.mxu0 0.0
        %4592 = vmatprep.subr.mxu0 0.0
        %4593 = vmatpush1.msra.mxu0 0.0
        %4594 = vmatprep.subr.mxu0 0.0
        %4595 = vmatpush1.msra.mxu0 0.0
        %4596 = vmatprep.subr.mxu0 0.0
        %4597 = vmatpush1.msra.mxu0 0.0
        %4598 = vmatprep.subr.mxu0 0.0
        %4599 = vmatpush1.msra.mxu0 0.0
        %4600 = vmatprep.subr.mxu0 0.0
        %4601 = vmatpush1.msra.mxu0 0.0
        %4602 = vmatprep.subr.mxu0 0.0
        %4603 = vmatpush1.msra.mxu0 0.0
        %4604 = vmatprep.subr.mxu0 0.0
        %4605 = vmatpush1.msra.mxu0 0.0
        %4606 = vmatprep.subr.mxu0 0.0
        %4607 = vmatpush1.msra.mxu0 0.0
        %4608 = vmatprep.subr.mxu0 0.0
        %4609 = vmatpush1.msra.mxu0 0.0
        %4610 = vmatprep.subr.mxu0 0.0
        %4611 = vmatpush1.msra.mxu0 0.0
        %4612 = vmatprep.mubr.f32.mxu0 0.0
        %4613 = vmatmul.mubr.f32.gmra.mrb[0].mxu0 %v4437
        %v4614 = vpop.f32.mrb[0].mxu0
        %v4615 = vadd.f32 0.0, %v4614
        %v4616 = vpop.f32.mrb[0].mxu0
        %4617 = vmatprep.mubr.f32.mxu0 0.0
        %4618 = vmatmul.mubr.f32.gmra.mrb[0].mxu0 %v4439
        %v4619 = vpop.f32.mrb[0].mxu0
        %v4620 = vadd.f32 0.0, %v4619
        %v4621 = vpop.f32.mrb[0].mxu0
        %4622 = vmatprep.mubr.f32.mxu0 0.0
        %4623 = vmatmul.mubr.f32.gmra.mrb[0].mxu0 %v4441
        %v4624 = vpop.f32.mrb[0].mxu0
        %v4625 = vadd.f32 0.0, %v4624
        %v4626 = vpop.f32.mrb[0].mxu0
        %4627 = vmatprep.mubr.f32.mxu0 0.0
        %4628 = vmatmul.mubr.f32.gmra.mrb[0].mxu0 %v4443
        %v4629 = vpop.f32.mrb[0].mxu0
        %v4630 = vadd.f32 0.0, %v4629
        %v4631 = vpop.f32.mrb[0].mxu0
        %4632 = vmatprep.mubr.f32.mxu0 0.0
        %4633 = vmatmul.mubr.f32.gmra.mrb[0].mxu0 %v4445
        %v4634 = vpop.f32.mrb[0].mxu0
        %v4635 = vadd.f32 0.0, %v4634
        %v4636 = vpop.f32.mrb[0].mxu0
        %4637 = vmatprep.mubr.f32.mxu0 0.0
        %4638 = vmatmul.mubr.f32.gmra.mrb[0].mxu0 %v4447
        %v4639 = vpop.f32.mrb[0].mxu0
        %v4640 = vadd.f32 0.0, %v4639
        %v4641 = vpop.f32.mrb[0].mxu0
        %4642 = vmatprep.mubr.f32.mxu0 0.0
        %4643 = vmatmul.mubr.f32.gmra.mrb[0].mxu0 %v4449
        %v4644 = vpop.f32.mrb[0].mxu0
        %v4645 = vadd.f32 0.0, %v4644
        %v4646 = vpop.f32.mrb[0].mxu0
        %4647 = vmatprep.mubr.f32.mxu0 0.0
        %4648 = vmatmul.mubr.f32.gmra.mrb[0].mxu0 %v4451
        %v4649 = vpop.f32.mrb[0].mxu0
        %v4650 = vadd.f32 0.0, %v4649
        %v4651 = vpop.f32.mrb[0].mxu0
        %4652 = vmatprep.mubr.f32.mxu0 0.0
        %4653 = vmatmul.mubr.f32.gmra.mrb[0].mxu0 %v4453
        %v4654 = vpop.f32.mrb[0].mxu0
        %v4655 = vadd.f32 0.0, %v4654
        %v4656 = vpop.f32.mrb[0].mxu0
        %4657 = vmatprep.mubr.f32.mxu0 0.0
        %4658 = vmatmul.mubr.f32.gmra.mrb[0].mxu0 %v4455
        %v4659 = vpop.f32.mrb[0].mxu0
        %v4660 = vadd.f32 0.0, %v4659
        %v4661 = vpop.f32.mrb[0].mxu0
        %4662 = vmatprep.mubr.f32.mxu0 0.0
        %4663 = vmatmul.mubr.f32.gmra.mrb[0].mxu0 %v4457
        %v4664 = vpop.f32.mrb[0].mxu0
        %v4665 = vadd.f32 0.0, %v4664
        %v4666 = vpop.f32.mrb[0].mxu0
        %4667 = vmatprep.mubr.f32.mxu0 0.0
        %4668 = vmatmul.mubr.f32.gmra.mrb[0].mxu0 %v4459
        %v4669 = vpop.f32.mrb[0].mxu0
        %v4670 = vadd.f32 0.0, %v4669
        %v4671 = vpop.f32.mrb[0].mxu0
        %4672 = vmatprep.mubr.f32.mxu0 0.0
        %4673 = vmatmul.mubr.f32.gmra.mrb[0].mxu0 %v4461
        %v4674 = vpop.f32.mrb[0].mxu0
        %v4675 = vadd.f32 0.0, %v4674
        %v4676 = vpop.f32.mrb[0].mxu0
        %4677 = vmatprep.mubr.f32.mxu0 0.0
        %4678 = vmatmul.mubr.f32.gmra.mrb[0].mxu0 %v4463
        %v4679 = vpop.f32.mrb[0].mxu0
        %v4680 = vadd.f32 0.0, %v4679
        %v4681 = vpop.f32.mrb[0].mxu0
        %4682 = vmatprep.mubr.f32.mxu0 0.0
        %4683 = vmatmul.mubr.f32.gmra.mrb[0].mxu0 %v4465
        %v4684 = vpop.f32.mrb[0].mxu0
        %v4685 = vadd.f32 0.0, %v4684
        %v4686 = vpop.f32.mrb[0].mxu0
        %4687 = vmatprep.mubr.f32.mxu0 0.0
        %4688 = vmatmul.mubr.f32.gmra.mrb[0].mxu0 %v4467
        %v4689 = vpop.f32.mrb[0].mxu0
        %v4690 = vadd.f32 0.0, %v4689
        %v4691 = vpop.f32.mrb[0].mxu0
        %4692 = vdwg.mxu0
        %v4693 = vrcp.pop %v4469
        %v4694 = vrcp.pop %v4471
        %v4695 = vrcp.pop %v4473
        %v4696 = vrcp.pop %v4475
        %v4697 = vrcp.pop %v4477
        %v4698 = vrcp.pop %v4479
        %v4699 = vrcp.pop %v4481
        %v4700 = vrcp.pop %v4483
        %v4701 = vrcp.pop %v4485
        %v4702 = vrcp.pop %v4487
        %v4703 = vrcp.pop %v4489
        %v4704 = vrcp.pop %v4491
        %v4705 = vrcp.pop %v4493
        %v4706 = vrcp.pop %v4495
        %v4707 = vrcp.pop %v4497
        %v4708 = vrcp.pop %v4499
        %v4709 = vmul.f32 %v4615, %v4693
        %v4710 = vmul.f32 %v4620, %v4694
        %v4711 = vmul.f32 %v4625, %v4695
        %v4712 = vmul.f32 %v4630, %v4696
        %v4713 = vmul.f32 %v4635, %v4697
        %v4714 = vmul.f32 %v4640, %v4698
        %v4715 = vmul.f32 %v4645, %v4699
        %v4716 = vmul.f32 %v4650, %v4700
        %v4717 = vmul.f32 %v4655, %v4701
        %v4718 = vmul.f32 %v4660, %v4702
        %v4719 = vmul.f32 %v4665, %v4703
        %v4720 = vmul.f32 %v4670, %v4704
        %v4721 = vmul.f32 %v4675, %v4705
        %v4722 = vmul.f32 %v4680, %v4706
        %v4723 = vmul.f32 %v4685, %v4707
        %v4724 = vmul.f32 %v4690, %v4708
        %4725 = vst.msk [vmem:[#allocation4] sm:$0xff] %vm1314, %v4709
        %4726 = vst.msk [vmem:[#allocation4 + $0x8] sm:$0xff] %vm1314, %v4710
        %4727 = vst.msk [vmem:[#allocation4 + $0x10] sm:$0xff] %vm1314, %v4711
        %4728 = vst.msk [vmem:[#allocation4 + $0x18] sm:$0xff] %vm1314, %v4712
        %4729 = vst.msk [vmem:[#allocation4 + $0x20] sm:$0xff] %vm1314, %v4713
        %4730 = vst.msk [vmem:[#allocation4 + $0x28] sm:$0xff] %vm1314, %v4714
        %4731 = vst.msk [vmem:[#allocation4 + $0x30] sm:$0xff] %vm1314, %v4715
        %4732 = vst.msk [vmem:[#allocation4 + $0x38] sm:$0xff] %vm1314, %v4716
        %4733 = vst.msk [vmem:[#allocation4 + $0x40] sm:$0xff] %vm1314, %v4717
        %4734 = vst.msk [vmem:[#allocation4 + $0x48] sm:$0xff] %vm1314, %v4718
        %4735 = vst.msk [vmem:[#allocation4 + $0x50] sm:$0xff] %vm1314, %v4719
        %4736 = vst.msk [vmem:[#allocation4 + $0x58] sm:$0xff] %vm1314, %v4720
        %4737 = vst.msk [vmem:[#allocation4 + $0x60] sm:$0xff] %vm1314, %v4721
        %4738 = vst.msk [vmem:[#allocation4 + $0x68] sm:$0xff] %vm1314, %v4722
        %4739 = vst.msk [vmem:[#allocation4 + $0x70] sm:$0xff] %vm1314, %v4723
        %4740 = vst.msk [vmem:[#allocation4 + $0x78] sm:$0xff] %vm1314, %v4724
        %v4741 = vld [vmem:[#allocation3] sm:$0xff]
        %v4742 = vld [vmem:[#allocation3 + $0x8] sm:$0xff]
        %v4743 = vld [vmem:[#allocation3 + $0x10] sm:$0xff]
        %v4744 = vld [vmem:[#allocation3 + $0x18] sm:$0xff]
        %v4745 = vld [vmem:[#allocation3 + $0x20] sm:$0xff]
        %v4746 = vld [vmem:[#allocation3 + $0x28] sm:$0xff]
        %v4747 = vld [vmem:[#allocation3 + $0x30] sm:$0xff]
        %v4748 = vld [vmem:[#allocation3 + $0x38] sm:$0xff]
        %v4749 = vld [vmem:[#allocation3 + $0x40] sm:$0xff]
        %v4750 = vld [vmem:[#allocation3 + $0x48] sm:$0xff]
        %v4751 = vld [vmem:[#allocation3 + $0x50] sm:$0xff]
        %v4752 = vld [vmem:[#allocation3 + $0x58] sm:$0xff]
        %v4753 = vld [vmem:[#allocation3 + $0x60] sm:$0xff]
        %v4754 = vld [vmem:[#allocation3 + $0x68] sm:$0xff]
        %v4755 = vld [vmem:[#allocation3 + $0x70] sm:$0xff]
        %v4756 = vld [vmem:[#allocation3 + $0x78] sm:$0xff]
        %v4757 = vld [vmem:[%s3] sm:$0xff]
        %v4758 = vld [vmem:[%s3 + $0x8] sm:$0xff]
        %v4759 = vld [vmem:[%s3 + $0x10] sm:$0xff]
        %v4760 = vld [vmem:[%s3 + $0x18] sm:$0xff]
        %v4761 = vld [vmem:[%s3 + $0x20] sm:$0xff]
        %v4762 = vld [vmem:[%s3 + $0x28] sm:$0xff]
        %v4763 = vld [vmem:[%s3 + $0x30] sm:$0xff]
        %v4764 = vld [vmem:[%s3 + $0x38] sm:$0xff]
        %v4765 = vld [vmem:[%s3 + $0x40] sm:$0xff]
        %v4766 = vld [vmem:[%s3 + $0x48] sm:$0xff]
        %v4767 = vld [vmem:[%s3 + $0x50] sm:$0xff]
        %v4768 = vld [vmem:[%s3 + $0x58] sm:$0xff]
        %v4769 = vld [vmem:[%s3 + $0x60] sm:$0xff]
        %v4770 = vld [vmem:[%s3 + $0x68] sm:$0xff]
        %v4771 = vld [vmem:[%s3 + $0x70] sm:$0xff]
        %v4772 = vld [vmem:[%s3 + $0x78] sm:$0xff]
        %4789 = vrot.lane.b32.xlu0 %v4741, 112
        %v4790 = vpop.permute.xlu0 %4789
        %4791 = vrot.lane.b32.xlu0 %v4742, 112
        %v4792 = vpop.permute.xlu0 %4791
        %4793 = vrot.lane.b32.xlu0 %v4743, 112
        %v4794 = vpop.permute.xlu0 %4793
        %4795 = vrot.lane.b32.xlu0 %v4744, 112
        %v4796 = vpop.permute.xlu0 %4795
        %4797 = vrot.lane.b32.xlu0 %v4745, 112
        %v4798 = vpop.permute.xlu0 %4797
        %4799 = vrot.lane.b32.xlu0 %v4746, 112
        %v4800 = vpop.permute.xlu0 %4799
        %4801 = vrot.lane.b32.xlu0 %v4747, 112
        %v4802 = vpop.permute.xlu0 %4801
        %4803 = vrot.lane.b32.xlu0 %v4748, 112
        %v4804 = vpop.permute.xlu0 %4803
        %4805 = vrot.lane.b32.xlu0 %v4749, 112
        %v4806 = vpop.permute.xlu0 %4805
        %4807 = vrot.lane.b32.xlu0 %v4750, 112
        %v4808 = vpop.permute.xlu0 %4807
        %4809 = vrot.lane.b32.xlu0 %v4751, 112
        %v4810 = vpop.permute.xlu0 %4809
        %4811 = vrot.lane.b32.xlu0 %v4752, 112
        %v4812 = vpop.permute.xlu0 %4811
        %4813 = vrot.lane.b32.xlu0 %v4753, 112
        %v4814 = vpop.permute.xlu0 %4813
        %4815 = vrot.lane.b32.xlu0 %v4754, 112
        %v4816 = vpop.permute.xlu0 %4815
        %4817 = vrot.lane.b32.xlu0 %v4755, 112
        %v4818 = vpop.permute.xlu0 %4817
        %4819 = vrot.lane.b32.xlu0 %v4756, 112
        %v4820 = vpop.permute.xlu0 %4819
        %4821 = vrot.lane.b32.xlu0 %v4741, 80
        %v4822 = vpop.permute.xlu0 %4821
        %4823 = vrot.lane.b32.xlu0 %v4742, 80
        %v4824 = vpop.permute.xlu0 %4823
        %4825 = vrot.lane.b32.xlu0 %v4743, 80
        %v4826 = vpop.permute.xlu0 %4825
        %4827 = vrot.lane.b32.xlu0 %v4744, 80
        %v4828 = vpop.permute.xlu0 %4827
        %4829 = vrot.lane.b32.xlu0 %v4745, 80
        %v4830 = vpop.permute.xlu0 %4829
        %4831 = vrot.lane.b32.xlu0 %v4746, 80
        %v4832 = vpop.permute.xlu0 %4831
        %4833 = vrot.lane.b32.xlu0 %v4747, 80
        %v4834 = vpop.permute.xlu0 %4833
        %4835 = vrot.lane.b32.xlu0 %v4748, 80
        %v4836 = vpop.permute.xlu0 %4835
        %4837 = vrot.lane.b32.xlu0 %v4749, 80
        %v4838 = vpop.permute.xlu0 %4837
        %4839 = vrot.lane.b32.xlu0 %v4750, 80
        %v4840 = vpop.permute.xlu0 %4839
        %4841 = vrot.lane.b32.xlu0 %v4751, 80
        %v4842 = vpop.permute.xlu0 %4841
        %4843 = vrot.lane.b32.xlu0 %v4752, 80
        %v4844 = vpop.permute.xlu0 %4843
        %4845 = vrot.lane.b32.xlu0 %v4753, 80
        %v4846 = vpop.permute.xlu0 %4845
        %4847 = vrot.lane.b32.xlu0 %v4754, 80
        %v4848 = vpop.permute.xlu0 %4847
        %4849 = vrot.lane.b32.xlu0 %v4755, 80
        %v4850 = vpop.permute.xlu0 %4849
        %4851 = vrot.lane.b32.xlu0 %v4756, 80
        %v4852 = vpop.permute.xlu0 %4851
        %v4853 = vsel %vm1314, %v4790, 0
        %v4855 = vsel %vm1314, %v4792, 0
        %v4857 = vsel %vm1314, %v4794, 0
        %v4859 = vsel %vm1314, %v4796, 0
        %v4861 = vsel %vm1314, %v4798, 0
        %v4863 = vsel %vm1314, %v4800, 0
        %v4865 = vsel %vm1314, %v4802, 0
        %v4867 = vsel %vm1314, %v4804, 0
        %v4869 = vsel %vm1314, %v4806, 0
        %v4871 = vsel %vm1314, %v4808, 0
        %v4873 = vsel %vm1314, %v4810, 0
        %v4875 = vsel %vm1314, %v4812, 0
        %v4877 = vsel %vm1314, %v4814, 0
        %v4879 = vsel %vm1314, %v4816, 0
        %v4881 = vsel %vm1314, %v4818, 0
        %v4883 = vsel %vm1314, %v4820, 0
        %v4885 = vsel %vm1314, %v4822, 0
        %v4887 = vsel %vm1314, %v4824, 0
        %v4889 = vsel %vm1314, %v4826, 0
        %v4891 = vsel %vm1314, %v4828, 0
        %v4893 = vsel %vm1314, %v4830, 0
        %v4895 = vsel %vm1314, %v4832, 0
        %v4897 = vsel %vm1314, %v4834, 0
        %v4899 = vsel %vm1314, %v4836, 0
        %v4901 = vsel %vm1314, %v4838, 0
        %v4903 = vsel %vm1314, %v4840, 0
        %v4905 = vsel %vm1314, %v4842, 0
        %v4907 = vsel %vm1314, %v4844, 0
        %v4909 = vsel %vm1314, %v4846, 0
        %v4911 = vsel %vm1314, %v4848, 0
        %v4913 = vsel %vm1314, %v4850, 0
        %v4915 = vsel %vm1314, %v4852, 0
        %4917 = vmatprep.subr.mxu0 0.0
        %4918 = vmatpush1.xpose.msra.mxu0 %v4885
        %4919 = vmatprep.subr.mxu0 0.0
        %4920 = vmatpush1.xpose.msra.mxu0 %v4887
        %4921 = vmatprep.subr.mxu0 0.0
        %4922 = vmatpush1.xpose.msra.mxu0 %v4889
        %4923 = vmatprep.subr.mxu0 0.0
        %4924 = vmatpush1.xpose.msra.mxu0 %v4891
        %4925 = vmatprep.subr.mxu0 0.0
        %4926 = vmatpush1.xpose.msra.mxu0 %v4893
        %4927 = vmatprep.subr.mxu0 0.0
        %4928 = vmatpush1.xpose.msra.mxu0 %v4895
        %4929 = vmatprep.subr.mxu0 0.0
        %4930 = vmatpush1.xpose.msra.mxu0 %v4897
        %4931 = vmatprep.subr.mxu0 0.0
        %4932 = vmatpush1.xpose.msra.mxu0 %v4899
        %4933 = vmatprep.subr.mxu0 0.0
        %4934 = vmatpush1.xpose.msra.mxu0 %v4901
        %4935 = vmatprep.subr.mxu0 0.0
        %4936 = vmatpush1.xpose.msra.mxu0 %v4903
        %4937 = vmatprep.subr.mxu0 0.0
        %4938 = vmatpush1.xpose.msra.mxu0 %v4905
        %4939 = vmatprep.subr.mxu0 0.0
        %4940 = vmatpush1.xpose.msra.mxu0 %v4907
        %4941 = vmatprep.subr.mxu0 0.0
        %4942 = vmatpush1.xpose.msra.mxu0 %v4909
        %4943 = vmatprep.subr.mxu0 0.0
        %4944 = vmatpush1.xpose.msra.mxu0 %v4911
        %4945 = vmatprep.subr.mxu0 0.0
        %4946 = vmatpush1.xpose.msra.mxu0 %v4913
        %4947 = vmatprep.subr.mxu0 0.0
        %4948 = vmatpush1.xpose.msra.mxu0 %v4915
        %4949 = vmatprep.subr.mxu0 0.0
        %4950 = vmatpush1.xpose.msra.mxu0 0.0
        %4951 = vmatprep.subr.mxu0 0.0
        %4952 = vmatpush1.xpose.msra.mxu0 0.0
        %4953 = vmatprep.subr.mxu0 0.0
        %4954 = vmatpush1.xpose.msra.mxu0 0.0
        %4955 = vmatprep.subr.mxu0 0.0
        %4956 = vmatpush1.xpose.msra.mxu0 0.0
        %4957 = vmatprep.subr.mxu0 0.0
        %4958 = vmatpush1.xpose.msra.mxu0 0.0
        %4959 = vmatprep.subr.mxu0 0.0
        %4960 = vmatpush1.xpose.msra.mxu0 0.0
        %4961 = vmatprep.subr.mxu0 0.0
        %4962 = vmatpush1.xpose.msra.mxu0 0.0
        %4963 = vmatprep.subr.mxu0 0.0
        %4964 = vmatpush1.xpose.msra.mxu0 0.0
        %4965 = vmatprep.subr.mxu0 0.0
        %4966 = vmatpush1.xpose.msra.mxu0 0.0
        %4967 = vmatprep.subr.mxu0 0.0
        %4968 = vmatpush1.xpose.msra.mxu0 0.0
        %4969 = vmatprep.subr.mxu0 0.0
        %4970 = vmatpush1.xpose.msra.mxu0 0.0
        %4971 = vmatprep.subr.mxu0 0.0
        %4972 = vmatpush1.xpose.msra.mxu0 0.0
        %4973 = vmatprep.subr.mxu0 0.0
        %4974 = vmatpush1.xpose.msra.mxu0 0.0
        %4975 = vmatprep.subr.mxu0 0.0
        %4976 = vmatpush1.xpose.msra.mxu0 0.0
        %4977 = vmatprep.subr.mxu0 0.0
        %4978 = vmatpush1.xpose.msra.mxu0 0.0
        %4979 = vmatprep.subr.mxu0 0.0
        %4980 = vmatpush1.xpose.msra.mxu0 0.0
        %4981 = vmatprep.mubr.f32.mxu0 0.0
        %4982 = vmatmul.mubr.f32.gmra.mrb[0].mxu0 %v4853
        %v4983 = vpop.f32.mrb[0].mxu0
        %v4984 = vadd.f32 %v4757, %v4983
        %v4985 = vpop.f32.mrb[0].mxu0
        %4986 = vmatprep.mubr.f32.mxu0 0.0
        %4987 = vmatmul.mubr.f32.gmra.mrb[0].mxu0 %v4855
        %v4988 = vpop.f32.mrb[0].mxu0
        %v4989 = vadd.f32 %v4758, %v4988
        %v4990 = vpop.f32.mrb[0].mxu0
        %4991 = vmatprep.mubr.f32.mxu0 0.0
        %4992 = vmatmul.mubr.f32.gmra.mrb[0].mxu0 %v4857
        %v4993 = vpop.f32.mrb[0].mxu0
        %v4994 = vadd.f32 %v4759, %v4993
        %v4995 = vpop.f32.mrb[0].mxu0
        %4996 = vmatprep.mubr.f32.mxu0 0.0
        %4997 = vmatmul.mubr.f32.gmra.mrb[0].mxu0 %v4859
        %v4998 = vpop.f32.mrb[0].mxu0
        %v4999 = vadd.f32 %v4760, %v4998
        %v5000 = vpop.f32.mrb[0].mxu0
        %5001 = vmatprep.mubr.f32.mxu0 0.0
        %5002 = vmatmul.mubr.f32.gmra.mrb[0].mxu0 %v4861
        %v5003 = vpop.f32.mrb[0].mxu0
        %v5004 = vadd.f32 %v4761, %v5003
        %v5005 = vpop.f32.mrb[0].mxu0
        %5006 = vmatprep.mubr.f32.mxu0 0.0
        %5007 = vmatmul.mubr.f32.gmra.mrb[0].mxu0 %v4863
        %v5008 = vpop.f32.mrb[0].mxu0
        %v5009 = vadd.f32 %v4762, %v5008
        %v5010 = vpop.f32.mrb[0].mxu0
        %5011 = vmatprep.mubr.f32.mxu0 0.0
        %5012 = vmatmul.mubr.f32.gmra.mrb[0].mxu0 %v4865
        %v5013 = vpop.f32.mrb[0].mxu0
        %v5014 = vadd.f32 %v4763, %v5013
        %v5015 = vpop.f32.mrb[0].mxu0
        %5016 = vmatprep.mubr.f32.mxu0 0.0
        %5017 = vmatmul.mubr.f32.gmra.mrb[0].mxu0 %v4867
        %v5018 = vpop.f32.mrb[0].mxu0
        %v5019 = vadd.f32 %v4764, %v5018
        %v5020 = vpop.f32.mrb[0].mxu0
        %5021 = vmatprep.mubr.f32.mxu0 0.0
        %5022 = vmatmul.mubr.f32.gmra.mrb[0].mxu0 %v4869
        %v5023 = vpop.f32.mrb[0].mxu0
        %v5024 = vadd.f32 %v4765, %v5023
        %v5025 = vpop.f32.mrb[0].mxu0
        %5026 = vmatprep.mubr.f32.mxu0 0.0
        %5027 = vmatmul.mubr.f32.gmra.mrb[0].mxu0 %v4871
        %v5028 = vpop.f32.mrb[0].mxu0
        %v5029 = vadd.f32 %v4766, %v5028
        %v5030 = vpop.f32.mrb[0].mxu0
        %5031 = vmatprep.mubr.f32.mxu0 0.0
        %5032 = vmatmul.mubr.f32.gmra.mrb[0].mxu0 %v4873
        %v5033 = vpop.f32.mrb[0].mxu0
        %v5034 = vadd.f32 %v4767, %v5033
        %v5035 = vpop.f32.mrb[0].mxu0
        %5036 = vmatprep.mubr.f32.mxu0 0.0
        %5037 = vmatmul.mubr.f32.gmra.mrb[0].mxu0 %v4875
        %v5038 = vpop.f32.mrb[0].mxu0
        %v5039 = vadd.f32 %v4768, %v5038
        %v5040 = vpop.f32.mrb[0].mxu0
        %5041 = vmatprep.mubr.f32.mxu0 0.0
        %5042 = vmatmul.mubr.f32.gmra.mrb[0].mxu0 %v4877
        %v5043 = vpop.f32.mrb[0].mxu0
        %v5044 = vadd.f32 %v4769, %v5043
        %v5045 = vpop.f32.mrb[0].mxu0
        %5046 = vmatprep.mubr.f32.mxu0 0.0
        %5047 = vmatmul.mubr.f32.gmra.mrb[0].mxu0 %v4879
        %v5048 = vpop.f32.mrb[0].mxu0
        %v5049 = vadd.f32 %v4770, %v5048
        %v5050 = vpop.f32.mrb[0].mxu0
        %5051 = vmatprep.mubr.f32.mxu0 0.0
        %5052 = vmatmul.mubr.f32.gmra.mrb[0].mxu0 %v4881
        %v5053 = vpop.f32.mrb[0].mxu0
        %v5054 = vadd.f32 %v4771, %v5053
        %v5055 = vpop.f32.mrb[0].mxu0
        %5056 = vmatprep.mubr.f32.mxu0 0.0
        %5057 = vmatmul.mubr.f32.gmra.mrb[0].mxu0 %v4883
        %v5058 = vpop.f32.mrb[0].mxu0
        %v5059 = vadd.f32 %v4772, %v5058
        %v5060 = vpop.f32.mrb[0].mxu0
        %5061 = vdwg.mxu0
        %v5062 = vmul.f32 %v4984, 1.442695
        %v5063 = vpow.pop %v5062
        %v5064 = vmul.f32 %v4989, 1.442695
        %v5065 = vpow.pop %v5064
        %v5066 = vmul.f32 %v4994, 1.442695
        %v5067 = vpow.pop %v5066
        %v5068 = vmul.f32 %v4999, 1.442695
        %v5069 = vpow.pop %v5068
        %v5070 = vmul.f32 %v5004, 1.442695
        %v5071 = vpow.pop %v5070
        %v5072 = vmul.f32 %v5009, 1.442695
        %v5073 = vpow.pop %v5072
        %v5074 = vmul.f32 %v5014, 1.442695
        %v5075 = vpow.pop %v5074
        %v5076 = vmul.f32 %v5019, 1.442695
        %v5077 = vpow.pop %v5076
        %v5078 = vmul.f32 %v5024, 1.442695
        %v5079 = vpow.pop %v5078
        %v5080 = vmul.f32 %v5029, 1.442695
        %v5081 = vpow.pop %v5080
        %v5082 = vmul.f32 %v5034, 1.442695
        %v5083 = vpow.pop %v5082
        %v5084 = vmul.f32 %v5039, 1.442695
        %v5085 = vpow.pop %v5084
        %v5086 = vmul.f32 %v5044, 1.442695
        %v5087 = vpow.pop %v5086
        %v5088 = vmul.f32 %v5049, 1.442695
        %v5089 = vpow.pop %v5088
        %v5090 = vmul.f32 %v5054, 1.442695
        %v5091 = vpow.pop %v5090
        %v5092 = vmul.f32 %v5059, 1.442695
        %v5093 = vpow.pop %v5092
        %5094 = vadd.xlane.f32.xlu0 %v5063
        %v5095 = vpop.xlane.xlu0 %5094
        %5096 = vadd.xlane.f32.xlu0 %v5065
        %v5097 = vpop.xlane.xlu0 %5096
        %5098 = vadd.xlane.f32.xlu0 %v5067
        %v5099 = vpop.xlane.xlu0 %5098
        %5100 = vadd.xlane.f32.xlu0 %v5069
        %v5101 = vpop.xlane.xlu0 %5100
        %5102 = vadd.xlane.f32.xlu0 %v5071
        %v5103 = vpop.xlane.xlu0 %5102
        %5104 = vadd.xlane.f32.xlu0 %v5073
        %v5105 = vpop.xlane.xlu0 %5104
        %5106 = vadd.xlane.f32.xlu0 %v5075
        %v5107 = vpop.xlane.xlu0 %5106
        %5108 = vadd.xlane.f32.xlu0 %v5077
        %v5109 = vpop.xlane.xlu0 %5108
        %5110 = vadd.xlane.f32.xlu0 %v5079
        %v5111 = vpop.xlane.xlu0 %5110
        %5112 = vadd.xlane.f32.xlu0 %v5081
        %v5113 = vpop.xlane.xlu0 %5112
        %5114 = vadd.xlane.f32.xlu0 %v5083
        %v5115 = vpop.xlane.xlu0 %5114
        %5116 = vadd.xlane.f32.xlu0 %v5085
        %v5117 = vpop.xlane.xlu0 %5116
        %5118 = vadd.xlane.f32.xlu0 %v5087
        %v5119 = vpop.xlane.xlu0 %5118
        %5120 = vadd.xlane.f32.xlu0 %v5089
        %v5121 = vpop.xlane.xlu0 %5120
        %5122 = vadd.xlane.f32.xlu0 %v5091
        %v5123 = vpop.xlane.xlu0 %5122
        %5124 = vadd.xlane.f32.xlu0 %v5093
        %v5125 = vpop.xlane.xlu0 %5124
        %5126 = vrot.lane.b32.xlu0 %v4741, 48
        %v5127 = vpop.permute.xlu0 %5126
        %5128 = vrot.lane.b32.xlu0 %v4742, 48
        %v5129 = vpop.permute.xlu0 %5128
        %5130 = vrot.lane.b32.xlu0 %v4743, 48
        %v5131 = vpop.permute.xlu0 %5130
        %5132 = vrot.lane.b32.xlu0 %v4744, 48
        %v5133 = vpop.permute.xlu0 %5132
        %5134 = vrot.lane.b32.xlu0 %v4745, 48
        %v5135 = vpop.permute.xlu0 %5134
        %5136 = vrot.lane.b32.xlu0 %v4746, 48
        %v5137 = vpop.permute.xlu0 %5136
        %5138 = vrot.lane.b32.xlu0 %v4747, 48
        %v5139 = vpop.permute.xlu0 %5138
        %5140 = vrot.lane.b32.xlu0 %v4748, 48
        %v5141 = vpop.permute.xlu0 %5140
        %5142 = vrot.lane.b32.xlu0 %v4749, 48
        %v5143 = vpop.permute.xlu0 %5142
        %5144 = vrot.lane.b32.xlu0 %v4750, 48
        %v5145 = vpop.permute.xlu0 %5144
        %5146 = vrot.lane.b32.xlu0 %v4751, 48
        %v5147 = vpop.permute.xlu0 %5146
        %5148 = vrot.lane.b32.xlu0 %v4752, 48
        %v5149 = vpop.permute.xlu0 %5148
        %5150 = vrot.lane.b32.xlu0 %v4753, 48
        %v5151 = vpop.permute.xlu0 %5150
        %5152 = vrot.lane.b32.xlu0 %v4754, 48
        %v5153 = vpop.permute.xlu0 %5152
        %5154 = vrot.lane.b32.xlu0 %v4755, 48
        %v5155 = vpop.permute.xlu0 %5154
        %5156 = vrot.lane.b32.xlu0 %v4756, 48
        %v5157 = vpop.permute.xlu0 %5156
        %5174 = vmatprep.subr.mxu0 0.0
        %5175 = vmatpush1.msra.mxu0 %v5127
        %5176 = vmatprep.subr.mxu0 0.0
        %5177 = vmatpush1.msra.mxu0 %v5129
        %5178 = vmatprep.subr.mxu0 0.0
        %5179 = vmatpush1.msra.mxu0 %v5131
        %5180 = vmatprep.subr.mxu0 0.0
        %5181 = vmatpush1.msra.mxu0 %v5133
        %5182 = vmatprep.subr.mxu0 0.0
        %5183 = vmatpush1.msra.mxu0 %v5135
        %5184 = vmatprep.subr.mxu0 0.0
        %5185 = vmatpush1.msra.mxu0 %v5137
        %5186 = vmatprep.subr.mxu0 0.0
        %5187 = vmatpush1.msra.mxu0 %v5139
        %5188 = vmatprep.subr.mxu0 0.0
        %5189 = vmatpush1.msra.mxu0 %v5141
        %5190 = vmatprep.subr.mxu0 0.0
        %5191 = vmatpush1.msra.mxu0 %v5143
        %5192 = vmatprep.subr.mxu0 0.0
        %5193 = vmatpush1.msra.mxu0 %v5145
        %5194 = vmatprep.subr.mxu0 0.0
        %5195 = vmatpush1.msra.mxu0 %v5147
        %5196 = vmatprep.subr.mxu0 0.0
        %5197 = vmatpush1.msra.mxu0 %v5149
        %5198 = vmatprep.subr.mxu0 0.0
        %5199 = vmatpush1.msra.mxu0 %v5151
        %5200 = vmatprep.subr.mxu0 0.0
        %5201 = vmatpush1.msra.mxu0 %v5153
        %5202 = vmatprep.subr.mxu0 0.0
        %5203 = vmatpush1.msra.mxu0 %v5155
        %5204 = vmatprep.subr.mxu0 0.0
        %5205 = vmatpush1.msra.mxu0 %v5157
        %5206 = vmatprep.subr.mxu0 0.0
        %5207 = vmatpush1.msra.mxu0 0.0
        %5208 = vmatprep.subr.mxu0 0.0
        %5209 = vmatpush1.msra.mxu0 0.0
        %5210 = vmatprep.subr.mxu0 0.0
        %5211 = vmatpush1.msra.mxu0 0.0
        %5212 = vmatprep.subr.mxu0 0.0
        %5213 = vmatpush1.msra.mxu0 0.0
        %5214 = vmatprep.subr.mxu0 0.0
        %5215 = vmatpush1.msra.mxu0 0.0
        %5216 = vmatprep.subr.mxu0 0.0
        %5217 = vmatpush1.msra.mxu0 0.0
        %5218 = vmatprep.subr.mxu0 0.0
        %5219 = vmatpush1.msra.mxu0 0.0
        %5220 = vmatprep.subr.mxu0 0.0
        %5221 = vmatpush1.msra.mxu0 0.0
        %5222 = vmatprep.subr.mxu0 0.0
        %5223 = vmatpush1.msra.mxu0 0.0
        %5224 = vmatprep.subr.mxu0 0.0
        %5225 = vmatpush1.msra.mxu0 0.0
        %5226 = vmatprep.subr.mxu0 0.0
        %5227 = vmatpush1.msra.mxu0 0.0
        %5228 = vmatprep.subr.mxu0 0.0
        %5229 = vmatpush1.msra.mxu0 0.0
        %5230 = vmatprep.subr.mxu0 0.0
        %5231 = vmatpush1.msra.mxu0 0.0
        %5232 = vmatprep.subr.mxu0 0.0
        %5233 = vmatpush1.msra.mxu0 0.0
        %5234 = vmatprep.subr.mxu0 0.0
        %5235 = vmatpush1.msra.mxu0 0.0
        %5236 = vmatprep.subr.mxu0 0.0
        %5237 = vmatpush1.msra.mxu0 0.0
        %5238 = vmatprep.mubr.f32.mxu0 0.0
        %5239 = vmatmul.mubr.f32.gmra.mrb[0].mxu0 %v5063
        %v5240 = vpop.f32.mrb[0].mxu0
        %v5241 = vadd.f32 0.0, %v5240
        %v5242 = vpop.f32.mrb[0].mxu0
        %5243 = vmatprep.mubr.f32.mxu0 0.0
        %5244 = vmatmul.mubr.f32.gmra.mrb[0].mxu0 %v5065
        %v5245 = vpop.f32.mrb[0].mxu0
        %v5246 = vadd.f32 0.0, %v5245
        %v5247 = vpop.f32.mrb[0].mxu0
        %5248 = vmatprep.mubr.f32.mxu0 0.0
        %5249 = vmatmul.mubr.f32.gmra.mrb[0].mxu0 %v5067
        %v5250 = vpop.f32.mrb[0].mxu0
        %v5251 = vadd.f32 0.0, %v5250
        %v5252 = vpop.f32.mrb[0].mxu0
        %5253 = vmatprep.mubr.f32.mxu0 0.0
        %5254 = vmatmul.mubr.f32.gmra.mrb[0].mxu0 %v5069
        %v5255 = vpop.f32.mrb[0].mxu0
        %v5256 = vadd.f32 0.0, %v5255
        %v5257 = vpop.f32.mrb[0].mxu0
        %5258 = vmatprep.mubr.f32.mxu0 0.0
        %5259 = vmatmul.mubr.f32.gmra.mrb[0].mxu0 %v5071
        %v5260 = vpop.f32.mrb[0].mxu0
        %v5261 = vadd.f32 0.0, %v5260
        %v5262 = vpop.f32.mrb[0].mxu0
        %5263 = vmatprep.mubr.f32.mxu0 0.0
        %5264 = vmatmul.mubr.f32.gmra.mrb[0].mxu0 %v5073
        %v5265 = vpop.f32.mrb[0].mxu0
        %v5266 = vadd.f32 0.0, %v5265
        %v5267 = vpop.f32.mrb[0].mxu0
        %5268 = vmatprep.mubr.f32.mxu0 0.0
        %5269 = vmatmul.mubr.f32.gmra.mrb[0].mxu0 %v5075
        %v5270 = vpop.f32.mrb[0].mxu0
        %v5271 = vadd.f32 0.0, %v5270
        %v5272 = vpop.f32.mrb[0].mxu0
        %5273 = vmatprep.mubr.f32.mxu0 0.0
        %5274 = vmatmul.mubr.f32.gmra.mrb[0].mxu0 %v5077
        %v5275 = vpop.f32.mrb[0].mxu0
        %v5276 = vadd.f32 0.0, %v5275
        %v5277 = vpop.f32.mrb[0].mxu0
        %5278 = vmatprep.mubr.f32.mxu0 0.0
        %5279 = vmatmul.mubr.f32.gmra.mrb[0].mxu0 %v5079
        %v5280 = vpop.f32.mrb[0].mxu0
        %v5281 = vadd.f32 0.0, %v5280
        %v5282 = vpop.f32.mrb[0].mxu0
        %5283 = vmatprep.mubr.f32.mxu0 0.0
        %5284 = vmatmul.mubr.f32.gmra.mrb[0].mxu0 %v5081
        %v5285 = vpop.f32.mrb[0].mxu0
        %v5286 = vadd.f32 0.0, %v5285
        %v5287 = vpop.f32.mrb[0].mxu0
        %5288 = vmatprep.mubr.f32.mxu0 0.0
        %5289 = vmatmul.mubr.f32.gmra.mrb[0].mxu0 %v5083
        %v5290 = vpop.f32.mrb[0].mxu0
        %v5291 = vadd.f32 0.0, %v5290
        %v5292 = vpop.f32.mrb[0].mxu0
        %5293 = vmatprep.mubr.f32.mxu0 0.0
        %5294 = vmatmul.mubr.f32.gmra.mrb[0].mxu0 %v5085
        %v5295 = vpop.f32.mrb[0].mxu0
        %v5296 = vadd.f32 0.0, %v5295
        %v5297 = vpop.f32.mrb[0].mxu0
        %5298 = vmatprep.mubr.f32.mxu0 0.0
        %5299 = vmatmul.mubr.f32.gmra.mrb[0].mxu0 %v5087
        %v5300 = vpop.f32.mrb[0].mxu0
        %v5301 = vadd.f32 0.0, %v5300
        %v5302 = vpop.f32.mrb[0].mxu0
        %5303 = vmatprep.mubr.f32.mxu0 0.0
        %5304 = vmatmul.mubr.f32.gmra.mrb[0].mxu0 %v5089
        %v5305 = vpop.f32.mrb[0].mxu0
        %v5306 = vadd.f32 0.0, %v5305
        %v5307 = vpop.f32.mrb[0].mxu0
        %5308 = vmatprep.mubr.f32.mxu0 0.0
        %5309 = vmatmul.mubr.f32.gmra.mrb[0].mxu0 %v5091
        %v5310 = vpop.f32.mrb[0].mxu0
        %v5311 = vadd.f32 0.0, %v5310
        %v5312 = vpop.f32.mrb[0].mxu0
        %5313 = vmatprep.mubr.f32.mxu0 0.0
        %5314 = vmatmul.mubr.f32.gmra.mrb[0].mxu0 %v5093
        %v5315 = vpop.f32.mrb[0].mxu0
        %v5316 = vadd.f32 0.0, %v5315
        %v5317 = vpop.f32.mrb[0].mxu0
        %5318 = vdwg.mxu0
        %v5319 = vrcp.pop %v5095
        %v5320 = vrcp.pop %v5097
        %v5321 = vrcp.pop %v5099
        %v5322 = vrcp.pop %v5101
        %v5323 = vrcp.pop %v5103
        %v5324 = vrcp.pop %v5105
        %v5325 = vrcp.pop %v5107
        %v5326 = vrcp.pop %v5109
        %v5327 = vrcp.pop %v5111
        %v5328 = vrcp.pop %v5113
        %v5329 = vrcp.pop %v5115
        %v5330 = vrcp.pop %v5117
        %v5331 = vrcp.pop %v5119
        %v5332 = vrcp.pop %v5121
        %v5333 = vrcp.pop %v5123
        %v5334 = vrcp.pop %v5125
        %v5335 = vmul.f32 %v5241, %v5319
        %v5336 = vmul.f32 %v5246, %v5320
        %v5337 = vmul.f32 %v5251, %v5321
        %v5338 = vmul.f32 %v5256, %v5322
        %v5339 = vmul.f32 %v5261, %v5323
        %v5340 = vmul.f32 %v5266, %v5324
        %v5341 = vmul.f32 %v5271, %v5325
        %v5342 = vmul.f32 %v5276, %v5326
        %v5343 = vmul.f32 %v5281, %v5327
        %v5344 = vmul.f32 %v5286, %v5328
        %v5345 = vmul.f32 %v5291, %v5329
        %v5346 = vmul.f32 %v5296, %v5330
        %v5347 = vmul.f32 %v5301, %v5331
        %v5348 = vmul.f32 %v5306, %v5332
        %v5349 = vmul.f32 %v5311, %v5333
        %v5350 = vmul.f32 %v5316, %v5334
        %5367 = vrot.lane.b32.xlu0 %v5335, 16
        %v5368 = vpop.permute.xlu0 %5367
        %5369 = vrot.lane.b32.xlu0 %v5336, 16
        %v5370 = vpop.permute.xlu0 %5369
        %5371 = vrot.lane.b32.xlu0 %v5337, 16
        %v5372 = vpop.permute.xlu0 %5371
        %5373 = vrot.lane.b32.xlu0 %v5338, 16
        %v5374 = vpop.permute.xlu0 %5373
        %5375 = vrot.lane.b32.xlu0 %v5339, 16
        %v5376 = vpop.permute.xlu0 %5375
        %5377 = vrot.lane.b32.xlu0 %v5340, 16
        %v5378 = vpop.permute.xlu0 %5377
        %5379 = vrot.lane.b32.xlu0 %v5341, 16
        %v5380 = vpop.permute.xlu0 %5379
        %5381 = vrot.lane.b32.xlu0 %v5342, 16
        %v5382 = vpop.permute.xlu0 %5381
        %5383 = vrot.lane.b32.xlu0 %v5343, 16
        %v5384 = vpop.permute.xlu0 %5383
        %5385 = vrot.lane.b32.xlu0 %v5344, 16
        %v5386 = vpop.permute.xlu0 %5385
        %5387 = vrot.lane.b32.xlu0 %v5345, 16
        %v5388 = vpop.permute.xlu0 %5387
        %5389 = vrot.lane.b32.xlu0 %v5346, 16
        %v5390 = vpop.permute.xlu0 %5389
        %5391 = vrot.lane.b32.xlu0 %v5347, 16
        %v5392 = vpop.permute.xlu0 %5391
        %5393 = vrot.lane.b32.xlu0 %v5348, 16
        %v5394 = vpop.permute.xlu0 %5393
        %5395 = vrot.lane.b32.xlu0 %v5349, 16
        %v5396 = vpop.permute.xlu0 %5395
        %5397 = vrot.lane.b32.xlu0 %v5350, 16
        %v5398 = vpop.permute.xlu0 %5397
        %5415 = vst.msk [vmem:[#allocation4] sm:$0xff] %vm2503, %v5368
        %5416 = vst.msk [vmem:[#allocation4 + $0x8] sm:$0xff] %vm2503, %v5370
        %5417 = vst.msk [vmem:[#allocation4 + $0x10] sm:$0xff] %vm2503, %v5372
        %5418 = vst.msk [vmem:[#allocation4 + $0x18] sm:$0xff] %vm2503, %v5374
        %5419 = vst.msk [vmem:[#allocation4 + $0x20] sm:$0xff] %vm2503, %v5376
        %5420 = vst.msk [vmem:[#allocation4 + $0x28] sm:$0xff] %vm2503, %v5378
        %5421 = vst.msk [vmem:[#allocation4 + $0x30] sm:$0xff] %vm2503, %v5380
        %5422 = vst.msk [vmem:[#allocation4 + $0x38] sm:$0xff] %vm2503, %v5382
        %5423 = vst.msk [vmem:[#allocation4 + $0x40] sm:$0xff] %vm2503, %v5384
        %5424 = vst.msk [vmem:[#allocation4 + $0x48] sm:$0xff] %vm2503, %v5386
        %5425 = vst.msk [vmem:[#allocation4 + $0x50] sm:$0xff] %vm2503, %v5388
        %5426 = vst.msk [vmem:[#allocation4 + $0x58] sm:$0xff] %vm2503, %v5390
        %5427 = vst.msk [vmem:[#allocation4 + $0x60] sm:$0xff] %vm2503, %v5392
        %5428 = vst.msk [vmem:[#allocation4 + $0x68] sm:$0xff] %vm2503, %v5394
        %5429 = vst.msk [vmem:[#allocation4 + $0x70] sm:$0xff] %vm2503, %v5396
        %5430 = vst.msk [vmem:[#allocation4 + $0x78] sm:$0xff] %vm2503, %v5398
        %v5431 = vld [vmem:[#allocation4] sm:$0xff]
        %v5432 = vld [vmem:[#allocation4 + $0x8] sm:$0xff]
        %v5433 = vld [vmem:[#allocation4 + $0x10] sm:$0xff]
        %v5434 = vld [vmem:[#allocation4 + $0x18] sm:$0xff]
        %v5435 = vld [vmem:[#allocation4 + $0x20] sm:$0xff]
        %v5436 = vld [vmem:[#allocation4 + $0x28] sm:$0xff]
        %v5437 = vld [vmem:[#allocation4 + $0x30] sm:$0xff]
        %v5438 = vld [vmem:[#allocation4 + $0x38] sm:$0xff]
        %v5439 = vld [vmem:[#allocation4 + $0x40] sm:$0xff]
        %v5440 = vld [vmem:[#allocation4 + $0x48] sm:$0xff]
        %v5441 = vld [vmem:[#allocation4 + $0x50] sm:$0xff]
        %v5442 = vld [vmem:[#allocation4 + $0x58] sm:$0xff]
        %v5443 = vld [vmem:[#allocation4 + $0x60] sm:$0xff]
        %v5444 = vld [vmem:[#allocation4 + $0x68] sm:$0xff]
        %v5445 = vld [vmem:[#allocation4 + $0x70] sm:$0xff]
        %v5446 = vld [vmem:[#allocation4 + $0x78] sm:$0xff]
        %s5447 = scalar_lea.vmem %s7, 32
        %v5448 = vld [vmem:[%s5447] sm:$0xff]
        %v5449 = vld [vmem:[%s5447 + $0x8] sm:$0xff]
        %v5450 = vld [vmem:[%s5447 + $0x10] sm:$0xff]
        %v5451 = vld [vmem:[%s5447 + $0x18] sm:$0xff]
        %v5453 = vsel %vm737, %v5431, 0
        %v5456 = vsel %vm737, %v5432, 0
        %v5459 = vsel %vm737, %v5433, 0
        %v5462 = vsel %vm737, %v5434, 0
        %v5465 = vsel %vm737, %v5435, 0
        %v5468 = vsel %vm737, %v5436, 0
        %v5471 = vsel %vm737, %v5437, 0
        %v5474 = vsel %vm737, %v5438, 0
        %v5477 = vsel %vm737, %v5439, 0
        %v5480 = vsel %vm737, %v5440, 0
        %v5483 = vsel %vm737, %v5441, 0
        %v5486 = vsel %vm737, %v5442, 0
        %v5489 = vsel %vm737, %v5443, 0
        %v5492 = vsel %vm737, %v5444, 0
        %v5495 = vsel %vm737, %v5445, 0
        %v5498 = vsel %vm737, %v5446, 0
        %5500 = vmatprep.subr.mxu0 0.0
        %5501 = vmatpush1.msra.mxu0 %v5448
        %5502 = vmatprep.subr.mxu0 0.0
        %5503 = vmatpush1.msra.mxu0 %v5449
        %5504 = vmatprep.subr.mxu0 0.0
        %5505 = vmatpush1.msra.mxu0 %v5450
        %5506 = vmatprep.subr.mxu0 0.0
        %5507 = vmatpush1.msra.mxu0 %v5451
        %5508 = vmatprep.subr.mxu0 0.0
        %5509 = vmatpush1.msra.mxu0 0.0
        %5510 = vmatprep.subr.mxu0 0.0
        %5511 = vmatpush1.msra.mxu0 0.0
        %5512 = vmatprep.subr.mxu0 0.0
        %5513 = vmatpush1.msra.mxu0 0.0
        %5514 = vmatprep.subr.mxu0 0.0
        %5515 = vmatpush1.msra.mxu0 0.0
        %5516 = vmatprep.subr.mxu0 0.0
        %5517 = vmatpush1.msra.mxu0 0.0
        %5518 = vmatprep.subr.mxu0 0.0
        %5519 = vmatpush1.msra.mxu0 0.0
        %5520 = vmatprep.subr.mxu0 0.0
        %5521 = vmatpush1.msra.mxu0 0.0
        %5522 = vmatprep.subr.mxu0 0.0
        %5523 = vmatpush1.msra.mxu0 0.0
        %5524 = vmatprep.subr.mxu0 0.0
        %5525 = vmatpush1.msra.mxu0 0.0
        %5526 = vmatprep.subr.mxu0 0.0
        %5527 = vmatpush1.msra.mxu0 0.0
        %5528 = vmatprep.subr.mxu0 0.0
        %5529 = vmatpush1.msra.mxu0 0.0
        %5530 = vmatprep.subr.mxu0 0.0
        %5531 = vmatpush1.msra.mxu0 0.0
        %5532 = vmatprep.subr.mxu0 0.0
        %5533 = vmatpush1.msra.mxu0 0.0
        %5534 = vmatprep.subr.mxu0 0.0
        %5535 = vmatpush1.msra.mxu0 0.0
        %5536 = vmatprep.subr.mxu0 0.0
        %5537 = vmatpush1.msra.mxu0 0.0
        %5538 = vmatprep.subr.mxu0 0.0
        %5539 = vmatpush1.msra.mxu0 0.0
        %5540 = vmatprep.subr.mxu0 0.0
        %5541 = vmatpush1.msra.mxu0 0.0
        %5542 = vmatprep.subr.mxu0 0.0
        %5543 = vmatpush1.msra.mxu0 0.0
        %5544 = vmatprep.subr.mxu0 0.0
        %5545 = vmatpush1.msra.mxu0 0.0
        %5546 = vmatprep.subr.mxu0 0.0
        %5547 = vmatpush1.msra.mxu0 0.0
        %5548 = vmatprep.subr.mxu0 0.0
        %5549 = vmatpush1.msra.mxu0 0.0
        %5550 = vmatprep.subr.mxu0 0.0
        %5551 = vmatpush1.msra.mxu0 0.0
        %5552 = vmatprep.subr.mxu0 0.0
        %5553 = vmatpush1.msra.mxu0 0.0
        %5554 = vmatprep.subr.mxu0 0.0
        %5555 = vmatpush1.msra.mxu0 0.0
        %5556 = vmatprep.subr.mxu0 0.0
        %5557 = vmatpush1.msra.mxu0 0.0
        %5558 = vmatprep.subr.mxu0 0.0
        %5559 = vmatpush1.msra.mxu0 0.0
        %5560 = vmatprep.subr.mxu0 0.0
        %5561 = vmatpush1.msra.mxu0 0.0
        %5562 = vmatprep.subr.mxu0 0.0
        %5563 = vmatpush1.msra.mxu0 0.0
        %5564 = vmatprep.mubr.f32.mxu0 0.0
        %5565 = vmatmul.mubr.f32.gmra.mrb[0].mxu0 %v5453
        %v5566 = vpop.f32.mrb[0].mxu0
        %v5567 = vadd.f32 0.0, %v5566
        %v5568 = vpop.f32.mrb[0].mxu0
        %5569 = vmatprep.mubr.f32.mxu0 0.0
        %5570 = vmatmul.mubr.f32.gmra.mrb[0].mxu0 %v5456
        %v5571 = vpop.f32.mrb[0].mxu0
        %v5572 = vadd.f32 0.0, %v5571
        %v5573 = vpop.f32.mrb[0].mxu0
        %5574 = vmatprep.mubr.f32.mxu0 0.0
        %5575 = vmatmul.mubr.f32.gmra.mrb[0].mxu0 %v5459
        %v5576 = vpop.f32.mrb[0].mxu0
        %v5577 = vadd.f32 0.0, %v5576
        %v5578 = vpop.f32.mrb[0].mxu0
        %5579 = vmatprep.mubr.f32.mxu0 0.0
        %5580 = vmatmul.mubr.f32.gmra.mrb[0].mxu0 %v5462
        %v5581 = vpop.f32.mrb[0].mxu0
        %v5582 = vadd.f32 0.0, %v5581
        %v5583 = vpop.f32.mrb[0].mxu0
        %5584 = vmatprep.mubr.f32.mxu0 0.0
        %5585 = vmatmul.mubr.f32.gmra.mrb[0].mxu0 %v5465
        %v5586 = vpop.f32.mrb[0].mxu0
        %v5587 = vadd.f32 0.0, %v5586
        %v5588 = vpop.f32.mrb[0].mxu0
        %5589 = vmatprep.mubr.f32.mxu0 0.0
        %5590 = vmatmul.mubr.f32.gmra.mrb[0].mxu0 %v5468
        %v5591 = vpop.f32.mrb[0].mxu0
        %v5592 = vadd.f32 0.0, %v5591
        %v5593 = vpop.f32.mrb[0].mxu0
        %5594 = vmatprep.mubr.f32.mxu0 0.0
        %5595 = vmatmul.mubr.f32.gmra.mrb[0].mxu0 %v5471
        %v5596 = vpop.f32.mrb[0].mxu0
        %v5597 = vadd.f32 0.0, %v5596
        %v5598 = vpop.f32.mrb[0].mxu0
        %5599 = vmatprep.mubr.f32.mxu0 0.0
        %5600 = vmatmul.mubr.f32.gmra.mrb[0].mxu0 %v5474
        %v5601 = vpop.f32.mrb[0].mxu0
        %v5602 = vadd.f32 0.0, %v5601
        %v5603 = vpop.f32.mrb[0].mxu0
        %5604 = vmatprep.mubr.f32.mxu0 0.0
        %5605 = vmatmul.mubr.f32.gmra.mrb[0].mxu0 %v5477
        %v5606 = vpop.f32.mrb[0].mxu0
        %v5607 = vadd.f32 0.0, %v5606
        %v5608 = vpop.f32.mrb[0].mxu0
        %5609 = vmatprep.mubr.f32.mxu0 0.0
        %5610 = vmatmul.mubr.f32.gmra.mrb[0].mxu0 %v5480
        %v5611 = vpop.f32.mrb[0].mxu0
        %v5612 = vadd.f32 0.0, %v5611
        %v5613 = vpop.f32.mrb[0].mxu0
        %5614 = vmatprep.mubr.f32.mxu0 0.0
        %5615 = vmatmul.mubr.f32.gmra.mrb[0].mxu0 %v5483
        %v5616 = vpop.f32.mrb[0].mxu0
        %v5617 = vadd.f32 0.0, %v5616
        %v5618 = vpop.f32.mrb[0].mxu0
        %5619 = vmatprep.mubr.f32.mxu0 0.0
        %5620 = vmatmul.mubr.f32.gmra.mrb[0].mxu0 %v5486
        %v5621 = vpop.f32.mrb[0].mxu0
        %v5622 = vadd.f32 0.0, %v5621
        %v5623 = vpop.f32.mrb[0].mxu0
        %5624 = vmatprep.mubr.f32.mxu0 0.0
        %5625 = vmatmul.mubr.f32.gmra.mrb[0].mxu0 %v5489
        %v5626 = vpop.f32.mrb[0].mxu0
        %v5627 = vadd.f32 0.0, %v5626
        %v5628 = vpop.f32.mrb[0].mxu0
        %5629 = vmatprep.mubr.f32.mxu0 0.0
        %5630 = vmatmul.mubr.f32.gmra.mrb[0].mxu0 %v5492
        %v5631 = vpop.f32.mrb[0].mxu0
        %v5632 = vadd.f32 0.0, %v5631
        %v5633 = vpop.f32.mrb[0].mxu0
        %5634 = vmatprep.mubr.f32.mxu0 0.0
        %5635 = vmatmul.mubr.f32.gmra.mrb[0].mxu0 %v5495
        %v5636 = vpop.f32.mrb[0].mxu0
        %v5637 = vadd.f32 0.0, %v5636
        %v5638 = vpop.f32.mrb[0].mxu0
        %5639 = vmatprep.mubr.f32.mxu0 0.0
        %5640 = vmatmul.mubr.f32.gmra.mrb[0].mxu0 %v5498
        %v5641 = vpop.f32.mrb[0].mxu0
        %v5642 = vadd.f32 0.0, %v5641
        %v5643 = vpop.f32.mrb[0].mxu0
        %5644 = vdwg.mxu0
        %v5645 = vld [vmem:[#allocation2] sm:$0xff]
        %v5646 = vld [vmem:[#allocation2 + $0x8] sm:$0xff]
        %v5647 = vld [vmem:[#allocation2 + $0x10] sm:$0xff]
        %v5648 = vld [vmem:[#allocation2 + $0x18] sm:$0xff]
        %v5649 = vld [vmem:[#allocation2 + $0x20] sm:$0xff]
        %v5650 = vld [vmem:[#allocation2 + $0x28] sm:$0xff]
        %v5651 = vld [vmem:[#allocation2 + $0x30] sm:$0xff]
        %v5652 = vld [vmem:[#allocation2 + $0x38] sm:$0xff]
        %v5653 = vld [vmem:[#allocation2 + $0x40] sm:$0xff]
        %v5654 = vld [vmem:[#allocation2 + $0x48] sm:$0xff]
        %v5655 = vld [vmem:[#allocation2 + $0x50] sm:$0xff]
        %v5656 = vld [vmem:[#allocation2 + $0x58] sm:$0xff]
        %v5657 = vld [vmem:[#allocation2 + $0x60] sm:$0xff]
        %v5658 = vld [vmem:[#allocation2 + $0x68] sm:$0xff]
        %v5659 = vld [vmem:[#allocation2 + $0x70] sm:$0xff]
        %v5660 = vld [vmem:[#allocation2 + $0x78] sm:$0xff]
        %v5661 = vadd.f32 %v5645, %v5567
        %v5662 = vadd.f32 %v5646, %v5572
        %v5663 = vadd.f32 %v5647, %v5577
        %v5664 = vadd.f32 %v5648, %v5582
        %v5665 = vadd.f32 %v5649, %v5587
        %v5666 = vadd.f32 %v5650, %v5592
        %v5667 = vadd.f32 %v5651, %v5597
        %v5668 = vadd.f32 %v5652, %v5602
        %v5669 = vadd.f32 %v5653, %v5607
        %v5670 = vadd.f32 %v5654, %v5612
        %v5671 = vadd.f32 %v5655, %v5617
        %v5672 = vadd.f32 %v5656, %v5622
        %v5673 = vadd.f32 %v5657, %v5627
        %v5674 = vadd.f32 %v5658, %v5632
        %v5675 = vadd.f32 %v5659, %v5637
        %v5676 = vadd.f32 %v5660, %v5642
        %v5677 = vlaneseq
        %v5678 = vshrl.u32 %v5677, 7
        %v5679 = vsub.s32 4, %v5678
        %v5680 = vrot.slane %v3668, %v5679
        %v5681 = vadd.f32 %v5661, %v5680
        %v5682 = vadd.f32 %v5662, %v5680
        %v5683 = vadd.f32 %v5663, %v5680
        %v5684 = vadd.f32 %v5664, %v5680
        %v5685 = vadd.f32 %v5665, %v5680
        %v5686 = vadd.f32 %v5666, %v5680
        %v5687 = vadd.f32 %v5667, %v5680
        %v5688 = vadd.f32 %v5668, %v5680
        %v5689 = vadd.f32 %v5669, %v5680
        %v5690 = vadd.f32 %v5670, %v5680
        %v5691 = vadd.f32 %v5671, %v5680
        %v5692 = vadd.f32 %v5672, %v5680
        %v5693 = vadd.f32 %v5673, %v5680
        %v5694 = vadd.f32 %v5674, %v5680
        %v5695 = vadd.f32 %v5675, %v5680
        %v5696 = vadd.f32 %v5676, %v5680
        %5697 = vst.msk [vmem:[#allocation2] sm:$0xff] %vm737, %v5681
        %5698 = vst.msk [vmem:[#allocation2 + $0x8] sm:$0xff] %vm737, %v5682
        %5699 = vst.msk [vmem:[#allocation2 + $0x10] sm:$0xff] %vm737, %v5683
        %5700 = vst.msk [vmem:[#allocation2 + $0x18] sm:$0xff] %vm737, %v5684
        %5701 = vst.msk [vmem:[#allocation2 + $0x20] sm:$0xff] %vm737, %v5685
        %5702 = vst.msk [vmem:[#allocation2 + $0x28] sm:$0xff] %vm737, %v5686
        %5703 = vst.msk [vmem:[#allocation2 + $0x30] sm:$0xff] %vm737, %v5687
        %5704 = vst.msk [vmem:[#allocation2 + $0x38] sm:$0xff] %vm737, %v5688
        %5705 = vst.msk [vmem:[#allocation2 + $0x40] sm:$0xff] %vm737, %v5689
        %5706 = vst.msk [vmem:[#allocation2 + $0x48] sm:$0xff] %vm737, %v5690
        %5707 = vst.msk [vmem:[#allocation2 + $0x50] sm:$0xff] %vm737, %v5691
        %5708 = vst.msk [vmem:[#allocation2 + $0x58] sm:$0xff] %vm737, %v5692
        %5709 = vst.msk [vmem:[#allocation2 + $0x60] sm:$0xff] %vm737, %v5693
        %5710 = vst.msk [vmem:[#allocation2 + $0x68] sm:$0xff] %vm737, %v5694
        %5711 = vst.msk [vmem:[#allocation2 + $0x70] sm:$0xff] %vm737, %v5695
        %5712 = vst.msk [vmem:[#allocation2 + $0x78] sm:$0xff] %vm737, %v5696
        %v5713 = vld [vmem:[#allocation2] sm:$0xff]
        %v5714 = vld [vmem:[#allocation2 + $0x8] sm:$0xff]
        %v5715 = vld [vmem:[#allocation2 + $0x10] sm:$0xff]
        %v5716 = vld [vmem:[#allocation2 + $0x18] sm:$0xff]
        %v5717 = vld [vmem:[#allocation2 + $0x20] sm:$0xff]
        %v5718 = vld [vmem:[#allocation2 + $0x28] sm:$0xff]
        %v5719 = vld [vmem:[#allocation2 + $0x30] sm:$0xff]
        %v5720 = vld [vmem:[#allocation2 + $0x38] sm:$0xff]
        %v5721 = vld [vmem:[#allocation2 + $0x40] sm:$0xff]
        %v5722 = vld [vmem:[#allocation2 + $0x48] sm:$0xff]
        %v5723 = vld [vmem:[#allocation2 + $0x50] sm:$0xff]
        %v5724 = vld [vmem:[#allocation2 + $0x58] sm:$0xff]
        %v5725 = vld [vmem:[#allocation2 + $0x60] sm:$0xff]
        %v5726 = vld [vmem:[#allocation2 + $0x68] sm:$0xff]
        %v5727 = vld [vmem:[#allocation2 + $0x70] sm:$0xff]
        %v5728 = vld [vmem:[#allocation2 + $0x78] sm:$0xff]
        %v5729 = vsel %vm737, %v5713, 0.0
        %5730 = vadd.xlane.f32.xlu0 %v5729
        %v5731 = vpop.xlane.xlu0 %5730
        %v5732 = vsel %vm737, %v5714, 0.0
        %5733 = vadd.xlane.f32.xlu0 %v5732
        %v5734 = vpop.xlane.xlu0 %5733
        %v5735 = vsel %vm737, %v5715, 0.0
        %5736 = vadd.xlane.f32.xlu0 %v5735
        %v5737 = vpop.xlane.xlu0 %5736
        %v5738 = vsel %vm737, %v5716, 0.0
        %5739 = vadd.xlane.f32.xlu0 %v5738
        %v5740 = vpop.xlane.xlu0 %5739
        %v5741 = vsel %vm737, %v5717, 0.0
        %5742 = vadd.xlane.f32.xlu0 %v5741
        %v5743 = vpop.xlane.xlu0 %5742
        %v5744 = vsel %vm737, %v5718, 0.0
        %5745 = vadd.xlane.f32.xlu0 %v5744
        %v5746 = vpop.xlane.xlu0 %5745
        %v5747 = vsel %vm737, %v5719, 0.0
        %5748 = vadd.xlane.f32.xlu0 %v5747
        %v5749 = vpop.xlane.xlu0 %5748
        %v5750 = vsel %vm737, %v5720, 0.0
        %5751 = vadd.xlane.f32.xlu0 %v5750
        %v5752 = vpop.xlane.xlu0 %5751
        %v5753 = vsel %vm737, %v5721, 0.0
        %5754 = vadd.xlane.f32.xlu0 %v5753
        %v5755 = vpop.xlane.xlu0 %5754
        %v5756 = vsel %vm737, %v5722, 0.0
        %5757 = vadd.xlane.f32.xlu0 %v5756
        %v5758 = vpop.xlane.xlu0 %5757
        %v5759 = vsel %vm737, %v5723, 0.0
        %5760 = vadd.xlane.f32.xlu0 %v5759
        %v5761 = vpop.xlane.xlu0 %5760
        %v5762 = vsel %vm737, %v5724, 0.0
        %5763 = vadd.xlane.f32.xlu0 %v5762
        %v5764 = vpop.xlane.xlu0 %5763
        %v5765 = vsel %vm737, %v5725, 0.0
        %5766 = vadd.xlane.f32.xlu0 %v5765
        %v5767 = vpop.xlane.xlu0 %5766
        %v5768 = vsel %vm737, %v5726, 0.0
        %5769 = vadd.xlane.f32.xlu0 %v5768
        %v5770 = vpop.xlane.xlu0 %5769
        %v5771 = vsel %vm737, %v5727, 0.0
        %5772 = vadd.xlane.f32.xlu0 %v5771
        %v5773 = vpop.xlane.xlu0 %5772
        %v5774 = vsel %vm737, %v5728, 0.0
        %5775 = vadd.xlane.f32.xlu0 %v5774
        %v5776 = vpop.xlane.xlu0 %5775
        %v5777 = vmul.f32 %v5731, %v819
        %v5778 = vmul.f32 %v5734, %v819
        %v5779 = vmul.f32 %v5737, %v819
        %v5780 = vmul.f32 %v5740, %v819
        %v5781 = vmul.f32 %v5743, %v819
        %v5782 = vmul.f32 %v5746, %v819
        %v5783 = vmul.f32 %v5749, %v819
        %v5784 = vmul.f32 %v5752, %v819
        %v5785 = vmul.f32 %v5755, %v819
        %v5786 = vmul.f32 %v5758, %v819
        %v5787 = vmul.f32 %v5761, %v819
        %v5788 = vmul.f32 %v5764, %v819
        %v5789 = vmul.f32 %v5767, %v819
        %v5790 = vmul.f32 %v5770, %v819
        %v5791 = vmul.f32 %v5773, %v819
        %v5792 = vmul.f32 %v5776, %v819
        %v5793 = vsub.f32 %v5713, %v5777
        %v5794 = vsub.f32 %v5714, %v5778
        %v5795 = vsub.f32 %v5715, %v5779
        %v5796 = vsub.f32 %v5716, %v5780
        %v5797 = vsub.f32 %v5717, %v5781
        %v5798 = vsub.f32 %v5718, %v5782
        %v5799 = vsub.f32 %v5719, %v5783
        %v5800 = vsub.f32 %v5720, %v5784
        %v5801 = vsub.f32 %v5721, %v5785
        %v5802 = vsub.f32 %v5722, %v5786
        %v5803 = vsub.f32 %v5723, %v5787
        %v5804 = vsub.f32 %v5724, %v5788
        %v5805 = vsub.f32 %v5725, %v5789
        %v5806 = vsub.f32 %v5726, %v5790
        %v5807 = vsub.f32 %v5727, %v5791
        %v5808 = vsub.f32 %v5728, %v5792
        %v5809 = vmul.f32 %v5793, %v5793
        %v5810 = vmul.f32 %v5794, %v5794
        %v5811 = vmul.f32 %v5795, %v5795
        %v5812 = vmul.f32 %v5796, %v5796
        %v5813 = vmul.f32 %v5797, %v5797
        %v5814 = vmul.f32 %v5798, %v5798
        %v5815 = vmul.f32 %v5799, %v5799
        %v5816 = vmul.f32 %v5800, %v5800
        %v5817 = vmul.f32 %v5801, %v5801
        %v5818 = vmul.f32 %v5802, %v5802
        %v5819 = vmul.f32 %v5803, %v5803
        %v5820 = vmul.f32 %v5804, %v5804
        %v5821 = vmul.f32 %v5805, %v5805
        %v5822 = vmul.f32 %v5806, %v5806
        %v5823 = vmul.f32 %v5807, %v5807
        %v5824 = vmul.f32 %v5808, %v5808
        %v5825 = vsel %vm737, %v5809, 0.0
        %5826 = vadd.xlane.f32.xlu0 %v5825
        %v5827 = vpop.xlane.xlu0 %5826
        %v5828 = vsel %vm737, %v5810, 0.0
        %5829 = vadd.xlane.f32.xlu0 %v5828
        %v5830 = vpop.xlane.xlu0 %5829
        %v5831 = vsel %vm737, %v5811, 0.0
        %5832 = vadd.xlane.f32.xlu0 %v5831
        %v5833 = vpop.xlane.xlu0 %5832
        %v5834 = vsel %vm737, %v5812, 0.0
        %5835 = vadd.xlane.f32.xlu0 %v5834
        %v5836 = vpop.xlane.xlu0 %5835
        %v5837 = vsel %vm737, %v5813, 0.0
        %5838 = vadd.xlane.f32.xlu0 %v5837
        %v5839 = vpop.xlane.xlu0 %5838
        %v5840 = vsel %vm737, %v5814, 0.0
        %5841 = vadd.xlane.f32.xlu0 %v5840
        %v5842 = vpop.xlane.xlu0 %5841
        %v5843 = vsel %vm737, %v5815, 0.0
        %5844 = vadd.xlane.f32.xlu0 %v5843
        %v5845 = vpop.xlane.xlu0 %5844
        %v5846 = vsel %vm737, %v5816, 0.0
        %5847 = vadd.xlane.f32.xlu0 %v5846
        %v5848 = vpop.xlane.xlu0 %5847
        %v5849 = vsel %vm737, %v5817, 0.0
        %5850 = vadd.xlane.f32.xlu0 %v5849
        %v5851 = vpop.xlane.xlu0 %5850
        %v5852 = vsel %vm737, %v5818, 0.0
        %5853 = vadd.xlane.f32.xlu0 %v5852
        %v5854 = vpop.xlane.xlu0 %5853
        %v5855 = vsel %vm737, %v5819, 0.0
        %5856 = vadd.xlane.f32.xlu0 %v5855
        %v5857 = vpop.xlane.xlu0 %5856
        %v5858 = vsel %vm737, %v5820, 0.0
        %5859 = vadd.xlane.f32.xlu0 %v5858
        %v5860 = vpop.xlane.xlu0 %5859
        %v5861 = vsel %vm737, %v5821, 0.0
        %5862 = vadd.xlane.f32.xlu0 %v5861
        %v5863 = vpop.xlane.xlu0 %5862
        %v5864 = vsel %vm737, %v5822, 0.0
        %5865 = vadd.xlane.f32.xlu0 %v5864
        %v5866 = vpop.xlane.xlu0 %5865
        %v5867 = vsel %vm737, %v5823, 0.0
        %5868 = vadd.xlane.f32.xlu0 %v5867
        %v5869 = vpop.xlane.xlu0 %5868
        %v5870 = vsel %vm737, %v5824, 0.0
        %5871 = vadd.xlane.f32.xlu0 %v5870
        %v5872 = vpop.xlane.xlu0 %5871
        %v5873 = vmul.f32 %v5827, %v819
        %v5874 = vmul.f32 %v5830, %v819
        %v5875 = vmul.f32 %v5833, %v819
        %v5876 = vmul.f32 %v5836, %v819
        %v5877 = vmul.f32 %v5839, %v819
        %v5878 = vmul.f32 %v5842, %v819
        %v5879 = vmul.f32 %v5845, %v819
        %v5880 = vmul.f32 %v5848, %v819
        %v5881 = vmul.f32 %v5851, %v819
        %v5882 = vmul.f32 %v5854, %v819
        %v5883 = vmul.f32 %v5857, %v819
        %v5884 = vmul.f32 %v5860, %v819
        %v5885 = vmul.f32 %v5863, %v819
        %v5886 = vmul.f32 %v5866, %v819
        %v5887 = vmul.f32 %v5869, %v819
        %v5888 = vmul.f32 %v5872, %v819
        %v5889 = vadd.f32 %v5873, 1e-05
        %v5890 = vadd.f32 %v5874, 1e-05
        %v5891 = vadd.f32 %v5875, 1e-05
        %v5892 = vadd.f32 %v5876, 1e-05
        %v5893 = vadd.f32 %v5877, 1e-05
        %v5894 = vadd.f32 %v5878, 1e-05
        %v5895 = vadd.f32 %v5879, 1e-05
        %v5896 = vadd.f32 %v5880, 1e-05
        %v5897 = vadd.f32 %v5881, 1e-05
        %v5898 = vadd.f32 %v5882, 1e-05
        %v5899 = vadd.f32 %v5883, 1e-05
        %v5900 = vadd.f32 %v5884, 1e-05
        %v5901 = vadd.f32 %v5885, 1e-05
        %v5902 = vadd.f32 %v5886, 1e-05
        %v5903 = vadd.f32 %v5887, 1e-05
        %v5904 = vadd.f32 %v5888, 1e-05
        %v5905 = vrsqrt.pop %v5889
        %v5906 = vrsqrt.pop %v5890
        %v5907 = vrsqrt.pop %v5891
        %v5908 = vrsqrt.pop %v5892
        %v5909 = vrsqrt.pop %v5893
        %v5910 = vrsqrt.pop %v5894
        %v5911 = vrsqrt.pop %v5895
        %v5912 = vrsqrt.pop %v5896
        %v5913 = vrsqrt.pop %v5897
        %v5914 = vrsqrt.pop %v5898
        %v5915 = vrsqrt.pop %v5899
        %v5916 = vrsqrt.pop %v5900
        %v5917 = vrsqrt.pop %v5901
        %v5918 = vrsqrt.pop %v5902
        %v5919 = vrsqrt.pop %v5903
        %v5920 = vrsqrt.pop %v5904
        %v5921 = vmul.f32 %v5793, %v5905
        %v5922 = vmul.f32 %v5794, %v5906
        %v5923 = vmul.f32 %v5795, %v5907
        %v5924 = vmul.f32 %v5796, %v5908
        %v5925 = vmul.f32 %v5797, %v5909
        %v5926 = vmul.f32 %v5798, %v5910
        %v5927 = vmul.f32 %v5799, %v5911
        %v5928 = vmul.f32 %v5800, %v5912
        %v5929 = vmul.f32 %v5801, %v5913
        %v5930 = vmul.f32 %v5802, %v5914
        %v5931 = vmul.f32 %v5803, %v5915
        %v5932 = vmul.f32 %v5804, %v5916
        %v5933 = vmul.f32 %v5805, %v5917
        %v5934 = vmul.f32 %v5806, %v5918
        %v5935 = vmul.f32 %v5807, %v5919
        %v5936 = vmul.f32 %v5808, %v5920
        %v5937 = vlaneseq
        %v5938 = vshrl.u32 %v5937, 7
        %v5939 = vsub.s32 2, %v5938
        %v5940 = vrot.slane %v3668, %v5939
        %v5941 = vmul.f32 %v5921, %v5940
        %v5942 = vmul.f32 %v5922, %v5940
        %v5943 = vmul.f32 %v5923, %v5940
        %v5944 = vmul.f32 %v5924, %v5940
        %v5945 = vmul.f32 %v5925, %v5940
        %v5946 = vmul.f32 %v5926, %v5940
        %v5947 = vmul.f32 %v5927, %v5940
        %v5948 = vmul.f32 %v5928, %v5940
        %v5949 = vmul.f32 %v5929, %v5940
        %v5950 = vmul.f32 %v5930, %v5940
        %v5951 = vmul.f32 %v5931, %v5940
        %v5952 = vmul.f32 %v5932, %v5940
        %v5953 = vmul.f32 %v5933, %v5940
        %v5954 = vmul.f32 %v5934, %v5940
        %v5955 = vmul.f32 %v5935, %v5940
        %v5956 = vmul.f32 %v5936, %v5940
        %v5957 = vlaneseq
        %v5958 = vshrl.u32 %v5957, 7
        %v5959 = vsub.s32 3, %v5958
        %v5960 = vrot.slane %v3668, %v5959
        %v5961 = vadd.f32 %v5941, %v5960
        %v5962 = vadd.f32 %v5942, %v5960
        %v5963 = vadd.f32 %v5943, %v5960
        %v5964 = vadd.f32 %v5944, %v5960
        %v5965 = vadd.f32 %v5945, %v5960
        %v5966 = vadd.f32 %v5946, %v5960
        %v5967 = vadd.f32 %v5947, %v5960
        %v5968 = vadd.f32 %v5948, %v5960
        %v5969 = vadd.f32 %v5949, %v5960
        %v5970 = vadd.f32 %v5950, %v5960
        %v5971 = vadd.f32 %v5951, %v5960
        %v5972 = vadd.f32 %v5952, %v5960
        %v5973 = vadd.f32 %v5953, %v5960
        %v5974 = vadd.f32 %v5954, %v5960
        %v5975 = vadd.f32 %v5955, %v5960
        %v5976 = vadd.f32 %v5956, %v5960
        %s5977 = scalar_lea.vmem %s8, 32
        %v5978 = vld [vmem:[%s5977] sm:$0xff]
        %v5979 = vld [vmem:[%s5977 + $0x8] sm:$0xff]
        %v5980 = vld [vmem:[%s5977 + $0x10] sm:$0xff]
        %v5981 = vld [vmem:[%s5977 + $0x18] sm:$0xff]
        %s5982 = scalar_lea.vmem %s5, 1
        %v5983 = vld [vmem:[%s5982] sm:$0x1]
        %v5985 = vlaneseq
        %v5986 = vshrl.u32 %v5985, 7
        %v5987 = vsub.s32 0, %v5986
        %v5988 = vrot.slane %v5983, %v5987
        %v5991 = vsel %vm737, %v5961, 0
        %v5994 = vsel %vm737, %v5962, 0
        %v5997 = vsel %vm737, %v5963, 0
        %v6000 = vsel %vm737, %v5964, 0
        %v6003 = vsel %vm737, %v5965, 0
        %v6006 = vsel %vm737, %v5966, 0
        %v6009 = vsel %vm737, %v5967, 0
        %v6012 = vsel %vm737, %v5968, 0
        %v6015 = vsel %vm737, %v5969, 0
        %v6018 = vsel %vm737, %v5970, 0
        %v6021 = vsel %vm737, %v5971, 0
        %v6024 = vsel %vm737, %v5972, 0
        %v6027 = vsel %vm737, %v5973, 0
        %v6030 = vsel %vm737, %v5974, 0
        %v6033 = vsel %vm737, %v5975, 0
        %v6036 = vsel %vm737, %v5976, 0
        %6038 = vmatprep.subr.mxu0 0.0
        %6039 = vmatpush1.msra.mxu0 %v5978
        %6040 = vmatprep.subr.mxu0 0.0
        %6041 = vmatpush1.msra.mxu0 %v5979
        %6042 = vmatprep.subr.mxu0 0.0
        %6043 = vmatpush1.msra.mxu0 %v5980
        %6044 = vmatprep.subr.mxu0 0.0
        %6045 = vmatpush1.msra.mxu0 %v5981
        %6046 = vmatprep.subr.mxu0 0.0
        %6047 = vmatpush1.msra.mxu0 0.0
        %6048 = vmatprep.subr.mxu0 0.0
        %6049 = vmatpush1.msra.mxu0 0.0
        %6050 = vmatprep.subr.mxu0 0.0
        %6051 = vmatpush1.msra.mxu0 0.0
        %6052 = vmatprep.subr.mxu0 0.0
        %6053 = vmatpush1.msra.mxu0 0.0
        %6054 = vmatprep.subr.mxu0 0.0
        %6055 = vmatpush1.msra.mxu0 0.0
        %6056 = vmatprep.subr.mxu0 0.0
        %6057 = vmatpush1.msra.mxu0 0.0
        %6058 = vmatprep.subr.mxu0 0.0
        %6059 = vmatpush1.msra.mxu0 0.0
        %6060 = vmatprep.subr.mxu0 0.0
        %6061 = vmatpush1.msra.mxu0 0.0
        %6062 = vmatprep.subr.mxu0 0.0
        %6063 = vmatpush1.msra.mxu0 0.0
        %6064 = vmatprep.subr.mxu0 0.0
        %6065 = vmatpush1.msra.mxu0 0.0
        %6066 = vmatprep.subr.mxu0 0.0
        %6067 = vmatpush1.msra.mxu0 0.0
        %6068 = vmatprep.subr.mxu0 0.0
        %6069 = vmatpush1.msra.mxu0 0.0
        %6070 = vmatprep.subr.mxu0 0.0
        %6071 = vmatpush1.msra.mxu0 0.0
        %6072 = vmatprep.subr.mxu0 0.0
        %6073 = vmatpush1.msra.mxu0 0.0
        %6074 = vmatprep.subr.mxu0 0.0
        %6075 = vmatpush1.msra.mxu0 0.0
        %6076 = vmatprep.subr.mxu0 0.0
        %6077 = vmatpush1.msra.mxu0 0.0
        %6078 = vmatprep.subr.mxu0 0.0
        %6079 = vmatpush1.msra.mxu0 0.0
        %6080 = vmatprep.subr.mxu0 0.0
        %6081 = vmatpush1.msra.mxu0 0.0
        %6082 = vmatprep.subr.mxu0 0.0
        %6083 = vmatpush1.msra.mxu0 0.0
        %6084 = vmatprep.subr.mxu0 0.0
        %6085 = vmatpush1.msra.mxu0 0.0
        %6086 = vmatprep.subr.mxu0 0.0
        %6087 = vmatpush1.msra.mxu0 0.0
        %6088 = vmatprep.subr.mxu0 0.0
        %6089 = vmatpush1.msra.mxu0 0.0
        %6090 = vmatprep.subr.mxu0 0.0
        %6091 = vmatpush1.msra.mxu0 0.0
        %6092 = vmatprep.subr.mxu0 0.0
        %6093 = vmatpush1.msra.mxu0 0.0
        %6094 = vmatprep.subr.mxu0 0.0
        %6095 = vmatpush1.msra.mxu0 0.0
        %6096 = vmatprep.subr.mxu0 0.0
        %6097 = vmatpush1.msra.mxu0 0.0
        %6098 = vmatprep.subr.mxu0 0.0
        %6099 = vmatpush1.msra.mxu0 0.0
        %6100 = vmatprep.subr.mxu0 0.0
        %6101 = vmatpush1.msra.mxu0 0.0
        %6102 = vmatprep.mubr.f32.mxu0 0.0
        %6103 = vmatmul.mubr.f32.gmra.mrb[0].mxu0 %v5991
        %v6104 = vpop.f32.mrb[0].mxu0
        %v6105 = vadd.f32 %v5988, %v6104
        %v6106 = vpop.f32.mrb[0].mxu0
        %6107 = vmatprep.mubr.f32.mxu0 0.0
        %6108 = vmatmul.mubr.f32.gmra.mrb[0].mxu0 %v5994
        %v6109 = vpop.f32.mrb[0].mxu0
        %v6110 = vadd.f32 %v5988, %v6109
        %v6111 = vpop.f32.mrb[0].mxu0
        %6112 = vmatprep.mubr.f32.mxu0 0.0
        %6113 = vmatmul.mubr.f32.gmra.mrb[0].mxu0 %v5997
        %v6114 = vpop.f32.mrb[0].mxu0
        %v6115 = vadd.f32 %v5988, %v6114
        %v6116 = vpop.f32.mrb[0].mxu0
        %6117 = vmatprep.mubr.f32.mxu0 0.0
        %6118 = vmatmul.mubr.f32.gmra.mrb[0].mxu0 %v6000
        %v6119 = vpop.f32.mrb[0].mxu0
        %v6120 = vadd.f32 %v5988, %v6119
        %v6121 = vpop.f32.mrb[0].mxu0
        %6122 = vmatprep.mubr.f32.mxu0 0.0
        %6123 = vmatmul.mubr.f32.gmra.mrb[0].mxu0 %v6003
        %v6124 = vpop.f32.mrb[0].mxu0
        %v6125 = vadd.f32 %v5988, %v6124
        %v6126 = vpop.f32.mrb[0].mxu0
        %6127 = vmatprep.mubr.f32.mxu0 0.0
        %6128 = vmatmul.mubr.f32.gmra.mrb[0].mxu0 %v6006
        %v6129 = vpop.f32.mrb[0].mxu0
        %v6130 = vadd.f32 %v5988, %v6129
        %v6131 = vpop.f32.mrb[0].mxu0
        %6132 = vmatprep.mubr.f32.mxu0 0.0
        %6133 = vmatmul.mubr.f32.gmra.mrb[0].mxu0 %v6009
        %v6134 = vpop.f32.mrb[0].mxu0
        %v6135 = vadd.f32 %v5988, %v6134
        %v6136 = vpop.f32.mrb[0].mxu0
        %6137 = vmatprep.mubr.f32.mxu0 0.0
        %6138 = vmatmul.mubr.f32.gmra.mrb[0].mxu0 %v6012
        %v6139 = vpop.f32.mrb[0].mxu0
        %v6140 = vadd.f32 %v5988, %v6139
        %v6141 = vpop.f32.mrb[0].mxu0
        %6142 = vmatprep.mubr.f32.mxu0 0.0
        %6143 = vmatmul.mubr.f32.gmra.mrb[0].mxu0 %v6015
        %v6144 = vpop.f32.mrb[0].mxu0
        %v6145 = vadd.f32 %v5988, %v6144
        %v6146 = vpop.f32.mrb[0].mxu0
        %6147 = vmatprep.mubr.f32.mxu0 0.0
        %6148 = vmatmul.mubr.f32.gmra.mrb[0].mxu0 %v6018
        %v6149 = vpop.f32.mrb[0].mxu0
        %v6150 = vadd.f32 %v5988, %v6149
        %v6151 = vpop.f32.mrb[0].mxu0
        %6152 = vmatprep.mubr.f32.mxu0 0.0
        %6153 = vmatmul.mubr.f32.gmra.mrb[0].mxu0 %v6021
        %v6154 = vpop.f32.mrb[0].mxu0
        %v6155 = vadd.f32 %v5988, %v6154
        %v6156 = vpop.f32.mrb[0].mxu0
        %6157 = vmatprep.mubr.f32.mxu0 0.0
        %6158 = vmatmul.mubr.f32.gmra.mrb[0].mxu0 %v6024
        %v6159 = vpop.f32.mrb[0].mxu0
        %v6160 = vadd.f32 %v5988, %v6159
        %v6161 = vpop.f32.mrb[0].mxu0
        %6162 = vmatprep.mubr.f32.mxu0 0.0
        %6163 = vmatmul.mubr.f32.gmra.mrb[0].mxu0 %v6027
        %v6164 = vpop.f32.mrb[0].mxu0
        %v6165 = vadd.f32 %v5988, %v6164
        %v6166 = vpop.f32.mrb[0].mxu0
        %6167 = vmatprep.mubr.f32.mxu0 0.0
        %6168 = vmatmul.mubr.f32.gmra.mrb[0].mxu0 %v6030
        %v6169 = vpop.f32.mrb[0].mxu0
        %v6170 = vadd.f32 %v5988, %v6169
        %v6171 = vpop.f32.mrb[0].mxu0
        %6172 = vmatprep.mubr.f32.mxu0 0.0
        %6173 = vmatmul.mubr.f32.gmra.mrb[0].mxu0 %v6033
        %v6174 = vpop.f32.mrb[0].mxu0
        %v6175 = vadd.f32 %v5988, %v6174
        %v6176 = vpop.f32.mrb[0].mxu0
        %6177 = vmatprep.mubr.f32.mxu0 0.0
        %6178 = vmatmul.mubr.f32.gmra.mrb[0].mxu0 %v6036
        %v6179 = vpop.f32.mrb[0].mxu0
        %v6180 = vadd.f32 %v5988, %v6179
        %v6181 = vpop.f32.mrb[0].mxu0
        %6182 = vdwg.mxu0
        %v6183 = vmul.f32 %v6105, 0.5
        %v6184 = vmul.f32 %v6110, 0.5
        %v6185 = vmul.f32 %v6115, 0.5
        %v6186 = vmul.f32 %v6120, 0.5
        %v6187 = vmul.f32 %v6125, 0.5
        %v6188 = vmul.f32 %v6130, 0.5
        %v6189 = vmul.f32 %v6135, 0.5
        %v6190 = vmul.f32 %v6140, 0.5
        %v6191 = vmul.f32 %v6145, 0.5
        %v6192 = vmul.f32 %v6150, 0.5
        %v6193 = vmul.f32 %v6155, 0.5
        %v6194 = vmul.f32 %v6160, 0.5
        %v6195 = vmul.f32 %v6165, 0.5
        %v6196 = vmul.f32 %v6170, 0.5
        %v6197 = vmul.f32 %v6175, 0.5
        %v6198 = vmul.f32 %v6180, 0.5
        %v6199 = vmul.f32 %v6105, 0.044715
        %v6200 = vmul.f32 %v6110, 0.044715
        %v6201 = vmul.f32 %v6115, 0.044715
        %v6202 = vmul.f32 %v6120, 0.044715
        %v6203 = vmul.f32 %v6125, 0.044715
        %v6204 = vmul.f32 %v6130, 0.044715
        %v6205 = vmul.f32 %v6135, 0.044715
        %v6206 = vmul.f32 %v6140, 0.044715
        %v6207 = vmul.f32 %v6145, 0.044715
        %v6208 = vmul.f32 %v6150, 0.044715
        %v6209 = vmul.f32 %v6155, 0.044715
        %v6210 = vmul.f32 %v6160, 0.044715
        %v6211 = vmul.f32 %v6165, 0.044715
        %v6212 = vmul.f32 %v6170, 0.044715
        %v6213 = vmul.f32 %v6175, 0.044715
        %v6214 = vmul.f32 %v6180, 0.044715
        %v6215 = vmul.f32 %v6199, %v6105
        %v6216 = vmul.f32 %v6200, %v6110
        %v6217 = vmul.f32 %v6201, %v6115
        %v6218 = vmul.f32 %v6202, %v6120
        %v6219 = vmul.f32 %v6203, %v6125
        %v6220 = vmul.f32 %v6204, %v6130
        %v6221 = vmul.f32 %v6205, %v6135
        %v6222 = vmul.f32 %v6206, %v6140
        %v6223 = vmul.f32 %v6207, %v6145
        %v6224 = vmul.f32 %v6208, %v6150
        %v6225 = vmul.f32 %v6209, %v6155
        %v6226 = vmul.f32 %v6210, %v6160
        %v6227 = vmul.f32 %v6211, %v6165
        %v6228 = vmul.f32 %v6212, %v6170
        %v6229 = vmul.f32 %v6213, %v6175
        %v6230 = vmul.f32 %v6214, %v6180
        %v6231 = vmul.f32 %v6215, %v6105
        %v6232 = vmul.f32 %v6216, %v6110
        %v6233 = vmul.f32 %v6217, %v6115
        %v6234 = vmul.f32 %v6218, %v6120
        %v6235 = vmul.f32 %v6219, %v6125
        %v6236 = vmul.f32 %v6220, %v6130
        %v6237 = vmul.f32 %v6221, %v6135
        %v6238 = vmul.f32 %v6222, %v6140
        %v6239 = vmul.f32 %v6223, %v6145
        %v6240 = vmul.f32 %v6224, %v6150
        %v6241 = vmul.f32 %v6225, %v6155
        %v6242 = vmul.f32 %v6226, %v6160
        %v6243 = vmul.f32 %v6227, %v6165
        %v6244 = vmul.f32 %v6228, %v6170
        %v6245 = vmul.f32 %v6229, %v6175
        %v6246 = vmul.f32 %v6230, %v6180
        %v6247 = vadd.f32 %v6105, %v6231
        %v6248 = vadd.f32 %v6110, %v6232
        %v6249 = vadd.f32 %v6115, %v6233
        %v6250 = vadd.f32 %v6120, %v6234
        %v6251 = vadd.f32 %v6125, %v6235
        %v6252 = vadd.f32 %v6130, %v6236
        %v6253 = vadd.f32 %v6135, %v6237
        %v6254 = vadd.f32 %v6140, %v6238
        %v6255 = vadd.f32 %v6145, %v6239
        %v6256 = vadd.f32 %v6150, %v6240
        %v6257 = vadd.f32 %v6155, %v6241
        %v6258 = vadd.f32 %v6160, %v6242
        %v6259 = vadd.f32 %v6165, %v6243
        %v6260 = vadd.f32 %v6170, %v6244
        %v6261 = vadd.f32 %v6175, %v6245
        %v6262 = vadd.f32 %v6180, %v6246
        %v6263 = vmul.f32 %v6247, 0.7978846
        %v6264 = vmul.f32 %v6248, 0.7978846
        %v6265 = vmul.f32 %v6249, 0.7978846
        %v6266 = vmul.f32 %v6250, 0.7978846
        %v6267 = vmul.f32 %v6251, 0.7978846
        %v6268 = vmul.f32 %v6252, 0.7978846
        %v6269 = vmul.f32 %v6253, 0.7978846
        %v6270 = vmul.f32 %v6254, 0.7978846
        %v6271 = vmul.f32 %v6255, 0.7978846
        %v6272 = vmul.f32 %v6256, 0.7978846
        %v6273 = vmul.f32 %v6257, 0.7978846
        %v6274 = vmul.f32 %v6258, 0.7978846
        %v6275 = vmul.f32 %v6259, 0.7978846
        %v6276 = vmul.f32 %v6260, 0.7978846
        %v6277 = vmul.f32 %v6261, 0.7978846
        %v6278 = vmul.f32 %v6262, 0.7978846
        %v6279 = vtanh.pop %v6263
        %v6280 = vtanh.pop %v6264
        %v6281 = vtanh.pop %v6265
        %v6282 = vtanh.pop %v6266
        %v6283 = vtanh.pop %v6267
        %v6284 = vtanh.pop %v6268
        %v6285 = vtanh.pop %v6269
        %v6286 = vtanh.pop %v6270
        %v6287 = vtanh.pop %v6271
        %v6288 = vtanh.pop %v6272
        %v6289 = vtanh.pop %v6273
        %v6290 = vtanh.pop %v6274
        %v6291 = vtanh.pop %v6275
        %v6292 = vtanh.pop %v6276
        %v6293 = vtanh.pop %v6277
        %v6294 = vtanh.pop %v6278
        %v6295 = vadd.f32 %v6279, 1.0
        %v6296 = vadd.f32 %v6280, 1.0
        %v6297 = vadd.f32 %v6281, 1.0
        %v6298 = vadd.f32 %v6282, 1.0
        %v6299 = vadd.f32 %v6283, 1.0
        %v6300 = vadd.f32 %v6284, 1.0
        %v6301 = vadd.f32 %v6285, 1.0
        %v6302 = vadd.f32 %v6286, 1.0
        %v6303 = vadd.f32 %v6287, 1.0
        %v6304 = vadd.f32 %v6288, 1.0
        %v6305 = vadd.f32 %v6289, 1.0
        %v6306 = vadd.f32 %v6290, 1.0
        %v6307 = vadd.f32 %v6291, 1.0
        %v6308 = vadd.f32 %v6292, 1.0
        %v6309 = vadd.f32 %v6293, 1.0
        %v6310 = vadd.f32 %v6294, 1.0
        %v6311 = vmul.f32 %v6183, %v6295
        %v6312 = vmul.f32 %v6184, %v6296
        %v6313 = vmul.f32 %v6185, %v6297
        %v6314 = vmul.f32 %v6186, %v6298
        %v6315 = vmul.f32 %v6187, %v6299
        %v6316 = vmul.f32 %v6188, %v6300
        %v6317 = vmul.f32 %v6189, %v6301
        %v6318 = vmul.f32 %v6190, %v6302
        %v6319 = vmul.f32 %v6191, %v6303
        %v6320 = vmul.f32 %v6192, %v6304
        %v6321 = vmul.f32 %v6193, %v6305
        %v6322 = vmul.f32 %v6194, %v6306
        %v6323 = vmul.f32 %v6195, %v6307
        %v6324 = vmul.f32 %v6196, %v6308
        %v6325 = vmul.f32 %v6197, %v6309
        %v6326 = vmul.f32 %v6198, %v6310
        %s6327 = scalar_lea.vmem %s9, 64
        %v6328 = vld [vmem:[%s6327] sm:$0xff]
        %v6329 = vld [vmem:[%s6327 + $0x8] sm:$0xff]
        %v6330 = vld [vmem:[%s6327 + $0x10] sm:$0xff]
        %v6331 = vld [vmem:[%s6327 + $0x18] sm:$0xff]
        %v6332 = vld [vmem:[%s6327 + $0x20] sm:$0xff]
        %v6333 = vld [vmem:[%s6327 + $0x28] sm:$0xff]
        %v6334 = vld [vmem:[%s6327 + $0x30] sm:$0xff]
        %v6335 = vld [vmem:[%s6327 + $0x38] sm:$0xff]
        %v6337 = vsel %vm3421, %v6311, 0
        %v6340 = vsel %vm3421, %v6312, 0
        %v6343 = vsel %vm3421, %v6313, 0
        %v6346 = vsel %vm3421, %v6314, 0
        %v6349 = vsel %vm3421, %v6315, 0
        %v6352 = vsel %vm3421, %v6316, 0
        %v6355 = vsel %vm3421, %v6317, 0
        %v6358 = vsel %vm3421, %v6318, 0
        %v6361 = vsel %vm3421, %v6319, 0
        %v6364 = vsel %vm3421, %v6320, 0
        %v6367 = vsel %vm3421, %v6321, 0
        %v6370 = vsel %vm3421, %v6322, 0
        %v6373 = vsel %vm3421, %v6323, 0
        %v6376 = vsel %vm3421, %v6324, 0
        %v6379 = vsel %vm3421, %v6325, 0
        %v6382 = vsel %vm3421, %v6326, 0
        %6384 = vmatprep.subr.mxu0 0.0
        %6385 = vmatpush1.msra.mxu0 %v6328
        %6386 = vmatprep.subr.mxu0 0.0
        %6387 = vmatpush1.msra.mxu0 %v6329
        %6388 = vmatprep.subr.mxu0 0.0
        %6389 = vmatpush1.msra.mxu0 %v6330
        %6390 = vmatprep.subr.mxu0 0.0
        %6391 = vmatpush1.msra.mxu0 %v6331
        %6392 = vmatprep.subr.mxu0 0.0
        %6393 = vmatpush1.msra.mxu0 %v6332
        %6394 = vmatprep.subr.mxu0 0.0
        %6395 = vmatpush1.msra.mxu0 %v6333
        %6396 = vmatprep.subr.mxu0 0.0
        %6397 = vmatpush1.msra.mxu0 %v6334
        %6398 = vmatprep.subr.mxu0 0.0
        %6399 = vmatpush1.msra.mxu0 %v6335
        %6400 = vmatprep.subr.mxu0 0.0
        %6401 = vmatpush1.msra.mxu0 0.0
        %6402 = vmatprep.subr.mxu0 0.0
        %6403 = vmatpush1.msra.mxu0 0.0
        %6404 = vmatprep.subr.mxu0 0.0
        %6405 = vmatpush1.msra.mxu0 0.0
        %6406 = vmatprep.subr.mxu0 0.0
        %6407 = vmatpush1.msra.mxu0 0.0
        %6408 = vmatprep.subr.mxu0 0.0
        %6409 = vmatpush1.msra.mxu0 0.0
        %6410 = vmatprep.subr.mxu0 0.0
        %6411 = vmatpush1.msra.mxu0 0.0
        %6412 = vmatprep.subr.mxu0 0.0
        %6413 = vmatpush1.msra.mxu0 0.0
        %6414 = vmatprep.subr.mxu0 0.0
        %6415 = vmatpush1.msra.mxu0 0.0
        %6416 = vmatprep.subr.mxu0 0.0
        %6417 = vmatpush1.msra.mxu0 0.0
        %6418 = vmatprep.subr.mxu0 0.0
        %6419 = vmatpush1.msra.mxu0 0.0
        %6420 = vmatprep.subr.mxu0 0.0
        %6421 = vmatpush1.msra.mxu0 0.0
        %6422 = vmatprep.subr.mxu0 0.0
        %6423 = vmatpush1.msra.mxu0 0.0
        %6424 = vmatprep.subr.mxu0 0.0
        %6425 = vmatpush1.msra.mxu0 0.0
        %6426 = vmatprep.subr.mxu0 0.0
        %6427 = vmatpush1.msra.mxu0 0.0
        %6428 = vmatprep.subr.mxu0 0.0
        %6429 = vmatpush1.msra.mxu0 0.0
        %6430 = vmatprep.subr.mxu0 0.0
        %6431 = vmatpush1.msra.mxu0 0.0
        %6432 = vmatprep.subr.mxu0 0.0
        %6433 = vmatpush1.msra.mxu0 0.0
        %6434 = vmatprep.subr.mxu0 0.0
        %6435 = vmatpush1.msra.mxu0 0.0
        %6436 = vmatprep.subr.mxu0 0.0
        %6437 = vmatpush1.msra.mxu0 0.0
        %6438 = vmatprep.subr.mxu0 0.0
        %6439 = vmatpush1.msra.mxu0 0.0
        %6440 = vmatprep.subr.mxu0 0.0
        %6441 = vmatpush1.msra.mxu0 0.0
        %6442 = vmatprep.subr.mxu0 0.0
        %6443 = vmatpush1.msra.mxu0 0.0
        %6444 = vmatprep.subr.mxu0 0.0
        %6445 = vmatpush1.msra.mxu0 0.0
        %6446 = vmatprep.subr.mxu0 0.0
        %6447 = vmatpush1.msra.mxu0 0.0
        %6448 = vmatprep.mubr.f32.mxu0 0.0
        %6449 = vmatmul.mubr.f32.gmra.mrb[0].mxu0 %v6337
        %v6450 = vpop.f32.mrb[0].mxu0
        %v6451 = vadd.f32 0.0, %v6450
        %v6452 = vpop.f32.mrb[0].mxu0
        %6453 = vmatprep.mubr.f32.mxu0 0.0
        %6454 = vmatmul.mubr.f32.gmra.mrb[0].mxu0 %v6340
        %v6455 = vpop.f32.mrb[0].mxu0
        %v6456 = vadd.f32 0.0, %v6455
        %v6457 = vpop.f32.mrb[0].mxu0
        %6458 = vmatprep.mubr.f32.mxu0 0.0
        %6459 = vmatmul.mubr.f32.gmra.mrb[0].mxu0 %v6343
        %v6460 = vpop.f32.mrb[0].mxu0
        %v6461 = vadd.f32 0.0, %v6460
        %v6462 = vpop.f32.mrb[0].mxu0
        %6463 = vmatprep.mubr.f32.mxu0 0.0
        %6464 = vmatmul.mubr.f32.gmra.mrb[0].mxu0 %v6346
        %v6465 = vpop.f32.mrb[0].mxu0
        %v6466 = vadd.f32 0.0, %v6465
        %v6467 = vpop.f32.mrb[0].mxu0
        %6468 = vmatprep.mubr.f32.mxu0 0.0
        %6469 = vmatmul.mubr.f32.gmra.mrb[0].mxu0 %v6349
        %v6470 = vpop.f32.mrb[0].mxu0
        %v6471 = vadd.f32 0.0, %v6470
        %v6472 = vpop.f32.mrb[0].mxu0
        %6473 = vmatprep.mubr.f32.mxu0 0.0
        %6474 = vmatmul.mubr.f32.gmra.mrb[0].mxu0 %v6352
        %v6475 = vpop.f32.mrb[0].mxu0
        %v6476 = vadd.f32 0.0, %v6475
        %v6477 = vpop.f32.mrb[0].mxu0
        %6478 = vmatprep.mubr.f32.mxu0 0.0
        %6479 = vmatmul.mubr.f32.gmra.mrb[0].mxu0 %v6355
        %v6480 = vpop.f32.mrb[0].mxu0
        %v6481 = vadd.f32 0.0, %v6480
        %v6482 = vpop.f32.mrb[0].mxu0
        %6483 = vmatprep.mubr.f32.mxu0 0.0
        %6484 = vmatmul.mubr.f32.gmra.mrb[0].mxu0 %v6358
        %v6485 = vpop.f32.mrb[0].mxu0
        %v6486 = vadd.f32 0.0, %v6485
        %v6487 = vpop.f32.mrb[0].mxu0
        %6488 = vmatprep.mubr.f32.mxu0 0.0
        %6489 = vmatmul.mubr.f32.gmra.mrb[0].mxu0 %v6361
        %v6490 = vpop.f32.mrb[0].mxu0
        %v6491 = vadd.f32 0.0, %v6490
        %v6492 = vpop.f32.mrb[0].mxu0
        %6493 = vmatprep.mubr.f32.mxu0 0.0
        %6494 = vmatmul.mubr.f32.gmra.mrb[0].mxu0 %v6364
        %v6495 = vpop.f32.mrb[0].mxu0
        %v6496 = vadd.f32 0.0, %v6495
        %v6497 = vpop.f32.mrb[0].mxu0
        %6498 = vmatprep.mubr.f32.mxu0 0.0
        %6499 = vmatmul.mubr.f32.gmra.mrb[0].mxu0 %v6367
        %v6500 = vpop.f32.mrb[0].mxu0
        %v6501 = vadd.f32 0.0, %v6500
        %v6502 = vpop.f32.mrb[0].mxu0
        %6503 = vmatprep.mubr.f32.mxu0 0.0
        %6504 = vmatmul.mubr.f32.gmra.mrb[0].mxu0 %v6370
        %v6505 = vpop.f32.mrb[0].mxu0
        %v6506 = vadd.f32 0.0, %v6505
        %v6507 = vpop.f32.mrb[0].mxu0
        %6508 = vmatprep.mubr.f32.mxu0 0.0
        %6509 = vmatmul.mubr.f32.gmra.mrb[0].mxu0 %v6373
        %v6510 = vpop.f32.mrb[0].mxu0
        %v6511 = vadd.f32 0.0, %v6510
        %v6512 = vpop.f32.mrb[0].mxu0
        %6513 = vmatprep.mubr.f32.mxu0 0.0
        %6514 = vmatmul.mubr.f32.gmra.mrb[0].mxu0 %v6376
        %v6515 = vpop.f32.mrb[0].mxu0
        %v6516 = vadd.f32 0.0, %v6515
        %v6517 = vpop.f32.mrb[0].mxu0
        %6518 = vmatprep.mubr.f32.mxu0 0.0
        %6519 = vmatmul.mubr.f32.gmra.mrb[0].mxu0 %v6379
        %v6520 = vpop.f32.mrb[0].mxu0
        %v6521 = vadd.f32 0.0, %v6520
        %v6522 = vpop.f32.mrb[0].mxu0
        %6523 = vmatprep.mubr.f32.mxu0 0.0
        %6524 = vmatmul.mubr.f32.gmra.mrb[0].mxu0 %v6382
        %v6525 = vpop.f32.mrb[0].mxu0
        %v6526 = vadd.f32 0.0, %v6525
        %v6527 = vpop.f32.mrb[0].mxu0
        %6528 = vdwg.mxu0
        %v6529 = vadd.f32 %v5713, %v6451
        %v6530 = vadd.f32 %v5714, %v6456
        %v6531 = vadd.f32 %v5715, %v6461
        %v6532 = vadd.f32 %v5716, %v6466
        %v6533 = vadd.f32 %v5717, %v6471
        %v6534 = vadd.f32 %v5718, %v6476
        %v6535 = vadd.f32 %v5719, %v6481
        %v6536 = vadd.f32 %v5720, %v6486
        %v6537 = vadd.f32 %v5721, %v6491
        %v6538 = vadd.f32 %v5722, %v6496
        %v6539 = vadd.f32 %v5723, %v6501
        %v6540 = vadd.f32 %v5724, %v6506
        %v6541 = vadd.f32 %v5725, %v6511
        %v6542 = vadd.f32 %v5726, %v6516
        %v6543 = vadd.f32 %v5727, %v6521
        %v6544 = vadd.f32 %v5728, %v6526
        %v6545 = vlaneseq
        %v6546 = vshrl.u32 %v6545, 7
        %v6547 = vsub.s32 5, %v6546
        %v6548 = vrot.slane %v3668, %v6547
        %v6549 = vadd.f32 %v6529, %v6548
        %v6550 = vadd.f32 %v6530, %v6548
        %v6551 = vadd.f32 %v6531, %v6548
        %v6552 = vadd.f32 %v6532, %v6548
        %v6553 = vadd.f32 %v6533, %v6548
        %v6554 = vadd.f32 %v6534, %v6548
        %v6555 = vadd.f32 %v6535, %v6548
        %v6556 = vadd.f32 %v6536, %v6548
        %v6557 = vadd.f32 %v6537, %v6548
        %v6558 = vadd.f32 %v6538, %v6548
        %v6559 = vadd.f32 %v6539, %v6548
        %v6560 = vadd.f32 %v6540, %v6548
        %v6561 = vadd.f32 %v6541, %v6548
        %v6562 = vadd.f32 %v6542, %v6548
        %v6563 = vadd.f32 %v6543, %v6548
        %v6564 = vadd.f32 %v6544, %v6548
        %6565 = vst.msk [vmem:[#allocation2] sm:$0xff] %vm737, %v6549
        %6566 = vst.msk [vmem:[#allocation2 + $0x8] sm:$0xff] %vm737, %v6550
        %6567 = vst.msk [vmem:[#allocation2 + $0x10] sm:$0xff] %vm737, %v6551
        %6568 = vst.msk [vmem:[#allocation2 + $0x18] sm:$0xff] %vm737, %v6552
        %6569 = vst.msk [vmem:[#allocation2 + $0x20] sm:$0xff] %vm737, %v6553
        %6570 = vst.msk [vmem:[#allocation2 + $0x28] sm:$0xff] %vm737, %v6554
        %6571 = vst.msk [vmem:[#allocation2 + $0x30] sm:$0xff] %vm737, %v6555
        %6572 = vst.msk [vmem:[#allocation2 + $0x38] sm:$0xff] %vm737, %v6556
        %6573 = vst.msk [vmem:[#allocation2 + $0x40] sm:$0xff] %vm737, %v6557
        %6574 = vst.msk [vmem:[#allocation2 + $0x48] sm:$0xff] %vm737, %v6558
        %6575 = vst.msk [vmem:[#allocation2 + $0x50] sm:$0xff] %vm737, %v6559
        %6576 = vst.msk [vmem:[#allocation2 + $0x58] sm:$0xff] %vm737, %v6560
        %6577 = vst.msk [vmem:[#allocation2 + $0x60] sm:$0xff] %vm737, %v6561
        %6578 = vst.msk [vmem:[#allocation2 + $0x68] sm:$0xff] %vm737, %v6562
        %6579 = vst.msk [vmem:[#allocation2 + $0x70] sm:$0xff] %vm737, %v6563
        %6580 = vst.msk [vmem:[#allocation2 + $0x78] sm:$0xff] %vm737, %v6564
        %v6581 = vld [vmem:[%s10] sm:$0xff]
        %v6582 = vld [vmem:[%s10 + $0x8] sm:$0xff]
        %v6583 = vld [vmem:[#allocation2] sm:$0xff]
        %v6584 = vld [vmem:[#allocation2 + $0x8] sm:$0xff]
        %v6585 = vld [vmem:[#allocation2 + $0x10] sm:$0xff]
        %v6586 = vld [vmem:[#allocation2 + $0x18] sm:$0xff]
        %v6587 = vld [vmem:[#allocation2 + $0x20] sm:$0xff]
        %v6588 = vld [vmem:[#allocation2 + $0x28] sm:$0xff]
        %v6589 = vld [vmem:[#allocation2 + $0x30] sm:$0xff]
        %v6590 = vld [vmem:[#allocation2 + $0x38] sm:$0xff]
        %v6591 = vld [vmem:[#allocation2 + $0x40] sm:$0xff]
        %v6592 = vld [vmem:[#allocation2 + $0x48] sm:$0xff]
        %v6593 = vld [vmem:[#allocation2 + $0x50] sm:$0xff]
        %v6594 = vld [vmem:[#allocation2 + $0x58] sm:$0xff]
        %v6595 = vld [vmem:[#allocation2 + $0x60] sm:$0xff]
        %v6596 = vld [vmem:[#allocation2 + $0x68] sm:$0xff]
        %v6597 = vld [vmem:[#allocation2 + $0x70] sm:$0xff]
        %v6598 = vld [vmem:[#allocation2 + $0x78] sm:$0xff]
        %6599 = vmatprep.subr.mxu0 0.0
        %6600 = vmatpush1.msra.mxu0 %v6583
        %6601 = vmatprep.subr.mxu0 0.0
        %6602 = vmatpush1.msra.mxu0 %v6584
        %6603 = vmatprep.subr.mxu0 0.0
        %6604 = vmatpush1.msra.mxu0 %v6585
        %6605 = vmatprep.subr.mxu0 0.0
        %6606 = vmatpush1.msra.mxu0 %v6586
        %6607 = vmatprep.subr.mxu0 0.0
        %6608 = vmatpush1.msra.mxu0 %v6587
        %6609 = vmatprep.subr.mxu0 0.0
        %6610 = vmatpush1.msra.mxu0 %v6588
        %6611 = vmatprep.subr.mxu0 0.0
        %6612 = vmatpush1.msra.mxu0 %v6589
        %6613 = vmatprep.subr.mxu0 0.0
        %6614 = vmatpush1.msra.mxu0 %v6590
        %6615 = vmatprep.subr.mxu0 0.0
        %6616 = vmatpush1.msra.mxu0 %v6591
        %6617 = vmatprep.subr.mxu0 0.0
        %6618 = vmatpush1.msra.mxu0 %v6592
        %6619 = vmatprep.subr.mxu0 0.0
        %6620 = vmatpush1.msra.mxu0 %v6593
        %6621 = vmatprep.subr.mxu0 0.0
        %6622 = vmatpush1.msra.mxu0 %v6594
        %6623 = vmatprep.subr.mxu0 0.0
        %6624 = vmatpush1.msra.mxu0 %v6595
        %6625 = vmatprep.subr.mxu0 0.0
        %6626 = vmatpush1.msra.mxu0 %v6596
        %6627 = vmatprep.subr.mxu0 0.0
        %6628 = vmatpush1.msra.mxu0 %v6597
        %6629 = vmatprep.subr.mxu0 0.0
        %6630 = vmatpush1.msra.mxu0 %v6598
        %6631 = vmatprep.subr.mxu0 0.0
        %6632 = vmatpush1.msra.mxu0 0.0
        %6633 = vmatprep.subr.mxu0 0.0
        %6634 = vmatpush1.msra.mxu0 0.0
        %6635 = vmatprep.subr.mxu0 0.0
        %6636 = vmatpush1.msra.mxu0 0.0
        %6637 = vmatprep.subr.mxu0 0.0
        %6638 = vmatpush1.msra.mxu0 0.0
        %6639 = vmatprep.subr.mxu0 0.0
        %6640 = vmatpush1.msra.mxu0 0.0
        %6641 = vmatprep.subr.mxu0 0.0
        %6642 = vmatpush1.msra.mxu0 0.0
        %6643 = vmatprep.subr.mxu0 0.0
        %6644 = vmatpush1.msra.mxu0 0.0
        %6645 = vmatprep.subr.mxu0 0.0
        %6646 = vmatpush1.msra.mxu0 0.0
        %6647 = vmatprep.subr.mxu0 0.0
        %6648 = vmatpush1.msra.mxu0 0.0
        %6649 = vmatprep.subr.mxu0 0.0
        %6650 = vmatpush1.msra.mxu0 0.0
        %6651 = vmatprep.subr.mxu0 0.0
        %6652 = vmatpush1.msra.mxu0 0.0
        %6653 = vmatprep.subr.mxu0 0.0
        %6654 = vmatpush1.msra.mxu0 0.0
        %6655 = vmatprep.subr.mxu0 0.0
        %6656 = vmatpush1.msra.mxu0 0.0
        %6657 = vmatprep.subr.mxu0 0.0
        %6658 = vmatpush1.msra.mxu0 0.0
        %6659 = vmatprep.subr.mxu0 0.0
        %6660 = vmatpush1.msra.mxu0 0.0
        %6661 = vmatprep.subr.mxu0 0.0
        %6662 = vmatpush1.msra.mxu0 0.0
        %6663 = vmatprep.mubr.f32.mxu0 0.0
        %6664 = vmatmul.mubr.f32.gmra.mrb[0].mxu0 %v6581
        %v6665 = vpop.f32.mrb[0].mxu0
        %v6666 = vadd.f32 0.0, %v6665
        %v6667 = vpop.f32.mrb[0].mxu0
        %6668 = vmatprep.mubr.f32.mxu0 0.0
        %6669 = vmatmul.mubr.f32.gmra.mrb[0].mxu0 %v6582
        %v6670 = vpop.f32.mrb[0].mxu0
        %v6671 = vadd.f32 0.0, %v6670
        %v6672 = vpop.f32.mrb[0].mxu0
        %6673 = vdwg.mxu0
        %6674 = vst.msk [vmem:[%s380] sm:$0xff] %vm737, %v6666
        %6675 = vst.msk [vmem:[%s380 + $0x8] sm:$0xff] %vm737, %v6671
        %s6676 = sand.u32 %s269, 1
        %s6677 = scalar_lea.sflag [#allocation6], %s6676
        %s6678 = sand.u32 %s269, 1
        %s6679 = smul.addr %s6678, 16
        %s6680 = scalar_lea.vmem [#allocation5], %s6679
        // Predicated region
        $region65: #{tpu_custom_call.1} parent=63 // pred_check
          %p6681 = pneg %p279
        $region66: #{tpu_custom_call.1} parent=63 // pred_check_branch
          %6683 = sbr.rel (%p6681) target = $region68
        $region67: #{tpu_custom_call.1} parent=63 // pred_region
          %s6684 = smul.u32 2, %s25
          %s6686 = ssub.s32 256, 256
          %6687 = vsyncadd %s6677, %s6686
          %s6688 = smul.addr %s6684, 128
          %s6689 = scalar_lea.hbm %s11, %s6688
          %s6690 = sshll.u32 %s6680, 4
          %s6691 = int_to_ptr.vmem [resolvable:$true] %s6690
          %6696 = dma.vmem_to_hbm [thread:$0]  %s6691, 256, %s6689, %s6677, 128, 128, 8
        $region68: #{tpu_custom_call.1} parent=63 // pred_fallthru
          _
      $region64: #{tpu_custom_call.1} parent=5 // pred_fallthru
        _
      %p6697 = scmp.le.s32.totalorder 2, %s20
      // Predicated region
      $region69: #{tpu_custom_call.1} parent=5 // pred_check
        %p6698 = pneg %p6697
      $region70: #{tpu_custom_call.1} parent=5 // pred_check_branch
        %6700 = sbr.rel (%p6698) target = $region72
      $region71: #{tpu_custom_call.1} parent=5 // pred_region
        %s6701 = ssub.s32 %s20, 2
        // Predicated region
        $region73: #{tpu_custom_call.1} parent=71 // pred_check
          %p6702 = pneg %p285
        $region74: #{tpu_custom_call.1} parent=71 // pred_check_branch
          %6704 = sbr.rel (%p6702) target = $region76
        $region75: #{tpu_custom_call.1} parent=71 // pred_region
          %s6705 = sand.u32 %s270, 1
          %s6706 = scalar_lea.sflag [#allocation6], %s6705
          %s6707 = sand.u32 %s270, 1
          %s6708 = smul.addr %s6707, 16
          %s6709 = scalar_lea.vmem [#allocation5], %s6708
          %6710 = dma.done %s6706, 256
        $region76: #{tpu_custom_call.1} parent=71 // pred_fallthru
          _
      $region72: #{tpu_custom_call.1} parent=5 // pred_fallthru
        _
    $region6: #{tpu_custom_call.1} parent=1 // loop_footer
      %s24 = sadd.s32 1, %s20
    $region7: #{tpu_custom_call.1} parent=1 // loop_footer_branch
      %19 = sbr.rel target = $region3
    $region8: #{tpu_custom_call.1} parent=1 // loop_exit
      _
    %6711 = vsyncpa [#allocation6], 1
    %s6712 = scalar_lea.sflag [#allocation6], 1
    %6713 = vsyncpa %s6712, 1

</llo_original>
